<compile_context>
chip_gen: v7x
topology: tpu7x:2x2x1
jax: 0.10.0
libtpu: 0.0.40
codegen_flags: <defaults>
</compile_context>

<pallas_src>
import jax
import jax.numpy as jnp
from jax.experimental import pallas as pl
from jax.experimental.pallas import tpu as pltpu

IN_FEATS = 3 * 128 * 128 + 4          # 49156 (image features + 4-way one-hot)
H1, H2, OUT = 512, 256, 2
TK = 7040                             # K tile (multiple of 128), 7 grid steps
K_PAD = 49280                         # 7 * 7040; zero-pad keeps the sum exact


def mlp_kernel(x_ref, w1_ref, b1_ref, w2_ref, b2_ref, w3_ref, b3_ref,
               o_ref, acc_ref):
    k = pl.program_id(0)

    @pl.when(k == 0)
    def _():
        acc_ref[...] = jnp.zeros_like(acc_ref)

    # Layer-1 partial matmul over this K tile (bf16 operands, f32 accumulate).
    start = pl.multiple_of(k * TK, 128)
    x_tile = x_ref[:, pl.ds(start, TK)]
    acc_ref[...] += jnp.dot(x_tile, w1_ref[...],
                            preferred_element_type=jnp.float32)

    @pl.when(k == pl.num_programs(0) - 1)
    def _():
        h1 = jnp.maximum(acc_ref[...] + b1_ref[...], 0.0)          # ReLU
        h2 = jnp.maximum(
            jnp.dot(h1, w2_ref[...], preferred_element_type=jnp.float32)
            + b2_ref[...], 0.0)                                     # ReLU
        o_ref[...] = (jnp.dot(h2, w3_ref[...],
                              preferred_element_type=jnp.float32)
                      + b3_ref[...]).astype(o_ref.dtype)


def prepare_params(params):
    """One-time kernel-side param prep: pad w1 along K and cast to bf16.

    Done once (outside the forward path) so no per-call pad/cast traffic.
    """
    w1, b1, w2, b2, w3, b3 = params
    w1p = jnp.pad(w1, ((0, K_PAD - IN_FEATS), (0, 0))).astype(jnp.bfloat16)
    return (w1p, b1, w2, b2, w3, b3)


def mlp_forward(img, action, kernel_params):
    """img: (B, 3, 128, 128) float32; action: (B,) integer in [0, 4)."""
    w1p, b1, w2, b2, w3, b3 = kernel_params
    B = img.shape[0]

    # --- plain-JAX glue: flatten, one-hot, concat, pad K, cast to bf16 ---
    x = img.reshape(B, -1)
    action_onehot = jax.nn.one_hot(action.astype(jnp.int32), 4, dtype=x.dtype)
    x = jnp.concatenate([x, action_onehot], axis=1)                 # (B, 49156)
    x = jnp.pad(x, ((0, 0), (0, K_PAD - IN_FEATS)))                 # (B, 49280)
    x = x.astype(jnp.bfloat16)                                      # ~200 KB

    return pl.pallas_call(
        mlp_kernel,
        out_shape=jax.ShapeDtypeStruct((B, OUT), jnp.float32),
        grid_spec=pltpu.PrefetchScalarGridSpec(
            num_scalar_prefetch=0,
            grid=(K_PAD // TK,),
            in_specs=[
                pl.BlockSpec((B, K_PAD), lambda k: (0, 0)),   # x (resident)
                pl.BlockSpec((TK, H1), lambda k: (k, 0)),     # w1 tile (bf16 stream)
                pl.BlockSpec((1, H1), lambda k: (0, 0)),      # b1 (resident)
                pl.BlockSpec((H1, H2), lambda k: (0, 0)),     # w2 (resident)
                pl.BlockSpec((1, H2), lambda k: (0, 0)),      # b2
                pl.BlockSpec((H2, OUT), lambda k: (0, 0)),    # w3
                pl.BlockSpec((1, OUT), lambda k: (0, 0)),     # b3
            ],
            out_specs=pl.BlockSpec((B, OUT), lambda k: (0, 0)),
            scratch_shapes=[pltpu.VMEM((B, H1), jnp.float32)],  # layer-1 acc
        ),
        compiler_params=pltpu.CompilerParams(
            dimension_semantics=("arbitrary",)),
    )(x, w1p, b1, w2, b2, w3, b3)


def init_params(key):
    """Deterministic synthetic init (uniform, fan_in-scaled like nn.Linear).

    Weights stored (in, out), i.e. transposed vs PyTorch nn.Linear's (out, in).
    """
    def linear(key, fan_in, fan_out):
        kw, kb = jax.random.split(key)
        bound = 1.0 / jnp.sqrt(fan_in)
        w = jax.random.uniform(kw, (fan_in, fan_out), jnp.float32,
                               -bound, bound)
        b = jax.random.uniform(kb, (1, fan_out), jnp.float32, -bound, bound)
        return w, b

    k1, k2, k3 = jax.random.split(key, 3)
    w1, b1 = linear(k1, IN_FEATS, H1)
    w2, b2 = linear(k2, H1, H2)
    w3, b3 = linear(k3, H2, OUT)
    return (w1, b1, w2, b2, w3, b3)


def mlp_reference(img, action, params):
    """Pure-JAX f32 reference for correctness checking."""
    w1, b1, w2, b2, w3, b3 = params
    B = img.shape[0]
    x = img.reshape(B, -1)
    x = jnp.concatenate(
        [x, jax.nn.one_hot(action.astype(jnp.int32), 4, dtype=x.dtype)], axis=1)
    h1 = jnp.maximum(x @ w1 + b1, 0.0)
    h2 = jnp.maximum(h1 @ w2 + b2, 0.0)
    return h2 @ w3 + b3


if __name__ == "__main__":
    key = jax.random.PRNGKey(0)
    k_img, k_act, k_params = jax.random.split(key, 3)

    B = 2
    img = jax.random.normal(k_img, (B, 3, 128, 128), jnp.float32)
    action = jax.random.randint(k_act, (B,), 0, 4, jnp.int32)
    params = init_params(k_params)
    kernel_params = prepare_params(params)   # one-time pad + bf16 cast of w1
    kernel_params = jax.block_until_ready(kernel_params)

    out = mlp_forward(img, action, kernel_params)
    out = jax.block_until_ready(out)

    ref = mlp_reference(img, action, params)
    assert out.shape == (B, 2)
    # bf16 streaming of x/w1 (f32 accumulation) -> loosened tolerance.
    assert jnp.allclose(out, ref, atol=2e-2, rtol=2e-2), (out, ref)

    print("KERNEL_OK")
</pallas_src>

<mosaic_0001>
module attributes {stable_mosaic.version = 11 : i64} {
  func.func @mlp_kernel(%arg0: i32, %arg1: memref<2x49280xbf16, #tpu.memory_space<vmem>>, %arg2: memref<7040x512xbf16, #tpu.memory_space<vmem>>, %arg3: memref<1x512xf32, #tpu.memory_space<vmem>>, %arg4: memref<512x256xf32, #tpu.memory_space<vmem>>, %arg5: memref<1x256xf32, #tpu.memory_space<vmem>>, %arg6: memref<256x2xf32, #tpu.memory_space<vmem>>, %arg7: memref<1x2xf32, #tpu.memory_space<vmem>>, %arg8: memref<2x2xf32, #tpu.memory_space<vmem>>, %arg9: memref<2x512xf32, #tpu.memory_space<vmem>>) attributes {dimension_semantics = [#tpu.dimension_semantics<arbitrary>], iteration_bounds = array<i64: 7>, scalar_prefetch = 0 : i64, scratch_operands = 1 : i64, tpu.core_type = #tpu.core_type<tc>, window_params = [{pipeline_mode = #tpu.pipeline_mode<synchronous>, transform_indices = @transform_0, window_bounds = array<i64: 2, 49280>}, {transform_indices = @transform_1, window_bounds = array<i64: 7040, 512>}, {pipeline_mode = #tpu.pipeline_mode<synchronous>, transform_indices = @transform_2, window_bounds = array<i64: 1, 512>}, {pipeline_mode = #tpu.pipeline_mode<synchronous>, transform_indices = @transform_3, window_bounds = array<i64: 512, 256>}, {pipeline_mode = #tpu.pipeline_mode<synchronous>, transform_indices = @transform_4, window_bounds = array<i64: 1, 256>}, {pipeline_mode = #tpu.pipeline_mode<synchronous>, transform_indices = @transform_5, window_bounds = array<i64: 256, 2>}, {pipeline_mode = #tpu.pipeline_mode<synchronous>, transform_indices = @transform_6, window_bounds = array<i64: 1, 2>}, {pipeline_mode = #tpu.pipeline_mode<synchronous>, transform_indices = @transform_7, window_bounds = array<i64: 2, 2>}]} {
    %c0_i32 = arith.constant 0 : i32
    %0 = arith.cmpi eq, %arg0, %c0_i32 : i32
    %1 = arith.extui %0 : i1 to i32
    %c0_i32_0 = arith.constant 0 : i32
    %2 = arith.cmpi ne, %1, %c0_i32_0 : i32
    scf.if %2 {
      %cst_8 = arith.constant 0.000000e+00 : f32
      %15 = vector.broadcast %cst_8 : f32 to vector<2x512xf32>
      %c0_9 = arith.constant 0 : index
      %c0_10 = arith.constant 0 : index
      %16 = vector.load %arg9[%c0_9, %c0_10] : memref<2x512xf32, #tpu.memory_space<vmem>>, vector<2x512xf32>
      tpu.vector_store %arg9[%c0_9, %c0_10], %15 {strides = array<i32>} : memref<2x512xf32, #tpu.memory_space<vmem>>, vector<2x512xf32>,
    } else {
    }
    %c7040_i32 = arith.constant 7040 : i32
    %3 = arith.muli %arg0, %c7040_i32 : i32
    %4 = tpu.assume_multiple %3, 128 : i32
    %c0 = arith.constant 0 : index
    %5 = arith.index_cast %4 : i32 to index
    %6 = vector.load %arg1[%c0, %5] : memref<2x49280xbf16, #tpu.memory_space<vmem>>, vector<2x7040xbf16>
    %c0_1 = arith.constant 0 : index
    %c0_2 = arith.constant 0 : index
    %7 = vector.load %arg9[%c0_1, %c0_2] : memref<2x512xf32, #tpu.memory_space<vmem>>, vector<2x512xf32>
    %c0_3 = arith.constant 0 : index
    %c0_4 = arith.constant 0 : index
    %8 = vector.load %arg2[%c0_3, %c0_4] : memref<7040x512xbf16, #tpu.memory_space<vmem>>, vector<7040x512xbf16>
    %cst = arith.constant dense<0.000000e+00> : vector<2x512xf32>
    %9 = tpu.matmul %6, %8, %cst {dimension_numbers = #tpu.dot_dimension_numbers<[1], [0], [0], [1], [0, 0, 1, 1], [], []>} : vector<2x7040xbf16>, vector<7040x512xbf16>, vector<2x512xf32> -> vector<2x512xf32>
    %10 = arith.addf %7, %9 : vector<2x512xf32>
    %c0_5 = arith.constant 0 : index
    %c0_6 = arith.constant 0 : index
    %11 = vector.load %arg9[%c0_5, %c0_6] : memref<2x512xf32, #tpu.memory_space<vmem>>, vector<2x512xf32>
    tpu.vector_store %arg9[%c0_5, %c0_6], %10 {strides = array<i32>} : memref<2x512xf32, #tpu.memory_space<vmem>>, vector<2x512xf32>,
    %c6_i32 = arith.constant 6 : i32
    %12 = arith.cmpi eq, %arg0, %c6_i32 : i32
    %13 = arith.extui %12 : i1 to i32
    %c0_i32_7 = arith.constant 0 : i32
    %14 = arith.cmpi ne, %13, %c0_i32_7 : i32
    scf.if %14 {
      %c0_8 = arith.constant 0 : index
      %c0_9 = arith.constant 0 : index
      %15 = vector.load %arg9[%c0_8, %c0_9] : memref<2x512xf32, #tpu.memory_space<vmem>>, vector<2x512xf32>
      %c0_10 = arith.constant 0 : index
      %c0_11 = arith.constant 0 : index
      %16 = vector.load %arg3[%c0_10, %c0_11] : memref<1x512xf32, #tpu.memory_space<vmem>>, vector<1x512xf32>
      %17 = vector.broadcast %16 : vector<1x512xf32> to vector<2x512xf32>
      %18 = arith.addf %15, %17 : vector<2x512xf32>
      %cst_12 = arith.constant 0.000000e+00 : f32
      %19 = vector.broadcast %cst_12 : f32 to vector<2x512xf32>
      %20 = arith.maximumf %18, %19 : vector<2x512xf32>
      %c0_13 = arith.constant 0 : index
      %c0_14 = arith.constant 0 : index
      %21 = vector.load %arg4[%c0_13, %c0_14] : memref<512x256xf32, #tpu.memory_space<vmem>>, vector<512x256xf32>
      %cst_15 = arith.constant dense<0.000000e+00> : vector<2x256xf32>
      %22 = tpu.matmul %20, %21, %cst_15 {dimension_numbers = #tpu.dot_dimension_numbers<[1], [0], [0], [1], [0, 0, 1, 1], [], []>} : vector<2x512xf32>, vector<512x256xf32>, vector<2x256xf32> -> vector<2x256xf32>
      %c0_16 = arith.constant 0 : index
      %c0_17 = arith.constant 0 : index
      %23 = vector.load %arg5[%c0_16, %c0_17] : memref<1x256xf32, #tpu.memory_space<vmem>>, vector<1x256xf32>
      %24 = vector.broadcast %23 : vector<1x256xf32> to vector<2x256xf32>
      %25 = arith.addf %22, %24 : vector<2x256xf32>
      %cst_18 = arith.constant 0.000000e+00 : f32
      %26 = vector.broadcast %cst_18 : f32 to vector<2x256xf32>
      %27 = arith.maximumf %25, %26 : vector<2x256xf32>
      %c0_19 = arith.constant 0 : index
      %c0_20 = arith.constant 0 : index
      %28 = vector.load %arg6[%c0_19, %c0_20] : memref<256x2xf32, #tpu.memory_space<vmem>>, vector<256x2xf32>
      %cst_21 = arith.constant dense<0.000000e+00> : vector<2x2xf32>
      %29 = tpu.matmul %27, %28, %cst_21 {dimension_numbers = #tpu.dot_dimension_numbers<[1], [0], [0], [1], [0, 0, 1, 1], [], []>} : vector<2x256xf32>, vector<256x2xf32>, vector<2x2xf32> -> vector<2x2xf32>
      %c0_22 = arith.constant 0 : index
      %c0_23 = arith.constant 0 : index
      %30 = vector.load %arg7[%c0_22, %c0_23] : memref<1x2xf32, #tpu.memory_space<vmem>>, vector<1x2xf32>
      %31 = vector.broadcast %30 : vector<1x2xf32> to vector<2x2xf32>
      %32 = arith.addf %29, %31 : vector<2x2xf32>
      %c0_24 = arith.constant 0 : index
      %c0_25 = arith.constant 0 : index
      %33 = vector.load %arg8[%c0_24, %c0_25] : memref<2x2xf32, #tpu.memory_space<vmem>>, vector<2x2xf32>
      tpu.vector_store %arg8[%c0_24, %c0_25], %32 {strides = array<i32>} : memref<2x2xf32, #tpu.memory_space<vmem>>, vector<2x2xf32>,
    } else {
    }
    return
  }
  func.func @transform_0(%arg0: i32) -> (i32, i32) {
    %c0_i32 = arith.constant 0 : i32
    %c0_i32_0 = arith.constant 0 : i32
    %c0_i32_1 = arith.constant 0 : i32
    return %c0_i32, %c0_i32_0 : i32, i32
  }
  func.func @transform_1(%arg0: i32) -> (i32, i32) {
    %c0_i32 = arith.constant 0 : i32
    %c0_i32_0 = arith.constant 0 : i32
    return %arg0, %c0_i32 : i32, i32
  }
  func.func @transform_2(%arg0: i32) -> (i32, i32) {
    %c0_i32 = arith.constant 0 : i32
    %c0_i32_0 = arith.constant 0 : i32
    %c0_i32_1 = arith.constant 0 : i32
    return %c0_i32, %c0_i32_0 : i32, i32
  }
  func.func @transform_3(%arg0: i32) -> (i32, i32) {
    %c0_i32 = arith.constant 0 : i32
    %c0_i32_0 = arith.constant 0 : i32
    %c0_i32_1 = arith.constant 0 : i32
    return %c0_i32, %c0_i32_0 : i32, i32
  }
  func.func @transform_4(%arg0: i32) -> (i32, i32) {
    %c0_i32 = arith.constant 0 : i32
    %c0_i32_0 = arith.constant 0 : i32
    %c0_i32_1 = arith.constant 0 : i32
    return %c0_i32, %c0_i32_0 : i32, i32
  }
  func.func @transform_5(%arg0: i32) -> (i32, i32) {
    %c0_i32 = arith.constant 0 : i32
    %c0_i32_0 = arith.constant 0 : i32
    %c0_i32_1 = arith.constant 0 : i32
    return %c0_i32, %c0_i32_0 : i32, i32
  }
  func.func @transform_6(%arg0: i32) -> (i32, i32) {
    %c0_i32 = arith.constant 0 : i32
    %c0_i32_0 = arith.constant 0 : i32
    %c0_i32_1 = arith.constant 0 : i32
    return %c0_i32, %c0_i32_0 : i32, i32
  }
  func.func @transform_7(%arg0: i32) -> (i32, i32) {
    %c0_i32 = arith.constant 0 : i32
    %c0_i32_0 = arith.constant 0 : i32
    %c0_i32_1 = arith.constant 0 : i32
    return %c0_i32, %c0_i32_0 : i32, i32
  }
}

</mosaic_0001>

<llo_original>
// kernel: tpu_custom_call.1
$region0: #{tpu_custom_call.1}
  #allocation0 [shape = 'u32[]', space=smem, size = 0x4, offset = 0x4, fixed_abs, tag = 'smem constant byte address 0x4 - core index']
  #allocation1 [shape = 'u32[144,128]{1,0:T(1,128)}', space=vmem, size = 0x12000, scoped, tag = 'internal scratch']
  #allocation2 [shape = 'f32[2,512]{1,0:T(2,128)}', space=vmem, size = 0x1000, scoped, tag = 'scratch operand']
  %s0 = inlined_call_operand.hbm [shape: bf16[2,49280], index: 0, kind: input, shape index: {}]
  %s1 = inlined_call_operand.hbm [shape: bf16[49280,512], index: 1, kind: input, shape index: {}]
  %s2 = inlined_call_operand.hbm [shape: f32[1,512], index: 2, kind: input, shape index: {}]
  %s3 = inlined_call_operand.hbm [shape: f32[512,256], index: 3, kind: input, shape index: {}]
  %s4 = inlined_call_operand.hbm [shape: f32[1,256], index: 4, kind: input, shape index: {}]
  %s5 = inlined_call_operand.vmem [shape: f32[256,2], index: 5, kind: input, shape index: {}]
  %s6 = inlined_call_operand.hbm [shape: f32[1,2], index: 6, kind: input, shape index: {}]
  %s7 = inlined_call_operand.hbm [shape: f32[2,2], index: 7, kind: output, shape index: {}]
  %s8 = sld [smem:[#allocation0]]
  $region93: #{tpu_custom_call.1} parent=0
    _
  %s10 = ssub.s32 1, %s8
  %s11 = scalar_select 0, %s10, %s8
  $region1: #{tpu_custom_call.1} parent=0
    #allocation3 [shape = 'u8[197120]{0}', space=vmem, size = 0x30400, scoped, tag = 'input window, operand 0, single buffered']
    #allocation4 [shape = 's32[2]{0}', space=sflag, size = 0x8, scoped, tag = 'scoped memory for tpu_custom_call.1']
    #allocation5 [shape = 's32[2]{0}', space=sflag, size = 0x8, scoped, tag = 'scoped memory for tpu_custom_call.1']
    #allocation6 [shape = 'u8[14417920]{0}', space=vmem, size = 0xdc0000, scoped, tag = 'input window, operand 1']
    #allocation7 [shape = 's32[2]{0}', space=sflag, size = 0x8, scoped, tag = 'scoped memory for tpu_custom_call.1']
    #allocation8 [shape = 'u8[2048]{0}', space=vmem, size = 0x800, scoped, tag = 'input window, operand 2, single buffered']
    #allocation9 [shape = 'u8[524288]{0}', space=vmem, size = 0x80000, scoped, tag = 'input window, operand 3, single buffered']
    #allocation10 [shape = 's32[1]{0}', space=sflag, size = 0x4, scoped, tag = 'scoped memory for tpu_custom_call.1']
    #allocation11 [shape = 'u8[1024]{0}', space=vmem, size = 0x400, scoped, tag = 'input window, operand 4, single buffered']
    #allocation12 [shape = 'u8[512]{0}', space=vmem, size = 0x400, scoped, tag = 'input window, operand 6, single buffered']
    #allocation13 [shape = 's32[1]{0}', space=sflag, size = 0x4, scoped, tag = 'scoped memory for tpu_custom_call.1']
    #allocation14 [shape = 'u8[1024]{0}', space=vmem, size = 0x400, scoped, tag = 'output window, operand 0, single buffered']
    %12 = vsyncpa [#allocation4], 0
    %13 = vsyncpa [#allocation7], 0
    %s14 = scalar_lea.sflag [#allocation7], 1
    %15 = vsyncpa %s14, 0
    %16 = vsyncpa [#allocation10], 0
    %17 = vsyncpa [#allocation13], 0
    %18 = vsyncpa [#allocation5], 0
    loop: start=0, step=1, limit=9
    $region2: #{tpu_custom_call.1} parent=1 // loop_pre_header
      _
    $region3: #{tpu_custom_call.1} parent=1 // loop_header
      %s20 = sphi 0, %s24
      %p21 = scmp.ge.s32.totalorder %s20, 9
      %s28 = sphi 0, %s28
      %s30 = sphi 0, %s28
      %s31 = sphi 0, %s30
      %s45 = sphi 0, %s31
      %s51 = sphi 0, %s53
      %s54 = sphi 0, %s51
      %s55 = sphi 0, %s54
      %s71 = sphi 0, %s55
      %s75 = sphi 0, %s75
      %s77 = sphi 0, %s75
      %s78 = sphi 0, %s77
      %s92 = sphi 0, %s78
      %s96 = sphi 0, %s96
      %s98 = sphi 0, %s96
      %s99 = sphi 0, %s98
      %s113 = sphi 0, %s99
      %s117 = sphi 0, %s117
      %s119 = sphi 0, %s117
      %s120 = sphi 0, %s119
      %s134 = sphi 0, %s120
      %s138 = sphi 0, %s138
      %s140 = sphi 0, %s138
      %s141 = sphi 0, %s140
      %s155 = sphi 0, %s141
      %s159 = sphi 0, %s159
      %s161 = sphi 0, %s159
      %s162 = sphi 0, %s161
      %s176 = sphi 0, %s162
      %s180 = sphi 0, %s180
      %s182 = sphi 0, %s180
      %s183 = sphi 0, %s182
      %s197 = sphi 0, %s183
    $region4: #{tpu_custom_call.1} parent=1 // loop_header_branch
      %23 = sbr.rel (%p21) target = $region8
    $region5: #{tpu_custom_call.1} parent=1 // loop_body
      %s25 = ssub.s32 %s20, 1
      %s26 = ssub.s32 %s20, 2
      %s27 = sadd.s32 %s20, 1
      %s29 = sadd.s32 %s28, 1
      %p32 = scmp.eq.s32.totalorder %s20, 6
      %p33 = scmp.ne.s32.totalorder %s28, %s30
      %p34 = scmp.eq.s32.totalorder %s20, 0
      %p35 = por %p33, %p34
      %p36 = scmp.ne.s32.totalorder %s28, %s30
      %p37 = scmp.eq.s32.totalorder %s25, 6
      %p38 = por %p36, %p37
      %p39 = scmp.ne.s32.totalorder %s30, %s31
      %p40 = scmp.eq.s32.totalorder %s25, 0
      %p41 = por %p39, %p40
      %p42 = scmp.ne.s32.totalorder %s30, %s31
      %p43 = scmp.eq.s32.totalorder %s26, 6
      %p44 = por %p42, %p43
      %p46 = scmp.ne.s32.totalorder %s31, %s45
      %p47 = scmp.eq.s32.totalorder %s26, 0
      %p48 = por %p46, %p47
      %s49 = ssub.s32 %s20, %s27
      %p50 = scmp.eq.s32.totalorder %s49, 0
      %s52 = sadd.s32 %s51, 1
      %s53 = scalar_select %p50, %s51, %s52
      %p56 = pneg %p50
      %p57 = scmp.eq.s32.totalorder %s20, 6
      %p58 = por %p56, %p57
      %p59 = scmp.ne.s32.totalorder %s51, %s54
      %p60 = scmp.eq.s32.totalorder %s20, 0
      %p61 = por %p59, %p60
      %p62 = scmp.ne.s32.totalorder %s51, %s54
      %p63 = scmp.eq.s32.totalorder %s25, 6
      %p64 = por %p62, %p63
      %p65 = scmp.ne.s32.totalorder %s54, %s55
      %p66 = scmp.eq.s32.totalorder %s25, 0
      %p67 = por %p65, %p66
      %p68 = scmp.ne.s32.totalorder %s54, %s55
      %p69 = scmp.eq.s32.totalorder %s26, 6
      %p70 = por %p68, %p69
      %p72 = scmp.ne.s32.totalorder %s55, %s71
      %p73 = scmp.eq.s32.totalorder %s26, 0
      %p74 = por %p72, %p73
      %s76 = sadd.s32 %s75, 1
      %p79 = scmp.eq.s32.totalorder %s20, 6
      %p80 = scmp.ne.s32.totalorder %s75, %s77
      %p81 = scmp.eq.s32.totalorder %s20, 0
      %p82 = por %p80, %p81
      %p83 = scmp.ne.s32.totalorder %s75, %s77
      %p84 = scmp.eq.s32.totalorder %s25, 6
      %p85 = por %p83, %p84
      %p86 = scmp.ne.s32.totalorder %s77, %s78
      %p87 = scmp.eq.s32.totalorder %s25, 0
      %p88 = por %p86, %p87
      %p89 = scmp.ne.s32.totalorder %s77, %s78
      %p90 = scmp.eq.s32.totalorder %s26, 6
      %p91 = por %p89, %p90
      %p93 = scmp.ne.s32.totalorder %s78, %s92
      %p94 = scmp.eq.s32.totalorder %s26, 0
      %p95 = por %p93, %p94
      %s97 = sadd.s32 %s96, 1
      %p100 = scmp.eq.s32.totalorder %s20, 6
      %p101 = scmp.ne.s32.totalorder %s96, %s98
      %p102 = scmp.eq.s32.totalorder %s20, 0
      %p103 = por %p101, %p102
      %p104 = scmp.ne.s32.totalorder %s96, %s98
      %p105 = scmp.eq.s32.totalorder %s25, 6
      %p106 = por %p104, %p105
      %p107 = scmp.ne.s32.totalorder %s98, %s99
      %p108 = scmp.eq.s32.totalorder %s25, 0
      %p109 = por %p107, %p108
      %p110 = scmp.ne.s32.totalorder %s98, %s99
      %p111 = scmp.eq.s32.totalorder %s26, 6
      %p112 = por %p110, %p111
      %p114 = scmp.ne.s32.totalorder %s99, %s113
      %p115 = scmp.eq.s32.totalorder %s26, 0
      %p116 = por %p114, %p115
      %s118 = sadd.s32 %s117, 1
      %p121 = scmp.eq.s32.totalorder %s20, 6
      %p122 = scmp.ne.s32.totalorder %s117, %s119
      %p123 = scmp.eq.s32.totalorder %s20, 0
      %p124 = por %p122, %p123
      %p125 = scmp.ne.s32.totalorder %s117, %s119
      %p126 = scmp.eq.s32.totalorder %s25, 6
      %p127 = por %p125, %p126
      %p128 = scmp.ne.s32.totalorder %s119, %s120
      %p129 = scmp.eq.s32.totalorder %s25, 0
      %p130 = por %p128, %p129
      %p131 = scmp.ne.s32.totalorder %s119, %s120
      %p132 = scmp.eq.s32.totalorder %s26, 6
      %p133 = por %p131, %p132
      %p135 = scmp.ne.s32.totalorder %s120, %s134
      %p136 = scmp.eq.s32.totalorder %s26, 0
      %p137 = por %p135, %p136
      %s139 = sadd.s32 %s138, 1
      %p142 = scmp.eq.s32.totalorder %s20, 6
      %p143 = scmp.ne.s32.totalorder %s138, %s140
      %p144 = scmp.eq.s32.totalorder %s20, 0
      %p145 = por %p143, %p144
      %p146 = scmp.ne.s32.totalorder %s138, %s140
      %p147 = scmp.eq.s32.totalorder %s25, 6
      %p148 = por %p146, %p147
      %p149 = scmp.ne.s32.totalorder %s140, %s141
      %p150 = scmp.eq.s32.totalorder %s25, 0
      %p151 = por %p149, %p150
      %p152 = scmp.ne.s32.totalorder %s140, %s141
      %p153 = scmp.eq.s32.totalorder %s26, 6
      %p154 = por %p152, %p153
      %p156 = scmp.ne.s32.totalorder %s141, %s155
      %p157 = scmp.eq.s32.totalorder %s26, 0
      %p158 = por %p156, %p157
      %s160 = sadd.s32 %s159, 1
      %p163 = scmp.eq.s32.totalorder %s20, 6
      %p164 = scmp.ne.s32.totalorder %s159, %s161
      %p165 = scmp.eq.s32.totalorder %s20, 0
      %p166 = por %p164, %p165
      %p167 = scmp.ne.s32.totalorder %s159, %s161
      %p168 = scmp.eq.s32.totalorder %s25, 6
      %p169 = por %p167, %p168
      %p170 = scmp.ne.s32.totalorder %s161, %s162
      %p171 = scmp.eq.s32.totalorder %s25, 0
      %p172 = por %p170, %p171
      %p173 = scmp.ne.s32.totalorder %s161, %s162
      %p174 = scmp.eq.s32.totalorder %s26, 6
      %p175 = por %p173, %p174
      %p177 = scmp.ne.s32.totalorder %s162, %s176
      %p178 = scmp.eq.s32.totalorder %s26, 0
      %p179 = por %p177, %p178
      %s181 = sadd.s32 %s180, 1
      %p184 = scmp.eq.s32.totalorder %s20, 6
      %p185 = scmp.ne.s32.totalorder %s180, %s182
      %p186 = scmp.eq.s32.totalorder %s20, 0
      %p187 = por %p185, %p186
      %p188 = scmp.ne.s32.totalorder %s180, %s182
      %p189 = scmp.eq.s32.totalorder %s25, 6
      %p190 = por %p188, %p189
      %p191 = scmp.ne.s32.totalorder %s182, %s183
      %p192 = scmp.eq.s32.totalorder %s25, 0
      %p193 = por %p191, %p192
      %p194 = scmp.ne.s32.totalorder %s182, %s183
      %p195 = scmp.eq.s32.totalorder %s26, 6
      %p196 = por %p194, %p195
      %p198 = scmp.ne.s32.totalorder %s183, %s197
      %p199 = scmp.eq.s32.totalorder %s26, 0
      %p200 = por %p198, %p199
      %p201 = scmp.le.s32.totalorder 1, %s20
      %p202 = scmp.lt.s32.totalorder %s20, 8
      %p203 = pnand %p201, %p202
      %p204 = pneg %p203
      // Predicated region
      $region9: #{tpu_custom_call.1} parent=5 // pred_check
        _
      $region10: #{tpu_custom_call.1} parent=5 // pred_check_branch
        %206 = sbr.rel (%p203) target = $region12
      $region11: #{tpu_custom_call.1} parent=5 // pred_region
        %s207 = ssub.s32 %s20, 1
        // Predicated region
        $region13: #{tpu_custom_call.1} parent=11 // pred_check
          %p208 = pneg %p41
        $region14: #{tpu_custom_call.1} parent=11 // pred_check_branch
          %210 = sbr.rel (%p208) target = $region16
        $region15: #{tpu_custom_call.1} parent=11 // pred_region
          %s212 = ssub.s32 6160, 6160
          %213 = vsyncadd [#allocation4], %s212
          %s215 = sshll.u32 [#allocation3], 4
          %s216 = int_to_ptr.vmem [resolvable:$true] %s215
          %218 = dma.hbm_to_vmem [thread:$0]  %s0, 6160, %s216, [#allocation4]
        $region16: #{tpu_custom_call.1} parent=11 // pred_fallthru
          _
        // Predicated region
        $region17: #{tpu_custom_call.1} parent=11 // pred_check
          %p219 = pneg %p88
        $region18: #{tpu_custom_call.1} parent=11 // pred_check_branch
          %221 = sbr.rel (%p219) target = $region20
        $region19: #{tpu_custom_call.1} parent=11 // pred_region
          %s223 = ssub.s32 64, 64
          %224 = vsyncadd [#allocation7], %s223
          %s226 = sshll.u32 [#allocation8], 4
          %s227 = int_to_ptr.vmem [resolvable:$true] %s226
          %229 = dma.hbm_to_vmem [thread:$0]  %s2, 64, %s227, [#allocation7]
        $region20: #{tpu_custom_call.1} parent=11 // pred_fallthru
          _
        // Predicated region
        $region21: #{tpu_custom_call.1} parent=11 // pred_check
          %p230 = pneg %p109
        $region22: #{tpu_custom_call.1} parent=11 // pred_check_branch
          %232 = sbr.rel (%p230) target = $region24
        $region23: #{tpu_custom_call.1} parent=11 // pred_region
          %s234 = ssub.s32 16384, 16384
          %235 = vsyncadd [#allocation10], %s234
          %s236 = sshll.u32 [#allocation9], 4
          %s237 = int_to_ptr.vmem [resolvable:$true] %s236
          %242 = dma.hbm_to_vmem [thread:$0]  %s3, 16384, %s237, [#allocation10], 256, 256, 16
        $region24: #{tpu_custom_call.1} parent=11 // pred_fallthru
          _
        // Predicated region
        $region25: #{tpu_custom_call.1} parent=11 // pred_check
          %p243 = pneg %p130
        $region26: #{tpu_custom_call.1} parent=11 // pred_check_branch
          %245 = sbr.rel (%p243) target = $region28
        $region27: #{tpu_custom_call.1} parent=11 // pred_region
          %s247 = ssub.s32 32, 32
          %248 = vsyncadd [#allocation10], %s247
          %s250 = sshll.u32 [#allocation11], 4
          %s251 = int_to_ptr.vmem [resolvable:$true] %s250
          %253 = dma.hbm_to_vmem [thread:$0]  %s4, 32, %s251, [#allocation10]
        $region28: #{tpu_custom_call.1} parent=11 // pred_fallthru
          _
        // Predicated region
        $region29: #{tpu_custom_call.1} parent=11 // pred_check
          %p254 = pneg %p151
        $region30: #{tpu_custom_call.1} parent=11 // pred_check_branch
          %256 = sbr.rel (%p254) target = $region32
        $region31: #{tpu_custom_call.1} parent=11 // pred_region
          _
        $region32: #{tpu_custom_call.1} parent=11 // pred_fallthru
          _
        // Predicated region
        $region33: #{tpu_custom_call.1} parent=11 // pred_check
          %p257 = pneg %p172
        $region34: #{tpu_custom_call.1} parent=11 // pred_check_branch
          %259 = sbr.rel (%p257) target = $region36
        $region35: #{tpu_custom_call.1} parent=11 // pred_region
          %s261 = ssub.s32 16, 16
          %262 = vsyncadd [#allocation13], %s261
          %s264 = sshll.u32 [#allocation12], 4
          %s265 = int_to_ptr.vmem [resolvable:$true] %s264
          %267 = dma.hbm_to_vmem [thread:$0]  %s6, 16, %s265, [#allocation13]
        $region36: #{tpu_custom_call.1} parent=11 // pred_fallthru
          _
      $region12: #{tpu_custom_call.1} parent=5 // pred_fallthru
        _
      %p268 = scmp.lt.s32.totalorder %s20, 7
      // Predicated region
      $region37: #{tpu_custom_call.1} parent=5 // pred_check
        %p269 = pneg %p268
      $region38: #{tpu_custom_call.1} parent=5 // pred_check_branch
        %271 = sbr.rel (%p269) target = $region40
      $region39: #{tpu_custom_call.1} parent=5 // pred_region
        // Predicated region
        $region41: #{tpu_custom_call.1} parent=39 // pred_check
          %p272 = pneg %p61
        $region42: #{tpu_custom_call.1} parent=39 // pred_check_branch
          %274 = sbr.rel (%p272) target = $region44
        $region43: #{tpu_custom_call.1} parent=39 // pred_region
          %s275 = sand.u32 %s20, 1
          %s276 = scalar_lea.sflag [#allocation7], %s275
          %s277 = sand.u32 %s51, 1
          %s278 = smul.addr %s277, 14080
          %s279 = scalar_lea.vmem [#allocation6], %s278
          %s280 = smul.u32 880, %s20
          %s282 = ssub.s32 225280, 225280
          %283 = vsyncadd %s276, %s282
          %s284 = smul.addr %s280, 4
          %s285 = smul.addr %s284, 64
          %s286 = scalar_lea.hbm %s1, %s285
          %s287 = sshll.u32 %s279, 4
          %s288 = int_to_ptr.vmem [resolvable:$true] %s287
          %293 = dma.hbm_to_vmem [thread:$0]  %s286, 225280, %s288, %s276, 256, 256, 16
        $region44: #{tpu_custom_call.1} parent=39 // pred_fallthru
          _
      $region40: #{tpu_custom_call.1} parent=5 // pred_fallthru
        _
      %p294 = scmp.le.s32.totalorder 1, %s20
      %p295 = scmp.lt.s32.totalorder %s20, 8
      %p296 = pnand %p294, %p295
      %p297 = pneg %p296
      // Predicated region
      $region45: #{tpu_custom_call.1} parent=5 // pred_check
        _
      $region46: #{tpu_custom_call.1} parent=5 // pred_check_branch
        %299 = sbr.rel (%p296) target = $region48
      $region47: #{tpu_custom_call.1} parent=5 // pred_region
        %s300 = ssub.s32 %s20, 1
        // Predicated region
        $region49: #{tpu_custom_call.1} parent=47 // pred_check
          %p301 = pneg %p41
        $region50: #{tpu_custom_call.1} parent=47 // pred_check_branch
          %303 = sbr.rel (%p301) target = $region52
        $region51: #{tpu_custom_call.1} parent=47 // pred_region
          %304 = dma.done [#allocation4], 6160
        $region52: #{tpu_custom_call.1} parent=47 // pred_fallthru
          _
        %s305 = sand.u32 %s25, 1
        %s306 = scalar_lea.sflag [#allocation7], %s305
        %s307 = sand.u32 %s54, 1
        %s308 = smul.addr %s307, 14080
        %s309 = scalar_lea.vmem [#allocation6], %s308
        // Predicated region
        $region53: #{tpu_custom_call.1} parent=47 // pred_check
          %p310 = pneg %p67
        $region54: #{tpu_custom_call.1} parent=47 // pred_check_branch
          %312 = sbr.rel (%p310) target = $region56
        $region55: #{tpu_custom_call.1} parent=47 // pred_region
          %313 = dma.done %s306, 225280
        $region56: #{tpu_custom_call.1} parent=47 // pred_fallthru
          _
        // Predicated region
        $region57: #{tpu_custom_call.1} parent=47 // pred_check
          %p314 = pneg %p88
        $region58: #{tpu_custom_call.1} parent=47 // pred_check_branch
          %316 = sbr.rel (%p314) target = $region60
        $region59: #{tpu_custom_call.1} parent=47 // pred_region
          %317 = dma.done [#allocation7], 64
        $region60: #{tpu_custom_call.1} parent=47 // pred_fallthru
          _
        // Predicated region
        $region61: #{tpu_custom_call.1} parent=47 // pred_check
          %p318 = pneg %p109
        $region62: #{tpu_custom_call.1} parent=47 // pred_check_branch
          %320 = sbr.rel (%p318) target = $region64
        $region63: #{tpu_custom_call.1} parent=47 // pred_region
          %321 = dma.done [#allocation10], 16384
        $region64: #{tpu_custom_call.1} parent=47 // pred_fallthru
          _
        // Predicated region
        $region65: #{tpu_custom_call.1} parent=47 // pred_check
          %p322 = pneg %p130
        $region66: #{tpu_custom_call.1} parent=47 // pred_check_branch
          %324 = sbr.rel (%p322) target = $region68
        $region67: #{tpu_custom_call.1} parent=47 // pred_region
          %325 = dma.done [#allocation10], 32
        $region68: #{tpu_custom_call.1} parent=47 // pred_fallthru
          _
        // Predicated region
        $region69: #{tpu_custom_call.1} parent=47 // pred_check
          %p326 = pneg %p172
        $region70: #{tpu_custom_call.1} parent=47 // pred_check_branch
          %328 = sbr.rel (%p326) target = $region72
        $region71: #{tpu_custom_call.1} parent=47 // pred_region
          %329 = dma.done [#allocation13], 16
        $region72: #{tpu_custom_call.1} parent=47 // pred_fallthru
          _
        %p330 = pneg %p41
        %p331 = pneg %p38
        %s332 = sand.u32 %s25, 1
        %s333 = scalar_lea.sflag [#allocation7], %s332
        %s334 = sand.u32 %s54, 1
        %s335 = smul.addr %s334, 14080
        %s336 = scalar_lea.vmem [#allocation6], %s335
        %p337 = pneg %p67
        %p338 = pneg %p64
        %p339 = pneg %p88
        %p340 = pneg %p85
        %p341 = pneg %p109
        %p342 = pneg %p106
        %p343 = pneg %p130
        %p344 = pneg %p127
        %p345 = pneg %p151
        %p346 = pneg %p148
        %p347 = pneg %p172
        %p348 = pneg %p169
        %p349 = pneg %p193
        %p350 = pneg %p190
        %s351 = smul.u32 880, %s25
        %p353 = scmp.eq.s32.totalorder %s25, 0
        // Predicated region
        $region73: #{tpu_custom_call.1} parent=47 // pred_check
          %p354 = pneg %p353
        $region74: #{tpu_custom_call.1} parent=47 // pred_check_branch
          %356 = sbr.rel (%p354) target = $region76
        $region75: #{tpu_custom_call.1} parent=47 // pred_region
          %357 = vst [vmem:[#allocation2] sm:$0xff] 0.0
        $region76: #{tpu_custom_call.1} parent=47 // pred_fallthru
          _
        %s358 = smul.u32 %s25, 7040
        %s359 = sshra.s32 %s358, 7
        %s360 = sand.u32 %s358, 127
        %s361 = scalar_lea.vmem [#allocation3], %s359
        %v362 = vld [vmem:[%s361] sm:$0xff]
        %v363 = vld [vmem:[%s361 + $0x8] sm:$0xff]
        %v364 = vld [vmem:[%s361 + $0x10] sm:$0xff]
        %v365 = vld [vmem:[%s361 + $0x18] sm:$0xff]
        %v366 = vld [vmem:[%s361 + $0x20] sm:$0xff]
        %v367 = vld [vmem:[%s361 + $0x28] sm:$0xff]
        %v368 = vld [vmem:[%s361 + $0x30] sm:$0x7f]
        %v369 = vld [vmem:[#allocation2] sm:$0xff]
        %v370 = vld [vmem:[%s309] sm:$0xff]
        %v371 = vld [vmem:[%s309 + $0x8] sm:$0xff]
        %v372 = vld [vmem:[%s309 + $0x10] sm:$0xff]
        %v373 = vld [vmem:[%s309 + $0x18] sm:$0xff]
        %v374 = vld [vmem:[%s309 + $0x20] sm:$0xff]
        %v375 = vld [vmem:[%s309 + $0x28] sm:$0xff]
        %v376 = vld [vmem:[%s309 + $0x30] sm:$0xff]
        %v377 = vld [vmem:[%s309 + $0x38] sm:$0xff]
        %v378 = vld [vmem:[%s309 + $0x40] sm:$0xff]
        %v379 = vld [vmem:[%s309 + $0x48] sm:$0xff]
        %v380 = vld [vmem:[%s309 + $0x50] sm:$0xff]
        %v381 = vld [vmem:[%s309 + $0x58] sm:$0xff]
        %v382 = vld [vmem:[%s309 + $0x60] sm:$0xff]
        %v383 = vld [vmem:[%s309 + $0x68] sm:$0xff]
        %v384 = vld [vmem:[%s309 + $0x70] sm:$0xff]
        %v385 = vld [vmem:[%s309 + $0x78] sm:$0xff]
        %v386 = vld [vmem:[%s309 + $0x80] sm:$0xff]
        %v387 = vld [vmem:[%s309 + $0x88] sm:$0xff]
        %v388 = vld [vmem:[%s309 + $0x90] sm:$0xff]
        %v389 = vld [vmem:[%s309 + $0x98] sm:$0xff]
        %v390 = vld [vmem:[%s309 + $0xa0] sm:$0xff]
        %v391 = vld [vmem:[%s309 + $0xa8] sm:$0xff]
        %v392 = vld [vmem:[%s309 + $0xb0] sm:$0xff]
        %v393 = vld [vmem:[%s309 + $0xb8] sm:$0xff]
        %v394 = vld [vmem:[%s309 + $0xc0] sm:$0xff]
        %v395 = vld [vmem:[%s309 + $0xc8] sm:$0xff]
        %v396 = vld [vmem:[%s309 + $0xd0] sm:$0xff]
        %v397 = vld [vmem:[%s309 + $0xd8] sm:$0xff]
        %v398 = vld [vmem:[%s309 + $0xe0] sm:$0xff]
        %v399 = vld [vmem:[%s309 + $0xe8] sm:$0xff]
        %v400 = vld [vmem:[%s309 + $0xf0] sm:$0xff]
        %v401 = vld [vmem:[%s309 + $0xf8] sm:$0xff]
        %v402 = vld [vmem:[%s309 + $0x100] sm:$0xff]
        %v403 = vld [vmem:[%s309 + $0x108] sm:$0xff]
        %v404 = vld [vmem:[%s309 + $0x110] sm:$0xff]
        %v405 = vld [vmem:[%s309 + $0x118] sm:$0xff]
        %v406 = vld [vmem:[%s309 + $0x120] sm:$0xff]
        %v407 = vld [vmem:[%s309 + $0x128] sm:$0xff]
        %v408 = vld [vmem:[%s309 + $0x130] sm:$0xff]
        %v409 = vld [vmem:[%s309 + $0x138] sm:$0xff]
        %v410 = vld [vmem:[%s309 + $0x140] sm:$0xff]
        %v411 = vld [vmem:[%s309 + $0x148] sm:$0xff]
        %v412 = vld [vmem:[%s309 + $0x150] sm:$0xff]
        %v413 = vld [vmem:[%s309 + $0x158] sm:$0xff]
        %v414 = vld [vmem:[%s309 + $0x160] sm:$0xff]
        %v415 = vld [vmem:[%s309 + $0x168] sm:$0xff]
        %v416 = vld [vmem:[%s309 + $0x170] sm:$0xff]
        %v417 = vld [vmem:[%s309 + $0x178] sm:$0xff]
        %v418 = vld [vmem:[%s309 + $0x180] sm:$0xff]
        %v419 = vld [vmem:[%s309 + $0x188] sm:$0xff]
        %v420 = vld [vmem:[%s309 + $0x190] sm:$0xff]
        %v421 = vld [vmem:[%s309 + $0x198] sm:$0xff]
        %v422 = vld [vmem:[%s309 + $0x1a0] sm:$0xff]
        %v423 = vld [vmem:[%s309 + $0x1a8] sm:$0xff]
        %v424 = vld [vmem:[%s309 + $0x1b0] sm:$0xff]
        %v425 = vld [vmem:[%s309 + $0x1b8] sm:$0xff]
        %v426 = vld [vmem:[%s309 + $0x1c0] sm:$0xff]
        %v427 = vld [vmem:[%s309 + $0x1c8] sm:$0xff]
        %v428 = vld [vmem:[%s309 + $0x1d0] sm:$0xff]
        %v429 = vld [vmem:[%s309 + $0x1d8] sm:$0xff]
        %v430 = vld [vmem:[%s309 + $0x1e0] sm:$0xff]
        %v431 = vld [vmem:[%s309 + $0x1e8] sm:$0xff]
        %v432 = vld [vmem:[%s309 + $0x1f0] sm:$0xff]
        %v433 = vld [vmem:[%s309 + $0x1f8] sm:$0xff]
        %v434 = vld [vmem:[%s309 + $0x200] sm:$0xff]
        %v435 = vld [vmem:[%s309 + $0x208] sm:$0xff]
        %v436 = vld [vmem:[%s309 + $0x210] sm:$0xff]
        %v437 = vld [vmem:[%s309 + $0x218] sm:$0xff]
        %v438 = vld [vmem:[%s309 + $0x220] sm:$0xff]
        %v439 = vld [vmem:[%s309 + $0x228] sm:$0xff]
        %v440 = vld [vmem:[%s309 + $0x230] sm:$0xff]
        %v441 = vld [vmem:[%s309 + $0x238] sm:$0xff]
        %v442 = vld [vmem:[%s309 + $0x240] sm:$0xff]
        %v443 = vld [vmem:[%s309 + $0x248] sm:$0xff]
        %v444 = vld [vmem:[%s309 + $0x250] sm:$0xff]
        %v445 = vld [vmem:[%s309 + $0x258] sm:$0xff]
        %v446 = vld [vmem:[%s309 + $0x260] sm:$0xff]
        %v447 = vld [vmem:[%s309 + $0x268] sm:$0xff]
        %v448 = vld [vmem:[%s309 + $0x270] sm:$0xff]
        %v449 = vld [vmem:[%s309 + $0x278] sm:$0xff]
        %v450 = vld [vmem:[%s309 + $0x280] sm:$0xff]
        %v451 = vld [vmem:[%s309 + $0x288] sm:$0xff]
        %v452 = vld [vmem:[%s309 + $0x290] sm:$0xff]
        %v453 = vld [vmem:[%s309 + $0x298] sm:$0xff]
        %v454 = vld [vmem:[%s309 + $0x2a0] sm:$0xff]
        %v455 = vld [vmem:[%s309 + $0x2a8] sm:$0xff]
        %v456 = vld [vmem:[%s309 + $0x2b0] sm:$0xff]
        %v457 = vld [vmem:[%s309 + $0x2b8] sm:$0xff]
        %v458 = vld [vmem:[%s309 + $0x2c0] sm:$0xff]
        %v459 = vld [vmem:[%s309 + $0x2c8] sm:$0xff]
        %v460 = vld [vmem:[%s309 + $0x2d0] sm:$0xff]
        %v461 = vld [vmem:[%s309 + $0x2d8] sm:$0xff]
        %v462 = vld [vmem:[%s309 + $0x2e0] sm:$0xff]
        %v463 = vld [vmem:[%s309 + $0x2e8] sm:$0xff]
        %v464 = vld [vmem:[%s309 + $0x2f0] sm:$0xff]
        %v465 = vld [vmem:[%s309 + $0x2f8] sm:$0xff]
        %v466 = vld [vmem:[%s309 + $0x300] sm:$0xff]
        %v467 = vld [vmem:[%s309 + $0x308] sm:$0xff]
        %v468 = vld [vmem:[%s309 + $0x310] sm:$0xff]
        %v469 = vld [vmem:[%s309 + $0x318] sm:$0xff]
        %v470 = vld [vmem:[%s309 + $0x320] sm:$0xff]
        %v471 = vld [vmem:[%s309 + $0x328] sm:$0xff]
        %v472 = vld [vmem:[%s309 + $0x330] sm:$0xff]
        %v473 = vld [vmem:[%s309 + $0x338] sm:$0xff]
        %v474 = vld [vmem:[%s309 + $0x340] sm:$0xff]
        %v475 = vld [vmem:[%s309 + $0x348] sm:$0xff]
        %v476 = vld [vmem:[%s309 + $0x350] sm:$0xff]
        %v477 = vld [vmem:[%s309 + $0x358] sm:$0xff]
        %v478 = vld [vmem:[%s309 + $0x360] sm:$0xff]
        %v479 = vld [vmem:[%s309 + $0x368] sm:$0xff]
        %v480 = vld [vmem:[%s309 + $0x370] sm:$0xff]
        %v481 = vld [vmem:[%s309 + $0x378] sm:$0xff]
        %v482 = vld [vmem:[%s309 + $0x380] sm:$0xff]
        %v483 = vld [vmem:[%s309 + $0x388] sm:$0xff]
        %v484 = vld [vmem:[%s309 + $0x390] sm:$0xff]
        %v485 = vld [vmem:[%s309 + $0x398] sm:$0xff]
        %v486 = vld [vmem:[%s309 + $0x3a0] sm:$0xff]
        %v487 = vld [vmem:[%s309 + $0x3a8] sm:$0xff]
        %v488 = vld [vmem:[%s309 + $0x3b0] sm:$0xff]
        %v489 = vld [vmem:[%s309 + $0x3b8] sm:$0xff]
        %v490 = vld [vmem:[%s309 + $0x3c0] sm:$0xff]
        %v491 = vld [vmem:[%s309 + $0x3c8] sm:$0xff]
        %v492 = vld [vmem:[%s309 + $0x3d0] sm:$0xff]
        %v493 = vld [vmem:[%s309 + $0x3d8] sm:$0xff]
        %v494 = vld [vmem:[%s309 + $0x3e0] sm:$0xff]
        %v495 = vld [vmem:[%s309 + $0x3e8] sm:$0xff]
        %v496 = vld [vmem:[%s309 + $0x3f0] sm:$0xff]
        %v497 = vld [vmem:[%s309 + $0x3f8] sm:$0xff]
        %v498 = vld [vmem:[%s309 + $0x400] sm:$0xff]
        %v499 = vld [vmem:[%s309 + $0x408] sm:$0xff]
        %v500 = vld [vmem:[%s309 + $0x410] sm:$0xff]
        %v501 = vld [vmem:[%s309 + $0x418] sm:$0xff]
        %v502 = vld [vmem:[%s309 + $0x420] sm:$0xff]
        %v503 = vld [vmem:[%s309 + $0x428] sm:$0xff]
        %v504 = vld [vmem:[%s309 + $0x430] sm:$0xff]
        %v505 = vld [vmem:[%s309 + $0x438] sm:$0xff]
        %v506 = vld [vmem:[%s309 + $0x440] sm:$0xff]
        %v507 = vld [vmem:[%s309 + $0x448] sm:$0xff]
        %v508 = vld [vmem:[%s309 + $0x450] sm:$0xff]
        %v509 = vld [vmem:[%s309 + $0x458] sm:$0xff]
        %v510 = vld [vmem:[%s309 + $0x460] sm:$0xff]
        %v511 = vld [vmem:[%s309 + $0x468] sm:$0xff]
        %v512 = vld [vmem:[%s309 + $0x470] sm:$0xff]
        %v513 = vld [vmem:[%s309 + $0x478] sm:$0xff]
        %v514 = vld [vmem:[%s309 + $0x480] sm:$0xff]
        %v515 = vld [vmem:[%s309 + $0x488] sm:$0xff]
        %v516 = vld [vmem:[%s309 + $0x490] sm:$0xff]
        %v517 = vld [vmem:[%s309 + $0x498] sm:$0xff]
        %v518 = vld [vmem:[%s309 + $0x4a0] sm:$0xff]
        %v519 = vld [vmem:[%s309 + $0x4a8] sm:$0xff]
        %v520 = vld [vmem:[%s309 + $0x4b0] sm:$0xff]
        %v521 = vld [vmem:[%s309 + $0x4b8] sm:$0xff]
        %v522 = vld [vmem:[%s309 + $0x4c0] sm:$0xff]
        %v523 = vld [vmem:[%s309 + $0x4c8] sm:$0xff]
        %v524 = vld [vmem:[%s309 + $0x4d0] sm:$0xff]
        %v525 = vld [vmem:[%s309 + $0x4d8] sm:$0xff]
        %v526 = vld [vmem:[%s309 + $0x4e0] sm:$0xff]
        %v527 = vld [vmem:[%s309 + $0x4e8] sm:$0xff]
        %v528 = vld [vmem:[%s309 + $0x4f0] sm:$0xff]
        %v529 = vld [vmem:[%s309 + $0x4f8] sm:$0xff]
        %v530 = vld [vmem:[%s309 + $0x500] sm:$0xff]
        %v531 = vld [vmem:[%s309 + $0x508] sm:$0xff]
        %v532 = vld [vmem:[%s309 + $0x510] sm:$0xff]
        %v533 = vld [vmem:[%s309 + $0x518] sm:$0xff]
        %v534 = vld [vmem:[%s309 + $0x520] sm:$0xff]
        %v535 = vld [vmem:[%s309 + $0x528] sm:$0xff]
        %v536 = vld [vmem:[%s309 + $0x530] sm:$0xff]
        %v537 = vld [vmem:[%s309 + $0x538] sm:$0xff]
        %v538 = vld [vmem:[%s309 + $0x540] sm:$0xff]
        %v539 = vld [vmem:[%s309 + $0x548] sm:$0xff]
        %v540 = vld [vmem:[%s309 + $0x550] sm:$0xff]
        %v541 = vld [vmem:[%s309 + $0x558] sm:$0xff]
        %v542 = vld [vmem:[%s309 + $0x560] sm:$0xff]
        %v543 = vld [vmem:[%s309 + $0x568] sm:$0xff]
        %v544 = vld [vmem:[%s309 + $0x570] sm:$0xff]
        %v545 = vld [vmem:[%s309 + $0x578] sm:$0xff]
        %v546 = vld [vmem:[%s309 + $0x580] sm:$0xff]
        %v547 = vld [vmem:[%s309 + $0x588] sm:$0xff]
        %v548 = vld [vmem:[%s309 + $0x590] sm:$0xff]
        %v549 = vld [vmem:[%s309 + $0x598] sm:$0xff]
        %v550 = vld [vmem:[%s309 + $0x5a0] sm:$0xff]
        %v551 = vld [vmem:[%s309 + $0x5a8] sm:$0xff]
        %v552 = vld [vmem:[%s309 + $0x5b0] sm:$0xff]
        %v553 = vld [vmem:[%s309 + $0x5b8] sm:$0xff]
        %v554 = vld [vmem:[%s309 + $0x5c0] sm:$0xff]
        %v555 = vld [vmem:[%s309 + $0x5c8] sm:$0xff]
        %v556 = vld [vmem:[%s309 + $0x5d0] sm:$0xff]
        %v557 = vld [vmem:[%s309 + $0x5d8] sm:$0xff]
        %v558 = vld [vmem:[%s309 + $0x5e0] sm:$0xff]
        %v559 = vld [vmem:[%s309 + $0x5e8] sm:$0xff]
        %v560 = vld [vmem:[%s309 + $0x5f0] sm:$0xff]
        %v561 = vld [vmem:[%s309 + $0x5f8] sm:$0xff]
        %v562 = vld [vmem:[%s309 + $0x600] sm:$0xff]
        %v563 = vld [vmem:[%s309 + $0x608] sm:$0xff]
        %v564 = vld [vmem:[%s309 + $0x610] sm:$0xff]
        %v565 = vld [vmem:[%s309 + $0x618] sm:$0xff]
        %v566 = vld [vmem:[%s309 + $0x620] sm:$0xff]
        %v567 = vld [vmem:[%s309 + $0x628] sm:$0xff]
        %v568 = vld [vmem:[%s309 + $0x630] sm:$0xff]
        %v569 = vld [vmem:[%s309 + $0x638] sm:$0xff]
        %v570 = vld [vmem:[%s309 + $0x640] sm:$0xff]
        %v571 = vld [vmem:[%s309 + $0x648] sm:$0xff]
        %v572 = vld [vmem:[%s309 + $0x650] sm:$0xff]
        %v573 = vld [vmem:[%s309 + $0x658] sm:$0xff]
        %v574 = vld [vmem:[%s309 + $0x660] sm:$0xff]
        %v575 = vld [vmem:[%s309 + $0x668] sm:$0xff]
        %v576 = vld [vmem:[%s309 + $0x670] sm:$0xff]
        %v577 = vld [vmem:[%s309 + $0x678] sm:$0xff]
        %v578 = vld [vmem:[%s309 + $0x680] sm:$0xff]
        %v579 = vld [vmem:[%s309 + $0x688] sm:$0xff]
        %v580 = vld [vmem:[%s309 + $0x690] sm:$0xff]
        %v581 = vld [vmem:[%s309 + $0x698] sm:$0xff]
        %v582 = vld [vmem:[%s309 + $0x6a0] sm:$0xff]
        %v583 = vld [vmem:[%s309 + $0x6a8] sm:$0xff]
        %v584 = vld [vmem:[%s309 + $0x6b0] sm:$0xff]
        %v585 = vld [vmem:[%s309 + $0x6b8] sm:$0xff]
        %v586 = vld [vmem:[%s309 + $0x6c0] sm:$0xff]
        %v587 = vld [vmem:[%s309 + $0x6c8] sm:$0xff]
        %v588 = vld [vmem:[%s309 + $0x6d0] sm:$0xff]
        %v589 = vld [vmem:[%s309 + $0x6d8] sm:$0xff]
        %v590 = vld [vmem:[%s309 + $0x6e0] sm:$0xff]
        %v591 = vld [vmem:[%s309 + $0x6e8] sm:$0xff]
        %v592 = vld [vmem:[%s309 + $0x6f0] sm:$0xff]
        %v593 = vld [vmem:[%s309 + $0x6f8] sm:$0xff]
        %v594 = vld [vmem:[%s309 + $0x700] sm:$0xff]
        %v595 = vld [vmem:[%s309 + $0x708] sm:$0xff]
        %v596 = vld [vmem:[%s309 + $0x710] sm:$0xff]
        %v597 = vld [vmem:[%s309 + $0x718] sm:$0xff]
        %v598 = vld [vmem:[%s309 + $0x720] sm:$0xff]
        %v599 = vld [vmem:[%s309 + $0x728] sm:$0xff]
        %v600 = vld [vmem:[%s309 + $0x730] sm:$0xff]
        %v601 = vld [vmem:[%s309 + $0x738] sm:$0xff]
        %v602 = vld [vmem:[%s309 + $0x740] sm:$0xff]
        %v603 = vld [vmem:[%s309 + $0x748] sm:$0xff]
        %v604 = vld [vmem:[%s309 + $0x750] sm:$0xff]
        %v605 = vld [vmem:[%s309 + $0x758] sm:$0xff]
        %v606 = vld [vmem:[%s309 + $0x760] sm:$0xff]
        %v607 = vld [vmem:[%s309 + $0x768] sm:$0xff]
        %v608 = vld [vmem:[%s309 + $0x770] sm:$0xff]
        %v609 = vld [vmem:[%s309 + $0x778] sm:$0xff]
        %v610 = vld [vmem:[%s309 + $0x780] sm:$0xff]
        %v611 = vld [vmem:[%s309 + $0x788] sm:$0xff]
        %v612 = vld [vmem:[%s309 + $0x790] sm:$0xff]
        %v613 = vld [vmem:[%s309 + $0x798] sm:$0xff]
        %v614 = vld [vmem:[%s309 + $0x7a0] sm:$0xff]
        %v615 = vld [vmem:[%s309 + $0x7a8] sm:$0xff]
        %v616 = vld [vmem:[%s309 + $0x7b0] sm:$0xff]
        %v617 = vld [vmem:[%s309 + $0x7b8] sm:$0xff]
        %v618 = vld [vmem:[%s309 + $0x7c0] sm:$0xff]
        %v619 = vld [vmem:[%s309 + $0x7c8] sm:$0xff]
        %v620 = vld [vmem:[%s309 + $0x7d0] sm:$0xff]
        %v621 = vld [vmem:[%s309 + $0x7d8] sm:$0xff]
        %v622 = vld [vmem:[%s309 + $0x7e0] sm:$0xff]
        %v623 = vld [vmem:[%s309 + $0x7e8] sm:$0xff]
        %v624 = vld [vmem:[%s309 + $0x7f0] sm:$0xff]
        %v625 = vld [vmem:[%s309 + $0x7f8] sm:$0xff]
        %v626 = vld [vmem:[%s309 + $0x800] sm:$0xff]
        %v627 = vld [vmem:[%s309 + $0x808] sm:$0xff]
        %v628 = vld [vmem:[%s309 + $0x810] sm:$0xff]
        %v629 = vld [vmem:[%s309 + $0x818] sm:$0xff]
        %v630 = vld [vmem:[%s309 + $0x820] sm:$0xff]
        %v631 = vld [vmem:[%s309 + $0x828] sm:$0xff]
        %v632 = vld [vmem:[%s309 + $0x830] sm:$0xff]
        %v633 = vld [vmem:[%s309 + $0x838] sm:$0xff]
        %v634 = vld [vmem:[%s309 + $0x840] sm:$0xff]
        %v635 = vld [vmem:[%s309 + $0x848] sm:$0xff]
        %v636 = vld [vmem:[%s309 + $0x850] sm:$0xff]
        %v637 = vld [vmem:[%s309 + $0x858] sm:$0xff]
        %v638 = vld [vmem:[%s309 + $0x860] sm:$0xff]
        %v639 = vld [vmem:[%s309 + $0x868] sm:$0xff]
        %v640 = vld [vmem:[%s309 + $0x870] sm:$0xff]
        %v641 = vld [vmem:[%s309 + $0x878] sm:$0xff]
        %v642 = vld [vmem:[%s309 + $0x880] sm:$0xff]
        %v643 = vld [vmem:[%s309 + $0x888] sm:$0xff]
        %v644 = vld [vmem:[%s309 + $0x890] sm:$0xff]
        %v645 = vld [vmem:[%s309 + $0x898] sm:$0xff]
        %v646 = vld [vmem:[%s309 + $0x8a0] sm:$0xff]
        %v647 = vld [vmem:[%s309 + $0x8a8] sm:$0xff]
        %v648 = vld [vmem:[%s309 + $0x8b0] sm:$0xff]
        %v649 = vld [vmem:[%s309 + $0x8b8] sm:$0xff]
        %v650 = vld [vmem:[%s309 + $0x8c0] sm:$0xff]
        %v651 = vld [vmem:[%s309 + $0x8c8] sm:$0xff]
        %v652 = vld [vmem:[%s309 + $0x8d0] sm:$0xff]
        %v653 = vld [vmem:[%s309 + $0x8d8] sm:$0xff]
        %v654 = vld [vmem:[%s309 + $0x8e0] sm:$0xff]
        %v655 = vld [vmem:[%s309 + $0x8e8] sm:$0xff]
        %v656 = vld [vmem:[%s309 + $0x8f0] sm:$0xff]
        %v657 = vld [vmem:[%s309 + $0x8f8] sm:$0xff]
        %v658 = vld [vmem:[%s309 + $0x900] sm:$0xff]
        %v659 = vld [vmem:[%s309 + $0x908] sm:$0xff]
        %v660 = vld [vmem:[%s309 + $0x910] sm:$0xff]
        %v661 = vld [vmem:[%s309 + $0x918] sm:$0xff]
        %v662 = vld [vmem:[%s309 + $0x920] sm:$0xff]
        %v663 = vld [vmem:[%s309 + $0x928] sm:$0xff]
        %v664 = vld [vmem:[%s309 + $0x930] sm:$0xff]
        %v665 = vld [vmem:[%s309 + $0x938] sm:$0xff]
        %v666 = vld [vmem:[%s309 + $0x940] sm:$0xff]
        %v667 = vld [vmem:[%s309 + $0x948] sm:$0xff]
        %v668 = vld [vmem:[%s309 + $0x950] sm:$0xff]
        %v669 = vld [vmem:[%s309 + $0x958] sm:$0xff]
        %v670 = vld [vmem:[%s309 + $0x960] sm:$0xff]
        %v671 = vld [vmem:[%s309 + $0x968] sm:$0xff]
        %v672 = vld [vmem:[%s309 + $0x970] sm:$0xff]
        %v673 = vld [vmem:[%s309 + $0x978] sm:$0xff]
        %v674 = vld [vmem:[%s309 + $0x980] sm:$0xff]
        %v675 = vld [vmem:[%s309 + $0x988] sm:$0xff]
        %v676 = vld [vmem:[%s309 + $0x990] sm:$0xff]
        %v677 = vld [vmem:[%s309 + $0x998] sm:$0xff]
        %v678 = vld [vmem:[%s309 + $0x9a0] sm:$0xff]
        %v679 = vld [vmem:[%s309 + $0x9a8] sm:$0xff]
        %v680 = vld [vmem:[%s309 + $0x9b0] sm:$0xff]
        %v681 = vld [vmem:[%s309 + $0x9b8] sm:$0xff]
        %v682 = vld [vmem:[%s309 + $0x9c0] sm:$0xff]
        %v683 = vld [vmem:[%s309 + $0x9c8] sm:$0xff]
        %v684 = vld [vmem:[%s309 + $0x9d0] sm:$0xff]
        %v685 = vld [vmem:[%s309 + $0x9d8] sm:$0xff]
        %v686 = vld [vmem:[%s309 + $0x9e0] sm:$0xff]
        %v687 = vld [vmem:[%s309 + $0x9e8] sm:$0xff]
        %v688 = vld [vmem:[%s309 + $0x9f0] sm:$0xff]
        %v689 = vld [vmem:[%s309 + $0x9f8] sm:$0xff]
        %v690 = vld [vmem:[%s309 + $0xa00] sm:$0xff]
        %v691 = vld [vmem:[%s309 + $0xa08] sm:$0xff]
        %v692 = vld [vmem:[%s309 + $0xa10] sm:$0xff]
        %v693 = vld [vmem:[%s309 + $0xa18] sm:$0xff]
        %v694 = vld [vmem:[%s309 + $0xa20] sm:$0xff]
        %v695 = vld [vmem:[%s309 + $0xa28] sm:$0xff]
        %v696 = vld [vmem:[%s309 + $0xa30] sm:$0xff]
        %v697 = vld [vmem:[%s309 + $0xa38] sm:$0xff]
        %v698 = vld [vmem:[%s309 + $0xa40] sm:$0xff]
        %v699 = vld [vmem:[%s309 + $0xa48] sm:$0xff]
        %v700 = vld [vmem:[%s309 + $0xa50] sm:$0xff]
        %v701 = vld [vmem:[%s309 + $0xa58] sm:$0xff]
        %v702 = vld [vmem:[%s309 + $0xa60] sm:$0xff]
        %v703 = vld [vmem:[%s309 + $0xa68] sm:$0xff]
        %v704 = vld [vmem:[%s309 + $0xa70] sm:$0xff]
        %v705 = vld [vmem:[%s309 + $0xa78] sm:$0xff]
        %v706 = vld [vmem:[%s309 + $0xa80] sm:$0xff]
        %v707 = vld [vmem:[%s309 + $0xa88] sm:$0xff]
        %v708 = vld [vmem:[%s309 + $0xa90] sm:$0xff]
        %v709 = vld [vmem:[%s309 + $0xa98] sm:$0xff]
        %v710 = vld [vmem:[%s309 + $0xaa0] sm:$0xff]
        %v711 = vld [vmem:[%s309 + $0xaa8] sm:$0xff]
        %v712 = vld [vmem:[%s309 + $0xab0] sm:$0xff]
        %v713 = vld [vmem:[%s309 + $0xab8] sm:$0xff]
        %v714 = vld [vmem:[%s309 + $0xac0] sm:$0xff]
        %v715 = vld [vmem:[%s309 + $0xac8] sm:$0xff]
        %v716 = vld [vmem:[%s309 + $0xad0] sm:$0xff]
        %v717 = vld [vmem:[%s309 + $0xad8] sm:$0xff]
        %v718 = vld [vmem:[%s309 + $0xae0] sm:$0xff]
        %v719 = vld [vmem:[%s309 + $0xae8] sm:$0xff]
        %v720 = vld [vmem:[%s309 + $0xaf0] sm:$0xff]
        %v721 = vld [vmem:[%s309 + $0xaf8] sm:$0xff]
        %v722 = vld [vmem:[%s309 + $0xb00] sm:$0xff]
        %v723 = vld [vmem:[%s309 + $0xb08] sm:$0xff]
        %v724 = vld [vmem:[%s309 + $0xb10] sm:$0xff]
        %v725 = vld [vmem:[%s309 + $0xb18] sm:$0xff]
        %v726 = vld [vmem:[%s309 + $0xb20] sm:$0xff]
        %v727 = vld [vmem:[%s309 + $0xb28] sm:$0xff]
        %v728 = vld [vmem:[%s309 + $0xb30] sm:$0xff]
        %v729 = vld [vmem:[%s309 + $0xb38] sm:$0xff]
        %v730 = vld [vmem:[%s309 + $0xb40] sm:$0xff]
        %v731 = vld [vmem:[%s309 + $0xb48] sm:$0xff]
        %v732 = vld [vmem:[%s309 + $0xb50] sm:$0xff]
        %v733 = vld [vmem:[%s309 + $0xb58] sm:$0xff]
        %v734 = vld [vmem:[%s309 + $0xb60] sm:$0xff]
        %v735 = vld [vmem:[%s309 + $0xb68] sm:$0xff]
        %v736 = vld [vmem:[%s309 + $0xb70] sm:$0xff]
        %v737 = vld [vmem:[%s309 + $0xb78] sm:$0xff]
        %v738 = vld [vmem:[%s309 + $0xb80] sm:$0xff]
        %v739 = vld [vmem:[%s309 + $0xb88] sm:$0xff]
        %v740 = vld [vmem:[%s309 + $0xb90] sm:$0xff]
        %v741 = vld [vmem:[%s309 + $0xb98] sm:$0xff]
        %v742 = vld [vmem:[%s309 + $0xba0] sm:$0xff]
        %v743 = vld [vmem:[%s309 + $0xba8] sm:$0xff]
        %v744 = vld [vmem:[%s309 + $0xbb0] sm:$0xff]
        %v745 = vld [vmem:[%s309 + $0xbb8] sm:$0xff]
        %v746 = vld [vmem:[%s309 + $0xbc0] sm:$0xff]
        %v747 = vld [vmem:[%s309 + $0xbc8] sm:$0xff]
        %v748 = vld [vmem:[%s309 + $0xbd0] sm:$0xff]
        %v749 = vld [vmem:[%s309 + $0xbd8] sm:$0xff]
        %v750 = vld [vmem:[%s309 + $0xbe0] sm:$0xff]
        %v751 = vld [vmem:[%s309 + $0xbe8] sm:$0xff]
        %v752 = vld [vmem:[%s309 + $0xbf0] sm:$0xff]
        %v753 = vld [vmem:[%s309 + $0xbf8] sm:$0xff]
        %v754 = vld [vmem:[%s309 + $0xc00] sm:$0xff]
        %v755 = vld [vmem:[%s309 + $0xc08] sm:$0xff]
        %v756 = vld [vmem:[%s309 + $0xc10] sm:$0xff]
        %v757 = vld [vmem:[%s309 + $0xc18] sm:$0xff]
        %v758 = vld [vmem:[%s309 + $0xc20] sm:$0xff]
        %v759 = vld [vmem:[%s309 + $0xc28] sm:$0xff]
        %v760 = vld [vmem:[%s309 + $0xc30] sm:$0xff]
        %v761 = vld [vmem:[%s309 + $0xc38] sm:$0xff]
        %v762 = vld [vmem:[%s309 + $0xc40] sm:$0xff]
        %v763 = vld [vmem:[%s309 + $0xc48] sm:$0xff]
        %v764 = vld [vmem:[%s309 + $0xc50] sm:$0xff]
        %v765 = vld [vmem:[%s309 + $0xc58] sm:$0xff]
        %v766 = vld [vmem:[%s309 + $0xc60] sm:$0xff]
        %v767 = vld [vmem:[%s309 + $0xc68] sm:$0xff]
        %v768 = vld [vmem:[%s309 + $0xc70] sm:$0xff]
        %v769 = vld [vmem:[%s309 + $0xc78] sm:$0xff]
        %v770 = vld [vmem:[%s309 + $0xc80] sm:$0xff]
        %v771 = vld [vmem:[%s309 + $0xc88] sm:$0xff]
        %v772 = vld [vmem:[%s309 + $0xc90] sm:$0xff]
        %v773 = vld [vmem:[%s309 + $0xc98] sm:$0xff]
        %v774 = vld [vmem:[%s309 + $0xca0] sm:$0xff]
        %v775 = vld [vmem:[%s309 + $0xca8] sm:$0xff]
        %v776 = vld [vmem:[%s309 + $0xcb0] sm:$0xff]
        %v777 = vld [vmem:[%s309 + $0xcb8] sm:$0xff]
        %v778 = vld [vmem:[%s309 + $0xcc0] sm:$0xff]
        %v779 = vld [vmem:[%s309 + $0xcc8] sm:$0xff]
        %v780 = vld [vmem:[%s309 + $0xcd0] sm:$0xff]
        %v781 = vld [vmem:[%s309 + $0xcd8] sm:$0xff]
        %v782 = vld [vmem:[%s309 + $0xce0] sm:$0xff]
        %v783 = vld [vmem:[%s309 + $0xce8] sm:$0xff]
        %v784 = vld [vmem:[%s309 + $0xcf0] sm:$0xff]
        %v785 = vld [vmem:[%s309 + $0xcf8] sm:$0xff]
        %v786 = vld [vmem:[%s309 + $0xd00] sm:$0xff]
        %v787 = vld [vmem:[%s309 + $0xd08] sm:$0xff]
        %v788 = vld [vmem:[%s309 + $0xd10] sm:$0xff]
        %v789 = vld [vmem:[%s309 + $0xd18] sm:$0xff]
        %v790 = vld [vmem:[%s309 + $0xd20] sm:$0xff]
        %v791 = vld [vmem:[%s309 + $0xd28] sm:$0xff]
        %v792 = vld [vmem:[%s309 + $0xd30] sm:$0xff]
        %v793 = vld [vmem:[%s309 + $0xd38] sm:$0xff]
        %v794 = vld [vmem:[%s309 + $0xd40] sm:$0xff]
        %v795 = vld [vmem:[%s309 + $0xd48] sm:$0xff]
        %v796 = vld [vmem:[%s309 + $0xd50] sm:$0xff]
        %v797 = vld [vmem:[%s309 + $0xd58] sm:$0xff]
        %v798 = vld [vmem:[%s309 + $0xd60] sm:$0xff]
        %v799 = vld [vmem:[%s309 + $0xd68] sm:$0xff]
        %v800 = vld [vmem:[%s309 + $0xd70] sm:$0xff]
        %v801 = vld [vmem:[%s309 + $0xd78] sm:$0xff]
        %v802 = vld [vmem:[%s309 + $0xd80] sm:$0xff]
        %v803 = vld [vmem:[%s309 + $0xd88] sm:$0xff]
        %v804 = vld [vmem:[%s309 + $0xd90] sm:$0xff]
        %v805 = vld [vmem:[%s309 + $0xd98] sm:$0xff]
        %v806 = vld [vmem:[%s309 + $0xda0] sm:$0xff]
        %v807 = vld [vmem:[%s309 + $0xda8] sm:$0xff]
        %v808 = vld [vmem:[%s309 + $0xdb0] sm:$0xff]
        %v809 = vld [vmem:[%s309 + $0xdb8] sm:$0xff]
        %v810 = vld [vmem:[%s309 + $0xdc0] sm:$0xff]
        %v811 = vld [vmem:[%s309 + $0xdc8] sm:$0xff]
        %v812 = vld [vmem:[%s309 + $0xdd0] sm:$0xff]
        %v813 = vld [vmem:[%s309 + $0xdd8] sm:$0xff]
        %v814 = vld [vmem:[%s309 + $0xde0] sm:$0xff]
        %v815 = vld [vmem:[%s309 + $0xde8] sm:$0xff]
        %v816 = vld [vmem:[%s309 + $0xdf0] sm:$0xff]
        %v817 = vld [vmem:[%s309 + $0xdf8] sm:$0xff]
        %v818 = vld [vmem:[%s309 + $0xe00] sm:$0xff]
        %v819 = vld [vmem:[%s309 + $0xe08] sm:$0xff]
        %v820 = vld [vmem:[%s309 + $0xe10] sm:$0xff]
        %v821 = vld [vmem:[%s309 + $0xe18] sm:$0xff]
        %v822 = vld [vmem:[%s309 + $0xe20] sm:$0xff]
        %v823 = vld [vmem:[%s309 + $0xe28] sm:$0xff]
        %v824 = vld [vmem:[%s309 + $0xe30] sm:$0xff]
        %v825 = vld [vmem:[%s309 + $0xe38] sm:$0xff]
        %v826 = vld [vmem:[%s309 + $0xe40] sm:$0xff]
        %v827 = vld [vmem:[%s309 + $0xe48] sm:$0xff]
        %v828 = vld [vmem:[%s309 + $0xe50] sm:$0xff]
        %v829 = vld [vmem:[%s309 + $0xe58] sm:$0xff]
        %v830 = vld [vmem:[%s309 + $0xe60] sm:$0xff]
        %v831 = vld [vmem:[%s309 + $0xe68] sm:$0xff]
        %v832 = vld [vmem:[%s309 + $0xe70] sm:$0xff]
        %v833 = vld [vmem:[%s309 + $0xe78] sm:$0xff]
        %v834 = vld [vmem:[%s309 + $0xe80] sm:$0xff]
        %v835 = vld [vmem:[%s309 + $0xe88] sm:$0xff]
        %v836 = vld [vmem:[%s309 + $0xe90] sm:$0xff]
        %v837 = vld [vmem:[%s309 + $0xe98] sm:$0xff]
        %v838 = vld [vmem:[%s309 + $0xea0] sm:$0xff]
        %v839 = vld [vmem:[%s309 + $0xea8] sm:$0xff]
        %v840 = vld [vmem:[%s309 + $0xeb0] sm:$0xff]
        %v841 = vld [vmem:[%s309 + $0xeb8] sm:$0xff]
        %v842 = vld [vmem:[%s309 + $0xec0] sm:$0xff]
        %v843 = vld [vmem:[%s309 + $0xec8] sm:$0xff]
        %v844 = vld [vmem:[%s309 + $0xed0] sm:$0xff]
        %v845 = vld [vmem:[%s309 + $0xed8] sm:$0xff]
        %v846 = vld [vmem:[%s309 + $0xee0] sm:$0xff]
        %v847 = vld [vmem:[%s309 + $0xee8] sm:$0xff]
        %v848 = vld [vmem:[%s309 + $0xef0] sm:$0xff]
        %v849 = vld [vmem:[%s309 + $0xef8] sm:$0xff]
        %v850 = vld [vmem:[%s309 + $0xf00] sm:$0xff]
        %v851 = vld [vmem:[%s309 + $0xf08] sm:$0xff]
        %v852 = vld [vmem:[%s309 + $0xf10] sm:$0xff]
        %v853 = vld [vmem:[%s309 + $0xf18] sm:$0xff]
        %v854 = vld [vmem:[%s309 + $0xf20] sm:$0xff]
        %v855 = vld [vmem:[%s309 + $0xf28] sm:$0xff]
        %v856 = vld [vmem:[%s309 + $0xf30] sm:$0xff]
        %v857 = vld [vmem:[%s309 + $0xf38] sm:$0xff]
        %v858 = vld [vmem:[%s309 + $0xf40] sm:$0xff]
        %v859 = vld [vmem:[%s309 + $0xf48] sm:$0xff]
        %v860 = vld [vmem:[%s309 + $0xf50] sm:$0xff]
        %v861 = vld [vmem:[%s309 + $0xf58] sm:$0xff]
        %v862 = vld [vmem:[%s309 + $0xf60] sm:$0xff]
        %v863 = vld [vmem:[%s309 + $0xf68] sm:$0xff]
        %v864 = vld [vmem:[%s309 + $0xf70] sm:$0xff]
        %v865 = vld [vmem:[%s309 + $0xf78] sm:$0xff]
        %v866 = vld [vmem:[%s309 + $0xf80] sm:$0xff]
        %v867 = vld [vmem:[%s309 + $0xf88] sm:$0xff]
        %v868 = vld [vmem:[%s309 + $0xf90] sm:$0xff]
        %v869 = vld [vmem:[%s309 + $0xf98] sm:$0xff]
        %v870 = vld [vmem:[%s309 + $0xfa0] sm:$0xff]
        %v871 = vld [vmem:[%s309 + $0xfa8] sm:$0xff]
        %v872 = vld [vmem:[%s309 + $0xfb0] sm:$0xff]
        %v873 = vld [vmem:[%s309 + $0xfb8] sm:$0xff]
        %v874 = vld [vmem:[%s309 + $0xfc0] sm:$0xff]
        %v875 = vld [vmem:[%s309 + $0xfc8] sm:$0xff]
        %v876 = vld [vmem:[%s309 + $0xfd0] sm:$0xff]
        %v877 = vld [vmem:[%s309 + $0xfd8] sm:$0xff]
        %v878 = vld [vmem:[%s309 + $0xfe0] sm:$0xff]
        %v879 = vld [vmem:[%s309 + $0xfe8] sm:$0xff]
        %v880 = vld [vmem:[%s309 + $0xff0] sm:$0xff]
        %v881 = vld [vmem:[%s309 + $0xff8] sm:$0xff]
        %v882 = vld [vmem:[%s309 + $0x1000] sm:$0xff]
        %v883 = vld [vmem:[%s309 + $0x1008] sm:$0xff]
        %v884 = vld [vmem:[%s309 + $0x1010] sm:$0xff]
        %v885 = vld [vmem:[%s309 + $0x1018] sm:$0xff]
        %v886 = vld [vmem:[%s309 + $0x1020] sm:$0xff]
        %v887 = vld [vmem:[%s309 + $0x1028] sm:$0xff]
        %v888 = vld [vmem:[%s309 + $0x1030] sm:$0xff]
        %v889 = vld [vmem:[%s309 + $0x1038] sm:$0xff]
        %v890 = vld [vmem:[%s309 + $0x1040] sm:$0xff]
        %v891 = vld [vmem:[%s309 + $0x1048] sm:$0xff]
        %v892 = vld [vmem:[%s309 + $0x1050] sm:$0xff]
        %v893 = vld [vmem:[%s309 + $0x1058] sm:$0xff]
        %v894 = vld [vmem:[%s309 + $0x1060] sm:$0xff]
        %v895 = vld [vmem:[%s309 + $0x1068] sm:$0xff]
        %v896 = vld [vmem:[%s309 + $0x1070] sm:$0xff]
        %v897 = vld [vmem:[%s309 + $0x1078] sm:$0xff]
        %v898 = vld [vmem:[%s309 + $0x1080] sm:$0xff]
        %v899 = vld [vmem:[%s309 + $0x1088] sm:$0xff]
        %v900 = vld [vmem:[%s309 + $0x1090] sm:$0xff]
        %v901 = vld [vmem:[%s309 + $0x1098] sm:$0xff]
        %v902 = vld [vmem:[%s309 + $0x10a0] sm:$0xff]
        %v903 = vld [vmem:[%s309 + $0x10a8] sm:$0xff]
        %v904 = vld [vmem:[%s309 + $0x10b0] sm:$0xff]
        %v905 = vld [vmem:[%s309 + $0x10b8] sm:$0xff]
        %v906 = vld [vmem:[%s309 + $0x10c0] sm:$0xff]
        %v907 = vld [vmem:[%s309 + $0x10c8] sm:$0xff]
        %v908 = vld [vmem:[%s309 + $0x10d0] sm:$0xff]
        %v909 = vld [vmem:[%s309 + $0x10d8] sm:$0xff]
        %v910 = vld [vmem:[%s309 + $0x10e0] sm:$0xff]
        %v911 = vld [vmem:[%s309 + $0x10e8] sm:$0xff]
        %v912 = vld [vmem:[%s309 + $0x10f0] sm:$0xff]
        %v913 = vld [vmem:[%s309 + $0x10f8] sm:$0xff]
        %v914 = vld [vmem:[%s309 + $0x1100] sm:$0xff]
        %v915 = vld [vmem:[%s309 + $0x1108] sm:$0xff]
        %v916 = vld [vmem:[%s309 + $0x1110] sm:$0xff]
        %v917 = vld [vmem:[%s309 + $0x1118] sm:$0xff]
        %v918 = vld [vmem:[%s309 + $0x1120] sm:$0xff]
        %v919 = vld [vmem:[%s309 + $0x1128] sm:$0xff]
        %v920 = vld [vmem:[%s309 + $0x1130] sm:$0xff]
        %v921 = vld [vmem:[%s309 + $0x1138] sm:$0xff]
        %v922 = vld [vmem:[%s309 + $0x1140] sm:$0xff]
        %v923 = vld [vmem:[%s309 + $0x1148] sm:$0xff]
        %v924 = vld [vmem:[%s309 + $0x1150] sm:$0xff]
        %v925 = vld [vmem:[%s309 + $0x1158] sm:$0xff]
        %v926 = vld [vmem:[%s309 + $0x1160] sm:$0xff]
        %v927 = vld [vmem:[%s309 + $0x1168] sm:$0xff]
        %v928 = vld [vmem:[%s309 + $0x1170] sm:$0xff]
        %v929 = vld [vmem:[%s309 + $0x1178] sm:$0xff]
        %v930 = vld [vmem:[%s309 + $0x1180] sm:$0xff]
        %v931 = vld [vmem:[%s309 + $0x1188] sm:$0xff]
        %v932 = vld [vmem:[%s309 + $0x1190] sm:$0xff]
        %v933 = vld [vmem:[%s309 + $0x1198] sm:$0xff]
        %v934 = vld [vmem:[%s309 + $0x11a0] sm:$0xff]
        %v935 = vld [vmem:[%s309 + $0x11a8] sm:$0xff]
        %v936 = vld [vmem:[%s309 + $0x11b0] sm:$0xff]
        %v937 = vld [vmem:[%s309 + $0x11b8] sm:$0xff]
        %v938 = vld [vmem:[%s309 + $0x11c0] sm:$0xff]
        %v939 = vld [vmem:[%s309 + $0x11c8] sm:$0xff]
        %v940 = vld [vmem:[%s309 + $0x11d0] sm:$0xff]
        %v941 = vld [vmem:[%s309 + $0x11d8] sm:$0xff]
        %v942 = vld [vmem:[%s309 + $0x11e0] sm:$0xff]
        %v943 = vld [vmem:[%s309 + $0x11e8] sm:$0xff]
        %v944 = vld [vmem:[%s309 + $0x11f0] sm:$0xff]
        %v945 = vld [vmem:[%s309 + $0x11f8] sm:$0xff]
        %v946 = vld [vmem:[%s309 + $0x1200] sm:$0xff]
        %v947 = vld [vmem:[%s309 + $0x1208] sm:$0xff]
        %v948 = vld [vmem:[%s309 + $0x1210] sm:$0xff]
        %v949 = vld [vmem:[%s309 + $0x1218] sm:$0xff]
        %v950 = vld [vmem:[%s309 + $0x1220] sm:$0xff]
        %v951 = vld [vmem:[%s309 + $0x1228] sm:$0xff]
        %v952 = vld [vmem:[%s309 + $0x1230] sm:$0xff]
        %v953 = vld [vmem:[%s309 + $0x1238] sm:$0xff]
        %v954 = vld [vmem:[%s309 + $0x1240] sm:$0xff]
        %v955 = vld [vmem:[%s309 + $0x1248] sm:$0xff]
        %v956 = vld [vmem:[%s309 + $0x1250] sm:$0xff]
        %v957 = vld [vmem:[%s309 + $0x1258] sm:$0xff]
        %v958 = vld [vmem:[%s309 + $0x1260] sm:$0xff]
        %v959 = vld [vmem:[%s309 + $0x1268] sm:$0xff]
        %v960 = vld [vmem:[%s309 + $0x1270] sm:$0xff]
        %v961 = vld [vmem:[%s309 + $0x1278] sm:$0xff]
        %v962 = vld [vmem:[%s309 + $0x1280] sm:$0xff]
        %v963 = vld [vmem:[%s309 + $0x1288] sm:$0xff]
        %v964 = vld [vmem:[%s309 + $0x1290] sm:$0xff]
        %v965 = vld [vmem:[%s309 + $0x1298] sm:$0xff]
        %v966 = vld [vmem:[%s309 + $0x12a0] sm:$0xff]
        %v967 = vld [vmem:[%s309 + $0x12a8] sm:$0xff]
        %v968 = vld [vmem:[%s309 + $0x12b0] sm:$0xff]
        %v969 = vld [vmem:[%s309 + $0x12b8] sm:$0xff]
        %v970 = vld [vmem:[%s309 + $0x12c0] sm:$0xff]
        %v971 = vld [vmem:[%s309 + $0x12c8] sm:$0xff]
        %v972 = vld [vmem:[%s309 + $0x12d0] sm:$0xff]
        %v973 = vld [vmem:[%s309 + $0x12d8] sm:$0xff]
        %v974 = vld [vmem:[%s309 + $0x12e0] sm:$0xff]
        %v975 = vld [vmem:[%s309 + $0x12e8] sm:$0xff]
        %v976 = vld [vmem:[%s309 + $0x12f0] sm:$0xff]
        %v977 = vld [vmem:[%s309 + $0x12f8] sm:$0xff]
        %v978 = vld [vmem:[%s309 + $0x1300] sm:$0xff]
        %v979 = vld [vmem:[%s309 + $0x1308] sm:$0xff]
        %v980 = vld [vmem:[%s309 + $0x1310] sm:$0xff]
        %v981 = vld [vmem:[%s309 + $0x1318] sm:$0xff]
        %v982 = vld [vmem:[%s309 + $0x1320] sm:$0xff]
        %v983 = vld [vmem:[%s309 + $0x1328] sm:$0xff]
        %v984 = vld [vmem:[%s309 + $0x1330] sm:$0xff]
        %v985 = vld [vmem:[%s309 + $0x1338] sm:$0xff]
        %v986 = vld [vmem:[%s309 + $0x1340] sm:$0xff]
        %v987 = vld [vmem:[%s309 + $0x1348] sm:$0xff]
        %v988 = vld [vmem:[%s309 + $0x1350] sm:$0xff]
        %v989 = vld [vmem:[%s309 + $0x1358] sm:$0xff]
        %v990 = vld [vmem:[%s309 + $0x1360] sm:$0xff]
        %v991 = vld [vmem:[%s309 + $0x1368] sm:$0xff]
        %v992 = vld [vmem:[%s309 + $0x1370] sm:$0xff]
        %v993 = vld [vmem:[%s309 + $0x1378] sm:$0xff]
        %v994 = vld [vmem:[%s309 + $0x1380] sm:$0xff]
        %v995 = vld [vmem:[%s309 + $0x1388] sm:$0xff]
        %v996 = vld [vmem:[%s309 + $0x1390] sm:$0xff]
        %v997 = vld [vmem:[%s309 + $0x1398] sm:$0xff]
        %v998 = vld [vmem:[%s309 + $0x13a0] sm:$0xff]
        %v999 = vld [vmem:[%s309 + $0x13a8] sm:$0xff]
        %v1000 = vld [vmem:[%s309 + $0x13b0] sm:$0xff]
        %v1001 = vld [vmem:[%s309 + $0x13b8] sm:$0xff]
        %v1002 = vld [vmem:[%s309 + $0x13c0] sm:$0xff]
        %v1003 = vld [vmem:[%s309 + $0x13c8] sm:$0xff]
        %v1004 = vld [vmem:[%s309 + $0x13d0] sm:$0xff]
        %v1005 = vld [vmem:[%s309 + $0x13d8] sm:$0xff]
        %v1006 = vld [vmem:[%s309 + $0x13e0] sm:$0xff]
        %v1007 = vld [vmem:[%s309 + $0x13e8] sm:$0xff]
        %v1008 = vld [vmem:[%s309 + $0x13f0] sm:$0xff]
        %v1009 = vld [vmem:[%s309 + $0x13f8] sm:$0xff]
        %v1010 = vld [vmem:[%s309 + $0x1400] sm:$0xff]
        %v1011 = vld [vmem:[%s309 + $0x1408] sm:$0xff]
        %v1012 = vld [vmem:[%s309 + $0x1410] sm:$0xff]
        %v1013 = vld [vmem:[%s309 + $0x1418] sm:$0xff]
        %v1014 = vld [vmem:[%s309 + $0x1420] sm:$0xff]
        %v1015 = vld [vmem:[%s309 + $0x1428] sm:$0xff]
        %v1016 = vld [vmem:[%s309 + $0x1430] sm:$0xff]
        %v1017 = vld [vmem:[%s309 + $0x1438] sm:$0xff]
        %v1018 = vld [vmem:[%s309 + $0x1440] sm:$0xff]
        %v1019 = vld [vmem:[%s309 + $0x1448] sm:$0xff]
        %v1020 = vld [vmem:[%s309 + $0x1450] sm:$0xff]
        %v1021 = vld [vmem:[%s309 + $0x1458] sm:$0xff]
        %v1022 = vld [vmem:[%s309 + $0x1460] sm:$0xff]
        %v1023 = vld [vmem:[%s309 + $0x1468] sm:$0xff]
        %v1024 = vld [vmem:[%s309 + $0x1470] sm:$0xff]
        %v1025 = vld [vmem:[%s309 + $0x1478] sm:$0xff]
        %v1026 = vld [vmem:[%s309 + $0x1480] sm:$0xff]
        %v1027 = vld [vmem:[%s309 + $0x1488] sm:$0xff]
        %v1028 = vld [vmem:[%s309 + $0x1490] sm:$0xff]
        %v1029 = vld [vmem:[%s309 + $0x1498] sm:$0xff]
        %v1030 = vld [vmem:[%s309 + $0x14a0] sm:$0xff]
        %v1031 = vld [vmem:[%s309 + $0x14a8] sm:$0xff]
        %v1032 = vld [vmem:[%s309 + $0x14b0] sm:$0xff]
        %v1033 = vld [vmem:[%s309 + $0x14b8] sm:$0xff]
        %v1034 = vld [vmem:[%s309 + $0x14c0] sm:$0xff]
        %v1035 = vld [vmem:[%s309 + $0x14c8] sm:$0xff]
        %v1036 = vld [vmem:[%s309 + $0x14d0] sm:$0xff]
        %v1037 = vld [vmem:[%s309 + $0x14d8] sm:$0xff]
        %v1038 = vld [vmem:[%s309 + $0x14e0] sm:$0xff]
        %v1039 = vld [vmem:[%s309 + $0x14e8] sm:$0xff]
        %v1040 = vld [vmem:[%s309 + $0x14f0] sm:$0xff]
        %v1041 = vld [vmem:[%s309 + $0x14f8] sm:$0xff]
        %v1042 = vld [vmem:[%s309 + $0x1500] sm:$0xff]
        %v1043 = vld [vmem:[%s309 + $0x1508] sm:$0xff]
        %v1044 = vld [vmem:[%s309 + $0x1510] sm:$0xff]
        %v1045 = vld [vmem:[%s309 + $0x1518] sm:$0xff]
        %v1046 = vld [vmem:[%s309 + $0x1520] sm:$0xff]
        %v1047 = vld [vmem:[%s309 + $0x1528] sm:$0xff]
        %v1048 = vld [vmem:[%s309 + $0x1530] sm:$0xff]
        %v1049 = vld [vmem:[%s309 + $0x1538] sm:$0xff]
        %v1050 = vld [vmem:[%s309 + $0x1540] sm:$0xff]
        %v1051 = vld [vmem:[%s309 + $0x1548] sm:$0xff]
        %v1052 = vld [vmem:[%s309 + $0x1550] sm:$0xff]
        %v1053 = vld [vmem:[%s309 + $0x1558] sm:$0xff]
        %v1054 = vld [vmem:[%s309 + $0x1560] sm:$0xff]
        %v1055 = vld [vmem:[%s309 + $0x1568] sm:$0xff]
        %v1056 = vld [vmem:[%s309 + $0x1570] sm:$0xff]
        %v1057 = vld [vmem:[%s309 + $0x1578] sm:$0xff]
        %v1058 = vld [vmem:[%s309 + $0x1580] sm:$0xff]
        %v1059 = vld [vmem:[%s309 + $0x1588] sm:$0xff]
        %v1060 = vld [vmem:[%s309 + $0x1590] sm:$0xff]
        %v1061 = vld [vmem:[%s309 + $0x1598] sm:$0xff]
        %v1062 = vld [vmem:[%s309 + $0x15a0] sm:$0xff]
        %v1063 = vld [vmem:[%s309 + $0x15a8] sm:$0xff]
        %v1064 = vld [vmem:[%s309 + $0x15b0] sm:$0xff]
        %v1065 = vld [vmem:[%s309 + $0x15b8] sm:$0xff]
        %v1066 = vld [vmem:[%s309 + $0x15c0] sm:$0xff]
        %v1067 = vld [vmem:[%s309 + $0x15c8] sm:$0xff]
        %v1068 = vld [vmem:[%s309 + $0x15d0] sm:$0xff]
        %v1069 = vld [vmem:[%s309 + $0x15d8] sm:$0xff]
        %v1070 = vld [vmem:[%s309 + $0x15e0] sm:$0xff]
        %v1071 = vld [vmem:[%s309 + $0x15e8] sm:$0xff]
        %v1072 = vld [vmem:[%s309 + $0x15f0] sm:$0xff]
        %v1073 = vld [vmem:[%s309 + $0x15f8] sm:$0xff]
        %v1074 = vld [vmem:[%s309 + $0x1600] sm:$0xff]
        %v1075 = vld [vmem:[%s309 + $0x1608] sm:$0xff]
        %v1076 = vld [vmem:[%s309 + $0x1610] sm:$0xff]
        %v1077 = vld [vmem:[%s309 + $0x1618] sm:$0xff]
        %v1078 = vld [vmem:[%s309 + $0x1620] sm:$0xff]
        %v1079 = vld [vmem:[%s309 + $0x1628] sm:$0xff]
        %v1080 = vld [vmem:[%s309 + $0x1630] sm:$0xff]
        %v1081 = vld [vmem:[%s309 + $0x1638] sm:$0xff]
        %v1082 = vld [vmem:[%s309 + $0x1640] sm:$0xff]
        %v1083 = vld [vmem:[%s309 + $0x1648] sm:$0xff]
        %v1084 = vld [vmem:[%s309 + $0x1650] sm:$0xff]
        %v1085 = vld [vmem:[%s309 + $0x1658] sm:$0xff]
        %v1086 = vld [vmem:[%s309 + $0x1660] sm:$0xff]
        %v1087 = vld [vmem:[%s309 + $0x1668] sm:$0xff]
        %v1088 = vld [vmem:[%s309 + $0x1670] sm:$0xff]
        %v1089 = vld [vmem:[%s309 + $0x1678] sm:$0xff]
        %v1090 = vld [vmem:[%s309 + $0x1680] sm:$0xff]
        %v1091 = vld [vmem:[%s309 + $0x1688] sm:$0xff]
        %v1092 = vld [vmem:[%s309 + $0x1690] sm:$0xff]
        %v1093 = vld [vmem:[%s309 + $0x1698] sm:$0xff]
        %v1094 = vld [vmem:[%s309 + $0x16a0] sm:$0xff]
        %v1095 = vld [vmem:[%s309 + $0x16a8] sm:$0xff]
        %v1096 = vld [vmem:[%s309 + $0x16b0] sm:$0xff]
        %v1097 = vld [vmem:[%s309 + $0x16b8] sm:$0xff]
        %v1098 = vld [vmem:[%s309 + $0x16c0] sm:$0xff]
        %v1099 = vld [vmem:[%s309 + $0x16c8] sm:$0xff]
        %v1100 = vld [vmem:[%s309 + $0x16d0] sm:$0xff]
        %v1101 = vld [vmem:[%s309 + $0x16d8] sm:$0xff]
        %v1102 = vld [vmem:[%s309 + $0x16e0] sm:$0xff]
        %v1103 = vld [vmem:[%s309 + $0x16e8] sm:$0xff]
        %v1104 = vld [vmem:[%s309 + $0x16f0] sm:$0xff]
        %v1105 = vld [vmem:[%s309 + $0x16f8] sm:$0xff]
        %v1106 = vld [vmem:[%s309 + $0x1700] sm:$0xff]
        %v1107 = vld [vmem:[%s309 + $0x1708] sm:$0xff]
        %v1108 = vld [vmem:[%s309 + $0x1710] sm:$0xff]
        %v1109 = vld [vmem:[%s309 + $0x1718] sm:$0xff]
        %v1110 = vld [vmem:[%s309 + $0x1720] sm:$0xff]
        %v1111 = vld [vmem:[%s309 + $0x1728] sm:$0xff]
        %v1112 = vld [vmem:[%s309 + $0x1730] sm:$0xff]
        %v1113 = vld [vmem:[%s309 + $0x1738] sm:$0xff]
        %v1114 = vld [vmem:[%s309 + $0x1740] sm:$0xff]
        %v1115 = vld [vmem:[%s309 + $0x1748] sm:$0xff]
        %v1116 = vld [vmem:[%s309 + $0x1750] sm:$0xff]
        %v1117 = vld [vmem:[%s309 + $0x1758] sm:$0xff]
        %v1118 = vld [vmem:[%s309 + $0x1760] sm:$0xff]
        %v1119 = vld [vmem:[%s309 + $0x1768] sm:$0xff]
        %v1120 = vld [vmem:[%s309 + $0x1770] sm:$0xff]
        %v1121 = vld [vmem:[%s309 + $0x1778] sm:$0xff]
        %v1122 = vld [vmem:[%s309 + $0x1780] sm:$0xff]
        %v1123 = vld [vmem:[%s309 + $0x1788] sm:$0xff]
        %v1124 = vld [vmem:[%s309 + $0x1790] sm:$0xff]
        %v1125 = vld [vmem:[%s309 + $0x1798] sm:$0xff]
        %v1126 = vld [vmem:[%s309 + $0x17a0] sm:$0xff]
        %v1127 = vld [vmem:[%s309 + $0x17a8] sm:$0xff]
        %v1128 = vld [vmem:[%s309 + $0x17b0] sm:$0xff]
        %v1129 = vld [vmem:[%s309 + $0x17b8] sm:$0xff]
        %v1130 = vld [vmem:[%s309 + $0x17c0] sm:$0xff]
        %v1131 = vld [vmem:[%s309 + $0x17c8] sm:$0xff]
        %v1132 = vld [vmem:[%s309 + $0x17d0] sm:$0xff]
        %v1133 = vld [vmem:[%s309 + $0x17d8] sm:$0xff]
        %v1134 = vld [vmem:[%s309 + $0x17e0] sm:$0xff]
        %v1135 = vld [vmem:[%s309 + $0x17e8] sm:$0xff]
        %v1136 = vld [vmem:[%s309 + $0x17f0] sm:$0xff]
        %v1137 = vld [vmem:[%s309 + $0x17f8] sm:$0xff]
        %v1138 = vld [vmem:[%s309 + $0x1800] sm:$0xff]
        %v1139 = vld [vmem:[%s309 + $0x1808] sm:$0xff]
        %v1140 = vld [vmem:[%s309 + $0x1810] sm:$0xff]
        %v1141 = vld [vmem:[%s309 + $0x1818] sm:$0xff]
        %v1142 = vld [vmem:[%s309 + $0x1820] sm:$0xff]
        %v1143 = vld [vmem:[%s309 + $0x1828] sm:$0xff]
        %v1144 = vld [vmem:[%s309 + $0x1830] sm:$0xff]
        %v1145 = vld [vmem:[%s309 + $0x1838] sm:$0xff]
        %v1146 = vld [vmem:[%s309 + $0x1840] sm:$0xff]
        %v1147 = vld [vmem:[%s309 + $0x1848] sm:$0xff]
        %v1148 = vld [vmem:[%s309 + $0x1850] sm:$0xff]
        %v1149 = vld [vmem:[%s309 + $0x1858] sm:$0xff]
        %v1150 = vld [vmem:[%s309 + $0x1860] sm:$0xff]
        %v1151 = vld [vmem:[%s309 + $0x1868] sm:$0xff]
        %v1152 = vld [vmem:[%s309 + $0x1870] sm:$0xff]
        %v1153 = vld [vmem:[%s309 + $0x1878] sm:$0xff]
        %v1154 = vld [vmem:[%s309 + $0x1880] sm:$0xff]
        %v1155 = vld [vmem:[%s309 + $0x1888] sm:$0xff]
        %v1156 = vld [vmem:[%s309 + $0x1890] sm:$0xff]
        %v1157 = vld [vmem:[%s309 + $0x1898] sm:$0xff]
        %v1158 = vld [vmem:[%s309 + $0x18a0] sm:$0xff]
        %v1159 = vld [vmem:[%s309 + $0x18a8] sm:$0xff]
        %v1160 = vld [vmem:[%s309 + $0x18b0] sm:$0xff]
        %v1161 = vld [vmem:[%s309 + $0x18b8] sm:$0xff]
        %v1162 = vld [vmem:[%s309 + $0x18c0] sm:$0xff]
        %v1163 = vld [vmem:[%s309 + $0x18c8] sm:$0xff]
        %v1164 = vld [vmem:[%s309 + $0x18d0] sm:$0xff]
        %v1165 = vld [vmem:[%s309 + $0x18d8] sm:$0xff]
        %v1166 = vld [vmem:[%s309 + $0x18e0] sm:$0xff]
        %v1167 = vld [vmem:[%s309 + $0x18e8] sm:$0xff]
        %v1168 = vld [vmem:[%s309 + $0x18f0] sm:$0xff]
        %v1169 = vld [vmem:[%s309 + $0x18f8] sm:$0xff]
        %v1170 = vld [vmem:[%s309 + $0x1900] sm:$0xff]
        %v1171 = vld [vmem:[%s309 + $0x1908] sm:$0xff]
        %v1172 = vld [vmem:[%s309 + $0x1910] sm:$0xff]
        %v1173 = vld [vmem:[%s309 + $0x1918] sm:$0xff]
        %v1174 = vld [vmem:[%s309 + $0x1920] sm:$0xff]
        %v1175 = vld [vmem:[%s309 + $0x1928] sm:$0xff]
        %v1176 = vld [vmem:[%s309 + $0x1930] sm:$0xff]
        %v1177 = vld [vmem:[%s309 + $0x1938] sm:$0xff]
        %v1178 = vld [vmem:[%s309 + $0x1940] sm:$0xff]
        %v1179 = vld [vmem:[%s309 + $0x1948] sm:$0xff]
        %v1180 = vld [vmem:[%s309 + $0x1950] sm:$0xff]
        %v1181 = vld [vmem:[%s309 + $0x1958] sm:$0xff]
        %v1182 = vld [vmem:[%s309 + $0x1960] sm:$0xff]
        %v1183 = vld [vmem:[%s309 + $0x1968] sm:$0xff]
        %v1184 = vld [vmem:[%s309 + $0x1970] sm:$0xff]
        %v1185 = vld [vmem:[%s309 + $0x1978] sm:$0xff]
        %v1186 = vld [vmem:[%s309 + $0x1980] sm:$0xff]
        %v1187 = vld [vmem:[%s309 + $0x1988] sm:$0xff]
        %v1188 = vld [vmem:[%s309 + $0x1990] sm:$0xff]
        %v1189 = vld [vmem:[%s309 + $0x1998] sm:$0xff]
        %v1190 = vld [vmem:[%s309 + $0x19a0] sm:$0xff]
        %v1191 = vld [vmem:[%s309 + $0x19a8] sm:$0xff]
        %v1192 = vld [vmem:[%s309 + $0x19b0] sm:$0xff]
        %v1193 = vld [vmem:[%s309 + $0x19b8] sm:$0xff]
        %v1194 = vld [vmem:[%s309 + $0x19c0] sm:$0xff]
        %v1195 = vld [vmem:[%s309 + $0x19c8] sm:$0xff]
        %v1196 = vld [vmem:[%s309 + $0x19d0] sm:$0xff]
        %v1197 = vld [vmem:[%s309 + $0x19d8] sm:$0xff]
        %v1198 = vld [vmem:[%s309 + $0x19e0] sm:$0xff]
        %v1199 = vld [vmem:[%s309 + $0x19e8] sm:$0xff]
        %v1200 = vld [vmem:[%s309 + $0x19f0] sm:$0xff]
        %v1201 = vld [vmem:[%s309 + $0x19f8] sm:$0xff]
        %v1202 = vld [vmem:[%s309 + $0x1a00] sm:$0xff]
        %v1203 = vld [vmem:[%s309 + $0x1a08] sm:$0xff]
        %v1204 = vld [vmem:[%s309 + $0x1a10] sm:$0xff]
        %v1205 = vld [vmem:[%s309 + $0x1a18] sm:$0xff]
        %v1206 = vld [vmem:[%s309 + $0x1a20] sm:$0xff]
        %v1207 = vld [vmem:[%s309 + $0x1a28] sm:$0xff]
        %v1208 = vld [vmem:[%s309 + $0x1a30] sm:$0xff]
        %v1209 = vld [vmem:[%s309 + $0x1a38] sm:$0xff]
        %v1210 = vld [vmem:[%s309 + $0x1a40] sm:$0xff]
        %v1211 = vld [vmem:[%s309 + $0x1a48] sm:$0xff]
        %v1212 = vld [vmem:[%s309 + $0x1a50] sm:$0xff]
        %v1213 = vld [vmem:[%s309 + $0x1a58] sm:$0xff]
        %v1214 = vld [vmem:[%s309 + $0x1a60] sm:$0xff]
        %v1215 = vld [vmem:[%s309 + $0x1a68] sm:$0xff]
        %v1216 = vld [vmem:[%s309 + $0x1a70] sm:$0xff]
        %v1217 = vld [vmem:[%s309 + $0x1a78] sm:$0xff]
        %v1218 = vld [vmem:[%s309 + $0x1a80] sm:$0xff]
        %v1219 = vld [vmem:[%s309 + $0x1a88] sm:$0xff]
        %v1220 = vld [vmem:[%s309 + $0x1a90] sm:$0xff]
        %v1221 = vld [vmem:[%s309 + $0x1a98] sm:$0xff]
        %v1222 = vld [vmem:[%s309 + $0x1aa0] sm:$0xff]
        %v1223 = vld [vmem:[%s309 + $0x1aa8] sm:$0xff]
        %v1224 = vld [vmem:[%s309 + $0x1ab0] sm:$0xff]
        %v1225 = vld [vmem:[%s309 + $0x1ab8] sm:$0xff]
        %v1226 = vld [vmem:[%s309 + $0x1ac0] sm:$0xff]
        %v1227 = vld [vmem:[%s309 + $0x1ac8] sm:$0xff]
        %v1228 = vld [vmem:[%s309 + $0x1ad0] sm:$0xff]
        %v1229 = vld [vmem:[%s309 + $0x1ad8] sm:$0xff]
        %v1230 = vld [vmem:[%s309 + $0x1ae0] sm:$0xff]
        %v1231 = vld [vmem:[%s309 + $0x1ae8] sm:$0xff]
        %v1232 = vld [vmem:[%s309 + $0x1af0] sm:$0xff]
        %v1233 = vld [vmem:[%s309 + $0x1af8] sm:$0xff]
        %v1234 = vld [vmem:[%s309 + $0x1b00] sm:$0xff]
        %v1235 = vld [vmem:[%s309 + $0x1b08] sm:$0xff]
        %v1236 = vld [vmem:[%s309 + $0x1b10] sm:$0xff]
        %v1237 = vld [vmem:[%s309 + $0x1b18] sm:$0xff]
        %v1238 = vld [vmem:[%s309 + $0x1b20] sm:$0xff]
        %v1239 = vld [vmem:[%s309 + $0x1b28] sm:$0xff]
        %v1240 = vld [vmem:[%s309 + $0x1b30] sm:$0xff]
        %v1241 = vld [vmem:[%s309 + $0x1b38] sm:$0xff]
        %v1242 = vld [vmem:[%s309 + $0x1b40] sm:$0xff]
        %v1243 = vld [vmem:[%s309 + $0x1b48] sm:$0xff]
        %v1244 = vld [vmem:[%s309 + $0x1b50] sm:$0xff]
        %v1245 = vld [vmem:[%s309 + $0x1b58] sm:$0xff]
        %v1246 = vld [vmem:[%s309 + $0x1b60] sm:$0xff]
        %v1247 = vld [vmem:[%s309 + $0x1b68] sm:$0xff]
        %v1248 = vld [vmem:[%s309 + $0x1b70] sm:$0xff]
        %v1249 = vld [vmem:[%s309 + $0x1b78] sm:$0xff]
        %v1250 = vld [vmem:[%s309 + $0x1b80] sm:$0xff]
        %v1251 = vld [vmem:[%s309 + $0x1b88] sm:$0xff]
        %v1252 = vld [vmem:[%s309 + $0x1b90] sm:$0xff]
        %v1253 = vld [vmem:[%s309 + $0x1b98] sm:$0xff]
        %v1254 = vld [vmem:[%s309 + $0x1ba0] sm:$0xff]
        %v1255 = vld [vmem:[%s309 + $0x1ba8] sm:$0xff]
        %v1256 = vld [vmem:[%s309 + $0x1bb0] sm:$0xff]
        %v1257 = vld [vmem:[%s309 + $0x1bb8] sm:$0xff]
        %v1258 = vld [vmem:[%s309 + $0x1bc0] sm:$0xff]
        %v1259 = vld [vmem:[%s309 + $0x1bc8] sm:$0xff]
        %v1260 = vld [vmem:[%s309 + $0x1bd0] sm:$0xff]
        %v1261 = vld [vmem:[%s309 + $0x1bd8] sm:$0xff]
        %v1262 = vld [vmem:[%s309 + $0x1be0] sm:$0xff]
        %v1263 = vld [vmem:[%s309 + $0x1be8] sm:$0xff]
        %v1264 = vld [vmem:[%s309 + $0x1bf0] sm:$0xff]
        %v1265 = vld [vmem:[%s309 + $0x1bf8] sm:$0xff]
        %v1266 = vld [vmem:[%s309 + $0x1c00] sm:$0xff]
        %v1267 = vld [vmem:[%s309 + $0x1c08] sm:$0xff]
        %v1268 = vld [vmem:[%s309 + $0x1c10] sm:$0xff]
        %v1269 = vld [vmem:[%s309 + $0x1c18] sm:$0xff]
        %v1270 = vld [vmem:[%s309 + $0x1c20] sm:$0xff]
        %v1271 = vld [vmem:[%s309 + $0x1c28] sm:$0xff]
        %v1272 = vld [vmem:[%s309 + $0x1c30] sm:$0xff]
        %v1273 = vld [vmem:[%s309 + $0x1c38] sm:$0xff]
        %v1274 = vld [vmem:[%s309 + $0x1c40] sm:$0xff]
        %v1275 = vld [vmem:[%s309 + $0x1c48] sm:$0xff]
        %v1276 = vld [vmem:[%s309 + $0x1c50] sm:$0xff]
        %v1277 = vld [vmem:[%s309 + $0x1c58] sm:$0xff]
        %v1278 = vld [vmem:[%s309 + $0x1c60] sm:$0xff]
        %v1279 = vld [vmem:[%s309 + $0x1c68] sm:$0xff]
        %v1280 = vld [vmem:[%s309 + $0x1c70] sm:$0xff]
        %v1281 = vld [vmem:[%s309 + $0x1c78] sm:$0xff]
        %v1282 = vld [vmem:[%s309 + $0x1c80] sm:$0xff]
        %v1283 = vld [vmem:[%s309 + $0x1c88] sm:$0xff]
        %v1284 = vld [vmem:[%s309 + $0x1c90] sm:$0xff]
        %v1285 = vld [vmem:[%s309 + $0x1c98] sm:$0xff]
        %v1286 = vld [vmem:[%s309 + $0x1ca0] sm:$0xff]
        %v1287 = vld [vmem:[%s309 + $0x1ca8] sm:$0xff]
        %v1288 = vld [vmem:[%s309 + $0x1cb0] sm:$0xff]
        %v1289 = vld [vmem:[%s309 + $0x1cb8] sm:$0xff]
        %v1290 = vld [vmem:[%s309 + $0x1cc0] sm:$0xff]
        %v1291 = vld [vmem:[%s309 + $0x1cc8] sm:$0xff]
        %v1292 = vld [vmem:[%s309 + $0x1cd0] sm:$0xff]
        %v1293 = vld [vmem:[%s309 + $0x1cd8] sm:$0xff]
        %v1294 = vld [vmem:[%s309 + $0x1ce0] sm:$0xff]
        %v1295 = vld [vmem:[%s309 + $0x1ce8] sm:$0xff]
        %v1296 = vld [vmem:[%s309 + $0x1cf0] sm:$0xff]
        %v1297 = vld [vmem:[%s309 + $0x1cf8] sm:$0xff]
        %v1298 = vld [vmem:[%s309 + $0x1d00] sm:$0xff]
        %v1299 = vld [vmem:[%s309 + $0x1d08] sm:$0xff]
        %v1300 = vld [vmem:[%s309 + $0x1d10] sm:$0xff]
        %v1301 = vld [vmem:[%s309 + $0x1d18] sm:$0xff]
        %v1302 = vld [vmem:[%s309 + $0x1d20] sm:$0xff]
        %v1303 = vld [vmem:[%s309 + $0x1d28] sm:$0xff]
        %v1304 = vld [vmem:[%s309 + $0x1d30] sm:$0xff]
        %v1305 = vld [vmem:[%s309 + $0x1d38] sm:$0xff]
        %v1306 = vld [vmem:[%s309 + $0x1d40] sm:$0xff]
        %v1307 = vld [vmem:[%s309 + $0x1d48] sm:$0xff]
        %v1308 = vld [vmem:[%s309 + $0x1d50] sm:$0xff]
        %v1309 = vld [vmem:[%s309 + $0x1d58] sm:$0xff]
        %v1310 = vld [vmem:[%s309 + $0x1d60] sm:$0xff]
        %v1311 = vld [vmem:[%s309 + $0x1d68] sm:$0xff]
        %v1312 = vld [vmem:[%s309 + $0x1d70] sm:$0xff]
        %v1313 = vld [vmem:[%s309 + $0x1d78] sm:$0xff]
        %v1314 = vld [vmem:[%s309 + $0x1d80] sm:$0xff]
        %v1315 = vld [vmem:[%s309 + $0x1d88] sm:$0xff]
        %v1316 = vld [vmem:[%s309 + $0x1d90] sm:$0xff]
        %v1317 = vld [vmem:[%s309 + $0x1d98] sm:$0xff]
        %v1318 = vld [vmem:[%s309 + $0x1da0] sm:$0xff]
        %v1319 = vld [vmem:[%s309 + $0x1da8] sm:$0xff]
        %v1320 = vld [vmem:[%s309 + $0x1db0] sm:$0xff]
        %v1321 = vld [vmem:[%s309 + $0x1db8] sm:$0xff]
        %v1322 = vld [vmem:[%s309 + $0x1dc0] sm:$0xff]
        %v1323 = vld [vmem:[%s309 + $0x1dc8] sm:$0xff]
        %v1324 = vld [vmem:[%s309 + $0x1dd0] sm:$0xff]
        %v1325 = vld [vmem:[%s309 + $0x1dd8] sm:$0xff]
        %v1326 = vld [vmem:[%s309 + $0x1de0] sm:$0xff]
        %v1327 = vld [vmem:[%s309 + $0x1de8] sm:$0xff]
        %v1328 = vld [vmem:[%s309 + $0x1df0] sm:$0xff]
        %v1329 = vld [vmem:[%s309 + $0x1df8] sm:$0xff]
        %v1330 = vld [vmem:[%s309 + $0x1e00] sm:$0xff]
        %v1331 = vld [vmem:[%s309 + $0x1e08] sm:$0xff]
        %v1332 = vld [vmem:[%s309 + $0x1e10] sm:$0xff]
        %v1333 = vld [vmem:[%s309 + $0x1e18] sm:$0xff]
        %v1334 = vld [vmem:[%s309 + $0x1e20] sm:$0xff]
        %v1335 = vld [vmem:[%s309 + $0x1e28] sm:$0xff]
        %v1336 = vld [vmem:[%s309 + $0x1e30] sm:$0xff]
        %v1337 = vld [vmem:[%s309 + $0x1e38] sm:$0xff]
        %v1338 = vld [vmem:[%s309 + $0x1e40] sm:$0xff]
        %v1339 = vld [vmem:[%s309 + $0x1e48] sm:$0xff]
        %v1340 = vld [vmem:[%s309 + $0x1e50] sm:$0xff]
        %v1341 = vld [vmem:[%s309 + $0x1e58] sm:$0xff]
        %v1342 = vld [vmem:[%s309 + $0x1e60] sm:$0xff]
        %v1343 = vld [vmem:[%s309 + $0x1e68] sm:$0xff]
        %v1344 = vld [vmem:[%s309 + $0x1e70] sm:$0xff]
        %v1345 = vld [vmem:[%s309 + $0x1e78] sm:$0xff]
        %v1346 = vld [vmem:[%s309 + $0x1e80] sm:$0xff]
        %v1347 = vld [vmem:[%s309 + $0x1e88] sm:$0xff]
        %v1348 = vld [vmem:[%s309 + $0x1e90] sm:$0xff]
        %v1349 = vld [vmem:[%s309 + $0x1e98] sm:$0xff]
        %v1350 = vld [vmem:[%s309 + $0x1ea0] sm:$0xff]
        %v1351 = vld [vmem:[%s309 + $0x1ea8] sm:$0xff]
        %v1352 = vld [vmem:[%s309 + $0x1eb0] sm:$0xff]
        %v1353 = vld [vmem:[%s309 + $0x1eb8] sm:$0xff]
        %v1354 = vld [vmem:[%s309 + $0x1ec0] sm:$0xff]
        %v1355 = vld [vmem:[%s309 + $0x1ec8] sm:$0xff]
        %v1356 = vld [vmem:[%s309 + $0x1ed0] sm:$0xff]
        %v1357 = vld [vmem:[%s309 + $0x1ed8] sm:$0xff]
        %v1358 = vld [vmem:[%s309 + $0x1ee0] sm:$0xff]
        %v1359 = vld [vmem:[%s309 + $0x1ee8] sm:$0xff]
        %v1360 = vld [vmem:[%s309 + $0x1ef0] sm:$0xff]
        %v1361 = vld [vmem:[%s309 + $0x1ef8] sm:$0xff]
        %v1362 = vld [vmem:[%s309 + $0x1f00] sm:$0xff]
        %v1363 = vld [vmem:[%s309 + $0x1f08] sm:$0xff]
        %v1364 = vld [vmem:[%s309 + $0x1f10] sm:$0xff]
        %v1365 = vld [vmem:[%s309 + $0x1f18] sm:$0xff]
        %v1366 = vld [vmem:[%s309 + $0x1f20] sm:$0xff]
        %v1367 = vld [vmem:[%s309 + $0x1f28] sm:$0xff]
        %v1368 = vld [vmem:[%s309 + $0x1f30] sm:$0xff]
        %v1369 = vld [vmem:[%s309 + $0x1f38] sm:$0xff]
        %v1370 = vld [vmem:[%s309 + $0x1f40] sm:$0xff]
        %v1371 = vld [vmem:[%s309 + $0x1f48] sm:$0xff]
        %v1372 = vld [vmem:[%s309 + $0x1f50] sm:$0xff]
        %v1373 = vld [vmem:[%s309 + $0x1f58] sm:$0xff]
        %v1374 = vld [vmem:[%s309 + $0x1f60] sm:$0xff]
        %v1375 = vld [vmem:[%s309 + $0x1f68] sm:$0xff]
        %v1376 = vld [vmem:[%s309 + $0x1f70] sm:$0xff]
        %v1377 = vld [vmem:[%s309 + $0x1f78] sm:$0xff]
        %v1378 = vld [vmem:[%s309 + $0x1f80] sm:$0xff]
        %v1379 = vld [vmem:[%s309 + $0x1f88] sm:$0xff]
        %v1380 = vld [vmem:[%s309 + $0x1f90] sm:$0xff]
        %v1381 = vld [vmem:[%s309 + $0x1f98] sm:$0xff]
        %v1382 = vld [vmem:[%s309 + $0x1fa0] sm:$0xff]
        %v1383 = vld [vmem:[%s309 + $0x1fa8] sm:$0xff]
        %v1384 = vld [vmem:[%s309 + $0x1fb0] sm:$0xff]
        %v1385 = vld [vmem:[%s309 + $0x1fb8] sm:$0xff]
        %v1386 = vld [vmem:[%s309 + $0x1fc0] sm:$0xff]
        %v1387 = vld [vmem:[%s309 + $0x1fc8] sm:$0xff]
        %v1388 = vld [vmem:[%s309 + $0x1fd0] sm:$0xff]
        %v1389 = vld [vmem:[%s309 + $0x1fd8] sm:$0xff]
        %v1390 = vld [vmem:[%s309 + $0x1fe0] sm:$0xff]
        %v1391 = vld [vmem:[%s309 + $0x1fe8] sm:$0xff]
        %v1392 = vld [vmem:[%s309 + $0x1ff0] sm:$0xff]
        %v1393 = vld [vmem:[%s309 + $0x1ff8] sm:$0xff]
        %v1394 = vld [vmem:[%s309 + $0x2000] sm:$0xff]
        %v1395 = vld [vmem:[%s309 + $0x2008] sm:$0xff]
        %v1396 = vld [vmem:[%s309 + $0x2010] sm:$0xff]
        %v1397 = vld [vmem:[%s309 + $0x2018] sm:$0xff]
        %v1398 = vld [vmem:[%s309 + $0x2020] sm:$0xff]
        %v1399 = vld [vmem:[%s309 + $0x2028] sm:$0xff]
        %v1400 = vld [vmem:[%s309 + $0x2030] sm:$0xff]
        %v1401 = vld [vmem:[%s309 + $0x2038] sm:$0xff]
        %v1402 = vld [vmem:[%s309 + $0x2040] sm:$0xff]
        %v1403 = vld [vmem:[%s309 + $0x2048] sm:$0xff]
        %v1404 = vld [vmem:[%s309 + $0x2050] sm:$0xff]
        %v1405 = vld [vmem:[%s309 + $0x2058] sm:$0xff]
        %v1406 = vld [vmem:[%s309 + $0x2060] sm:$0xff]
        %v1407 = vld [vmem:[%s309 + $0x2068] sm:$0xff]
        %v1408 = vld [vmem:[%s309 + $0x2070] sm:$0xff]
        %v1409 = vld [vmem:[%s309 + $0x2078] sm:$0xff]
        %v1410 = vld [vmem:[%s309 + $0x2080] sm:$0xff]
        %v1411 = vld [vmem:[%s309 + $0x2088] sm:$0xff]
        %v1412 = vld [vmem:[%s309 + $0x2090] sm:$0xff]
        %v1413 = vld [vmem:[%s309 + $0x2098] sm:$0xff]
        %v1414 = vld [vmem:[%s309 + $0x20a0] sm:$0xff]
        %v1415 = vld [vmem:[%s309 + $0x20a8] sm:$0xff]
        %v1416 = vld [vmem:[%s309 + $0x20b0] sm:$0xff]
        %v1417 = vld [vmem:[%s309 + $0x20b8] sm:$0xff]
        %v1418 = vld [vmem:[%s309 + $0x20c0] sm:$0xff]
        %v1419 = vld [vmem:[%s309 + $0x20c8] sm:$0xff]
        %v1420 = vld [vmem:[%s309 + $0x20d0] sm:$0xff]
        %v1421 = vld [vmem:[%s309 + $0x20d8] sm:$0xff]
        %v1422 = vld [vmem:[%s309 + $0x20e0] sm:$0xff]
        %v1423 = vld [vmem:[%s309 + $0x20e8] sm:$0xff]
        %v1424 = vld [vmem:[%s309 + $0x20f0] sm:$0xff]
        %v1425 = vld [vmem:[%s309 + $0x20f8] sm:$0xff]
        %v1426 = vld [vmem:[%s309 + $0x2100] sm:$0xff]
        %v1427 = vld [vmem:[%s309 + $0x2108] sm:$0xff]
        %v1428 = vld [vmem:[%s309 + $0x2110] sm:$0xff]
        %v1429 = vld [vmem:[%s309 + $0x2118] sm:$0xff]
        %v1430 = vld [vmem:[%s309 + $0x2120] sm:$0xff]
        %v1431 = vld [vmem:[%s309 + $0x2128] sm:$0xff]
        %v1432 = vld [vmem:[%s309 + $0x2130] sm:$0xff]
        %v1433 = vld [vmem:[%s309 + $0x2138] sm:$0xff]
        %v1434 = vld [vmem:[%s309 + $0x2140] sm:$0xff]
        %v1435 = vld [vmem:[%s309 + $0x2148] sm:$0xff]
        %v1436 = vld [vmem:[%s309 + $0x2150] sm:$0xff]
        %v1437 = vld [vmem:[%s309 + $0x2158] sm:$0xff]
        %v1438 = vld [vmem:[%s309 + $0x2160] sm:$0xff]
        %v1439 = vld [vmem:[%s309 + $0x2168] sm:$0xff]
        %v1440 = vld [vmem:[%s309 + $0x2170] sm:$0xff]
        %v1441 = vld [vmem:[%s309 + $0x2178] sm:$0xff]
        %v1442 = vld [vmem:[%s309 + $0x2180] sm:$0xff]
        %v1443 = vld [vmem:[%s309 + $0x2188] sm:$0xff]
        %v1444 = vld [vmem:[%s309 + $0x2190] sm:$0xff]
        %v1445 = vld [vmem:[%s309 + $0x2198] sm:$0xff]
        %v1446 = vld [vmem:[%s309 + $0x21a0] sm:$0xff]
        %v1447 = vld [vmem:[%s309 + $0x21a8] sm:$0xff]
        %v1448 = vld [vmem:[%s309 + $0x21b0] sm:$0xff]
        %v1449 = vld [vmem:[%s309 + $0x21b8] sm:$0xff]
        %v1450 = vld [vmem:[%s309 + $0x21c0] sm:$0xff]
        %v1451 = vld [vmem:[%s309 + $0x21c8] sm:$0xff]
        %v1452 = vld [vmem:[%s309 + $0x21d0] sm:$0xff]
        %v1453 = vld [vmem:[%s309 + $0x21d8] sm:$0xff]
        %v1454 = vld [vmem:[%s309 + $0x21e0] sm:$0xff]
        %v1455 = vld [vmem:[%s309 + $0x21e8] sm:$0xff]
        %v1456 = vld [vmem:[%s309 + $0x21f0] sm:$0xff]
        %v1457 = vld [vmem:[%s309 + $0x21f8] sm:$0xff]
        %v1458 = vld [vmem:[%s309 + $0x2200] sm:$0xff]
        %v1459 = vld [vmem:[%s309 + $0x2208] sm:$0xff]
        %v1460 = vld [vmem:[%s309 + $0x2210] sm:$0xff]
        %v1461 = vld [vmem:[%s309 + $0x2218] sm:$0xff]
        %v1462 = vld [vmem:[%s309 + $0x2220] sm:$0xff]
        %v1463 = vld [vmem:[%s309 + $0x2228] sm:$0xff]
        %v1464 = vld [vmem:[%s309 + $0x2230] sm:$0xff]
        %v1465 = vld [vmem:[%s309 + $0x2238] sm:$0xff]
        %v1466 = vld [vmem:[%s309 + $0x2240] sm:$0xff]
        %v1467 = vld [vmem:[%s309 + $0x2248] sm:$0xff]
        %v1468 = vld [vmem:[%s309 + $0x2250] sm:$0xff]
        %v1469 = vld [vmem:[%s309 + $0x2258] sm:$0xff]
        %v1470 = vld [vmem:[%s309 + $0x2260] sm:$0xff]
        %v1471 = vld [vmem:[%s309 + $0x2268] sm:$0xff]
        %v1472 = vld [vmem:[%s309 + $0x2270] sm:$0xff]
        %v1473 = vld [vmem:[%s309 + $0x2278] sm:$0xff]
        %v1474 = vld [vmem:[%s309 + $0x2280] sm:$0xff]
        %v1475 = vld [vmem:[%s309 + $0x2288] sm:$0xff]
        %v1476 = vld [vmem:[%s309 + $0x2290] sm:$0xff]
        %v1477 = vld [vmem:[%s309 + $0x2298] sm:$0xff]
        %v1478 = vld [vmem:[%s309 + $0x22a0] sm:$0xff]
        %v1479 = vld [vmem:[%s309 + $0x22a8] sm:$0xff]
        %v1480 = vld [vmem:[%s309 + $0x22b0] sm:$0xff]
        %v1481 = vld [vmem:[%s309 + $0x22b8] sm:$0xff]
        %v1482 = vld [vmem:[%s309 + $0x22c0] sm:$0xff]
        %v1483 = vld [vmem:[%s309 + $0x22c8] sm:$0xff]
        %v1484 = vld [vmem:[%s309 + $0x22d0] sm:$0xff]
        %v1485 = vld [vmem:[%s309 + $0x22d8] sm:$0xff]
        %v1486 = vld [vmem:[%s309 + $0x22e0] sm:$0xff]
        %v1487 = vld [vmem:[%s309 + $0x22e8] sm:$0xff]
        %v1488 = vld [vmem:[%s309 + $0x22f0] sm:$0xff]
        %v1489 = vld [vmem:[%s309 + $0x22f8] sm:$0xff]
        %v1490 = vld [vmem:[%s309 + $0x2300] sm:$0xff]
        %v1491 = vld [vmem:[%s309 + $0x2308] sm:$0xff]
        %v1492 = vld [vmem:[%s309 + $0x2310] sm:$0xff]
        %v1493 = vld [vmem:[%s309 + $0x2318] sm:$0xff]
        %v1494 = vld [vmem:[%s309 + $0x2320] sm:$0xff]
        %v1495 = vld [vmem:[%s309 + $0x2328] sm:$0xff]
        %v1496 = vld [vmem:[%s309 + $0x2330] sm:$0xff]
        %v1497 = vld [vmem:[%s309 + $0x2338] sm:$0xff]
        %v1498 = vld [vmem:[%s309 + $0x2340] sm:$0xff]
        %v1499 = vld [vmem:[%s309 + $0x2348] sm:$0xff]
        %v1500 = vld [vmem:[%s309 + $0x2350] sm:$0xff]
        %v1501 = vld [vmem:[%s309 + $0x2358] sm:$0xff]
        %v1502 = vld [vmem:[%s309 + $0x2360] sm:$0xff]
        %v1503 = vld [vmem:[%s309 + $0x2368] sm:$0xff]
        %v1504 = vld [vmem:[%s309 + $0x2370] sm:$0xff]
        %v1505 = vld [vmem:[%s309 + $0x2378] sm:$0xff]
        %v1506 = vld [vmem:[%s309 + $0x2380] sm:$0xff]
        %v1507 = vld [vmem:[%s309 + $0x2388] sm:$0xff]
        %v1508 = vld [vmem:[%s309 + $0x2390] sm:$0xff]
        %v1509 = vld [vmem:[%s309 + $0x2398] sm:$0xff]
        %v1510 = vld [vmem:[%s309 + $0x23a0] sm:$0xff]
        %v1511 = vld [vmem:[%s309 + $0x23a8] sm:$0xff]
        %v1512 = vld [vmem:[%s309 + $0x23b0] sm:$0xff]
        %v1513 = vld [vmem:[%s309 + $0x23b8] sm:$0xff]
        %v1514 = vld [vmem:[%s309 + $0x23c0] sm:$0xff]
        %v1515 = vld [vmem:[%s309 + $0x23c8] sm:$0xff]
        %v1516 = vld [vmem:[%s309 + $0x23d0] sm:$0xff]
        %v1517 = vld [vmem:[%s309 + $0x23d8] sm:$0xff]
        %v1518 = vld [vmem:[%s309 + $0x23e0] sm:$0xff]
        %v1519 = vld [vmem:[%s309 + $0x23e8] sm:$0xff]
        %v1520 = vld [vmem:[%s309 + $0x23f0] sm:$0xff]
        %v1521 = vld [vmem:[%s309 + $0x23f8] sm:$0xff]
        %v1522 = vld [vmem:[%s309 + $0x2400] sm:$0xff]
        %v1523 = vld [vmem:[%s309 + $0x2408] sm:$0xff]
        %v1524 = vld [vmem:[%s309 + $0x2410] sm:$0xff]
        %v1525 = vld [vmem:[%s309 + $0x2418] sm:$0xff]
        %v1526 = vld [vmem:[%s309 + $0x2420] sm:$0xff]
        %v1527 = vld [vmem:[%s309 + $0x2428] sm:$0xff]
        %v1528 = vld [vmem:[%s309 + $0x2430] sm:$0xff]
        %v1529 = vld [vmem:[%s309 + $0x2438] sm:$0xff]
        %v1530 = vld [vmem:[%s309 + $0x2440] sm:$0xff]
        %v1531 = vld [vmem:[%s309 + $0x2448] sm:$0xff]
        %v1532 = vld [vmem:[%s309 + $0x2450] sm:$0xff]
        %v1533 = vld [vmem:[%s309 + $0x2458] sm:$0xff]
        %v1534 = vld [vmem:[%s309 + $0x2460] sm:$0xff]
        %v1535 = vld [vmem:[%s309 + $0x2468] sm:$0xff]
        %v1536 = vld [vmem:[%s309 + $0x2470] sm:$0xff]
        %v1537 = vld [vmem:[%s309 + $0x2478] sm:$0xff]
        %v1538 = vld [vmem:[%s309 + $0x2480] sm:$0xff]
        %v1539 = vld [vmem:[%s309 + $0x2488] sm:$0xff]
        %v1540 = vld [vmem:[%s309 + $0x2490] sm:$0xff]
        %v1541 = vld [vmem:[%s309 + $0x2498] sm:$0xff]
        %v1542 = vld [vmem:[%s309 + $0x24a0] sm:$0xff]
        %v1543 = vld [vmem:[%s309 + $0x24a8] sm:$0xff]
        %v1544 = vld [vmem:[%s309 + $0x24b0] sm:$0xff]
        %v1545 = vld [vmem:[%s309 + $0x24b8] sm:$0xff]
        %v1546 = vld [vmem:[%s309 + $0x24c0] sm:$0xff]
        %v1547 = vld [vmem:[%s309 + $0x24c8] sm:$0xff]
        %v1548 = vld [vmem:[%s309 + $0x24d0] sm:$0xff]
        %v1549 = vld [vmem:[%s309 + $0x24d8] sm:$0xff]
        %v1550 = vld [vmem:[%s309 + $0x24e0] sm:$0xff]
        %v1551 = vld [vmem:[%s309 + $0x24e8] sm:$0xff]
        %v1552 = vld [vmem:[%s309 + $0x24f0] sm:$0xff]
        %v1553 = vld [vmem:[%s309 + $0x24f8] sm:$0xff]
        %v1554 = vld [vmem:[%s309 + $0x2500] sm:$0xff]
        %v1555 = vld [vmem:[%s309 + $0x2508] sm:$0xff]
        %v1556 = vld [vmem:[%s309 + $0x2510] sm:$0xff]
        %v1557 = vld [vmem:[%s309 + $0x2518] sm:$0xff]
        %v1558 = vld [vmem:[%s309 + $0x2520] sm:$0xff]
        %v1559 = vld [vmem:[%s309 + $0x2528] sm:$0xff]
        %v1560 = vld [vmem:[%s309 + $0x2530] sm:$0xff]
        %v1561 = vld [vmem:[%s309 + $0x2538] sm:$0xff]
        %v1562 = vld [vmem:[%s309 + $0x2540] sm:$0xff]
        %v1563 = vld [vmem:[%s309 + $0x2548] sm:$0xff]
        %v1564 = vld [vmem:[%s309 + $0x2550] sm:$0xff]
        %v1565 = vld [vmem:[%s309 + $0x2558] sm:$0xff]
        %v1566 = vld [vmem:[%s309 + $0x2560] sm:$0xff]
        %v1567 = vld [vmem:[%s309 + $0x2568] sm:$0xff]
        %v1568 = vld [vmem:[%s309 + $0x2570] sm:$0xff]
        %v1569 = vld [vmem:[%s309 + $0x2578] sm:$0xff]
        %v1570 = vld [vmem:[%s309 + $0x2580] sm:$0xff]
        %v1571 = vld [vmem:[%s309 + $0x2588] sm:$0xff]
        %v1572 = vld [vmem:[%s309 + $0x2590] sm:$0xff]
        %v1573 = vld [vmem:[%s309 + $0x2598] sm:$0xff]
        %v1574 = vld [vmem:[%s309 + $0x25a0] sm:$0xff]
        %v1575 = vld [vmem:[%s309 + $0x25a8] sm:$0xff]
        %v1576 = vld [vmem:[%s309 + $0x25b0] sm:$0xff]
        %v1577 = vld [vmem:[%s309 + $0x25b8] sm:$0xff]
        %v1578 = vld [vmem:[%s309 + $0x25c0] sm:$0xff]
        %v1579 = vld [vmem:[%s309 + $0x25c8] sm:$0xff]
        %v1580 = vld [vmem:[%s309 + $0x25d0] sm:$0xff]
        %v1581 = vld [vmem:[%s309 + $0x25d8] sm:$0xff]
        %v1582 = vld [vmem:[%s309 + $0x25e0] sm:$0xff]
        %v1583 = vld [vmem:[%s309 + $0x25e8] sm:$0xff]
        %v1584 = vld [vmem:[%s309 + $0x25f0] sm:$0xff]
        %v1585 = vld [vmem:[%s309 + $0x25f8] sm:$0xff]
        %v1586 = vld [vmem:[%s309 + $0x2600] sm:$0xff]
        %v1587 = vld [vmem:[%s309 + $0x2608] sm:$0xff]
        %v1588 = vld [vmem:[%s309 + $0x2610] sm:$0xff]
        %v1589 = vld [vmem:[%s309 + $0x2618] sm:$0xff]
        %v1590 = vld [vmem:[%s309 + $0x2620] sm:$0xff]
        %v1591 = vld [vmem:[%s309 + $0x2628] sm:$0xff]
        %v1592 = vld [vmem:[%s309 + $0x2630] sm:$0xff]
        %v1593 = vld [vmem:[%s309 + $0x2638] sm:$0xff]
        %v1594 = vld [vmem:[%s309 + $0x2640] sm:$0xff]
        %v1595 = vld [vmem:[%s309 + $0x2648] sm:$0xff]
        %v1596 = vld [vmem:[%s309 + $0x2650] sm:$0xff]
        %v1597 = vld [vmem:[%s309 + $0x2658] sm:$0xff]
        %v1598 = vld [vmem:[%s309 + $0x2660] sm:$0xff]
        %v1599 = vld [vmem:[%s309 + $0x2668] sm:$0xff]
        %v1600 = vld [vmem:[%s309 + $0x2670] sm:$0xff]
        %v1601 = vld [vmem:[%s309 + $0x2678] sm:$0xff]
        %v1602 = vld [vmem:[%s309 + $0x2680] sm:$0xff]
        %v1603 = vld [vmem:[%s309 + $0x2688] sm:$0xff]
        %v1604 = vld [vmem:[%s309 + $0x2690] sm:$0xff]
        %v1605 = vld [vmem:[%s309 + $0x2698] sm:$0xff]
        %v1606 = vld [vmem:[%s309 + $0x26a0] sm:$0xff]
        %v1607 = vld [vmem:[%s309 + $0x26a8] sm:$0xff]
        %v1608 = vld [vmem:[%s309 + $0x26b0] sm:$0xff]
        %v1609 = vld [vmem:[%s309 + $0x26b8] sm:$0xff]
        %v1610 = vld [vmem:[%s309 + $0x26c0] sm:$0xff]
        %v1611 = vld [vmem:[%s309 + $0x26c8] sm:$0xff]
        %v1612 = vld [vmem:[%s309 + $0x26d0] sm:$0xff]
        %v1613 = vld [vmem:[%s309 + $0x26d8] sm:$0xff]
        %v1614 = vld [vmem:[%s309 + $0x26e0] sm:$0xff]
        %v1615 = vld [vmem:[%s309 + $0x26e8] sm:$0xff]
        %v1616 = vld [vmem:[%s309 + $0x26f0] sm:$0xff]
        %v1617 = vld [vmem:[%s309 + $0x26f8] sm:$0xff]
        %v1618 = vld [vmem:[%s309 + $0x2700] sm:$0xff]
        %v1619 = vld [vmem:[%s309 + $0x2708] sm:$0xff]
        %v1620 = vld [vmem:[%s309 + $0x2710] sm:$0xff]
        %v1621 = vld [vmem:[%s309 + $0x2718] sm:$0xff]
        %v1622 = vld [vmem:[%s309 + $0x2720] sm:$0xff]
        %v1623 = vld [vmem:[%s309 + $0x2728] sm:$0xff]
        %v1624 = vld [vmem:[%s309 + $0x2730] sm:$0xff]
        %v1625 = vld [vmem:[%s309 + $0x2738] sm:$0xff]
        %v1626 = vld [vmem:[%s309 + $0x2740] sm:$0xff]
        %v1627 = vld [vmem:[%s309 + $0x2748] sm:$0xff]
        %v1628 = vld [vmem:[%s309 + $0x2750] sm:$0xff]
        %v1629 = vld [vmem:[%s309 + $0x2758] sm:$0xff]
        %v1630 = vld [vmem:[%s309 + $0x2760] sm:$0xff]
        %v1631 = vld [vmem:[%s309 + $0x2768] sm:$0xff]
        %v1632 = vld [vmem:[%s309 + $0x2770] sm:$0xff]
        %v1633 = vld [vmem:[%s309 + $0x2778] sm:$0xff]
        %v1634 = vld [vmem:[%s309 + $0x2780] sm:$0xff]
        %v1635 = vld [vmem:[%s309 + $0x2788] sm:$0xff]
        %v1636 = vld [vmem:[%s309 + $0x2790] sm:$0xff]
        %v1637 = vld [vmem:[%s309 + $0x2798] sm:$0xff]
        %v1638 = vld [vmem:[%s309 + $0x27a0] sm:$0xff]
        %v1639 = vld [vmem:[%s309 + $0x27a8] sm:$0xff]
        %v1640 = vld [vmem:[%s309 + $0x27b0] sm:$0xff]
        %v1641 = vld [vmem:[%s309 + $0x27b8] sm:$0xff]
        %v1642 = vld [vmem:[%s309 + $0x27c0] sm:$0xff]
        %v1643 = vld [vmem:[%s309 + $0x27c8] sm:$0xff]
        %v1644 = vld [vmem:[%s309 + $0x27d0] sm:$0xff]
        %v1645 = vld [vmem:[%s309 + $0x27d8] sm:$0xff]
        %v1646 = vld [vmem:[%s309 + $0x27e0] sm:$0xff]
        %v1647 = vld [vmem:[%s309 + $0x27e8] sm:$0xff]
        %v1648 = vld [vmem:[%s309 + $0x27f0] sm:$0xff]
        %v1649 = vld [vmem:[%s309 + $0x27f8] sm:$0xff]
        %v1650 = vld [vmem:[%s309 + $0x2800] sm:$0xff]
        %v1651 = vld [vmem:[%s309 + $0x2808] sm:$0xff]
        %v1652 = vld [vmem:[%s309 + $0x2810] sm:$0xff]
        %v1653 = vld [vmem:[%s309 + $0x2818] sm:$0xff]
        %v1654 = vld [vmem:[%s309 + $0x2820] sm:$0xff]
        %v1655 = vld [vmem:[%s309 + $0x2828] sm:$0xff]
        %v1656 = vld [vmem:[%s309 + $0x2830] sm:$0xff]
        %v1657 = vld [vmem:[%s309 + $0x2838] sm:$0xff]
        %v1658 = vld [vmem:[%s309 + $0x2840] sm:$0xff]
        %v1659 = vld [vmem:[%s309 + $0x2848] sm:$0xff]
        %v1660 = vld [vmem:[%s309 + $0x2850] sm:$0xff]
        %v1661 = vld [vmem:[%s309 + $0x2858] sm:$0xff]
        %v1662 = vld [vmem:[%s309 + $0x2860] sm:$0xff]
        %v1663 = vld [vmem:[%s309 + $0x2868] sm:$0xff]
        %v1664 = vld [vmem:[%s309 + $0x2870] sm:$0xff]
        %v1665 = vld [vmem:[%s309 + $0x2878] sm:$0xff]
        %v1666 = vld [vmem:[%s309 + $0x2880] sm:$0xff]
        %v1667 = vld [vmem:[%s309 + $0x2888] sm:$0xff]
        %v1668 = vld [vmem:[%s309 + $0x2890] sm:$0xff]
        %v1669 = vld [vmem:[%s309 + $0x2898] sm:$0xff]
        %v1670 = vld [vmem:[%s309 + $0x28a0] sm:$0xff]
        %v1671 = vld [vmem:[%s309 + $0x28a8] sm:$0xff]
        %v1672 = vld [vmem:[%s309 + $0x28b0] sm:$0xff]
        %v1673 = vld [vmem:[%s309 + $0x28b8] sm:$0xff]
        %v1674 = vld [vmem:[%s309 + $0x28c0] sm:$0xff]
        %v1675 = vld [vmem:[%s309 + $0x28c8] sm:$0xff]
        %v1676 = vld [vmem:[%s309 + $0x28d0] sm:$0xff]
        %v1677 = vld [vmem:[%s309 + $0x28d8] sm:$0xff]
        %v1678 = vld [vmem:[%s309 + $0x28e0] sm:$0xff]
        %v1679 = vld [vmem:[%s309 + $0x28e8] sm:$0xff]
        %v1680 = vld [vmem:[%s309 + $0x28f0] sm:$0xff]
        %v1681 = vld [vmem:[%s309 + $0x28f8] sm:$0xff]
        %v1682 = vld [vmem:[%s309 + $0x2900] sm:$0xff]
        %v1683 = vld [vmem:[%s309 + $0x2908] sm:$0xff]
        %v1684 = vld [vmem:[%s309 + $0x2910] sm:$0xff]
        %v1685 = vld [vmem:[%s309 + $0x2918] sm:$0xff]
        %v1686 = vld [vmem:[%s309 + $0x2920] sm:$0xff]
        %v1687 = vld [vmem:[%s309 + $0x2928] sm:$0xff]
        %v1688 = vld [vmem:[%s309 + $0x2930] sm:$0xff]
        %v1689 = vld [vmem:[%s309 + $0x2938] sm:$0xff]
        %v1690 = vld [vmem:[%s309 + $0x2940] sm:$0xff]
        %v1691 = vld [vmem:[%s309 + $0x2948] sm:$0xff]
        %v1692 = vld [vmem:[%s309 + $0x2950] sm:$0xff]
        %v1693 = vld [vmem:[%s309 + $0x2958] sm:$0xff]
        %v1694 = vld [vmem:[%s309 + $0x2960] sm:$0xff]
        %v1695 = vld [vmem:[%s309 + $0x2968] sm:$0xff]
        %v1696 = vld [vmem:[%s309 + $0x2970] sm:$0xff]
        %v1697 = vld [vmem:[%s309 + $0x2978] sm:$0xff]
        %v1698 = vld [vmem:[%s309 + $0x2980] sm:$0xff]
        %v1699 = vld [vmem:[%s309 + $0x2988] sm:$0xff]
        %v1700 = vld [vmem:[%s309 + $0x2990] sm:$0xff]
        %v1701 = vld [vmem:[%s309 + $0x2998] sm:$0xff]
        %v1702 = vld [vmem:[%s309 + $0x29a0] sm:$0xff]
        %v1703 = vld [vmem:[%s309 + $0x29a8] sm:$0xff]
        %v1704 = vld [vmem:[%s309 + $0x29b0] sm:$0xff]
        %v1705 = vld [vmem:[%s309 + $0x29b8] sm:$0xff]
        %v1706 = vld [vmem:[%s309 + $0x29c0] sm:$0xff]
        %v1707 = vld [vmem:[%s309 + $0x29c8] sm:$0xff]
        %v1708 = vld [vmem:[%s309 + $0x29d0] sm:$0xff]
        %v1709 = vld [vmem:[%s309 + $0x29d8] sm:$0xff]
        %v1710 = vld [vmem:[%s309 + $0x29e0] sm:$0xff]
        %v1711 = vld [vmem:[%s309 + $0x29e8] sm:$0xff]
        %v1712 = vld [vmem:[%s309 + $0x29f0] sm:$0xff]
        %v1713 = vld [vmem:[%s309 + $0x29f8] sm:$0xff]
        %v1714 = vld [vmem:[%s309 + $0x2a00] sm:$0xff]
        %v1715 = vld [vmem:[%s309 + $0x2a08] sm:$0xff]
        %v1716 = vld [vmem:[%s309 + $0x2a10] sm:$0xff]
        %v1717 = vld [vmem:[%s309 + $0x2a18] sm:$0xff]
        %v1718 = vld [vmem:[%s309 + $0x2a20] sm:$0xff]
        %v1719 = vld [vmem:[%s309 + $0x2a28] sm:$0xff]
        %v1720 = vld [vmem:[%s309 + $0x2a30] sm:$0xff]
        %v1721 = vld [vmem:[%s309 + $0x2a38] sm:$0xff]
        %v1722 = vld [vmem:[%s309 + $0x2a40] sm:$0xff]
        %v1723 = vld [vmem:[%s309 + $0x2a48] sm:$0xff]
        %v1724 = vld [vmem:[%s309 + $0x2a50] sm:$0xff]
        %v1725 = vld [vmem:[%s309 + $0x2a58] sm:$0xff]
        %v1726 = vld [vmem:[%s309 + $0x2a60] sm:$0xff]
        %v1727 = vld [vmem:[%s309 + $0x2a68] sm:$0xff]
        %v1728 = vld [vmem:[%s309 + $0x2a70] sm:$0xff]
        %v1729 = vld [vmem:[%s309 + $0x2a78] sm:$0xff]
        %v1730 = vld [vmem:[%s309 + $0x2a80] sm:$0xff]
        %v1731 = vld [vmem:[%s309 + $0x2a88] sm:$0xff]
        %v1732 = vld [vmem:[%s309 + $0x2a90] sm:$0xff]
        %v1733 = vld [vmem:[%s309 + $0x2a98] sm:$0xff]
        %v1734 = vld [vmem:[%s309 + $0x2aa0] sm:$0xff]
        %v1735 = vld [vmem:[%s309 + $0x2aa8] sm:$0xff]
        %v1736 = vld [vmem:[%s309 + $0x2ab0] sm:$0xff]
        %v1737 = vld [vmem:[%s309 + $0x2ab8] sm:$0xff]
        %v1738 = vld [vmem:[%s309 + $0x2ac0] sm:$0xff]
        %v1739 = vld [vmem:[%s309 + $0x2ac8] sm:$0xff]
        %v1740 = vld [vmem:[%s309 + $0x2ad0] sm:$0xff]
        %v1741 = vld [vmem:[%s309 + $0x2ad8] sm:$0xff]
        %v1742 = vld [vmem:[%s309 + $0x2ae0] sm:$0xff]
        %v1743 = vld [vmem:[%s309 + $0x2ae8] sm:$0xff]
        %v1744 = vld [vmem:[%s309 + $0x2af0] sm:$0xff]
        %v1745 = vld [vmem:[%s309 + $0x2af8] sm:$0xff]
        %v1746 = vld [vmem:[%s309 + $0x2b00] sm:$0xff]
        %v1747 = vld [vmem:[%s309 + $0x2b08] sm:$0xff]
        %v1748 = vld [vmem:[%s309 + $0x2b10] sm:$0xff]
        %v1749 = vld [vmem:[%s309 + $0x2b18] sm:$0xff]
        %v1750 = vld [vmem:[%s309 + $0x2b20] sm:$0xff]
        %v1751 = vld [vmem:[%s309 + $0x2b28] sm:$0xff]
        %v1752 = vld [vmem:[%s309 + $0x2b30] sm:$0xff]
        %v1753 = vld [vmem:[%s309 + $0x2b38] sm:$0xff]
        %v1754 = vld [vmem:[%s309 + $0x2b40] sm:$0xff]
        %v1755 = vld [vmem:[%s309 + $0x2b48] sm:$0xff]
        %v1756 = vld [vmem:[%s309 + $0x2b50] sm:$0xff]
        %v1757 = vld [vmem:[%s309 + $0x2b58] sm:$0xff]
        %v1758 = vld [vmem:[%s309 + $0x2b60] sm:$0xff]
        %v1759 = vld [vmem:[%s309 + $0x2b68] sm:$0xff]
        %v1760 = vld [vmem:[%s309 + $0x2b70] sm:$0xff]
        %v1761 = vld [vmem:[%s309 + $0x2b78] sm:$0xff]
        %v1762 = vld [vmem:[%s309 + $0x2b80] sm:$0xff]
        %v1763 = vld [vmem:[%s309 + $0x2b88] sm:$0xff]
        %v1764 = vld [vmem:[%s309 + $0x2b90] sm:$0xff]
        %v1765 = vld [vmem:[%s309 + $0x2b98] sm:$0xff]
        %v1766 = vld [vmem:[%s309 + $0x2ba0] sm:$0xff]
        %v1767 = vld [vmem:[%s309 + $0x2ba8] sm:$0xff]
        %v1768 = vld [vmem:[%s309 + $0x2bb0] sm:$0xff]
        %v1769 = vld [vmem:[%s309 + $0x2bb8] sm:$0xff]
        %v1770 = vld [vmem:[%s309 + $0x2bc0] sm:$0xff]
        %v1771 = vld [vmem:[%s309 + $0x2bc8] sm:$0xff]
        %v1772 = vld [vmem:[%s309 + $0x2bd0] sm:$0xff]
        %v1773 = vld [vmem:[%s309 + $0x2bd8] sm:$0xff]
        %v1774 = vld [vmem:[%s309 + $0x2be0] sm:$0xff]
        %v1775 = vld [vmem:[%s309 + $0x2be8] sm:$0xff]
        %v1776 = vld [vmem:[%s309 + $0x2bf0] sm:$0xff]
        %v1777 = vld [vmem:[%s309 + $0x2bf8] sm:$0xff]
        %v1778 = vld [vmem:[%s309 + $0x2c00] sm:$0xff]
        %v1779 = vld [vmem:[%s309 + $0x2c08] sm:$0xff]
        %v1780 = vld [vmem:[%s309 + $0x2c10] sm:$0xff]
        %v1781 = vld [vmem:[%s309 + $0x2c18] sm:$0xff]
        %v1782 = vld [vmem:[%s309 + $0x2c20] sm:$0xff]
        %v1783 = vld [vmem:[%s309 + $0x2c28] sm:$0xff]
        %v1784 = vld [vmem:[%s309 + $0x2c30] sm:$0xff]
        %v1785 = vld [vmem:[%s309 + $0x2c38] sm:$0xff]
        %v1786 = vld [vmem:[%s309 + $0x2c40] sm:$0xff]
        %v1787 = vld [vmem:[%s309 + $0x2c48] sm:$0xff]
        %v1788 = vld [vmem:[%s309 + $0x2c50] sm:$0xff]
        %v1789 = vld [vmem:[%s309 + $0x2c58] sm:$0xff]
        %v1790 = vld [vmem:[%s309 + $0x2c60] sm:$0xff]
        %v1791 = vld [vmem:[%s309 + $0x2c68] sm:$0xff]
        %v1792 = vld [vmem:[%s309 + $0x2c70] sm:$0xff]
        %v1793 = vld [vmem:[%s309 + $0x2c78] sm:$0xff]
        %v1794 = vld [vmem:[%s309 + $0x2c80] sm:$0xff]
        %v1795 = vld [vmem:[%s309 + $0x2c88] sm:$0xff]
        %v1796 = vld [vmem:[%s309 + $0x2c90] sm:$0xff]
        %v1797 = vld [vmem:[%s309 + $0x2c98] sm:$0xff]
        %v1798 = vld [vmem:[%s309 + $0x2ca0] sm:$0xff]
        %v1799 = vld [vmem:[%s309 + $0x2ca8] sm:$0xff]
        %v1800 = vld [vmem:[%s309 + $0x2cb0] sm:$0xff]
        %v1801 = vld [vmem:[%s309 + $0x2cb8] sm:$0xff]
        %v1802 = vld [vmem:[%s309 + $0x2cc0] sm:$0xff]
        %v1803 = vld [vmem:[%s309 + $0x2cc8] sm:$0xff]
        %v1804 = vld [vmem:[%s309 + $0x2cd0] sm:$0xff]
        %v1805 = vld [vmem:[%s309 + $0x2cd8] sm:$0xff]
        %v1806 = vld [vmem:[%s309 + $0x2ce0] sm:$0xff]
        %v1807 = vld [vmem:[%s309 + $0x2ce8] sm:$0xff]
        %v1808 = vld [vmem:[%s309 + $0x2cf0] sm:$0xff]
        %v1809 = vld [vmem:[%s309 + $0x2cf8] sm:$0xff]
        %v1810 = vld [vmem:[%s309 + $0x2d00] sm:$0xff]
        %v1811 = vld [vmem:[%s309 + $0x2d08] sm:$0xff]
        %v1812 = vld [vmem:[%s309 + $0x2d10] sm:$0xff]
        %v1813 = vld [vmem:[%s309 + $0x2d18] sm:$0xff]
        %v1814 = vld [vmem:[%s309 + $0x2d20] sm:$0xff]
        %v1815 = vld [vmem:[%s309 + $0x2d28] sm:$0xff]
        %v1816 = vld [vmem:[%s309 + $0x2d30] sm:$0xff]
        %v1817 = vld [vmem:[%s309 + $0x2d38] sm:$0xff]
        %v1818 = vld [vmem:[%s309 + $0x2d40] sm:$0xff]
        %v1819 = vld [vmem:[%s309 + $0x2d48] sm:$0xff]
        %v1820 = vld [vmem:[%s309 + $0x2d50] sm:$0xff]
        %v1821 = vld [vmem:[%s309 + $0x2d58] sm:$0xff]
        %v1822 = vld [vmem:[%s309 + $0x2d60] sm:$0xff]
        %v1823 = vld [vmem:[%s309 + $0x2d68] sm:$0xff]
        %v1824 = vld [vmem:[%s309 + $0x2d70] sm:$0xff]
        %v1825 = vld [vmem:[%s309 + $0x2d78] sm:$0xff]
        %v1826 = vld [vmem:[%s309 + $0x2d80] sm:$0xff]
        %v1827 = vld [vmem:[%s309 + $0x2d88] sm:$0xff]
        %v1828 = vld [vmem:[%s309 + $0x2d90] sm:$0xff]
        %v1829 = vld [vmem:[%s309 + $0x2d98] sm:$0xff]
        %v1830 = vld [vmem:[%s309 + $0x2da0] sm:$0xff]
        %v1831 = vld [vmem:[%s309 + $0x2da8] sm:$0xff]
        %v1832 = vld [vmem:[%s309 + $0x2db0] sm:$0xff]
        %v1833 = vld [vmem:[%s309 + $0x2db8] sm:$0xff]
        %v1834 = vld [vmem:[%s309 + $0x2dc0] sm:$0xff]
        %v1835 = vld [vmem:[%s309 + $0x2dc8] sm:$0xff]
        %v1836 = vld [vmem:[%s309 + $0x2dd0] sm:$0xff]
        %v1837 = vld [vmem:[%s309 + $0x2dd8] sm:$0xff]
        %v1838 = vld [vmem:[%s309 + $0x2de0] sm:$0xff]
        %v1839 = vld [vmem:[%s309 + $0x2de8] sm:$0xff]
        %v1840 = vld [vmem:[%s309 + $0x2df0] sm:$0xff]
        %v1841 = vld [vmem:[%s309 + $0x2df8] sm:$0xff]
        %v1842 = vld [vmem:[%s309 + $0x2e00] sm:$0xff]
        %v1843 = vld [vmem:[%s309 + $0x2e08] sm:$0xff]
        %v1844 = vld [vmem:[%s309 + $0x2e10] sm:$0xff]
        %v1845 = vld [vmem:[%s309 + $0x2e18] sm:$0xff]
        %v1846 = vld [vmem:[%s309 + $0x2e20] sm:$0xff]
        %v1847 = vld [vmem:[%s309 + $0x2e28] sm:$0xff]
        %v1848 = vld [vmem:[%s309 + $0x2e30] sm:$0xff]
        %v1849 = vld [vmem:[%s309 + $0x2e38] sm:$0xff]
        %v1850 = vld [vmem:[%s309 + $0x2e40] sm:$0xff]
        %v1851 = vld [vmem:[%s309 + $0x2e48] sm:$0xff]
        %v1852 = vld [vmem:[%s309 + $0x2e50] sm:$0xff]
        %v1853 = vld [vmem:[%s309 + $0x2e58] sm:$0xff]
        %v1854 = vld [vmem:[%s309 + $0x2e60] sm:$0xff]
        %v1855 = vld [vmem:[%s309 + $0x2e68] sm:$0xff]
        %v1856 = vld [vmem:[%s309 + $0x2e70] sm:$0xff]
        %v1857 = vld [vmem:[%s309 + $0x2e78] sm:$0xff]
        %v1858 = vld [vmem:[%s309 + $0x2e80] sm:$0xff]
        %v1859 = vld [vmem:[%s309 + $0x2e88] sm:$0xff]
        %v1860 = vld [vmem:[%s309 + $0x2e90] sm:$0xff]
        %v1861 = vld [vmem:[%s309 + $0x2e98] sm:$0xff]
        %v1862 = vld [vmem:[%s309 + $0x2ea0] sm:$0xff]
        %v1863 = vld [vmem:[%s309 + $0x2ea8] sm:$0xff]
        %v1864 = vld [vmem:[%s309 + $0x2eb0] sm:$0xff]
        %v1865 = vld [vmem:[%s309 + $0x2eb8] sm:$0xff]
        %v1866 = vld [vmem:[%s309 + $0x2ec0] sm:$0xff]
        %v1867 = vld [vmem:[%s309 + $0x2ec8] sm:$0xff]
        %v1868 = vld [vmem:[%s309 + $0x2ed0] sm:$0xff]
        %v1869 = vld [vmem:[%s309 + $0x2ed8] sm:$0xff]
        %v1870 = vld [vmem:[%s309 + $0x2ee0] sm:$0xff]
        %v1871 = vld [vmem:[%s309 + $0x2ee8] sm:$0xff]
        %v1872 = vld [vmem:[%s309 + $0x2ef0] sm:$0xff]
        %v1873 = vld [vmem:[%s309 + $0x2ef8] sm:$0xff]
        %v1874 = vld [vmem:[%s309 + $0x2f00] sm:$0xff]
        %v1875 = vld [vmem:[%s309 + $0x2f08] sm:$0xff]
        %v1876 = vld [vmem:[%s309 + $0x2f10] sm:$0xff]
        %v1877 = vld [vmem:[%s309 + $0x2f18] sm:$0xff]
        %v1878 = vld [vmem:[%s309 + $0x2f20] sm:$0xff]
        %v1879 = vld [vmem:[%s309 + $0x2f28] sm:$0xff]
        %v1880 = vld [vmem:[%s309 + $0x2f30] sm:$0xff]
        %v1881 = vld [vmem:[%s309 + $0x2f38] sm:$0xff]
        %v1882 = vld [vmem:[%s309 + $0x2f40] sm:$0xff]
        %v1883 = vld [vmem:[%s309 + $0x2f48] sm:$0xff]
        %v1884 = vld [vmem:[%s309 + $0x2f50] sm:$0xff]
        %v1885 = vld [vmem:[%s309 + $0x2f58] sm:$0xff]
        %v1886 = vld [vmem:[%s309 + $0x2f60] sm:$0xff]
        %v1887 = vld [vmem:[%s309 + $0x2f68] sm:$0xff]
        %v1888 = vld [vmem:[%s309 + $0x2f70] sm:$0xff]
        %v1889 = vld [vmem:[%s309 + $0x2f78] sm:$0xff]
        %v1890 = vld [vmem:[%s309 + $0x2f80] sm:$0xff]
        %v1891 = vld [vmem:[%s309 + $0x2f88] sm:$0xff]
        %v1892 = vld [vmem:[%s309 + $0x2f90] sm:$0xff]
        %v1893 = vld [vmem:[%s309 + $0x2f98] sm:$0xff]
        %v1894 = vld [vmem:[%s309 + $0x2fa0] sm:$0xff]
        %v1895 = vld [vmem:[%s309 + $0x2fa8] sm:$0xff]
        %v1896 = vld [vmem:[%s309 + $0x2fb0] sm:$0xff]
        %v1897 = vld [vmem:[%s309 + $0x2fb8] sm:$0xff]
        %v1898 = vld [vmem:[%s309 + $0x2fc0] sm:$0xff]
        %v1899 = vld [vmem:[%s309 + $0x2fc8] sm:$0xff]
        %v1900 = vld [vmem:[%s309 + $0x2fd0] sm:$0xff]
        %v1901 = vld [vmem:[%s309 + $0x2fd8] sm:$0xff]
        %v1902 = vld [vmem:[%s309 + $0x2fe0] sm:$0xff]
        %v1903 = vld [vmem:[%s309 + $0x2fe8] sm:$0xff]
        %v1904 = vld [vmem:[%s309 + $0x2ff0] sm:$0xff]
        %v1905 = vld [vmem:[%s309 + $0x2ff8] sm:$0xff]
        %v1906 = vld [vmem:[%s309 + $0x3000] sm:$0xff]
        %v1907 = vld [vmem:[%s309 + $0x3008] sm:$0xff]
        %v1908 = vld [vmem:[%s309 + $0x3010] sm:$0xff]
        %v1909 = vld [vmem:[%s309 + $0x3018] sm:$0xff]
        %v1910 = vld [vmem:[%s309 + $0x3020] sm:$0xff]
        %v1911 = vld [vmem:[%s309 + $0x3028] sm:$0xff]
        %v1912 = vld [vmem:[%s309 + $0x3030] sm:$0xff]
        %v1913 = vld [vmem:[%s309 + $0x3038] sm:$0xff]
        %v1914 = vld [vmem:[%s309 + $0x3040] sm:$0xff]
        %v1915 = vld [vmem:[%s309 + $0x3048] sm:$0xff]
        %v1916 = vld [vmem:[%s309 + $0x3050] sm:$0xff]
        %v1917 = vld [vmem:[%s309 + $0x3058] sm:$0xff]
        %v1918 = vld [vmem:[%s309 + $0x3060] sm:$0xff]
        %v1919 = vld [vmem:[%s309 + $0x3068] sm:$0xff]
        %v1920 = vld [vmem:[%s309 + $0x3070] sm:$0xff]
        %v1921 = vld [vmem:[%s309 + $0x3078] sm:$0xff]
        %v1922 = vld [vmem:[%s309 + $0x3080] sm:$0xff]
        %v1923 = vld [vmem:[%s309 + $0x3088] sm:$0xff]
        %v1924 = vld [vmem:[%s309 + $0x3090] sm:$0xff]
        %v1925 = vld [vmem:[%s309 + $0x3098] sm:$0xff]
        %v1926 = vld [vmem:[%s309 + $0x30a0] sm:$0xff]
        %v1927 = vld [vmem:[%s309 + $0x30a8] sm:$0xff]
        %v1928 = vld [vmem:[%s309 + $0x30b0] sm:$0xff]
        %v1929 = vld [vmem:[%s309 + $0x30b8] sm:$0xff]
        %v1930 = vld [vmem:[%s309 + $0x30c0] sm:$0xff]
        %v1931 = vld [vmem:[%s309 + $0x30c8] sm:$0xff]
        %v1932 = vld [vmem:[%s309 + $0x30d0] sm:$0xff]
        %v1933 = vld [vmem:[%s309 + $0x30d8] sm:$0xff]
        %v1934 = vld [vmem:[%s309 + $0x30e0] sm:$0xff]
        %v1935 = vld [vmem:[%s309 + $0x30e8] sm:$0xff]
        %v1936 = vld [vmem:[%s309 + $0x30f0] sm:$0xff]
        %v1937 = vld [vmem:[%s309 + $0x30f8] sm:$0xff]
        %v1938 = vld [vmem:[%s309 + $0x3100] sm:$0xff]
        %v1939 = vld [vmem:[%s309 + $0x3108] sm:$0xff]
        %v1940 = vld [vmem:[%s309 + $0x3110] sm:$0xff]
        %v1941 = vld [vmem:[%s309 + $0x3118] sm:$0xff]
        %v1942 = vld [vmem:[%s309 + $0x3120] sm:$0xff]
        %v1943 = vld [vmem:[%s309 + $0x3128] sm:$0xff]
        %v1944 = vld [vmem:[%s309 + $0x3130] sm:$0xff]
        %v1945 = vld [vmem:[%s309 + $0x3138] sm:$0xff]
        %v1946 = vld [vmem:[%s309 + $0x3140] sm:$0xff]
        %v1947 = vld [vmem:[%s309 + $0x3148] sm:$0xff]
        %v1948 = vld [vmem:[%s309 + $0x3150] sm:$0xff]
        %v1949 = vld [vmem:[%s309 + $0x3158] sm:$0xff]
        %v1950 = vld [vmem:[%s309 + $0x3160] sm:$0xff]
        %v1951 = vld [vmem:[%s309 + $0x3168] sm:$0xff]
        %v1952 = vld [vmem:[%s309 + $0x3170] sm:$0xff]
        %v1953 = vld [vmem:[%s309 + $0x3178] sm:$0xff]
        %v1954 = vld [vmem:[%s309 + $0x3180] sm:$0xff]
        %v1955 = vld [vmem:[%s309 + $0x3188] sm:$0xff]
        %v1956 = vld [vmem:[%s309 + $0x3190] sm:$0xff]
        %v1957 = vld [vmem:[%s309 + $0x3198] sm:$0xff]
        %v1958 = vld [vmem:[%s309 + $0x31a0] sm:$0xff]
        %v1959 = vld [vmem:[%s309 + $0x31a8] sm:$0xff]
        %v1960 = vld [vmem:[%s309 + $0x31b0] sm:$0xff]
        %v1961 = vld [vmem:[%s309 + $0x31b8] sm:$0xff]
        %v1962 = vld [vmem:[%s309 + $0x31c0] sm:$0xff]
        %v1963 = vld [vmem:[%s309 + $0x31c8] sm:$0xff]
        %v1964 = vld [vmem:[%s309 + $0x31d0] sm:$0xff]
        %v1965 = vld [vmem:[%s309 + $0x31d8] sm:$0xff]
        %v1966 = vld [vmem:[%s309 + $0x31e0] sm:$0xff]
        %v1967 = vld [vmem:[%s309 + $0x31e8] sm:$0xff]
        %v1968 = vld [vmem:[%s309 + $0x31f0] sm:$0xff]
        %v1969 = vld [vmem:[%s309 + $0x31f8] sm:$0xff]
        %v1970 = vld [vmem:[%s309 + $0x3200] sm:$0xff]
        %v1971 = vld [vmem:[%s309 + $0x3208] sm:$0xff]
        %v1972 = vld [vmem:[%s309 + $0x3210] sm:$0xff]
        %v1973 = vld [vmem:[%s309 + $0x3218] sm:$0xff]
        %v1974 = vld [vmem:[%s309 + $0x3220] sm:$0xff]
        %v1975 = vld [vmem:[%s309 + $0x3228] sm:$0xff]
        %v1976 = vld [vmem:[%s309 + $0x3230] sm:$0xff]
        %v1977 = vld [vmem:[%s309 + $0x3238] sm:$0xff]
        %v1978 = vld [vmem:[%s309 + $0x3240] sm:$0xff]
        %v1979 = vld [vmem:[%s309 + $0x3248] sm:$0xff]
        %v1980 = vld [vmem:[%s309 + $0x3250] sm:$0xff]
        %v1981 = vld [vmem:[%s309 + $0x3258] sm:$0xff]
        %v1982 = vld [vmem:[%s309 + $0x3260] sm:$0xff]
        %v1983 = vld [vmem:[%s309 + $0x3268] sm:$0xff]
        %v1984 = vld [vmem:[%s309 + $0x3270] sm:$0xff]
        %v1985 = vld [vmem:[%s309 + $0x3278] sm:$0xff]
        %v1986 = vld [vmem:[%s309 + $0x3280] sm:$0xff]
        %v1987 = vld [vmem:[%s309 + $0x3288] sm:$0xff]
        %v1988 = vld [vmem:[%s309 + $0x3290] sm:$0xff]
        %v1989 = vld [vmem:[%s309 + $0x3298] sm:$0xff]
        %v1990 = vld [vmem:[%s309 + $0x32a0] sm:$0xff]
        %v1991 = vld [vmem:[%s309 + $0x32a8] sm:$0xff]
        %v1992 = vld [vmem:[%s309 + $0x32b0] sm:$0xff]
        %v1993 = vld [vmem:[%s309 + $0x32b8] sm:$0xff]
        %v1994 = vld [vmem:[%s309 + $0x32c0] sm:$0xff]
        %v1995 = vld [vmem:[%s309 + $0x32c8] sm:$0xff]
        %v1996 = vld [vmem:[%s309 + $0x32d0] sm:$0xff]
        %v1997 = vld [vmem:[%s309 + $0x32d8] sm:$0xff]
        %v1998 = vld [vmem:[%s309 + $0x32e0] sm:$0xff]
        %v1999 = vld [vmem:[%s309 + $0x32e8] sm:$0xff]
        %v2000 = vld [vmem:[%s309 + $0x32f0] sm:$0xff]
        %v2001 = vld [vmem:[%s309 + $0x32f8] sm:$0xff]
        %v2002 = vld [vmem:[%s309 + $0x3300] sm:$0xff]
        %v2003 = vld [vmem:[%s309 + $0x3308] sm:$0xff]
        %v2004 = vld [vmem:[%s309 + $0x3310] sm:$0xff]
        %v2005 = vld [vmem:[%s309 + $0x3318] sm:$0xff]
        %v2006 = vld [vmem:[%s309 + $0x3320] sm:$0xff]
        %v2007 = vld [vmem:[%s309 + $0x3328] sm:$0xff]
        %v2008 = vld [vmem:[%s309 + $0x3330] sm:$0xff]
        %v2009 = vld [vmem:[%s309 + $0x3338] sm:$0xff]
        %v2010 = vld [vmem:[%s309 + $0x3340] sm:$0xff]
        %v2011 = vld [vmem:[%s309 + $0x3348] sm:$0xff]
        %v2012 = vld [vmem:[%s309 + $0x3350] sm:$0xff]
        %v2013 = vld [vmem:[%s309 + $0x3358] sm:$0xff]
        %v2014 = vld [vmem:[%s309 + $0x3360] sm:$0xff]
        %v2015 = vld [vmem:[%s309 + $0x3368] sm:$0xff]
        %v2016 = vld [vmem:[%s309 + $0x3370] sm:$0xff]
        %v2017 = vld [vmem:[%s309 + $0x3378] sm:$0xff]
        %v2018 = vld [vmem:[%s309 + $0x3380] sm:$0xff]
        %v2019 = vld [vmem:[%s309 + $0x3388] sm:$0xff]
        %v2020 = vld [vmem:[%s309 + $0x3390] sm:$0xff]
        %v2021 = vld [vmem:[%s309 + $0x3398] sm:$0xff]
        %v2022 = vld [vmem:[%s309 + $0x33a0] sm:$0xff]
        %v2023 = vld [vmem:[%s309 + $0x33a8] sm:$0xff]
        %v2024 = vld [vmem:[%s309 + $0x33b0] sm:$0xff]
        %v2025 = vld [vmem:[%s309 + $0x33b8] sm:$0xff]
        %v2026 = vld [vmem:[%s309 + $0x33c0] sm:$0xff]
        %v2027 = vld [vmem:[%s309 + $0x33c8] sm:$0xff]
        %v2028 = vld [vmem:[%s309 + $0x33d0] sm:$0xff]
        %v2029 = vld [vmem:[%s309 + $0x33d8] sm:$0xff]
        %v2030 = vld [vmem:[%s309 + $0x33e0] sm:$0xff]
        %v2031 = vld [vmem:[%s309 + $0x33e8] sm:$0xff]
        %v2032 = vld [vmem:[%s309 + $0x33f0] sm:$0xff]
        %v2033 = vld [vmem:[%s309 + $0x33f8] sm:$0xff]
        %v2034 = vld [vmem:[%s309 + $0x3400] sm:$0xff]
        %v2035 = vld [vmem:[%s309 + $0x3408] sm:$0xff]
        %v2036 = vld [vmem:[%s309 + $0x3410] sm:$0xff]
        %v2037 = vld [vmem:[%s309 + $0x3418] sm:$0xff]
        %v2038 = vld [vmem:[%s309 + $0x3420] sm:$0xff]
        %v2039 = vld [vmem:[%s309 + $0x3428] sm:$0xff]
        %v2040 = vld [vmem:[%s309 + $0x3430] sm:$0xff]
        %v2041 = vld [vmem:[%s309 + $0x3438] sm:$0xff]
        %v2042 = vld [vmem:[%s309 + $0x3440] sm:$0xff]
        %v2043 = vld [vmem:[%s309 + $0x3448] sm:$0xff]
        %v2044 = vld [vmem:[%s309 + $0x3450] sm:$0xff]
        %v2045 = vld [vmem:[%s309 + $0x3458] sm:$0xff]
        %v2046 = vld [vmem:[%s309 + $0x3460] sm:$0xff]
        %v2047 = vld [vmem:[%s309 + $0x3468] sm:$0xff]
        %v2048 = vld [vmem:[%s309 + $0x3470] sm:$0xff]
        %v2049 = vld [vmem:[%s309 + $0x3478] sm:$0xff]
        %v2050 = vld [vmem:[%s309 + $0x3480] sm:$0xff]
        %v2051 = vld [vmem:[%s309 + $0x3488] sm:$0xff]
        %v2052 = vld [vmem:[%s309 + $0x3490] sm:$0xff]
        %v2053 = vld [vmem:[%s309 + $0x3498] sm:$0xff]
        %v2054 = vld [vmem:[%s309 + $0x34a0] sm:$0xff]
        %v2055 = vld [vmem:[%s309 + $0x34a8] sm:$0xff]
        %v2056 = vld [vmem:[%s309 + $0x34b0] sm:$0xff]
        %v2057 = vld [vmem:[%s309 + $0x34b8] sm:$0xff]
        %v2058 = vld [vmem:[%s309 + $0x34c0] sm:$0xff]
        %v2059 = vld [vmem:[%s309 + $0x34c8] sm:$0xff]
        %v2060 = vld [vmem:[%s309 + $0x34d0] sm:$0xff]
        %v2061 = vld [vmem:[%s309 + $0x34d8] sm:$0xff]
        %v2062 = vld [vmem:[%s309 + $0x34e0] sm:$0xff]
        %v2063 = vld [vmem:[%s309 + $0x34e8] sm:$0xff]
        %v2064 = vld [vmem:[%s309 + $0x34f0] sm:$0xff]
        %v2065 = vld [vmem:[%s309 + $0x34f8] sm:$0xff]
        %v2066 = vld [vmem:[%s309 + $0x3500] sm:$0xff]
        %v2067 = vld [vmem:[%s309 + $0x3508] sm:$0xff]
        %v2068 = vld [vmem:[%s309 + $0x3510] sm:$0xff]
        %v2069 = vld [vmem:[%s309 + $0x3518] sm:$0xff]
        %v2070 = vld [vmem:[%s309 + $0x3520] sm:$0xff]
        %v2071 = vld [vmem:[%s309 + $0x3528] sm:$0xff]
        %v2072 = vld [vmem:[%s309 + $0x3530] sm:$0xff]
        %v2073 = vld [vmem:[%s309 + $0x3538] sm:$0xff]
        %v2074 = vld [vmem:[%s309 + $0x3540] sm:$0xff]
        %v2075 = vld [vmem:[%s309 + $0x3548] sm:$0xff]
        %v2076 = vld [vmem:[%s309 + $0x3550] sm:$0xff]
        %v2077 = vld [vmem:[%s309 + $0x3558] sm:$0xff]
        %v2078 = vld [vmem:[%s309 + $0x3560] sm:$0xff]
        %v2079 = vld [vmem:[%s309 + $0x3568] sm:$0xff]
        %v2080 = vld [vmem:[%s309 + $0x3570] sm:$0xff]
        %v2081 = vld [vmem:[%s309 + $0x3578] sm:$0xff]
        %v2082 = vld [vmem:[%s309 + $0x3580] sm:$0xff]
        %v2083 = vld [vmem:[%s309 + $0x3588] sm:$0xff]
        %v2084 = vld [vmem:[%s309 + $0x3590] sm:$0xff]
        %v2085 = vld [vmem:[%s309 + $0x3598] sm:$0xff]
        %v2086 = vld [vmem:[%s309 + $0x35a0] sm:$0xff]
        %v2087 = vld [vmem:[%s309 + $0x35a8] sm:$0xff]
        %v2088 = vld [vmem:[%s309 + $0x35b0] sm:$0xff]
        %v2089 = vld [vmem:[%s309 + $0x35b8] sm:$0xff]
        %v2090 = vld [vmem:[%s309 + $0x35c0] sm:$0xff]
        %v2091 = vld [vmem:[%s309 + $0x35c8] sm:$0xff]
        %v2092 = vld [vmem:[%s309 + $0x35d0] sm:$0xff]
        %v2093 = vld [vmem:[%s309 + $0x35d8] sm:$0xff]
        %v2094 = vld [vmem:[%s309 + $0x35e0] sm:$0xff]
        %v2095 = vld [vmem:[%s309 + $0x35e8] sm:$0xff]
        %v2096 = vld [vmem:[%s309 + $0x35f0] sm:$0xff]
        %v2097 = vld [vmem:[%s309 + $0x35f8] sm:$0xff]
        %v2098 = vld [vmem:[%s309 + $0x3600] sm:$0xff]
        %v2099 = vld [vmem:[%s309 + $0x3608] sm:$0xff]
        %v2100 = vld [vmem:[%s309 + $0x3610] sm:$0xff]
        %v2101 = vld [vmem:[%s309 + $0x3618] sm:$0xff]
        %v2102 = vld [vmem:[%s309 + $0x3620] sm:$0xff]
        %v2103 = vld [vmem:[%s309 + $0x3628] sm:$0xff]
        %v2104 = vld [vmem:[%s309 + $0x3630] sm:$0xff]
        %v2105 = vld [vmem:[%s309 + $0x3638] sm:$0xff]
        %v2106 = vld [vmem:[%s309 + $0x3640] sm:$0xff]
        %v2107 = vld [vmem:[%s309 + $0x3648] sm:$0xff]
        %v2108 = vld [vmem:[%s309 + $0x3650] sm:$0xff]
        %v2109 = vld [vmem:[%s309 + $0x3658] sm:$0xff]
        %v2110 = vld [vmem:[%s309 + $0x3660] sm:$0xff]
        %v2111 = vld [vmem:[%s309 + $0x3668] sm:$0xff]
        %v2112 = vld [vmem:[%s309 + $0x3670] sm:$0xff]
        %v2113 = vld [vmem:[%s309 + $0x3678] sm:$0xff]
        %v2114 = vld [vmem:[%s309 + $0x3680] sm:$0xff]
        %v2115 = vld [vmem:[%s309 + $0x3688] sm:$0xff]
        %v2116 = vld [vmem:[%s309 + $0x3690] sm:$0xff]
        %v2117 = vld [vmem:[%s309 + $0x3698] sm:$0xff]
        %v2118 = vld [vmem:[%s309 + $0x36a0] sm:$0xff]
        %v2119 = vld [vmem:[%s309 + $0x36a8] sm:$0xff]
        %v2120 = vld [vmem:[%s309 + $0x36b0] sm:$0xff]
        %v2121 = vld [vmem:[%s309 + $0x36b8] sm:$0xff]
        %v2122 = vld [vmem:[%s309 + $0x36c0] sm:$0xff]
        %v2123 = vld [vmem:[%s309 + $0x36c8] sm:$0xff]
        %v2124 = vld [vmem:[%s309 + $0x36d0] sm:$0xff]
        %v2125 = vld [vmem:[%s309 + $0x36d8] sm:$0xff]
        %v2126 = vld [vmem:[%s309 + $0x36e0] sm:$0xff]
        %v2127 = vld [vmem:[%s309 + $0x36e8] sm:$0xff]
        %v2128 = vld [vmem:[%s309 + $0x36f0] sm:$0xff]
        %v2129 = vld [vmem:[%s309 + $0x36f8] sm:$0xff]
        %v2137 = vcombine.high %v362, %v362
        %v2139 = vunpack.c.l.s4 1966171168
        %v2140 = vunpack.c.0.s8 %v2139
        %v2141 = vlaneseq
        %v2142 = vshrl.u32 %v2141, 7
        %v2143 = vsub.s32 %v2140, %v2142
        %v2144 = vrot.slane %v362, %v2143
        %v2146 = vunpack.c.l.s4 1966171168
        %v2147 = vunpack.c.0.s8 %v2146
        %v2148 = vlaneseq
        %v2149 = vshrl.u32 %v2148, 7
        %v2150 = vsub.s32 %v2147, %v2149
        %v2151 = vrot.slane %v2137, %v2150
        %v2152 = vcombine.high %v2144, %v2144
        %v2153 = vcombine.high %v2151, %v2151
        %v2155 = vunpack.c.l.s4 1966171168
        %v2156 = vunpack.c.0.s8 %v2155
        %v2157 = vlaneseq
        %v2158 = vshrl.u32 %v2157, 7
        %v2159 = vsub.s32 %v2156, %v2158
        %v2160 = vrot.slane %v2144, %v2159
        %v2162 = vunpack.c.l.s4 1966171168
        %v2163 = vunpack.c.0.s8 %v2162
        %v2164 = vlaneseq
        %v2165 = vshrl.u32 %v2164, 7
        %v2166 = vsub.s32 %v2163, %v2165
        %v2167 = vrot.slane %v2151, %v2166
        %v2169 = vunpack.c.l.s4 1966171168
        %v2170 = vunpack.c.0.s8 %v2169
        %v2171 = vlaneseq
        %v2172 = vshrl.u32 %v2171, 7
        %v2173 = vsub.s32 %v2170, %v2172
        %v2174 = vrot.slane %v2152, %v2173
        %v2176 = vunpack.c.l.s4 1966171168
        %v2177 = vunpack.c.0.s8 %v2176
        %v2178 = vlaneseq
        %v2179 = vshrl.u32 %v2178, 7
        %v2180 = vsub.s32 %v2177, %v2179
        %v2181 = vrot.slane %v2153, %v2180
        %v2182 = vcombine.high %v2160, %v2160
        %v2183 = vcombine.high %v2167, %v2167
        %v2184 = vcombine.high %v2174, %v2174
        %v2185 = vcombine.high %v2181, %v2181
        %v2186 = vcombine.high %v363, %v363
        %v2188 = vunpack.c.l.s4 1966171168
        %v2189 = vunpack.c.0.s8 %v2188
        %v2190 = vlaneseq
        %v2191 = vshrl.u32 %v2190, 7
        %v2192 = vsub.s32 %v2189, %v2191
        %v2193 = vrot.slane %v363, %v2192
        %v2195 = vunpack.c.l.s4 1966171168
        %v2196 = vunpack.c.0.s8 %v2195
        %v2197 = vlaneseq
        %v2198 = vshrl.u32 %v2197, 7
        %v2199 = vsub.s32 %v2196, %v2198
        %v2200 = vrot.slane %v2186, %v2199
        %v2201 = vcombine.high %v2193, %v2193
        %v2202 = vcombine.high %v2200, %v2200
        %v2204 = vunpack.c.l.s4 1966171168
        %v2205 = vunpack.c.0.s8 %v2204
        %v2206 = vlaneseq
        %v2207 = vshrl.u32 %v2206, 7
        %v2208 = vsub.s32 %v2205, %v2207
        %v2209 = vrot.slane %v2193, %v2208
        %v2211 = vunpack.c.l.s4 1966171168
        %v2212 = vunpack.c.0.s8 %v2211
        %v2213 = vlaneseq
        %v2214 = vshrl.u32 %v2213, 7
        %v2215 = vsub.s32 %v2212, %v2214
        %v2216 = vrot.slane %v2200, %v2215
        %v2218 = vunpack.c.l.s4 1966171168
        %v2219 = vunpack.c.0.s8 %v2218
        %v2220 = vlaneseq
        %v2221 = vshrl.u32 %v2220, 7
        %v2222 = vsub.s32 %v2219, %v2221
        %v2223 = vrot.slane %v2201, %v2222
        %v2225 = vunpack.c.l.s4 1966171168
        %v2226 = vunpack.c.0.s8 %v2225
        %v2227 = vlaneseq
        %v2228 = vshrl.u32 %v2227, 7
        %v2229 = vsub.s32 %v2226, %v2228
        %v2230 = vrot.slane %v2202, %v2229
        %v2231 = vcombine.high %v2209, %v2209
        %v2232 = vcombine.high %v2216, %v2216
        %v2233 = vcombine.high %v2223, %v2223
        %v2234 = vcombine.high %v2230, %v2230
        %v2235 = vcombine.high %v364, %v364
        %v2237 = vunpack.c.l.s4 1966171168
        %v2238 = vunpack.c.0.s8 %v2237
        %v2239 = vlaneseq
        %v2240 = vshrl.u32 %v2239, 7
        %v2241 = vsub.s32 %v2238, %v2240
        %v2242 = vrot.slane %v364, %v2241
        %v2244 = vunpack.c.l.s4 1966171168
        %v2245 = vunpack.c.0.s8 %v2244
        %v2246 = vlaneseq
        %v2247 = vshrl.u32 %v2246, 7
        %v2248 = vsub.s32 %v2245, %v2247
        %v2249 = vrot.slane %v2235, %v2248
        %v2250 = vcombine.high %v2242, %v2242
        %v2251 = vcombine.high %v2249, %v2249
        %v2253 = vunpack.c.l.s4 1966171168
        %v2254 = vunpack.c.0.s8 %v2253
        %v2255 = vlaneseq
        %v2256 = vshrl.u32 %v2255, 7
        %v2257 = vsub.s32 %v2254, %v2256
        %v2258 = vrot.slane %v2242, %v2257
        %v2260 = vunpack.c.l.s4 1966171168
        %v2261 = vunpack.c.0.s8 %v2260
        %v2262 = vlaneseq
        %v2263 = vshrl.u32 %v2262, 7
        %v2264 = vsub.s32 %v2261, %v2263
        %v2265 = vrot.slane %v2249, %v2264
        %v2267 = vunpack.c.l.s4 1966171168
        %v2268 = vunpack.c.0.s8 %v2267
        %v2269 = vlaneseq
        %v2270 = vshrl.u32 %v2269, 7
        %v2271 = vsub.s32 %v2268, %v2270
        %v2272 = vrot.slane %v2250, %v2271
        %v2274 = vunpack.c.l.s4 1966171168
        %v2275 = vunpack.c.0.s8 %v2274
        %v2276 = vlaneseq
        %v2277 = vshrl.u32 %v2276, 7
        %v2278 = vsub.s32 %v2275, %v2277
        %v2279 = vrot.slane %v2251, %v2278
        %v2280 = vcombine.high %v2258, %v2258
        %v2281 = vcombine.high %v2265, %v2265
        %v2282 = vcombine.high %v2272, %v2272
        %v2283 = vcombine.high %v2279, %v2279
        %v2284 = vcombine.high %v365, %v365
        %v2286 = vunpack.c.l.s4 1966171168
        %v2287 = vunpack.c.0.s8 %v2286
        %v2288 = vlaneseq
        %v2289 = vshrl.u32 %v2288, 7
        %v2290 = vsub.s32 %v2287, %v2289
        %v2291 = vrot.slane %v365, %v2290
        %v2293 = vunpack.c.l.s4 1966171168
        %v2294 = vunpack.c.0.s8 %v2293
        %v2295 = vlaneseq
        %v2296 = vshrl.u32 %v2295, 7
        %v2297 = vsub.s32 %v2294, %v2296
        %v2298 = vrot.slane %v2284, %v2297
        %v2299 = vcombine.high %v2291, %v2291
        %v2300 = vcombine.high %v2298, %v2298
        %v2302 = vunpack.c.l.s4 1966171168
        %v2303 = vunpack.c.0.s8 %v2302
        %v2304 = vlaneseq
        %v2305 = vshrl.u32 %v2304, 7
        %v2306 = vsub.s32 %v2303, %v2305
        %v2307 = vrot.slane %v2291, %v2306
        %v2309 = vunpack.c.l.s4 1966171168
        %v2310 = vunpack.c.0.s8 %v2309
        %v2311 = vlaneseq
        %v2312 = vshrl.u32 %v2311, 7
        %v2313 = vsub.s32 %v2310, %v2312
        %v2314 = vrot.slane %v2298, %v2313
        %v2316 = vunpack.c.l.s4 1966171168
        %v2317 = vunpack.c.0.s8 %v2316
        %v2318 = vlaneseq
        %v2319 = vshrl.u32 %v2318, 7
        %v2320 = vsub.s32 %v2317, %v2319
        %v2321 = vrot.slane %v2299, %v2320
        %v2323 = vunpack.c.l.s4 1966171168
        %v2324 = vunpack.c.0.s8 %v2323
        %v2325 = vlaneseq
        %v2326 = vshrl.u32 %v2325, 7
        %v2327 = vsub.s32 %v2324, %v2326
        %v2328 = vrot.slane %v2300, %v2327
        %v2329 = vcombine.high %v2307, %v2307
        %v2330 = vcombine.high %v2314, %v2314
        %v2331 = vcombine.high %v2321, %v2321
        %v2332 = vcombine.high %v2328, %v2328
        %v2333 = vcombine.high %v366, %v366
        %v2335 = vunpack.c.l.s4 1966171168
        %v2336 = vunpack.c.0.s8 %v2335
        %v2337 = vlaneseq
        %v2338 = vshrl.u32 %v2337, 7
        %v2339 = vsub.s32 %v2336, %v2338
        %v2340 = vrot.slane %v366, %v2339
        %v2342 = vunpack.c.l.s4 1966171168
        %v2343 = vunpack.c.0.s8 %v2342
        %v2344 = vlaneseq
        %v2345 = vshrl.u32 %v2344, 7
        %v2346 = vsub.s32 %v2343, %v2345
        %v2347 = vrot.slane %v2333, %v2346
        %v2348 = vcombine.high %v2340, %v2340
        %v2349 = vcombine.high %v2347, %v2347
        %v2351 = vunpack.c.l.s4 1966171168
        %v2352 = vunpack.c.0.s8 %v2351
        %v2353 = vlaneseq
        %v2354 = vshrl.u32 %v2353, 7
        %v2355 = vsub.s32 %v2352, %v2354
        %v2356 = vrot.slane %v2340, %v2355
        %v2358 = vunpack.c.l.s4 1966171168
        %v2359 = vunpack.c.0.s8 %v2358
        %v2360 = vlaneseq
        %v2361 = vshrl.u32 %v2360, 7
        %v2362 = vsub.s32 %v2359, %v2361
        %v2363 = vrot.slane %v2347, %v2362
        %v2365 = vunpack.c.l.s4 1966171168
        %v2366 = vunpack.c.0.s8 %v2365
        %v2367 = vlaneseq
        %v2368 = vshrl.u32 %v2367, 7
        %v2369 = vsub.s32 %v2366, %v2368
        %v2370 = vrot.slane %v2348, %v2369
        %v2372 = vunpack.c.l.s4 1966171168
        %v2373 = vunpack.c.0.s8 %v2372
        %v2374 = vlaneseq
        %v2375 = vshrl.u32 %v2374, 7
        %v2376 = vsub.s32 %v2373, %v2375
        %v2377 = vrot.slane %v2349, %v2376
        %v2378 = vcombine.high %v2356, %v2356
        %v2379 = vcombine.high %v2363, %v2363
        %v2380 = vcombine.high %v2370, %v2370
        %v2381 = vcombine.high %v2377, %v2377
        %v2382 = vcombine.high %v367, %v367
        %v2384 = vunpack.c.l.s4 1966171168
        %v2385 = vunpack.c.0.s8 %v2384
        %v2386 = vlaneseq
        %v2387 = vshrl.u32 %v2386, 7
        %v2388 = vsub.s32 %v2385, %v2387
        %v2389 = vrot.slane %v367, %v2388
        %v2391 = vunpack.c.l.s4 1966171168
        %v2392 = vunpack.c.0.s8 %v2391
        %v2393 = vlaneseq
        %v2394 = vshrl.u32 %v2393, 7
        %v2395 = vsub.s32 %v2392, %v2394
        %v2396 = vrot.slane %v2382, %v2395
        %v2397 = vcombine.high %v2389, %v2389
        %v2398 = vcombine.high %v2396, %v2396
        %v2400 = vunpack.c.l.s4 1966171168
        %v2401 = vunpack.c.0.s8 %v2400
        %v2402 = vlaneseq
        %v2403 = vshrl.u32 %v2402, 7
        %v2404 = vsub.s32 %v2401, %v2403
        %v2405 = vrot.slane %v2389, %v2404
        %v2407 = vunpack.c.l.s4 1966171168
        %v2408 = vunpack.c.0.s8 %v2407
        %v2409 = vlaneseq
        %v2410 = vshrl.u32 %v2409, 7
        %v2411 = vsub.s32 %v2408, %v2410
        %v2412 = vrot.slane %v2396, %v2411
        %v2414 = vunpack.c.l.s4 1966171168
        %v2415 = vunpack.c.0.s8 %v2414
        %v2416 = vlaneseq
        %v2417 = vshrl.u32 %v2416, 7
        %v2418 = vsub.s32 %v2415, %v2417
        %v2419 = vrot.slane %v2397, %v2418
        %v2421 = vunpack.c.l.s4 1966171168
        %v2422 = vunpack.c.0.s8 %v2421
        %v2423 = vlaneseq
        %v2424 = vshrl.u32 %v2423, 7
        %v2425 = vsub.s32 %v2422, %v2424
        %v2426 = vrot.slane %v2398, %v2425
        %v2427 = vcombine.high %v2405, %v2405
        %v2428 = vcombine.high %v2412, %v2412
        %v2429 = vcombine.high %v2419, %v2419
        %v2430 = vcombine.high %v2426, %v2426
        %v2431 = vcombine.high %v368, %v368
        %v2433 = vunpack.c.l.s4 1966171168
        %v2434 = vunpack.c.0.s8 %v2433
        %v2435 = vlaneseq
        %v2436 = vshrl.u32 %v2435, 7
        %v2437 = vsub.s32 %v2434, %v2436
        %v2438 = vrot.slane %v368, %v2437
        %v2440 = vunpack.c.l.s4 1966171168
        %v2441 = vunpack.c.0.s8 %v2440
        %v2442 = vlaneseq
        %v2443 = vshrl.u32 %v2442, 7
        %v2444 = vsub.s32 %v2441, %v2443
        %v2445 = vrot.slane %v2431, %v2444
        %v2446 = vcombine.high %v2438, %v2438
        %v2447 = vcombine.high %v2445, %v2445
        %v2449 = vunpack.c.l.s4 1966171168
        %v2450 = vunpack.c.0.s8 %v2449
        %v2451 = vlaneseq
        %v2452 = vshrl.u32 %v2451, 7
        %v2453 = vsub.s32 %v2450, %v2452
        %v2454 = vrot.slane %v2438, %v2453
        %v2456 = vunpack.c.l.s4 1966171168
        %v2457 = vunpack.c.0.s8 %v2456
        %v2458 = vlaneseq
        %v2459 = vshrl.u32 %v2458, 7
        %v2460 = vsub.s32 %v2457, %v2459
        %v2461 = vrot.slane %v2445, %v2460
        %v2463 = vunpack.c.l.s4 1966171168
        %v2464 = vunpack.c.0.s8 %v2463
        %v2465 = vlaneseq
        %v2466 = vshrl.u32 %v2465, 7
        %v2467 = vsub.s32 %v2464, %v2466
        %v2468 = vrot.slane %v2446, %v2467
        %v2470 = vunpack.c.l.s4 1966171168
        %v2471 = vunpack.c.0.s8 %v2470
        %v2472 = vlaneseq
        %v2473 = vshrl.u32 %v2472, 7
        %v2474 = vsub.s32 %v2471, %v2473
        %v2475 = vrot.slane %v2447, %v2474
        %v2476 = vcombine.high %v2454, %v2454
        %v2477 = vcombine.high %v2461, %v2461
        %v2478 = vcombine.high %v2468, %v2468
        %v4294 = vunpack.c.l.b16 %v370
        %v4295 = vunpack.c.h.b16 %v370
        %v4296 = vunpack.c.l.b16 %v371
        %v4297 = vunpack.c.h.b16 %v371
        %v4298 = vunpack.c.l.b16 %v372
        %v4299 = vunpack.c.h.b16 %v372
        %v4300 = vunpack.c.l.b16 %v373
        %v4301 = vunpack.c.h.b16 %v373
        %v4302 = vunpack.c.l.b16 %v374
        %v4303 = vunpack.c.h.b16 %v374
        %v4304 = vunpack.c.l.b16 %v375
        %v4305 = vunpack.c.h.b16 %v375
        %v4306 = vunpack.c.l.b16 %v376
        %v4307 = vunpack.c.h.b16 %v376
        %v4308 = vunpack.c.l.b16 %v377
        %v4309 = vunpack.c.h.b16 %v377
        %v4310 = vunpack.c.l.b16 %v378
        %v4311 = vunpack.c.h.b16 %v378
        %v4312 = vunpack.c.l.b16 %v379
        %v4313 = vunpack.c.h.b16 %v379
        %v4314 = vunpack.c.l.b16 %v380
        %v4315 = vunpack.c.h.b16 %v380
        %v4316 = vunpack.c.l.b16 %v381
        %v4317 = vunpack.c.h.b16 %v381
        %v4318 = vunpack.c.l.b16 %v382
        %v4319 = vunpack.c.h.b16 %v382
        %v4320 = vunpack.c.l.b16 %v383
        %v4321 = vunpack.c.h.b16 %v383
        %v4322 = vunpack.c.l.b16 %v384
        %v4323 = vunpack.c.h.b16 %v384
        %v4324 = vunpack.c.l.b16 %v385
        %v4325 = vunpack.c.h.b16 %v385
        %v4326 = vunpack.c.l.b16 %v386
        %v4327 = vunpack.c.h.b16 %v386
        %v4328 = vunpack.c.l.b16 %v387
        %v4329 = vunpack.c.h.b16 %v387
        %v4330 = vunpack.c.l.b16 %v388
        %v4331 = vunpack.c.h.b16 %v388
        %v4332 = vunpack.c.l.b16 %v389
        %v4333 = vunpack.c.h.b16 %v389
        %v4334 = vunpack.c.l.b16 %v390
        %v4335 = vunpack.c.h.b16 %v390
        %v4336 = vunpack.c.l.b16 %v391
        %v4337 = vunpack.c.h.b16 %v391
        %v4338 = vunpack.c.l.b16 %v392
        %v4339 = vunpack.c.h.b16 %v392
        %v4340 = vunpack.c.l.b16 %v393
        %v4341 = vunpack.c.h.b16 %v393
        %v4342 = vunpack.c.l.b16 %v394
        %v4343 = vunpack.c.h.b16 %v394
        %v4344 = vunpack.c.l.b16 %v395
        %v4345 = vunpack.c.h.b16 %v395
        %v4346 = vunpack.c.l.b16 %v396
        %v4347 = vunpack.c.h.b16 %v396
        %v4348 = vunpack.c.l.b16 %v397
        %v4349 = vunpack.c.h.b16 %v397
        %v4350 = vunpack.c.l.b16 %v398
        %v4351 = vunpack.c.h.b16 %v398
        %v4352 = vunpack.c.l.b16 %v399
        %v4353 = vunpack.c.h.b16 %v399
        %v4354 = vunpack.c.l.b16 %v400
        %v4355 = vunpack.c.h.b16 %v400
        %v4356 = vunpack.c.l.b16 %v401
        %v4357 = vunpack.c.h.b16 %v401
        %v4358 = vunpack.c.l.b16 %v402
        %v4359 = vunpack.c.h.b16 %v402
        %v4360 = vunpack.c.l.b16 %v403
        %v4361 = vunpack.c.h.b16 %v403
        %v4362 = vunpack.c.l.b16 %v404
        %v4363 = vunpack.c.h.b16 %v404
        %v4364 = vunpack.c.l.b16 %v405
        %v4365 = vunpack.c.h.b16 %v405
        %v4366 = vunpack.c.l.b16 %v406
        %v4367 = vunpack.c.h.b16 %v406
        %v4368 = vunpack.c.l.b16 %v407
        %v4369 = vunpack.c.h.b16 %v407
        %v4370 = vunpack.c.l.b16 %v408
        %v4371 = vunpack.c.h.b16 %v408
        %v4372 = vunpack.c.l.b16 %v409
        %v4373 = vunpack.c.h.b16 %v409
        %v4374 = vunpack.c.l.b16 %v410
        %v4375 = vunpack.c.h.b16 %v410
        %v4376 = vunpack.c.l.b16 %v411
        %v4377 = vunpack.c.h.b16 %v411
        %v4378 = vunpack.c.l.b16 %v412
        %v4379 = vunpack.c.h.b16 %v412
        %v4380 = vunpack.c.l.b16 %v413
        %v4381 = vunpack.c.h.b16 %v413
        %v4382 = vunpack.c.l.b16 %v414
        %v4383 = vunpack.c.h.b16 %v414
        %v4384 = vunpack.c.l.b16 %v415
        %v4385 = vunpack.c.h.b16 %v415
        %v4386 = vunpack.c.l.b16 %v416
        %v4387 = vunpack.c.h.b16 %v416
        %v4388 = vunpack.c.l.b16 %v417
        %v4389 = vunpack.c.h.b16 %v417
        %v4390 = vunpack.c.l.b16 %v418
        %v4391 = vunpack.c.h.b16 %v418
        %v4392 = vunpack.c.l.b16 %v419
        %v4393 = vunpack.c.h.b16 %v419
        %v4394 = vunpack.c.l.b16 %v420
        %v4395 = vunpack.c.h.b16 %v420
        %v4396 = vunpack.c.l.b16 %v421
        %v4397 = vunpack.c.h.b16 %v421
        %v4398 = vunpack.c.l.b16 %v422
        %v4399 = vunpack.c.h.b16 %v422
        %v4400 = vunpack.c.l.b16 %v423
        %v4401 = vunpack.c.h.b16 %v423
        %v4402 = vunpack.c.l.b16 %v424
        %v4403 = vunpack.c.h.b16 %v424
        %v4404 = vunpack.c.l.b16 %v425
        %v4405 = vunpack.c.h.b16 %v425
        %v4406 = vunpack.c.l.b16 %v426
        %v4407 = vunpack.c.h.b16 %v426
        %v4408 = vunpack.c.l.b16 %v427
        %v4409 = vunpack.c.h.b16 %v427
        %v4410 = vunpack.c.l.b16 %v428
        %v4411 = vunpack.c.h.b16 %v428
        %v4412 = vunpack.c.l.b16 %v429
        %v4413 = vunpack.c.h.b16 %v429
        %v4414 = vunpack.c.l.b16 %v430
        %v4415 = vunpack.c.h.b16 %v430
        %v4416 = vunpack.c.l.b16 %v431
        %v4417 = vunpack.c.h.b16 %v431
        %v4418 = vunpack.c.l.b16 %v432
        %v4419 = vunpack.c.h.b16 %v432
        %v4420 = vunpack.c.l.b16 %v433
        %v4421 = vunpack.c.h.b16 %v433
        %v4422 = vunpack.c.l.b16 %v434
        %v4423 = vunpack.c.h.b16 %v434
        %v4424 = vunpack.c.l.b16 %v435
        %v4425 = vunpack.c.h.b16 %v435
        %v4426 = vunpack.c.l.b16 %v436
        %v4427 = vunpack.c.h.b16 %v436
        %v4428 = vunpack.c.l.b16 %v437
        %v4429 = vunpack.c.h.b16 %v437
        %v4430 = vunpack.c.l.b16 %v438
        %v4431 = vunpack.c.h.b16 %v438
        %v4432 = vunpack.c.l.b16 %v439
        %v4433 = vunpack.c.h.b16 %v439
        %v4434 = vunpack.c.l.b16 %v440
        %v4435 = vunpack.c.h.b16 %v440
        %v4436 = vunpack.c.l.b16 %v441
        %v4437 = vunpack.c.h.b16 %v441
        %v4438 = vunpack.c.l.b16 %v442
        %v4439 = vunpack.c.h.b16 %v442
        %v4440 = vunpack.c.l.b16 %v443
        %v4441 = vunpack.c.h.b16 %v443
        %v4442 = vunpack.c.l.b16 %v444
        %v4443 = vunpack.c.h.b16 %v444
        %v4444 = vunpack.c.l.b16 %v445
        %v4445 = vunpack.c.h.b16 %v445
        %v4446 = vunpack.c.l.b16 %v446
        %v4447 = vunpack.c.h.b16 %v446
        %v4448 = vunpack.c.l.b16 %v447
        %v4449 = vunpack.c.h.b16 %v447
        %v4450 = vunpack.c.l.b16 %v448
        %v4451 = vunpack.c.h.b16 %v448
        %v4452 = vunpack.c.l.b16 %v449
        %v4453 = vunpack.c.h.b16 %v449
        %v4454 = vunpack.c.l.b16 %v450
        %v4455 = vunpack.c.h.b16 %v450
        %v4456 = vunpack.c.l.b16 %v451
        %v4457 = vunpack.c.h.b16 %v451
        %v4458 = vunpack.c.l.b16 %v452
        %v4459 = vunpack.c.h.b16 %v452
        %v4460 = vunpack.c.l.b16 %v453
        %v4461 = vunpack.c.h.b16 %v453
        %v4462 = vunpack.c.l.b16 %v454
        %v4463 = vunpack.c.h.b16 %v454
        %v4464 = vunpack.c.l.b16 %v455
        %v4465 = vunpack.c.h.b16 %v455
        %v4466 = vunpack.c.l.b16 %v456
        %v4467 = vunpack.c.h.b16 %v456
        %v4468 = vunpack.c.l.b16 %v457
        %v4469 = vunpack.c.h.b16 %v457
        %v4470 = vunpack.c.l.b16 %v458
        %v4471 = vunpack.c.h.b16 %v458
        %v4472 = vunpack.c.l.b16 %v459
        %v4473 = vunpack.c.h.b16 %v459
        %v4474 = vunpack.c.l.b16 %v460
        %v4475 = vunpack.c.h.b16 %v460
        %v4476 = vunpack.c.l.b16 %v461
        %v4477 = vunpack.c.h.b16 %v461
        %v4478 = vunpack.c.l.b16 %v462
        %v4479 = vunpack.c.h.b16 %v462
        %v4480 = vunpack.c.l.b16 %v463
        %v4481 = vunpack.c.h.b16 %v463
        %v4482 = vunpack.c.l.b16 %v464
        %v4483 = vunpack.c.h.b16 %v464
        %v4484 = vunpack.c.l.b16 %v465
        %v4485 = vunpack.c.h.b16 %v465
        %v4486 = vunpack.c.l.b16 %v466
        %v4487 = vunpack.c.h.b16 %v466
        %v4488 = vunpack.c.l.b16 %v467
        %v4489 = vunpack.c.h.b16 %v467
        %v4490 = vunpack.c.l.b16 %v468
        %v4491 = vunpack.c.h.b16 %v468
        %v4492 = vunpack.c.l.b16 %v469
        %v4493 = vunpack.c.h.b16 %v469
        %v4494 = vunpack.c.l.b16 %v470
        %v4495 = vunpack.c.h.b16 %v470
        %v4496 = vunpack.c.l.b16 %v471
        %v4497 = vunpack.c.h.b16 %v471
        %v4498 = vunpack.c.l.b16 %v472
        %v4499 = vunpack.c.h.b16 %v472
        %v4500 = vunpack.c.l.b16 %v473
        %v4501 = vunpack.c.h.b16 %v473
        %v4502 = vunpack.c.l.b16 %v474
        %v4503 = vunpack.c.h.b16 %v474
        %v4504 = vunpack.c.l.b16 %v475
        %v4505 = vunpack.c.h.b16 %v475
        %v4506 = vunpack.c.l.b16 %v476
        %v4507 = vunpack.c.h.b16 %v476
        %v4508 = vunpack.c.l.b16 %v477
        %v4509 = vunpack.c.h.b16 %v477
        %v4510 = vunpack.c.l.b16 %v478
        %v4511 = vunpack.c.h.b16 %v478
        %v4512 = vunpack.c.l.b16 %v479
        %v4513 = vunpack.c.h.b16 %v479
        %v4514 = vunpack.c.l.b16 %v480
        %v4515 = vunpack.c.h.b16 %v480
        %v4516 = vunpack.c.l.b16 %v481
        %v4517 = vunpack.c.h.b16 %v481
        %v4518 = vunpack.c.l.b16 %v482
        %v4519 = vunpack.c.h.b16 %v482
        %v4520 = vunpack.c.l.b16 %v483
        %v4521 = vunpack.c.h.b16 %v483
        %v4522 = vunpack.c.l.b16 %v484
        %v4523 = vunpack.c.h.b16 %v484
        %v4524 = vunpack.c.l.b16 %v485
        %v4525 = vunpack.c.h.b16 %v485
        %v4526 = vunpack.c.l.b16 %v486
        %v4527 = vunpack.c.h.b16 %v486
        %v4528 = vunpack.c.l.b16 %v487
        %v4529 = vunpack.c.h.b16 %v487
        %v4530 = vunpack.c.l.b16 %v488
        %v4531 = vunpack.c.h.b16 %v488
        %v4532 = vunpack.c.l.b16 %v489
        %v4533 = vunpack.c.h.b16 %v489
        %v4534 = vunpack.c.l.b16 %v490
        %v4535 = vunpack.c.h.b16 %v490
        %v4536 = vunpack.c.l.b16 %v491
        %v4537 = vunpack.c.h.b16 %v491
        %v4538 = vunpack.c.l.b16 %v492
        %v4539 = vunpack.c.h.b16 %v492
        %v4540 = vunpack.c.l.b16 %v493
        %v4541 = vunpack.c.h.b16 %v493
        %v4542 = vunpack.c.l.b16 %v494
        %v4543 = vunpack.c.h.b16 %v494
        %v4544 = vunpack.c.l.b16 %v495
        %v4545 = vunpack.c.h.b16 %v495
        %v4546 = vunpack.c.l.b16 %v496
        %v4547 = vunpack.c.h.b16 %v496
        %v4548 = vunpack.c.l.b16 %v497
        %v4549 = vunpack.c.h.b16 %v497
        %v4550 = vunpack.c.l.b16 %v498
        %v4551 = vunpack.c.h.b16 %v498
        %v4552 = vunpack.c.l.b16 %v499
        %v4553 = vunpack.c.h.b16 %v499
        %v4554 = vunpack.c.l.b16 %v500
        %v4555 = vunpack.c.h.b16 %v500
        %v4556 = vunpack.c.l.b16 %v501
        %v4557 = vunpack.c.h.b16 %v501
        %v4558 = vunpack.c.l.b16 %v502
        %v4559 = vunpack.c.h.b16 %v502
        %v4560 = vunpack.c.l.b16 %v503
        %v4561 = vunpack.c.h.b16 %v503
        %v4562 = vunpack.c.l.b16 %v504
        %v4563 = vunpack.c.h.b16 %v504
        %v4564 = vunpack.c.l.b16 %v505
        %v4565 = vunpack.c.h.b16 %v505
        %v4566 = vunpack.c.l.b16 %v506
        %v4567 = vunpack.c.h.b16 %v506
        %v4568 = vunpack.c.l.b16 %v507
        %v4569 = vunpack.c.h.b16 %v507
        %v4570 = vunpack.c.l.b16 %v508
        %v4571 = vunpack.c.h.b16 %v508
        %v4572 = vunpack.c.l.b16 %v509
        %v4573 = vunpack.c.h.b16 %v509
        %v4574 = vunpack.c.l.b16 %v510
        %v4575 = vunpack.c.h.b16 %v510
        %v4576 = vunpack.c.l.b16 %v511
        %v4577 = vunpack.c.h.b16 %v511
        %v4578 = vunpack.c.l.b16 %v512
        %v4579 = vunpack.c.h.b16 %v512
        %v4580 = vunpack.c.l.b16 %v513
        %v4581 = vunpack.c.h.b16 %v513
        %v4582 = vunpack.c.l.b16 %v514
        %v4583 = vunpack.c.h.b16 %v514
        %v4584 = vunpack.c.l.b16 %v515
        %v4585 = vunpack.c.h.b16 %v515
        %v4586 = vunpack.c.l.b16 %v516
        %v4587 = vunpack.c.h.b16 %v516
        %v4588 = vunpack.c.l.b16 %v517
        %v4589 = vunpack.c.h.b16 %v517
        %v4590 = vunpack.c.l.b16 %v518
        %v4591 = vunpack.c.h.b16 %v518
        %v4592 = vunpack.c.l.b16 %v519
        %v4593 = vunpack.c.h.b16 %v519
        %v4594 = vunpack.c.l.b16 %v520
        %v4595 = vunpack.c.h.b16 %v520
        %v4596 = vunpack.c.l.b16 %v521
        %v4597 = vunpack.c.h.b16 %v521
        %v4598 = vunpack.c.l.b16 %v522
        %v4599 = vunpack.c.h.b16 %v522
        %v4600 = vunpack.c.l.b16 %v523
        %v4601 = vunpack.c.h.b16 %v523
        %v4602 = vunpack.c.l.b16 %v524
        %v4603 = vunpack.c.h.b16 %v524
        %v4604 = vunpack.c.l.b16 %v525
        %v4605 = vunpack.c.h.b16 %v525
        %v4606 = vunpack.c.l.b16 %v526
        %v4607 = vunpack.c.h.b16 %v526
        %v4608 = vunpack.c.l.b16 %v527
        %v4609 = vunpack.c.h.b16 %v527
        %v4610 = vunpack.c.l.b16 %v528
        %v4611 = vunpack.c.h.b16 %v528
        %v4612 = vunpack.c.l.b16 %v529
        %v4613 = vunpack.c.h.b16 %v529
        %v4614 = vunpack.c.l.b16 %v530
        %v4615 = vunpack.c.h.b16 %v530
        %v4616 = vunpack.c.l.b16 %v531
        %v4617 = vunpack.c.h.b16 %v531
        %v4618 = vunpack.c.l.b16 %v532
        %v4619 = vunpack.c.h.b16 %v532
        %v4620 = vunpack.c.l.b16 %v533
        %v4621 = vunpack.c.h.b16 %v533
        %v4622 = vunpack.c.l.b16 %v534
        %v4623 = vunpack.c.h.b16 %v534
        %v4624 = vunpack.c.l.b16 %v535
        %v4625 = vunpack.c.h.b16 %v535
        %v4626 = vunpack.c.l.b16 %v536
        %v4627 = vunpack.c.h.b16 %v536
        %v4628 = vunpack.c.l.b16 %v537
        %v4629 = vunpack.c.h.b16 %v537
        %v4630 = vunpack.c.l.b16 %v538
        %v4631 = vunpack.c.h.b16 %v538
        %v4632 = vunpack.c.l.b16 %v539
        %v4633 = vunpack.c.h.b16 %v539
        %v4634 = vunpack.c.l.b16 %v540
        %v4635 = vunpack.c.h.b16 %v540
        %v4636 = vunpack.c.l.b16 %v541
        %v4637 = vunpack.c.h.b16 %v541
        %v4638 = vunpack.c.l.b16 %v542
        %v4639 = vunpack.c.h.b16 %v542
        %v4640 = vunpack.c.l.b16 %v543
        %v4641 = vunpack.c.h.b16 %v543
        %v4642 = vunpack.c.l.b16 %v544
        %v4643 = vunpack.c.h.b16 %v544
        %v4644 = vunpack.c.l.b16 %v545
        %v4645 = vunpack.c.h.b16 %v545
        %v4646 = vunpack.c.l.b16 %v546
        %v4647 = vunpack.c.h.b16 %v546
        %v4648 = vunpack.c.l.b16 %v547
        %v4649 = vunpack.c.h.b16 %v547
        %v4650 = vunpack.c.l.b16 %v548
        %v4651 = vunpack.c.h.b16 %v548
        %v4652 = vunpack.c.l.b16 %v549
        %v4653 = vunpack.c.h.b16 %v549
        %v4654 = vunpack.c.l.b16 %v550
        %v4655 = vunpack.c.h.b16 %v550
        %v4656 = vunpack.c.l.b16 %v551
        %v4657 = vunpack.c.h.b16 %v551
        %v4658 = vunpack.c.l.b16 %v552
        %v4659 = vunpack.c.h.b16 %v552
        %v4660 = vunpack.c.l.b16 %v553
        %v4661 = vunpack.c.h.b16 %v553
        %v4662 = vunpack.c.l.b16 %v554
        %v4663 = vunpack.c.h.b16 %v554
        %v4664 = vunpack.c.l.b16 %v555
        %v4665 = vunpack.c.h.b16 %v555
        %v4666 = vunpack.c.l.b16 %v556
        %v4667 = vunpack.c.h.b16 %v556
        %v4668 = vunpack.c.l.b16 %v557
        %v4669 = vunpack.c.h.b16 %v557
        %v4670 = vunpack.c.l.b16 %v558
        %v4671 = vunpack.c.h.b16 %v558
        %v4672 = vunpack.c.l.b16 %v559
        %v4673 = vunpack.c.h.b16 %v559
        %v4674 = vunpack.c.l.b16 %v560
        %v4675 = vunpack.c.h.b16 %v560
        %v4676 = vunpack.c.l.b16 %v561
        %v4677 = vunpack.c.h.b16 %v561
        %v4678 = vunpack.c.l.b16 %v562
        %v4679 = vunpack.c.h.b16 %v562
        %v4680 = vunpack.c.l.b16 %v563
        %v4681 = vunpack.c.h.b16 %v563
        %v4682 = vunpack.c.l.b16 %v564
        %v4683 = vunpack.c.h.b16 %v564
        %v4684 = vunpack.c.l.b16 %v565
        %v4685 = vunpack.c.h.b16 %v565
        %v4686 = vunpack.c.l.b16 %v566
        %v4687 = vunpack.c.h.b16 %v566
        %v4688 = vunpack.c.l.b16 %v567
        %v4689 = vunpack.c.h.b16 %v567
        %v4690 = vunpack.c.l.b16 %v568
        %v4691 = vunpack.c.h.b16 %v568
        %v4692 = vunpack.c.l.b16 %v569
        %v4693 = vunpack.c.h.b16 %v569
        %v4694 = vunpack.c.l.b16 %v570
        %v4695 = vunpack.c.h.b16 %v570
        %v4696 = vunpack.c.l.b16 %v571
        %v4697 = vunpack.c.h.b16 %v571
        %v4698 = vunpack.c.l.b16 %v572
        %v4699 = vunpack.c.h.b16 %v572
        %v4700 = vunpack.c.l.b16 %v573
        %v4701 = vunpack.c.h.b16 %v573
        %v4702 = vunpack.c.l.b16 %v574
        %v4703 = vunpack.c.h.b16 %v574
        %v4704 = vunpack.c.l.b16 %v575
        %v4705 = vunpack.c.h.b16 %v575
        %v4706 = vunpack.c.l.b16 %v576
        %v4707 = vunpack.c.h.b16 %v576
        %v4708 = vunpack.c.l.b16 %v577
        %v4709 = vunpack.c.h.b16 %v577
        %v4710 = vunpack.c.l.b16 %v578
        %v4711 = vunpack.c.h.b16 %v578
        %v4712 = vunpack.c.l.b16 %v579
        %v4713 = vunpack.c.h.b16 %v579
        %v4714 = vunpack.c.l.b16 %v580
        %v4715 = vunpack.c.h.b16 %v580
        %v4716 = vunpack.c.l.b16 %v581
        %v4717 = vunpack.c.h.b16 %v581
        %v4718 = vunpack.c.l.b16 %v582
        %v4719 = vunpack.c.h.b16 %v582
        %v4720 = vunpack.c.l.b16 %v583
        %v4721 = vunpack.c.h.b16 %v583
        %v4722 = vunpack.c.l.b16 %v584
        %v4723 = vunpack.c.h.b16 %v584
        %v4724 = vunpack.c.l.b16 %v585
        %v4725 = vunpack.c.h.b16 %v585
        %v4726 = vunpack.c.l.b16 %v586
        %v4727 = vunpack.c.h.b16 %v586
        %v4728 = vunpack.c.l.b16 %v587
        %v4729 = vunpack.c.h.b16 %v587
        %v4730 = vunpack.c.l.b16 %v588
        %v4731 = vunpack.c.h.b16 %v588
        %v4732 = vunpack.c.l.b16 %v589
        %v4733 = vunpack.c.h.b16 %v589
        %v4734 = vunpack.c.l.b16 %v590
        %v4735 = vunpack.c.h.b16 %v590
        %v4736 = vunpack.c.l.b16 %v591
        %v4737 = vunpack.c.h.b16 %v591
        %v4738 = vunpack.c.l.b16 %v592
        %v4739 = vunpack.c.h.b16 %v592
        %v4740 = vunpack.c.l.b16 %v593
        %v4741 = vunpack.c.h.b16 %v593
        %v4742 = vunpack.c.l.b16 %v594
        %v4743 = vunpack.c.h.b16 %v594
        %v4744 = vunpack.c.l.b16 %v595
        %v4745 = vunpack.c.h.b16 %v595
        %v4746 = vunpack.c.l.b16 %v596
        %v4747 = vunpack.c.h.b16 %v596
        %v4748 = vunpack.c.l.b16 %v597
        %v4749 = vunpack.c.h.b16 %v597
        %v4750 = vunpack.c.l.b16 %v598
        %v4751 = vunpack.c.h.b16 %v598
        %v4752 = vunpack.c.l.b16 %v599
        %v4753 = vunpack.c.h.b16 %v599
        %v4754 = vunpack.c.l.b16 %v600
        %v4755 = vunpack.c.h.b16 %v600
        %v4756 = vunpack.c.l.b16 %v601
        %v4757 = vunpack.c.h.b16 %v601
        %v4758 = vunpack.c.l.b16 %v602
        %v4759 = vunpack.c.h.b16 %v602
        %v4760 = vunpack.c.l.b16 %v603
        %v4761 = vunpack.c.h.b16 %v603
        %v4762 = vunpack.c.l.b16 %v604
        %v4763 = vunpack.c.h.b16 %v604
        %v4764 = vunpack.c.l.b16 %v605
        %v4765 = vunpack.c.h.b16 %v605
        %v4766 = vunpack.c.l.b16 %v606
        %v4767 = vunpack.c.h.b16 %v606
        %v4768 = vunpack.c.l.b16 %v607
        %v4769 = vunpack.c.h.b16 %v607
        %v4770 = vunpack.c.l.b16 %v608
        %v4771 = vunpack.c.h.b16 %v608
        %v4772 = vunpack.c.l.b16 %v609
        %v4773 = vunpack.c.h.b16 %v609
        %v4774 = vunpack.c.l.b16 %v610
        %v4775 = vunpack.c.h.b16 %v610
        %v4776 = vunpack.c.l.b16 %v611
        %v4777 = vunpack.c.h.b16 %v611
        %v4778 = vunpack.c.l.b16 %v612
        %v4779 = vunpack.c.h.b16 %v612
        %v4780 = vunpack.c.l.b16 %v613
        %v4781 = vunpack.c.h.b16 %v613
        %v4782 = vunpack.c.l.b16 %v614
        %v4783 = vunpack.c.h.b16 %v614
        %v4784 = vunpack.c.l.b16 %v615
        %v4785 = vunpack.c.h.b16 %v615
        %v4786 = vunpack.c.l.b16 %v616
        %v4787 = vunpack.c.h.b16 %v616
        %v4788 = vunpack.c.l.b16 %v617
        %v4789 = vunpack.c.h.b16 %v617
        %v4790 = vunpack.c.l.b16 %v618
        %v4791 = vunpack.c.h.b16 %v618
        %v4792 = vunpack.c.l.b16 %v619
        %v4793 = vunpack.c.h.b16 %v619
        %v4794 = vunpack.c.l.b16 %v620
        %v4795 = vunpack.c.h.b16 %v620
        %v4796 = vunpack.c.l.b16 %v621
        %v4797 = vunpack.c.h.b16 %v621
        %v4798 = vunpack.c.l.b16 %v622
        %v4799 = vunpack.c.h.b16 %v622
        %v4800 = vunpack.c.l.b16 %v623
        %v4801 = vunpack.c.h.b16 %v623
        %v4802 = vunpack.c.l.b16 %v624
        %v4803 = vunpack.c.h.b16 %v624
        %v4804 = vunpack.c.l.b16 %v625
        %v4805 = vunpack.c.h.b16 %v625
        %v4806 = vunpack.c.l.b16 %v626
        %v4807 = vunpack.c.h.b16 %v626
        %v4808 = vunpack.c.l.b16 %v627
        %v4809 = vunpack.c.h.b16 %v627
        %v4810 = vunpack.c.l.b16 %v628
        %v4811 = vunpack.c.h.b16 %v628
        %v4812 = vunpack.c.l.b16 %v629
        %v4813 = vunpack.c.h.b16 %v629
        %v4814 = vunpack.c.l.b16 %v630
        %v4815 = vunpack.c.h.b16 %v630
        %v4816 = vunpack.c.l.b16 %v631
        %v4817 = vunpack.c.h.b16 %v631
        %v4818 = vunpack.c.l.b16 %v632
        %v4819 = vunpack.c.h.b16 %v632
        %v4820 = vunpack.c.l.b16 %v633
        %v4821 = vunpack.c.h.b16 %v633
        %v4822 = vunpack.c.l.b16 %v634
        %v4823 = vunpack.c.h.b16 %v634
        %v4824 = vunpack.c.l.b16 %v635
        %v4825 = vunpack.c.h.b16 %v635
        %v4826 = vunpack.c.l.b16 %v636
        %v4827 = vunpack.c.h.b16 %v636
        %v4828 = vunpack.c.l.b16 %v637
        %v4829 = vunpack.c.h.b16 %v637
        %v4830 = vunpack.c.l.b16 %v638
        %v4831 = vunpack.c.h.b16 %v638
        %v4832 = vunpack.c.l.b16 %v639
        %v4833 = vunpack.c.h.b16 %v639
        %v4834 = vunpack.c.l.b16 %v640
        %v4835 = vunpack.c.h.b16 %v640
        %v4836 = vunpack.c.l.b16 %v641
        %v4837 = vunpack.c.h.b16 %v641
        %v4838 = vunpack.c.l.b16 %v642
        %v4839 = vunpack.c.h.b16 %v642
        %v4840 = vunpack.c.l.b16 %v643
        %v4841 = vunpack.c.h.b16 %v643
        %v4842 = vunpack.c.l.b16 %v644
        %v4843 = vunpack.c.h.b16 %v644
        %v4844 = vunpack.c.l.b16 %v645
        %v4845 = vunpack.c.h.b16 %v645
        %v4846 = vunpack.c.l.b16 %v646
        %v4847 = vunpack.c.h.b16 %v646
        %v4848 = vunpack.c.l.b16 %v647
        %v4849 = vunpack.c.h.b16 %v647
        %v4850 = vunpack.c.l.b16 %v648
        %v4851 = vunpack.c.h.b16 %v648
        %v4852 = vunpack.c.l.b16 %v649
        %v4853 = vunpack.c.h.b16 %v649
        %v4854 = vunpack.c.l.b16 %v650
        %v4855 = vunpack.c.h.b16 %v650
        %v4856 = vunpack.c.l.b16 %v651
        %v4857 = vunpack.c.h.b16 %v651
        %v4858 = vunpack.c.l.b16 %v652
        %v4859 = vunpack.c.h.b16 %v652
        %v4860 = vunpack.c.l.b16 %v653
        %v4861 = vunpack.c.h.b16 %v653
        %v4862 = vunpack.c.l.b16 %v654
        %v4863 = vunpack.c.h.b16 %v654
        %v4864 = vunpack.c.l.b16 %v655
        %v4865 = vunpack.c.h.b16 %v655
        %v4866 = vunpack.c.l.b16 %v656
        %v4867 = vunpack.c.h.b16 %v656
        %v4868 = vunpack.c.l.b16 %v657
        %v4869 = vunpack.c.h.b16 %v657
        %v4870 = vunpack.c.l.b16 %v658
        %v4871 = vunpack.c.h.b16 %v658
        %v4872 = vunpack.c.l.b16 %v659
        %v4873 = vunpack.c.h.b16 %v659
        %v4874 = vunpack.c.l.b16 %v660
        %v4875 = vunpack.c.h.b16 %v660
        %v4876 = vunpack.c.l.b16 %v661
        %v4877 = vunpack.c.h.b16 %v661
        %v4878 = vunpack.c.l.b16 %v662
        %v4879 = vunpack.c.h.b16 %v662
        %v4880 = vunpack.c.l.b16 %v663
        %v4881 = vunpack.c.h.b16 %v663
        %v4882 = vunpack.c.l.b16 %v664
        %v4883 = vunpack.c.h.b16 %v664
        %v4884 = vunpack.c.l.b16 %v665
        %v4885 = vunpack.c.h.b16 %v665
        %v4886 = vunpack.c.l.b16 %v666
        %v4887 = vunpack.c.h.b16 %v666
        %v4888 = vunpack.c.l.b16 %v667
        %v4889 = vunpack.c.h.b16 %v667
        %v4890 = vunpack.c.l.b16 %v668
        %v4891 = vunpack.c.h.b16 %v668
        %v4892 = vunpack.c.l.b16 %v669
        %v4893 = vunpack.c.h.b16 %v669
        %v4894 = vunpack.c.l.b16 %v670
        %v4895 = vunpack.c.h.b16 %v670
        %v4896 = vunpack.c.l.b16 %v671
        %v4897 = vunpack.c.h.b16 %v671
        %v4898 = vunpack.c.l.b16 %v672
        %v4899 = vunpack.c.h.b16 %v672
        %v4900 = vunpack.c.l.b16 %v673
        %v4901 = vunpack.c.h.b16 %v673
        %v4902 = vunpack.c.l.b16 %v674
        %v4903 = vunpack.c.h.b16 %v674
        %v4904 = vunpack.c.l.b16 %v675
        %v4905 = vunpack.c.h.b16 %v675
        %v4906 = vunpack.c.l.b16 %v676
        %v4907 = vunpack.c.h.b16 %v676
        %v4908 = vunpack.c.l.b16 %v677
        %v4909 = vunpack.c.h.b16 %v677
        %v4910 = vunpack.c.l.b16 %v678
        %v4911 = vunpack.c.h.b16 %v678
        %v4912 = vunpack.c.l.b16 %v679
        %v4913 = vunpack.c.h.b16 %v679
        %v4914 = vunpack.c.l.b16 %v680
        %v4915 = vunpack.c.h.b16 %v680
        %v4916 = vunpack.c.l.b16 %v681
        %v4917 = vunpack.c.h.b16 %v681
        %v4918 = vunpack.c.l.b16 %v682
        %v4919 = vunpack.c.h.b16 %v682
        %v4920 = vunpack.c.l.b16 %v683
        %v4921 = vunpack.c.h.b16 %v683
        %v4922 = vunpack.c.l.b16 %v684
        %v4923 = vunpack.c.h.b16 %v684
        %v4924 = vunpack.c.l.b16 %v685
        %v4925 = vunpack.c.h.b16 %v685
        %v4926 = vunpack.c.l.b16 %v686
        %v4927 = vunpack.c.h.b16 %v686
        %v4928 = vunpack.c.l.b16 %v687
        %v4929 = vunpack.c.h.b16 %v687
        %v4930 = vunpack.c.l.b16 %v688
        %v4931 = vunpack.c.h.b16 %v688
        %v4932 = vunpack.c.l.b16 %v689
        %v4933 = vunpack.c.h.b16 %v689
        %v4934 = vunpack.c.l.b16 %v690
        %v4935 = vunpack.c.h.b16 %v690
        %v4936 = vunpack.c.l.b16 %v691
        %v4937 = vunpack.c.h.b16 %v691
        %v4938 = vunpack.c.l.b16 %v692
        %v4939 = vunpack.c.h.b16 %v692
        %v4940 = vunpack.c.l.b16 %v693
        %v4941 = vunpack.c.h.b16 %v693
        %v4942 = vunpack.c.l.b16 %v694
        %v4943 = vunpack.c.h.b16 %v694
        %v4944 = vunpack.c.l.b16 %v695
        %v4945 = vunpack.c.h.b16 %v695
        %v4946 = vunpack.c.l.b16 %v696
        %v4947 = vunpack.c.h.b16 %v696
        %v4948 = vunpack.c.l.b16 %v697
        %v4949 = vunpack.c.h.b16 %v697
        %v4950 = vunpack.c.l.b16 %v698
        %v4951 = vunpack.c.h.b16 %v698
        %v4952 = vunpack.c.l.b16 %v699
        %v4953 = vunpack.c.h.b16 %v699
        %v4954 = vunpack.c.l.b16 %v700
        %v4955 = vunpack.c.h.b16 %v700
        %v4956 = vunpack.c.l.b16 %v701
        %v4957 = vunpack.c.h.b16 %v701
        %v4958 = vunpack.c.l.b16 %v702
        %v4959 = vunpack.c.h.b16 %v702
        %v4960 = vunpack.c.l.b16 %v703
        %v4961 = vunpack.c.h.b16 %v703
        %v4962 = vunpack.c.l.b16 %v704
        %v4963 = vunpack.c.h.b16 %v704
        %v4964 = vunpack.c.l.b16 %v705
        %v4965 = vunpack.c.h.b16 %v705
        %v4966 = vunpack.c.l.b16 %v706
        %v4967 = vunpack.c.h.b16 %v706
        %v4968 = vunpack.c.l.b16 %v707
        %v4969 = vunpack.c.h.b16 %v707
        %v4970 = vunpack.c.l.b16 %v708
        %v4971 = vunpack.c.h.b16 %v708
        %v4972 = vunpack.c.l.b16 %v709
        %v4973 = vunpack.c.h.b16 %v709
        %v4974 = vunpack.c.l.b16 %v710
        %v4975 = vunpack.c.h.b16 %v710
        %v4976 = vunpack.c.l.b16 %v711
        %v4977 = vunpack.c.h.b16 %v711
        %v4978 = vunpack.c.l.b16 %v712
        %v4979 = vunpack.c.h.b16 %v712
        %v4980 = vunpack.c.l.b16 %v713
        %v4981 = vunpack.c.h.b16 %v713
        %v4982 = vunpack.c.l.b16 %v714
        %v4983 = vunpack.c.h.b16 %v714
        %v4984 = vunpack.c.l.b16 %v715
        %v4985 = vunpack.c.h.b16 %v715
        %v4986 = vunpack.c.l.b16 %v716
        %v4987 = vunpack.c.h.b16 %v716
        %v4988 = vunpack.c.l.b16 %v717
        %v4989 = vunpack.c.h.b16 %v717
        %v4990 = vunpack.c.l.b16 %v718
        %v4991 = vunpack.c.h.b16 %v718
        %v4992 = vunpack.c.l.b16 %v719
        %v4993 = vunpack.c.h.b16 %v719
        %v4994 = vunpack.c.l.b16 %v720
        %v4995 = vunpack.c.h.b16 %v720
        %v4996 = vunpack.c.l.b16 %v721
        %v4997 = vunpack.c.h.b16 %v721
        %v4998 = vunpack.c.l.b16 %v722
        %v4999 = vunpack.c.h.b16 %v722
        %v5000 = vunpack.c.l.b16 %v723
        %v5001 = vunpack.c.h.b16 %v723
        %v5002 = vunpack.c.l.b16 %v724
        %v5003 = vunpack.c.h.b16 %v724
        %v5004 = vunpack.c.l.b16 %v725
        %v5005 = vunpack.c.h.b16 %v725
        %v5006 = vunpack.c.l.b16 %v726
        %v5007 = vunpack.c.h.b16 %v726
        %v5008 = vunpack.c.l.b16 %v727
        %v5009 = vunpack.c.h.b16 %v727
        %v5010 = vunpack.c.l.b16 %v728
        %v5011 = vunpack.c.h.b16 %v728
        %v5012 = vunpack.c.l.b16 %v729
        %v5013 = vunpack.c.h.b16 %v729
        %v5014 = vunpack.c.l.b16 %v730
        %v5015 = vunpack.c.h.b16 %v730
        %v5016 = vunpack.c.l.b16 %v731
        %v5017 = vunpack.c.h.b16 %v731
        %v5018 = vunpack.c.l.b16 %v732
        %v5019 = vunpack.c.h.b16 %v732
        %v5020 = vunpack.c.l.b16 %v733
        %v5021 = vunpack.c.h.b16 %v733
        %v5022 = vunpack.c.l.b16 %v734
        %v5023 = vunpack.c.h.b16 %v734
        %v5024 = vunpack.c.l.b16 %v735
        %v5025 = vunpack.c.h.b16 %v735
        %v5026 = vunpack.c.l.b16 %v736
        %v5027 = vunpack.c.h.b16 %v736
        %v5028 = vunpack.c.l.b16 %v737
        %v5029 = vunpack.c.h.b16 %v737
        %v5030 = vunpack.c.l.b16 %v738
        %v5031 = vunpack.c.h.b16 %v738
        %v5032 = vunpack.c.l.b16 %v739
        %v5033 = vunpack.c.h.b16 %v739
        %v5034 = vunpack.c.l.b16 %v740
        %v5035 = vunpack.c.h.b16 %v740
        %v5036 = vunpack.c.l.b16 %v741
        %v5037 = vunpack.c.h.b16 %v741
        %v5038 = vunpack.c.l.b16 %v742
        %v5039 = vunpack.c.h.b16 %v742
        %v5040 = vunpack.c.l.b16 %v743
        %v5041 = vunpack.c.h.b16 %v743
        %v5042 = vunpack.c.l.b16 %v744
        %v5043 = vunpack.c.h.b16 %v744
        %v5044 = vunpack.c.l.b16 %v745
        %v5045 = vunpack.c.h.b16 %v745
        %v5046 = vunpack.c.l.b16 %v746
        %v5047 = vunpack.c.h.b16 %v746
        %v5048 = vunpack.c.l.b16 %v747
        %v5049 = vunpack.c.h.b16 %v747
        %v5050 = vunpack.c.l.b16 %v748
        %v5051 = vunpack.c.h.b16 %v748
        %v5052 = vunpack.c.l.b16 %v749
        %v5053 = vunpack.c.h.b16 %v749
        %v5054 = vunpack.c.l.b16 %v750
        %v5055 = vunpack.c.h.b16 %v750
        %v5056 = vunpack.c.l.b16 %v751
        %v5057 = vunpack.c.h.b16 %v751
        %v5058 = vunpack.c.l.b16 %v752
        %v5059 = vunpack.c.h.b16 %v752
        %v5060 = vunpack.c.l.b16 %v753
        %v5061 = vunpack.c.h.b16 %v753
        %v5062 = vunpack.c.l.b16 %v754
        %v5063 = vunpack.c.h.b16 %v754
        %v5064 = vunpack.c.l.b16 %v755
        %v5065 = vunpack.c.h.b16 %v755
        %v5066 = vunpack.c.l.b16 %v756
        %v5067 = vunpack.c.h.b16 %v756
        %v5068 = vunpack.c.l.b16 %v757
        %v5069 = vunpack.c.h.b16 %v757
        %v5070 = vunpack.c.l.b16 %v758
        %v5071 = vunpack.c.h.b16 %v758
        %v5072 = vunpack.c.l.b16 %v759
        %v5073 = vunpack.c.h.b16 %v759
        %v5074 = vunpack.c.l.b16 %v760
        %v5075 = vunpack.c.h.b16 %v760
        %v5076 = vunpack.c.l.b16 %v761
        %v5077 = vunpack.c.h.b16 %v761
        %v5078 = vunpack.c.l.b16 %v762
        %v5079 = vunpack.c.h.b16 %v762
        %v5080 = vunpack.c.l.b16 %v763
        %v5081 = vunpack.c.h.b16 %v763
        %v5082 = vunpack.c.l.b16 %v764
        %v5083 = vunpack.c.h.b16 %v764
        %v5084 = vunpack.c.l.b16 %v765
        %v5085 = vunpack.c.h.b16 %v765
        %v5086 = vunpack.c.l.b16 %v766
        %v5087 = vunpack.c.h.b16 %v766
        %v5088 = vunpack.c.l.b16 %v767
        %v5089 = vunpack.c.h.b16 %v767
        %v5090 = vunpack.c.l.b16 %v768
        %v5091 = vunpack.c.h.b16 %v768
        %v5092 = vunpack.c.l.b16 %v769
        %v5093 = vunpack.c.h.b16 %v769
        %v5094 = vunpack.c.l.b16 %v770
        %v5095 = vunpack.c.h.b16 %v770
        %v5096 = vunpack.c.l.b16 %v771
        %v5097 = vunpack.c.h.b16 %v771
        %v5098 = vunpack.c.l.b16 %v772
        %v5099 = vunpack.c.h.b16 %v772
        %v5100 = vunpack.c.l.b16 %v773
        %v5101 = vunpack.c.h.b16 %v773
        %v5102 = vunpack.c.l.b16 %v774
        %v5103 = vunpack.c.h.b16 %v774
        %v5104 = vunpack.c.l.b16 %v775
        %v5105 = vunpack.c.h.b16 %v775
        %v5106 = vunpack.c.l.b16 %v776
        %v5107 = vunpack.c.h.b16 %v776
        %v5108 = vunpack.c.l.b16 %v777
        %v5109 = vunpack.c.h.b16 %v777
        %v5110 = vunpack.c.l.b16 %v778
        %v5111 = vunpack.c.h.b16 %v778
        %v5112 = vunpack.c.l.b16 %v779
        %v5113 = vunpack.c.h.b16 %v779
        %v5114 = vunpack.c.l.b16 %v780
        %v5115 = vunpack.c.h.b16 %v780
        %v5116 = vunpack.c.l.b16 %v781
        %v5117 = vunpack.c.h.b16 %v781
        %v5118 = vunpack.c.l.b16 %v782
        %v5119 = vunpack.c.h.b16 %v782
        %v5120 = vunpack.c.l.b16 %v783
        %v5121 = vunpack.c.h.b16 %v783
        %v5122 = vunpack.c.l.b16 %v784
        %v5123 = vunpack.c.h.b16 %v784
        %v5124 = vunpack.c.l.b16 %v785
        %v5125 = vunpack.c.h.b16 %v785
        %v5126 = vunpack.c.l.b16 %v786
        %v5127 = vunpack.c.h.b16 %v786
        %v5128 = vunpack.c.l.b16 %v787
        %v5129 = vunpack.c.h.b16 %v787
        %v5130 = vunpack.c.l.b16 %v788
        %v5131 = vunpack.c.h.b16 %v788
        %v5132 = vunpack.c.l.b16 %v789
        %v5133 = vunpack.c.h.b16 %v789
        %v5134 = vunpack.c.l.b16 %v790
        %v5135 = vunpack.c.h.b16 %v790
        %v5136 = vunpack.c.l.b16 %v791
        %v5137 = vunpack.c.h.b16 %v791
        %v5138 = vunpack.c.l.b16 %v792
        %v5139 = vunpack.c.h.b16 %v792
        %v5140 = vunpack.c.l.b16 %v793
        %v5141 = vunpack.c.h.b16 %v793
        %v5142 = vunpack.c.l.b16 %v794
        %v5143 = vunpack.c.h.b16 %v794
        %v5144 = vunpack.c.l.b16 %v795
        %v5145 = vunpack.c.h.b16 %v795
        %v5146 = vunpack.c.l.b16 %v796
        %v5147 = vunpack.c.h.b16 %v796
        %v5148 = vunpack.c.l.b16 %v797
        %v5149 = vunpack.c.h.b16 %v797
        %v5150 = vunpack.c.l.b16 %v798
        %v5151 = vunpack.c.h.b16 %v798
        %v5152 = vunpack.c.l.b16 %v799
        %v5153 = vunpack.c.h.b16 %v799
        %v5154 = vunpack.c.l.b16 %v800
        %v5155 = vunpack.c.h.b16 %v800
        %v5156 = vunpack.c.l.b16 %v801
        %v5157 = vunpack.c.h.b16 %v801
        %v5158 = vunpack.c.l.b16 %v802
        %v5159 = vunpack.c.h.b16 %v802
        %v5160 = vunpack.c.l.b16 %v803
        %v5161 = vunpack.c.h.b16 %v803
        %v5162 = vunpack.c.l.b16 %v804
        %v5163 = vunpack.c.h.b16 %v804
        %v5164 = vunpack.c.l.b16 %v805
        %v5165 = vunpack.c.h.b16 %v805
        %v5166 = vunpack.c.l.b16 %v806
        %v5167 = vunpack.c.h.b16 %v806
        %v5168 = vunpack.c.l.b16 %v807
        %v5169 = vunpack.c.h.b16 %v807
        %v5170 = vunpack.c.l.b16 %v808
        %v5171 = vunpack.c.h.b16 %v808
        %v5172 = vunpack.c.l.b16 %v809
        %v5173 = vunpack.c.h.b16 %v809
        %v5174 = vunpack.c.l.b16 %v810
        %v5175 = vunpack.c.h.b16 %v810
        %v5176 = vunpack.c.l.b16 %v811
        %v5177 = vunpack.c.h.b16 %v811
        %v5178 = vunpack.c.l.b16 %v812
        %v5179 = vunpack.c.h.b16 %v812
        %v5180 = vunpack.c.l.b16 %v813
        %v5181 = vunpack.c.h.b16 %v813
        %v5182 = vunpack.c.l.b16 %v814
        %v5183 = vunpack.c.h.b16 %v814
        %v5184 = vunpack.c.l.b16 %v815
        %v5185 = vunpack.c.h.b16 %v815
        %v5186 = vunpack.c.l.b16 %v816
        %v5187 = vunpack.c.h.b16 %v816
        %v5188 = vunpack.c.l.b16 %v817
        %v5189 = vunpack.c.h.b16 %v817
        %v5190 = vunpack.c.l.b16 %v818
        %v5191 = vunpack.c.h.b16 %v818
        %v5192 = vunpack.c.l.b16 %v819
        %v5193 = vunpack.c.h.b16 %v819
        %v5194 = vunpack.c.l.b16 %v820
        %v5195 = vunpack.c.h.b16 %v820
        %v5196 = vunpack.c.l.b16 %v821
        %v5197 = vunpack.c.h.b16 %v821
        %v5198 = vunpack.c.l.b16 %v822
        %v5199 = vunpack.c.h.b16 %v822
        %v5200 = vunpack.c.l.b16 %v823
        %v5201 = vunpack.c.h.b16 %v823
        %v5202 = vunpack.c.l.b16 %v824
        %v5203 = vunpack.c.h.b16 %v824
        %v5204 = vunpack.c.l.b16 %v825
        %v5205 = vunpack.c.h.b16 %v825
        %v5206 = vunpack.c.l.b16 %v826
        %v5207 = vunpack.c.h.b16 %v826
        %v5208 = vunpack.c.l.b16 %v827
        %v5209 = vunpack.c.h.b16 %v827
        %v5210 = vunpack.c.l.b16 %v828
        %v5211 = vunpack.c.h.b16 %v828
        %v5212 = vunpack.c.l.b16 %v829
        %v5213 = vunpack.c.h.b16 %v829
        %v5214 = vunpack.c.l.b16 %v830
        %v5215 = vunpack.c.h.b16 %v830
        %v5216 = vunpack.c.l.b16 %v831
        %v5217 = vunpack.c.h.b16 %v831
        %v5218 = vunpack.c.l.b16 %v832
        %v5219 = vunpack.c.h.b16 %v832
        %v5220 = vunpack.c.l.b16 %v833
        %v5221 = vunpack.c.h.b16 %v833
        %v5222 = vunpack.c.l.b16 %v834
        %v5223 = vunpack.c.h.b16 %v834
        %v5224 = vunpack.c.l.b16 %v835
        %v5225 = vunpack.c.h.b16 %v835
        %v5226 = vunpack.c.l.b16 %v836
        %v5227 = vunpack.c.h.b16 %v836
        %v5228 = vunpack.c.l.b16 %v837
        %v5229 = vunpack.c.h.b16 %v837
        %v5230 = vunpack.c.l.b16 %v838
        %v5231 = vunpack.c.h.b16 %v838
        %v5232 = vunpack.c.l.b16 %v839
        %v5233 = vunpack.c.h.b16 %v839
        %v5234 = vunpack.c.l.b16 %v840
        %v5235 = vunpack.c.h.b16 %v840
        %v5236 = vunpack.c.l.b16 %v841
        %v5237 = vunpack.c.h.b16 %v841
        %v5238 = vunpack.c.l.b16 %v842
        %v5239 = vunpack.c.h.b16 %v842
        %v5240 = vunpack.c.l.b16 %v843
        %v5241 = vunpack.c.h.b16 %v843
        %v5242 = vunpack.c.l.b16 %v844
        %v5243 = vunpack.c.h.b16 %v844
        %v5244 = vunpack.c.l.b16 %v845
        %v5245 = vunpack.c.h.b16 %v845
        %v5246 = vunpack.c.l.b16 %v846
        %v5247 = vunpack.c.h.b16 %v846
        %v5248 = vunpack.c.l.b16 %v847
        %v5249 = vunpack.c.h.b16 %v847
        %v5250 = vunpack.c.l.b16 %v848
        %v5251 = vunpack.c.h.b16 %v848
        %v5252 = vunpack.c.l.b16 %v849
        %v5253 = vunpack.c.h.b16 %v849
        %v5254 = vunpack.c.l.b16 %v850
        %v5255 = vunpack.c.h.b16 %v850
        %v5256 = vunpack.c.l.b16 %v851
        %v5257 = vunpack.c.h.b16 %v851
        %v5258 = vunpack.c.l.b16 %v852
        %v5259 = vunpack.c.h.b16 %v852
        %v5260 = vunpack.c.l.b16 %v853
        %v5261 = vunpack.c.h.b16 %v853
        %v5262 = vunpack.c.l.b16 %v854
        %v5263 = vunpack.c.h.b16 %v854
        %v5264 = vunpack.c.l.b16 %v855
        %v5265 = vunpack.c.h.b16 %v855
        %v5266 = vunpack.c.l.b16 %v856
        %v5267 = vunpack.c.h.b16 %v856
        %v5268 = vunpack.c.l.b16 %v857
        %v5269 = vunpack.c.h.b16 %v857
        %v5270 = vunpack.c.l.b16 %v858
        %v5271 = vunpack.c.h.b16 %v858
        %v5272 = vunpack.c.l.b16 %v859
        %v5273 = vunpack.c.h.b16 %v859
        %v5274 = vunpack.c.l.b16 %v860
        %v5275 = vunpack.c.h.b16 %v860
        %v5276 = vunpack.c.l.b16 %v861
        %v5277 = vunpack.c.h.b16 %v861
        %v5278 = vunpack.c.l.b16 %v862
        %v5279 = vunpack.c.h.b16 %v862
        %v5280 = vunpack.c.l.b16 %v863
        %v5281 = vunpack.c.h.b16 %v863
        %v5282 = vunpack.c.l.b16 %v864
        %v5283 = vunpack.c.h.b16 %v864
        %v5284 = vunpack.c.l.b16 %v865
        %v5285 = vunpack.c.h.b16 %v865
        %v5286 = vunpack.c.l.b16 %v866
        %v5287 = vunpack.c.h.b16 %v866
        %v5288 = vunpack.c.l.b16 %v867
        %v5289 = vunpack.c.h.b16 %v867
        %v5290 = vunpack.c.l.b16 %v868
        %v5291 = vunpack.c.h.b16 %v868
        %v5292 = vunpack.c.l.b16 %v869
        %v5293 = vunpack.c.h.b16 %v869
        %v5294 = vunpack.c.l.b16 %v870
        %v5295 = vunpack.c.h.b16 %v870
        %v5296 = vunpack.c.l.b16 %v871
        %v5297 = vunpack.c.h.b16 %v871
        %v5298 = vunpack.c.l.b16 %v872
        %v5299 = vunpack.c.h.b16 %v872
        %v5300 = vunpack.c.l.b16 %v873
        %v5301 = vunpack.c.h.b16 %v873
        %v5302 = vunpack.c.l.b16 %v874
        %v5303 = vunpack.c.h.b16 %v874
        %v5304 = vunpack.c.l.b16 %v875
        %v5305 = vunpack.c.h.b16 %v875
        %v5306 = vunpack.c.l.b16 %v876
        %v5307 = vunpack.c.h.b16 %v876
        %v5308 = vunpack.c.l.b16 %v877
        %v5309 = vunpack.c.h.b16 %v877
        %v5310 = vunpack.c.l.b16 %v878
        %v5311 = vunpack.c.h.b16 %v878
        %v5312 = vunpack.c.l.b16 %v879
        %v5313 = vunpack.c.h.b16 %v879
        %v5314 = vunpack.c.l.b16 %v880
        %v5315 = vunpack.c.h.b16 %v880
        %v5316 = vunpack.c.l.b16 %v881
        %v5317 = vunpack.c.h.b16 %v881
        %v5318 = vunpack.c.l.b16 %v882
        %v5319 = vunpack.c.h.b16 %v882
        %v5320 = vunpack.c.l.b16 %v883
        %v5321 = vunpack.c.h.b16 %v883
        %v5322 = vunpack.c.l.b16 %v884
        %v5323 = vunpack.c.h.b16 %v884
        %v5324 = vunpack.c.l.b16 %v885
        %v5325 = vunpack.c.h.b16 %v885
        %v5326 = vunpack.c.l.b16 %v886
        %v5327 = vunpack.c.h.b16 %v886
        %v5328 = vunpack.c.l.b16 %v887
        %v5329 = vunpack.c.h.b16 %v887
        %v5330 = vunpack.c.l.b16 %v888
        %v5331 = vunpack.c.h.b16 %v888
        %v5332 = vunpack.c.l.b16 %v889
        %v5333 = vunpack.c.h.b16 %v889
        %v5334 = vunpack.c.l.b16 %v890
        %v5335 = vunpack.c.h.b16 %v890
        %v5336 = vunpack.c.l.b16 %v891
        %v5337 = vunpack.c.h.b16 %v891
        %v5338 = vunpack.c.l.b16 %v892
        %v5339 = vunpack.c.h.b16 %v892
        %v5340 = vunpack.c.l.b16 %v893
        %v5341 = vunpack.c.h.b16 %v893
        %v5342 = vunpack.c.l.b16 %v894
        %v5343 = vunpack.c.h.b16 %v894
        %v5344 = vunpack.c.l.b16 %v895
        %v5345 = vunpack.c.h.b16 %v895
        %v5346 = vunpack.c.l.b16 %v896
        %v5347 = vunpack.c.h.b16 %v896
        %v5348 = vunpack.c.l.b16 %v897
        %v5349 = vunpack.c.h.b16 %v897
        %v5350 = vunpack.c.l.b16 %v898
        %v5351 = vunpack.c.h.b16 %v898
        %v5352 = vunpack.c.l.b16 %v899
        %v5353 = vunpack.c.h.b16 %v899
        %v5354 = vunpack.c.l.b16 %v900
        %v5355 = vunpack.c.h.b16 %v900
        %v5356 = vunpack.c.l.b16 %v901
        %v5357 = vunpack.c.h.b16 %v901
        %v5358 = vunpack.c.l.b16 %v902
        %v5359 = vunpack.c.h.b16 %v902
        %v5360 = vunpack.c.l.b16 %v903
        %v5361 = vunpack.c.h.b16 %v903
        %v5362 = vunpack.c.l.b16 %v904
        %v5363 = vunpack.c.h.b16 %v904
        %v5364 = vunpack.c.l.b16 %v905
        %v5365 = vunpack.c.h.b16 %v905
        %v5366 = vunpack.c.l.b16 %v906
        %v5367 = vunpack.c.h.b16 %v906
        %v5368 = vunpack.c.l.b16 %v907
        %v5369 = vunpack.c.h.b16 %v907
        %v5370 = vunpack.c.l.b16 %v908
        %v5371 = vunpack.c.h.b16 %v908
        %v5372 = vunpack.c.l.b16 %v909
        %v5373 = vunpack.c.h.b16 %v909
        %v5374 = vunpack.c.l.b16 %v910
        %v5375 = vunpack.c.h.b16 %v910
        %v5376 = vunpack.c.l.b16 %v911
        %v5377 = vunpack.c.h.b16 %v911
        %v5378 = vunpack.c.l.b16 %v912
        %v5379 = vunpack.c.h.b16 %v912
        %v5380 = vunpack.c.l.b16 %v913
        %v5381 = vunpack.c.h.b16 %v913
        %v5382 = vunpack.c.l.b16 %v914
        %v5383 = vunpack.c.h.b16 %v914
        %v5384 = vunpack.c.l.b16 %v915
        %v5385 = vunpack.c.h.b16 %v915
        %v5386 = vunpack.c.l.b16 %v916
        %v5387 = vunpack.c.h.b16 %v916
        %v5388 = vunpack.c.l.b16 %v917
        %v5389 = vunpack.c.h.b16 %v917
        %v5390 = vunpack.c.l.b16 %v918
        %v5391 = vunpack.c.h.b16 %v918
        %v5392 = vunpack.c.l.b16 %v919
        %v5393 = vunpack.c.h.b16 %v919
        %v5394 = vunpack.c.l.b16 %v920
        %v5395 = vunpack.c.h.b16 %v920
        %v5396 = vunpack.c.l.b16 %v921
        %v5397 = vunpack.c.h.b16 %v921
        %v5398 = vunpack.c.l.b16 %v922
        %v5399 = vunpack.c.h.b16 %v922
        %v5400 = vunpack.c.l.b16 %v923
        %v5401 = vunpack.c.h.b16 %v923
        %v5402 = vunpack.c.l.b16 %v924
        %v5403 = vunpack.c.h.b16 %v924
        %v5404 = vunpack.c.l.b16 %v925
        %v5405 = vunpack.c.h.b16 %v925
        %v5406 = vunpack.c.l.b16 %v926
        %v5407 = vunpack.c.h.b16 %v926
        %v5408 = vunpack.c.l.b16 %v927
        %v5409 = vunpack.c.h.b16 %v927
        %v5410 = vunpack.c.l.b16 %v928
        %v5411 = vunpack.c.h.b16 %v928
        %v5412 = vunpack.c.l.b16 %v929
        %v5413 = vunpack.c.h.b16 %v929
        %v5414 = vunpack.c.l.b16 %v930
        %v5415 = vunpack.c.h.b16 %v930
        %v5416 = vunpack.c.l.b16 %v931
        %v5417 = vunpack.c.h.b16 %v931
        %v5418 = vunpack.c.l.b16 %v932
        %v5419 = vunpack.c.h.b16 %v932
        %v5420 = vunpack.c.l.b16 %v933
        %v5421 = vunpack.c.h.b16 %v933
        %v5422 = vunpack.c.l.b16 %v934
        %v5423 = vunpack.c.h.b16 %v934
        %v5424 = vunpack.c.l.b16 %v935
        %v5425 = vunpack.c.h.b16 %v935
        %v5426 = vunpack.c.l.b16 %v936
        %v5427 = vunpack.c.h.b16 %v936
        %v5428 = vunpack.c.l.b16 %v937
        %v5429 = vunpack.c.h.b16 %v937
        %v5430 = vunpack.c.l.b16 %v938
        %v5431 = vunpack.c.h.b16 %v938
        %v5432 = vunpack.c.l.b16 %v939
        %v5433 = vunpack.c.h.b16 %v939
        %v5434 = vunpack.c.l.b16 %v940
        %v5435 = vunpack.c.h.b16 %v940
        %v5436 = vunpack.c.l.b16 %v941
        %v5437 = vunpack.c.h.b16 %v941
        %v5438 = vunpack.c.l.b16 %v942
        %v5439 = vunpack.c.h.b16 %v942
        %v5440 = vunpack.c.l.b16 %v943
        %v5441 = vunpack.c.h.b16 %v943
        %v5442 = vunpack.c.l.b16 %v944
        %v5443 = vunpack.c.h.b16 %v944
        %v5444 = vunpack.c.l.b16 %v945
        %v5445 = vunpack.c.h.b16 %v945
        %v5446 = vunpack.c.l.b16 %v946
        %v5447 = vunpack.c.h.b16 %v946
        %v5448 = vunpack.c.l.b16 %v947
        %v5449 = vunpack.c.h.b16 %v947
        %v5450 = vunpack.c.l.b16 %v948
        %v5451 = vunpack.c.h.b16 %v948
        %v5452 = vunpack.c.l.b16 %v949
        %v5453 = vunpack.c.h.b16 %v949
        %v5454 = vunpack.c.l.b16 %v950
        %v5455 = vunpack.c.h.b16 %v950
        %v5456 = vunpack.c.l.b16 %v951
        %v5457 = vunpack.c.h.b16 %v951
        %v5458 = vunpack.c.l.b16 %v952
        %v5459 = vunpack.c.h.b16 %v952
        %v5460 = vunpack.c.l.b16 %v953
        %v5461 = vunpack.c.h.b16 %v953
        %v5462 = vunpack.c.l.b16 %v954
        %v5463 = vunpack.c.h.b16 %v954
        %v5464 = vunpack.c.l.b16 %v955
        %v5465 = vunpack.c.h.b16 %v955
        %v5466 = vunpack.c.l.b16 %v956
        %v5467 = vunpack.c.h.b16 %v956
        %v5468 = vunpack.c.l.b16 %v957
        %v5469 = vunpack.c.h.b16 %v957
        %v5470 = vunpack.c.l.b16 %v958
        %v5471 = vunpack.c.h.b16 %v958
        %v5472 = vunpack.c.l.b16 %v959
        %v5473 = vunpack.c.h.b16 %v959
        %v5474 = vunpack.c.l.b16 %v960
        %v5475 = vunpack.c.h.b16 %v960
        %v5476 = vunpack.c.l.b16 %v961
        %v5477 = vunpack.c.h.b16 %v961
        %v5478 = vunpack.c.l.b16 %v962
        %v5479 = vunpack.c.h.b16 %v962
        %v5480 = vunpack.c.l.b16 %v963
        %v5481 = vunpack.c.h.b16 %v963
        %v5482 = vunpack.c.l.b16 %v964
        %v5483 = vunpack.c.h.b16 %v964
        %v5484 = vunpack.c.l.b16 %v965
        %v5485 = vunpack.c.h.b16 %v965
        %v5486 = vunpack.c.l.b16 %v966
        %v5487 = vunpack.c.h.b16 %v966
        %v5488 = vunpack.c.l.b16 %v967
        %v5489 = vunpack.c.h.b16 %v967
        %v5490 = vunpack.c.l.b16 %v968
        %v5491 = vunpack.c.h.b16 %v968
        %v5492 = vunpack.c.l.b16 %v969
        %v5493 = vunpack.c.h.b16 %v969
        %v5494 = vunpack.c.l.b16 %v970
        %v5495 = vunpack.c.h.b16 %v970
        %v5496 = vunpack.c.l.b16 %v971
        %v5497 = vunpack.c.h.b16 %v971
        %v5498 = vunpack.c.l.b16 %v972
        %v5499 = vunpack.c.h.b16 %v972
        %v5500 = vunpack.c.l.b16 %v973
        %v5501 = vunpack.c.h.b16 %v973
        %v5502 = vunpack.c.l.b16 %v974
        %v5503 = vunpack.c.h.b16 %v974
        %v5504 = vunpack.c.l.b16 %v975
        %v5505 = vunpack.c.h.b16 %v975
        %v5506 = vunpack.c.l.b16 %v976
        %v5507 = vunpack.c.h.b16 %v976
        %v5508 = vunpack.c.l.b16 %v977
        %v5509 = vunpack.c.h.b16 %v977
        %v5510 = vunpack.c.l.b16 %v978
        %v5511 = vunpack.c.h.b16 %v978
        %v5512 = vunpack.c.l.b16 %v979
        %v5513 = vunpack.c.h.b16 %v979
        %v5514 = vunpack.c.l.b16 %v980
        %v5515 = vunpack.c.h.b16 %v980
        %v5516 = vunpack.c.l.b16 %v981
        %v5517 = vunpack.c.h.b16 %v981
        %v5518 = vunpack.c.l.b16 %v982
        %v5519 = vunpack.c.h.b16 %v982
        %v5520 = vunpack.c.l.b16 %v983
        %v5521 = vunpack.c.h.b16 %v983
        %v5522 = vunpack.c.l.b16 %v984
        %v5523 = vunpack.c.h.b16 %v984
        %v5524 = vunpack.c.l.b16 %v985
        %v5525 = vunpack.c.h.b16 %v985
        %v5526 = vunpack.c.l.b16 %v986
        %v5527 = vunpack.c.h.b16 %v986
        %v5528 = vunpack.c.l.b16 %v987
        %v5529 = vunpack.c.h.b16 %v987
        %v5530 = vunpack.c.l.b16 %v988
        %v5531 = vunpack.c.h.b16 %v988
        %v5532 = vunpack.c.l.b16 %v989
        %v5533 = vunpack.c.h.b16 %v989
        %v5534 = vunpack.c.l.b16 %v990
        %v5535 = vunpack.c.h.b16 %v990
        %v5536 = vunpack.c.l.b16 %v991
        %v5537 = vunpack.c.h.b16 %v991
        %v5538 = vunpack.c.l.b16 %v992
        %v5539 = vunpack.c.h.b16 %v992
        %v5540 = vunpack.c.l.b16 %v993
        %v5541 = vunpack.c.h.b16 %v993
        %v5542 = vunpack.c.l.b16 %v994
        %v5543 = vunpack.c.h.b16 %v994
        %v5544 = vunpack.c.l.b16 %v995
        %v5545 = vunpack.c.h.b16 %v995
        %v5546 = vunpack.c.l.b16 %v996
        %v5547 = vunpack.c.h.b16 %v996
        %v5548 = vunpack.c.l.b16 %v997
        %v5549 = vunpack.c.h.b16 %v997
        %v5550 = vunpack.c.l.b16 %v998
        %v5551 = vunpack.c.h.b16 %v998
        %v5552 = vunpack.c.l.b16 %v999
        %v5553 = vunpack.c.h.b16 %v999
        %v5554 = vunpack.c.l.b16 %v1000
        %v5555 = vunpack.c.h.b16 %v1000
        %v5556 = vunpack.c.l.b16 %v1001
        %v5557 = vunpack.c.h.b16 %v1001
        %v5558 = vunpack.c.l.b16 %v1002
        %v5559 = vunpack.c.h.b16 %v1002
        %v5560 = vunpack.c.l.b16 %v1003
        %v5561 = vunpack.c.h.b16 %v1003
        %v5562 = vunpack.c.l.b16 %v1004
        %v5563 = vunpack.c.h.b16 %v1004
        %v5564 = vunpack.c.l.b16 %v1005
        %v5565 = vunpack.c.h.b16 %v1005
        %v5566 = vunpack.c.l.b16 %v1006
        %v5567 = vunpack.c.h.b16 %v1006
        %v5568 = vunpack.c.l.b16 %v1007
        %v5569 = vunpack.c.h.b16 %v1007
        %v5570 = vunpack.c.l.b16 %v1008
        %v5571 = vunpack.c.h.b16 %v1008
        %v5572 = vunpack.c.l.b16 %v1009
        %v5573 = vunpack.c.h.b16 %v1009
        %v5574 = vunpack.c.l.b16 %v1010
        %v5575 = vunpack.c.h.b16 %v1010
        %v5576 = vunpack.c.l.b16 %v1011
        %v5577 = vunpack.c.h.b16 %v1011
        %v5578 = vunpack.c.l.b16 %v1012
        %v5579 = vunpack.c.h.b16 %v1012
        %v5580 = vunpack.c.l.b16 %v1013
        %v5581 = vunpack.c.h.b16 %v1013
        %v5582 = vunpack.c.l.b16 %v1014
        %v5583 = vunpack.c.h.b16 %v1014
        %v5584 = vunpack.c.l.b16 %v1015
        %v5585 = vunpack.c.h.b16 %v1015
        %v5586 = vunpack.c.l.b16 %v1016
        %v5587 = vunpack.c.h.b16 %v1016
        %v5588 = vunpack.c.l.b16 %v1017
        %v5589 = vunpack.c.h.b16 %v1017
        %v5590 = vunpack.c.l.b16 %v1018
        %v5591 = vunpack.c.h.b16 %v1018
        %v5592 = vunpack.c.l.b16 %v1019
        %v5593 = vunpack.c.h.b16 %v1019
        %v5594 = vunpack.c.l.b16 %v1020
        %v5595 = vunpack.c.h.b16 %v1020
        %v5596 = vunpack.c.l.b16 %v1021
        %v5597 = vunpack.c.h.b16 %v1021
        %v5598 = vunpack.c.l.b16 %v1022
        %v5599 = vunpack.c.h.b16 %v1022
        %v5600 = vunpack.c.l.b16 %v1023
        %v5601 = vunpack.c.h.b16 %v1023
        %v5602 = vunpack.c.l.b16 %v1024
        %v5603 = vunpack.c.h.b16 %v1024
        %v5604 = vunpack.c.l.b16 %v1025
        %v5605 = vunpack.c.h.b16 %v1025
        %v5606 = vunpack.c.l.b16 %v1026
        %v5607 = vunpack.c.h.b16 %v1026
        %v5608 = vunpack.c.l.b16 %v1027
        %v5609 = vunpack.c.h.b16 %v1027
        %v5610 = vunpack.c.l.b16 %v1028
        %v5611 = vunpack.c.h.b16 %v1028
        %v5612 = vunpack.c.l.b16 %v1029
        %v5613 = vunpack.c.h.b16 %v1029
        %v5614 = vunpack.c.l.b16 %v1030
        %v5615 = vunpack.c.h.b16 %v1030
        %v5616 = vunpack.c.l.b16 %v1031
        %v5617 = vunpack.c.h.b16 %v1031
        %v5618 = vunpack.c.l.b16 %v1032
        %v5619 = vunpack.c.h.b16 %v1032
        %v5620 = vunpack.c.l.b16 %v1033
        %v5621 = vunpack.c.h.b16 %v1033
        %v5622 = vunpack.c.l.b16 %v1034
        %v5623 = vunpack.c.h.b16 %v1034
        %v5624 = vunpack.c.l.b16 %v1035
        %v5625 = vunpack.c.h.b16 %v1035
        %v5626 = vunpack.c.l.b16 %v1036
        %v5627 = vunpack.c.h.b16 %v1036
        %v5628 = vunpack.c.l.b16 %v1037
        %v5629 = vunpack.c.h.b16 %v1037
        %v5630 = vunpack.c.l.b16 %v1038
        %v5631 = vunpack.c.h.b16 %v1038
        %v5632 = vunpack.c.l.b16 %v1039
        %v5633 = vunpack.c.h.b16 %v1039
        %v5634 = vunpack.c.l.b16 %v1040
        %v5635 = vunpack.c.h.b16 %v1040
        %v5636 = vunpack.c.l.b16 %v1041
        %v5637 = vunpack.c.h.b16 %v1041
        %v5638 = vunpack.c.l.b16 %v1042
        %v5639 = vunpack.c.h.b16 %v1042
        %v5640 = vunpack.c.l.b16 %v1043
        %v5641 = vunpack.c.h.b16 %v1043
        %v5642 = vunpack.c.l.b16 %v1044
        %v5643 = vunpack.c.h.b16 %v1044
        %v5644 = vunpack.c.l.b16 %v1045
        %v5645 = vunpack.c.h.b16 %v1045
        %v5646 = vunpack.c.l.b16 %v1046
        %v5647 = vunpack.c.h.b16 %v1046
        %v5648 = vunpack.c.l.b16 %v1047
        %v5649 = vunpack.c.h.b16 %v1047
        %v5650 = vunpack.c.l.b16 %v1048
        %v5651 = vunpack.c.h.b16 %v1048
        %v5652 = vunpack.c.l.b16 %v1049
        %v5653 = vunpack.c.h.b16 %v1049
        %v5654 = vunpack.c.l.b16 %v1050
        %v5655 = vunpack.c.h.b16 %v1050
        %v5656 = vunpack.c.l.b16 %v1051
        %v5657 = vunpack.c.h.b16 %v1051
        %v5658 = vunpack.c.l.b16 %v1052
        %v5659 = vunpack.c.h.b16 %v1052
        %v5660 = vunpack.c.l.b16 %v1053
        %v5661 = vunpack.c.h.b16 %v1053
        %v5662 = vunpack.c.l.b16 %v1054
        %v5663 = vunpack.c.h.b16 %v1054
        %v5664 = vunpack.c.l.b16 %v1055
        %v5665 = vunpack.c.h.b16 %v1055
        %v5666 = vunpack.c.l.b16 %v1056
        %v5667 = vunpack.c.h.b16 %v1056
        %v5668 = vunpack.c.l.b16 %v1057
        %v5669 = vunpack.c.h.b16 %v1057
        %v5670 = vunpack.c.l.b16 %v1058
        %v5671 = vunpack.c.h.b16 %v1058
        %v5672 = vunpack.c.l.b16 %v1059
        %v5673 = vunpack.c.h.b16 %v1059
        %v5674 = vunpack.c.l.b16 %v1060
        %v5675 = vunpack.c.h.b16 %v1060
        %v5676 = vunpack.c.l.b16 %v1061
        %v5677 = vunpack.c.h.b16 %v1061
        %v5678 = vunpack.c.l.b16 %v1062
        %v5679 = vunpack.c.h.b16 %v1062
        %v5680 = vunpack.c.l.b16 %v1063
        %v5681 = vunpack.c.h.b16 %v1063
        %v5682 = vunpack.c.l.b16 %v1064
        %v5683 = vunpack.c.h.b16 %v1064
        %v5684 = vunpack.c.l.b16 %v1065
        %v5685 = vunpack.c.h.b16 %v1065
        %v5686 = vunpack.c.l.b16 %v1066
        %v5687 = vunpack.c.h.b16 %v1066
        %v5688 = vunpack.c.l.b16 %v1067
        %v5689 = vunpack.c.h.b16 %v1067
        %v5690 = vunpack.c.l.b16 %v1068
        %v5691 = vunpack.c.h.b16 %v1068
        %v5692 = vunpack.c.l.b16 %v1069
        %v5693 = vunpack.c.h.b16 %v1069
        %v5694 = vunpack.c.l.b16 %v1070
        %v5695 = vunpack.c.h.b16 %v1070
        %v5696 = vunpack.c.l.b16 %v1071
        %v5697 = vunpack.c.h.b16 %v1071
        %v5698 = vunpack.c.l.b16 %v1072
        %v5699 = vunpack.c.h.b16 %v1072
        %v5700 = vunpack.c.l.b16 %v1073
        %v5701 = vunpack.c.h.b16 %v1073
        %v5702 = vunpack.c.l.b16 %v1074
        %v5703 = vunpack.c.h.b16 %v1074
        %v5704 = vunpack.c.l.b16 %v1075
        %v5705 = vunpack.c.h.b16 %v1075
        %v5706 = vunpack.c.l.b16 %v1076
        %v5707 = vunpack.c.h.b16 %v1076
        %v5708 = vunpack.c.l.b16 %v1077
        %v5709 = vunpack.c.h.b16 %v1077
        %v5710 = vunpack.c.l.b16 %v1078
        %v5711 = vunpack.c.h.b16 %v1078
        %v5712 = vunpack.c.l.b16 %v1079
        %v5713 = vunpack.c.h.b16 %v1079
        %v5714 = vunpack.c.l.b16 %v1080
        %v5715 = vunpack.c.h.b16 %v1080
        %v5716 = vunpack.c.l.b16 %v1081
        %v5717 = vunpack.c.h.b16 %v1081
        %v5718 = vunpack.c.l.b16 %v1082
        %v5719 = vunpack.c.h.b16 %v1082
        %v5720 = vunpack.c.l.b16 %v1083
        %v5721 = vunpack.c.h.b16 %v1083
        %v5722 = vunpack.c.l.b16 %v1084
        %v5723 = vunpack.c.h.b16 %v1084
        %v5724 = vunpack.c.l.b16 %v1085
        %v5725 = vunpack.c.h.b16 %v1085
        %v5726 = vunpack.c.l.b16 %v1086
        %v5727 = vunpack.c.h.b16 %v1086
        %v5728 = vunpack.c.l.b16 %v1087
        %v5729 = vunpack.c.h.b16 %v1087
        %v5730 = vunpack.c.l.b16 %v1088
        %v5731 = vunpack.c.h.b16 %v1088
        %v5732 = vunpack.c.l.b16 %v1089
        %v5733 = vunpack.c.h.b16 %v1089
        %v5734 = vunpack.c.l.b16 %v1090
        %v5735 = vunpack.c.h.b16 %v1090
        %v5736 = vunpack.c.l.b16 %v1091
        %v5737 = vunpack.c.h.b16 %v1091
        %v5738 = vunpack.c.l.b16 %v1092
        %v5739 = vunpack.c.h.b16 %v1092
        %v5740 = vunpack.c.l.b16 %v1093
        %v5741 = vunpack.c.h.b16 %v1093
        %v5742 = vunpack.c.l.b16 %v1094
        %v5743 = vunpack.c.h.b16 %v1094
        %v5744 = vunpack.c.l.b16 %v1095
        %v5745 = vunpack.c.h.b16 %v1095
        %v5746 = vunpack.c.l.b16 %v1096
        %v5747 = vunpack.c.h.b16 %v1096
        %v5748 = vunpack.c.l.b16 %v1097
        %v5749 = vunpack.c.h.b16 %v1097
        %v5750 = vunpack.c.l.b16 %v1098
        %v5751 = vunpack.c.h.b16 %v1098
        %v5752 = vunpack.c.l.b16 %v1099
        %v5753 = vunpack.c.h.b16 %v1099
        %v5754 = vunpack.c.l.b16 %v1100
        %v5755 = vunpack.c.h.b16 %v1100
        %v5756 = vunpack.c.l.b16 %v1101
        %v5757 = vunpack.c.h.b16 %v1101
        %v5758 = vunpack.c.l.b16 %v1102
        %v5759 = vunpack.c.h.b16 %v1102
        %v5760 = vunpack.c.l.b16 %v1103
        %v5761 = vunpack.c.h.b16 %v1103
        %v5762 = vunpack.c.l.b16 %v1104
        %v5763 = vunpack.c.h.b16 %v1104
        %v5764 = vunpack.c.l.b16 %v1105
        %v5765 = vunpack.c.h.b16 %v1105
        %v5766 = vunpack.c.l.b16 %v1106
        %v5767 = vunpack.c.h.b16 %v1106
        %v5768 = vunpack.c.l.b16 %v1107
        %v5769 = vunpack.c.h.b16 %v1107
        %v5770 = vunpack.c.l.b16 %v1108
        %v5771 = vunpack.c.h.b16 %v1108
        %v5772 = vunpack.c.l.b16 %v1109
        %v5773 = vunpack.c.h.b16 %v1109
        %v5774 = vunpack.c.l.b16 %v1110
        %v5775 = vunpack.c.h.b16 %v1110
        %v5776 = vunpack.c.l.b16 %v1111
        %v5777 = vunpack.c.h.b16 %v1111
        %v5778 = vunpack.c.l.b16 %v1112
        %v5779 = vunpack.c.h.b16 %v1112
        %v5780 = vunpack.c.l.b16 %v1113
        %v5781 = vunpack.c.h.b16 %v1113
        %v5782 = vunpack.c.l.b16 %v1114
        %v5783 = vunpack.c.h.b16 %v1114
        %v5784 = vunpack.c.l.b16 %v1115
        %v5785 = vunpack.c.h.b16 %v1115
        %v5786 = vunpack.c.l.b16 %v1116
        %v5787 = vunpack.c.h.b16 %v1116
        %v5788 = vunpack.c.l.b16 %v1117
        %v5789 = vunpack.c.h.b16 %v1117
        %v5790 = vunpack.c.l.b16 %v1118
        %v5791 = vunpack.c.h.b16 %v1118
        %v5792 = vunpack.c.l.b16 %v1119
        %v5793 = vunpack.c.h.b16 %v1119
        %v5794 = vunpack.c.l.b16 %v1120
        %v5795 = vunpack.c.h.b16 %v1120
        %v5796 = vunpack.c.l.b16 %v1121
        %v5797 = vunpack.c.h.b16 %v1121
        %v5798 = vunpack.c.l.b16 %v1122
        %v5799 = vunpack.c.h.b16 %v1122
        %v5800 = vunpack.c.l.b16 %v1123
        %v5801 = vunpack.c.h.b16 %v1123
        %v5802 = vunpack.c.l.b16 %v1124
        %v5803 = vunpack.c.h.b16 %v1124
        %v5804 = vunpack.c.l.b16 %v1125
        %v5805 = vunpack.c.h.b16 %v1125
        %v5806 = vunpack.c.l.b16 %v1126
        %v5807 = vunpack.c.h.b16 %v1126
        %v5808 = vunpack.c.l.b16 %v1127
        %v5809 = vunpack.c.h.b16 %v1127
        %v5810 = vunpack.c.l.b16 %v1128
        %v5811 = vunpack.c.h.b16 %v1128
        %v5812 = vunpack.c.l.b16 %v1129
        %v5813 = vunpack.c.h.b16 %v1129
        %v5814 = vunpack.c.l.b16 %v1130
        %v5815 = vunpack.c.h.b16 %v1130
        %v5816 = vunpack.c.l.b16 %v1131
        %v5817 = vunpack.c.h.b16 %v1131
        %v5818 = vunpack.c.l.b16 %v1132
        %v5819 = vunpack.c.h.b16 %v1132
        %v5820 = vunpack.c.l.b16 %v1133
        %v5821 = vunpack.c.h.b16 %v1133
        %v5822 = vunpack.c.l.b16 %v1134
        %v5823 = vunpack.c.h.b16 %v1134
        %v5824 = vunpack.c.l.b16 %v1135
        %v5825 = vunpack.c.h.b16 %v1135
        %v5826 = vunpack.c.l.b16 %v1136
        %v5827 = vunpack.c.h.b16 %v1136
        %v5828 = vunpack.c.l.b16 %v1137
        %v5829 = vunpack.c.h.b16 %v1137
        %v5830 = vunpack.c.l.b16 %v1138
        %v5831 = vunpack.c.h.b16 %v1138
        %v5832 = vunpack.c.l.b16 %v1139
        %v5833 = vunpack.c.h.b16 %v1139
        %v5834 = vunpack.c.l.b16 %v1140
        %v5835 = vunpack.c.h.b16 %v1140
        %v5836 = vunpack.c.l.b16 %v1141
        %v5837 = vunpack.c.h.b16 %v1141
        %v5838 = vunpack.c.l.b16 %v1142
        %v5839 = vunpack.c.h.b16 %v1142
        %v5840 = vunpack.c.l.b16 %v1143
        %v5841 = vunpack.c.h.b16 %v1143
        %v5842 = vunpack.c.l.b16 %v1144
        %v5843 = vunpack.c.h.b16 %v1144
        %v5844 = vunpack.c.l.b16 %v1145
        %v5845 = vunpack.c.h.b16 %v1145
        %v5846 = vunpack.c.l.b16 %v1146
        %v5847 = vunpack.c.h.b16 %v1146
        %v5848 = vunpack.c.l.b16 %v1147
        %v5849 = vunpack.c.h.b16 %v1147
        %v5850 = vunpack.c.l.b16 %v1148
        %v5851 = vunpack.c.h.b16 %v1148
        %v5852 = vunpack.c.l.b16 %v1149
        %v5853 = vunpack.c.h.b16 %v1149
        %v5854 = vunpack.c.l.b16 %v1150
        %v5855 = vunpack.c.h.b16 %v1150
        %v5856 = vunpack.c.l.b16 %v1151
        %v5857 = vunpack.c.h.b16 %v1151
        %v5858 = vunpack.c.l.b16 %v1152
        %v5859 = vunpack.c.h.b16 %v1152
        %v5860 = vunpack.c.l.b16 %v1153
        %v5861 = vunpack.c.h.b16 %v1153
        %v5862 = vunpack.c.l.b16 %v1154
        %v5863 = vunpack.c.h.b16 %v1154
        %v5864 = vunpack.c.l.b16 %v1155
        %v5865 = vunpack.c.h.b16 %v1155
        %v5866 = vunpack.c.l.b16 %v1156
        %v5867 = vunpack.c.h.b16 %v1156
        %v5868 = vunpack.c.l.b16 %v1157
        %v5869 = vunpack.c.h.b16 %v1157
        %v5870 = vunpack.c.l.b16 %v1158
        %v5871 = vunpack.c.h.b16 %v1158
        %v5872 = vunpack.c.l.b16 %v1159
        %v5873 = vunpack.c.h.b16 %v1159
        %v5874 = vunpack.c.l.b16 %v1160
        %v5875 = vunpack.c.h.b16 %v1160
        %v5876 = vunpack.c.l.b16 %v1161
        %v5877 = vunpack.c.h.b16 %v1161
        %v5878 = vunpack.c.l.b16 %v1162
        %v5879 = vunpack.c.h.b16 %v1162
        %v5880 = vunpack.c.l.b16 %v1163
        %v5881 = vunpack.c.h.b16 %v1163
        %v5882 = vunpack.c.l.b16 %v1164
        %v5883 = vunpack.c.h.b16 %v1164
        %v5884 = vunpack.c.l.b16 %v1165
        %v5885 = vunpack.c.h.b16 %v1165
        %v5886 = vunpack.c.l.b16 %v1166
        %v5887 = vunpack.c.h.b16 %v1166
        %v5888 = vunpack.c.l.b16 %v1167
        %v5889 = vunpack.c.h.b16 %v1167
        %v5890 = vunpack.c.l.b16 %v1168
        %v5891 = vunpack.c.h.b16 %v1168
        %v5892 = vunpack.c.l.b16 %v1169
        %v5893 = vunpack.c.h.b16 %v1169
        %v5894 = vunpack.c.l.b16 %v1170
        %v5895 = vunpack.c.h.b16 %v1170
        %v5896 = vunpack.c.l.b16 %v1171
        %v5897 = vunpack.c.h.b16 %v1171
        %v5898 = vunpack.c.l.b16 %v1172
        %v5899 = vunpack.c.h.b16 %v1172
        %v5900 = vunpack.c.l.b16 %v1173
        %v5901 = vunpack.c.h.b16 %v1173
        %v5902 = vunpack.c.l.b16 %v1174
        %v5903 = vunpack.c.h.b16 %v1174
        %v5904 = vunpack.c.l.b16 %v1175
        %v5905 = vunpack.c.h.b16 %v1175
        %v5906 = vunpack.c.l.b16 %v1176
        %v5907 = vunpack.c.h.b16 %v1176
        %v5908 = vunpack.c.l.b16 %v1177
        %v5909 = vunpack.c.h.b16 %v1177
        %v5910 = vunpack.c.l.b16 %v1178
        %v5911 = vunpack.c.h.b16 %v1178
        %v5912 = vunpack.c.l.b16 %v1179
        %v5913 = vunpack.c.h.b16 %v1179
        %v5914 = vunpack.c.l.b16 %v1180
        %v5915 = vunpack.c.h.b16 %v1180
        %v5916 = vunpack.c.l.b16 %v1181
        %v5917 = vunpack.c.h.b16 %v1181
        %v5918 = vunpack.c.l.b16 %v1182
        %v5919 = vunpack.c.h.b16 %v1182
        %v5920 = vunpack.c.l.b16 %v1183
        %v5921 = vunpack.c.h.b16 %v1183
        %v5922 = vunpack.c.l.b16 %v1184
        %v5923 = vunpack.c.h.b16 %v1184
        %v5924 = vunpack.c.l.b16 %v1185
        %v5925 = vunpack.c.h.b16 %v1185
        %v5926 = vunpack.c.l.b16 %v1186
        %v5927 = vunpack.c.h.b16 %v1186
        %v5928 = vunpack.c.l.b16 %v1187
        %v5929 = vunpack.c.h.b16 %v1187
        %v5930 = vunpack.c.l.b16 %v1188
        %v5931 = vunpack.c.h.b16 %v1188
        %v5932 = vunpack.c.l.b16 %v1189
        %v5933 = vunpack.c.h.b16 %v1189
        %v5934 = vunpack.c.l.b16 %v1190
        %v5935 = vunpack.c.h.b16 %v1190
        %v5936 = vunpack.c.l.b16 %v1191
        %v5937 = vunpack.c.h.b16 %v1191
        %v5938 = vunpack.c.l.b16 %v1192
        %v5939 = vunpack.c.h.b16 %v1192
        %v5940 = vunpack.c.l.b16 %v1193
        %v5941 = vunpack.c.h.b16 %v1193
        %v5942 = vunpack.c.l.b16 %v1194
        %v5943 = vunpack.c.h.b16 %v1194
        %v5944 = vunpack.c.l.b16 %v1195
        %v5945 = vunpack.c.h.b16 %v1195
        %v5946 = vunpack.c.l.b16 %v1196
        %v5947 = vunpack.c.h.b16 %v1196
        %v5948 = vunpack.c.l.b16 %v1197
        %v5949 = vunpack.c.h.b16 %v1197
        %v5950 = vunpack.c.l.b16 %v1198
        %v5951 = vunpack.c.h.b16 %v1198
        %v5952 = vunpack.c.l.b16 %v1199
        %v5953 = vunpack.c.h.b16 %v1199
        %v5954 = vunpack.c.l.b16 %v1200
        %v5955 = vunpack.c.h.b16 %v1200
        %v5956 = vunpack.c.l.b16 %v1201
        %v5957 = vunpack.c.h.b16 %v1201
        %v5958 = vunpack.c.l.b16 %v1202
        %v5959 = vunpack.c.h.b16 %v1202
        %v5960 = vunpack.c.l.b16 %v1203
        %v5961 = vunpack.c.h.b16 %v1203
        %v5962 = vunpack.c.l.b16 %v1204
        %v5963 = vunpack.c.h.b16 %v1204
        %v5964 = vunpack.c.l.b16 %v1205
        %v5965 = vunpack.c.h.b16 %v1205
        %v5966 = vunpack.c.l.b16 %v1206
        %v5967 = vunpack.c.h.b16 %v1206
        %v5968 = vunpack.c.l.b16 %v1207
        %v5969 = vunpack.c.h.b16 %v1207
        %v5970 = vunpack.c.l.b16 %v1208
        %v5971 = vunpack.c.h.b16 %v1208
        %v5972 = vunpack.c.l.b16 %v1209
        %v5973 = vunpack.c.h.b16 %v1209
        %v5974 = vunpack.c.l.b16 %v1210
        %v5975 = vunpack.c.h.b16 %v1210
        %v5976 = vunpack.c.l.b16 %v1211
        %v5977 = vunpack.c.h.b16 %v1211
        %v5978 = vunpack.c.l.b16 %v1212
        %v5979 = vunpack.c.h.b16 %v1212
        %v5980 = vunpack.c.l.b16 %v1213
        %v5981 = vunpack.c.h.b16 %v1213
        %v5982 = vunpack.c.l.b16 %v1214
        %v5983 = vunpack.c.h.b16 %v1214
        %v5984 = vunpack.c.l.b16 %v1215
        %v5985 = vunpack.c.h.b16 %v1215
        %v5986 = vunpack.c.l.b16 %v1216
        %v5987 = vunpack.c.h.b16 %v1216
        %v5988 = vunpack.c.l.b16 %v1217
        %v5989 = vunpack.c.h.b16 %v1217
        %v5990 = vunpack.c.l.b16 %v1218
        %v5991 = vunpack.c.h.b16 %v1218
        %v5992 = vunpack.c.l.b16 %v1219
        %v5993 = vunpack.c.h.b16 %v1219
        %v5994 = vunpack.c.l.b16 %v1220
        %v5995 = vunpack.c.h.b16 %v1220
        %v5996 = vunpack.c.l.b16 %v1221
        %v5997 = vunpack.c.h.b16 %v1221
        %v5998 = vunpack.c.l.b16 %v1222
        %v5999 = vunpack.c.h.b16 %v1222
        %v6000 = vunpack.c.l.b16 %v1223
        %v6001 = vunpack.c.h.b16 %v1223
        %v6002 = vunpack.c.l.b16 %v1224
        %v6003 = vunpack.c.h.b16 %v1224
        %v6004 = vunpack.c.l.b16 %v1225
        %v6005 = vunpack.c.h.b16 %v1225
        %v6006 = vunpack.c.l.b16 %v1226
        %v6007 = vunpack.c.h.b16 %v1226
        %v6008 = vunpack.c.l.b16 %v1227
        %v6009 = vunpack.c.h.b16 %v1227
        %v6010 = vunpack.c.l.b16 %v1228
        %v6011 = vunpack.c.h.b16 %v1228
        %v6012 = vunpack.c.l.b16 %v1229
        %v6013 = vunpack.c.h.b16 %v1229
        %v6014 = vunpack.c.l.b16 %v1230
        %v6015 = vunpack.c.h.b16 %v1230
        %v6016 = vunpack.c.l.b16 %v1231
        %v6017 = vunpack.c.h.b16 %v1231
        %v6018 = vunpack.c.l.b16 %v1232
        %v6019 = vunpack.c.h.b16 %v1232
        %v6020 = vunpack.c.l.b16 %v1233
        %v6021 = vunpack.c.h.b16 %v1233
        %v6022 = vunpack.c.l.b16 %v1234
        %v6023 = vunpack.c.h.b16 %v1234
        %v6024 = vunpack.c.l.b16 %v1235
        %v6025 = vunpack.c.h.b16 %v1235
        %v6026 = vunpack.c.l.b16 %v1236
        %v6027 = vunpack.c.h.b16 %v1236
        %v6028 = vunpack.c.l.b16 %v1237
        %v6029 = vunpack.c.h.b16 %v1237
        %v6030 = vunpack.c.l.b16 %v1238
        %v6031 = vunpack.c.h.b16 %v1238
        %v6032 = vunpack.c.l.b16 %v1239
        %v6033 = vunpack.c.h.b16 %v1239
        %v6034 = vunpack.c.l.b16 %v1240
        %v6035 = vunpack.c.h.b16 %v1240
        %v6036 = vunpack.c.l.b16 %v1241
        %v6037 = vunpack.c.h.b16 %v1241
        %v6038 = vunpack.c.l.b16 %v1242
        %v6039 = vunpack.c.h.b16 %v1242
        %v6040 = vunpack.c.l.b16 %v1243
        %v6041 = vunpack.c.h.b16 %v1243
        %v6042 = vunpack.c.l.b16 %v1244
        %v6043 = vunpack.c.h.b16 %v1244
        %v6044 = vunpack.c.l.b16 %v1245
        %v6045 = vunpack.c.h.b16 %v1245
        %v6046 = vunpack.c.l.b16 %v1246
        %v6047 = vunpack.c.h.b16 %v1246
        %v6048 = vunpack.c.l.b16 %v1247
        %v6049 = vunpack.c.h.b16 %v1247
        %v6050 = vunpack.c.l.b16 %v1248
        %v6051 = vunpack.c.h.b16 %v1248
        %v6052 = vunpack.c.l.b16 %v1249
        %v6053 = vunpack.c.h.b16 %v1249
        %v6054 = vunpack.c.l.b16 %v1250
        %v6055 = vunpack.c.h.b16 %v1250
        %v6056 = vunpack.c.l.b16 %v1251
        %v6057 = vunpack.c.h.b16 %v1251
        %v6058 = vunpack.c.l.b16 %v1252
        %v6059 = vunpack.c.h.b16 %v1252
        %v6060 = vunpack.c.l.b16 %v1253
        %v6061 = vunpack.c.h.b16 %v1253
        %v6062 = vunpack.c.l.b16 %v1254
        %v6063 = vunpack.c.h.b16 %v1254
        %v6064 = vunpack.c.l.b16 %v1255
        %v6065 = vunpack.c.h.b16 %v1255
        %v6066 = vunpack.c.l.b16 %v1256
        %v6067 = vunpack.c.h.b16 %v1256
        %v6068 = vunpack.c.l.b16 %v1257
        %v6069 = vunpack.c.h.b16 %v1257
        %v6070 = vunpack.c.l.b16 %v1258
        %v6071 = vunpack.c.h.b16 %v1258
        %v6072 = vunpack.c.l.b16 %v1259
        %v6073 = vunpack.c.h.b16 %v1259
        %v6074 = vunpack.c.l.b16 %v1260
        %v6075 = vunpack.c.h.b16 %v1260
        %v6076 = vunpack.c.l.b16 %v1261
        %v6077 = vunpack.c.h.b16 %v1261
        %v6078 = vunpack.c.l.b16 %v1262
        %v6079 = vunpack.c.h.b16 %v1262
        %v6080 = vunpack.c.l.b16 %v1263
        %v6081 = vunpack.c.h.b16 %v1263
        %v6082 = vunpack.c.l.b16 %v1264
        %v6083 = vunpack.c.h.b16 %v1264
        %v6084 = vunpack.c.l.b16 %v1265
        %v6085 = vunpack.c.h.b16 %v1265
        %v6086 = vunpack.c.l.b16 %v1266
        %v6087 = vunpack.c.h.b16 %v1266
        %v6088 = vunpack.c.l.b16 %v1267
        %v6089 = vunpack.c.h.b16 %v1267
        %v6090 = vunpack.c.l.b16 %v1268
        %v6091 = vunpack.c.h.b16 %v1268
        %v6092 = vunpack.c.l.b16 %v1269
        %v6093 = vunpack.c.h.b16 %v1269
        %v6094 = vunpack.c.l.b16 %v1270
        %v6095 = vunpack.c.h.b16 %v1270
        %v6096 = vunpack.c.l.b16 %v1271
        %v6097 = vunpack.c.h.b16 %v1271
        %v6098 = vunpack.c.l.b16 %v1272
        %v6099 = vunpack.c.h.b16 %v1272
        %v6100 = vunpack.c.l.b16 %v1273
        %v6101 = vunpack.c.h.b16 %v1273
        %v6102 = vunpack.c.l.b16 %v1274
        %v6103 = vunpack.c.h.b16 %v1274
        %v6104 = vunpack.c.l.b16 %v1275
        %v6105 = vunpack.c.h.b16 %v1275
        %v6106 = vunpack.c.l.b16 %v1276
        %v6107 = vunpack.c.h.b16 %v1276
        %v6108 = vunpack.c.l.b16 %v1277
        %v6109 = vunpack.c.h.b16 %v1277
        %v6110 = vunpack.c.l.b16 %v1278
        %v6111 = vunpack.c.h.b16 %v1278
        %v6112 = vunpack.c.l.b16 %v1279
        %v6113 = vunpack.c.h.b16 %v1279
        %v6114 = vunpack.c.l.b16 %v1280
        %v6115 = vunpack.c.h.b16 %v1280
        %v6116 = vunpack.c.l.b16 %v1281
        %v6117 = vunpack.c.h.b16 %v1281
        %v6118 = vunpack.c.l.b16 %v1282
        %v6119 = vunpack.c.h.b16 %v1282
        %v6120 = vunpack.c.l.b16 %v1283
        %v6121 = vunpack.c.h.b16 %v1283
        %v6122 = vunpack.c.l.b16 %v1284
        %v6123 = vunpack.c.h.b16 %v1284
        %v6124 = vunpack.c.l.b16 %v1285
        %v6125 = vunpack.c.h.b16 %v1285
        %v6126 = vunpack.c.l.b16 %v1286
        %v6127 = vunpack.c.h.b16 %v1286
        %v6128 = vunpack.c.l.b16 %v1287
        %v6129 = vunpack.c.h.b16 %v1287
        %v6130 = vunpack.c.l.b16 %v1288
        %v6131 = vunpack.c.h.b16 %v1288
        %v6132 = vunpack.c.l.b16 %v1289
        %v6133 = vunpack.c.h.b16 %v1289
        %v6134 = vunpack.c.l.b16 %v1290
        %v6135 = vunpack.c.h.b16 %v1290
        %v6136 = vunpack.c.l.b16 %v1291
        %v6137 = vunpack.c.h.b16 %v1291
        %v6138 = vunpack.c.l.b16 %v1292
        %v6139 = vunpack.c.h.b16 %v1292
        %v6140 = vunpack.c.l.b16 %v1293
        %v6141 = vunpack.c.h.b16 %v1293
        %v6142 = vunpack.c.l.b16 %v1294
        %v6143 = vunpack.c.h.b16 %v1294
        %v6144 = vunpack.c.l.b16 %v1295
        %v6145 = vunpack.c.h.b16 %v1295
        %v6146 = vunpack.c.l.b16 %v1296
        %v6147 = vunpack.c.h.b16 %v1296
        %v6148 = vunpack.c.l.b16 %v1297
        %v6149 = vunpack.c.h.b16 %v1297
        %v6150 = vunpack.c.l.b16 %v1298
        %v6151 = vunpack.c.h.b16 %v1298
        %v6152 = vunpack.c.l.b16 %v1299
        %v6153 = vunpack.c.h.b16 %v1299
        %v6154 = vunpack.c.l.b16 %v1300
        %v6155 = vunpack.c.h.b16 %v1300
        %v6156 = vunpack.c.l.b16 %v1301
        %v6157 = vunpack.c.h.b16 %v1301
        %v6158 = vunpack.c.l.b16 %v1302
        %v6159 = vunpack.c.h.b16 %v1302
        %v6160 = vunpack.c.l.b16 %v1303
        %v6161 = vunpack.c.h.b16 %v1303
        %v6162 = vunpack.c.l.b16 %v1304
        %v6163 = vunpack.c.h.b16 %v1304
        %v6164 = vunpack.c.l.b16 %v1305
        %v6165 = vunpack.c.h.b16 %v1305
        %v6166 = vunpack.c.l.b16 %v1306
        %v6167 = vunpack.c.h.b16 %v1306
        %v6168 = vunpack.c.l.b16 %v1307
        %v6169 = vunpack.c.h.b16 %v1307
        %v6170 = vunpack.c.l.b16 %v1308
        %v6171 = vunpack.c.h.b16 %v1308
        %v6172 = vunpack.c.l.b16 %v1309
        %v6173 = vunpack.c.h.b16 %v1309
        %v6174 = vunpack.c.l.b16 %v1310
        %v6175 = vunpack.c.h.b16 %v1310
        %v6176 = vunpack.c.l.b16 %v1311
        %v6177 = vunpack.c.h.b16 %v1311
        %v6178 = vunpack.c.l.b16 %v1312
        %v6179 = vunpack.c.h.b16 %v1312
        %v6180 = vunpack.c.l.b16 %v1313
        %v6181 = vunpack.c.h.b16 %v1313
        %v6182 = vunpack.c.l.b16 %v1314
        %v6183 = vunpack.c.h.b16 %v1314
        %v6184 = vunpack.c.l.b16 %v1315
        %v6185 = vunpack.c.h.b16 %v1315
        %v6186 = vunpack.c.l.b16 %v1316
        %v6187 = vunpack.c.h.b16 %v1316
        %v6188 = vunpack.c.l.b16 %v1317
        %v6189 = vunpack.c.h.b16 %v1317
        %v6190 = vunpack.c.l.b16 %v1318
        %v6191 = vunpack.c.h.b16 %v1318
        %v6192 = vunpack.c.l.b16 %v1319
        %v6193 = vunpack.c.h.b16 %v1319
        %v6194 = vunpack.c.l.b16 %v1320
        %v6195 = vunpack.c.h.b16 %v1320
        %v6196 = vunpack.c.l.b16 %v1321
        %v6197 = vunpack.c.h.b16 %v1321
        %v6198 = vunpack.c.l.b16 %v1322
        %v6199 = vunpack.c.h.b16 %v1322
        %v6200 = vunpack.c.l.b16 %v1323
        %v6201 = vunpack.c.h.b16 %v1323
        %v6202 = vunpack.c.l.b16 %v1324
        %v6203 = vunpack.c.h.b16 %v1324
        %v6204 = vunpack.c.l.b16 %v1325
        %v6205 = vunpack.c.h.b16 %v1325
        %v6206 = vunpack.c.l.b16 %v1326
        %v6207 = vunpack.c.h.b16 %v1326
        %v6208 = vunpack.c.l.b16 %v1327
        %v6209 = vunpack.c.h.b16 %v1327
        %v6210 = vunpack.c.l.b16 %v1328
        %v6211 = vunpack.c.h.b16 %v1328
        %v6212 = vunpack.c.l.b16 %v1329
        %v6213 = vunpack.c.h.b16 %v1329
        %v6214 = vunpack.c.l.b16 %v1330
        %v6215 = vunpack.c.h.b16 %v1330
        %v6216 = vunpack.c.l.b16 %v1331
        %v6217 = vunpack.c.h.b16 %v1331
        %v6218 = vunpack.c.l.b16 %v1332
        %v6219 = vunpack.c.h.b16 %v1332
        %v6220 = vunpack.c.l.b16 %v1333
        %v6221 = vunpack.c.h.b16 %v1333
        %v6222 = vunpack.c.l.b16 %v1334
        %v6223 = vunpack.c.h.b16 %v1334
        %v6224 = vunpack.c.l.b16 %v1335
        %v6225 = vunpack.c.h.b16 %v1335
        %v6226 = vunpack.c.l.b16 %v1336
        %v6227 = vunpack.c.h.b16 %v1336
        %v6228 = vunpack.c.l.b16 %v1337
        %v6229 = vunpack.c.h.b16 %v1337
        %v6230 = vunpack.c.l.b16 %v1338
        %v6231 = vunpack.c.h.b16 %v1338
        %v6232 = vunpack.c.l.b16 %v1339
        %v6233 = vunpack.c.h.b16 %v1339
        %v6234 = vunpack.c.l.b16 %v1340
        %v6235 = vunpack.c.h.b16 %v1340
        %v6236 = vunpack.c.l.b16 %v1341
        %v6237 = vunpack.c.h.b16 %v1341
        %v6238 = vunpack.c.l.b16 %v1342
        %v6239 = vunpack.c.h.b16 %v1342
        %v6240 = vunpack.c.l.b16 %v1343
        %v6241 = vunpack.c.h.b16 %v1343
        %v6242 = vunpack.c.l.b16 %v1344
        %v6243 = vunpack.c.h.b16 %v1344
        %v6244 = vunpack.c.l.b16 %v1345
        %v6245 = vunpack.c.h.b16 %v1345
        %v6246 = vunpack.c.l.b16 %v1346
        %v6247 = vunpack.c.h.b16 %v1346
        %v6248 = vunpack.c.l.b16 %v1347
        %v6249 = vunpack.c.h.b16 %v1347
        %v6250 = vunpack.c.l.b16 %v1348
        %v6251 = vunpack.c.h.b16 %v1348
        %v6252 = vunpack.c.l.b16 %v1349
        %v6253 = vunpack.c.h.b16 %v1349
        %v6254 = vunpack.c.l.b16 %v1350
        %v6255 = vunpack.c.h.b16 %v1350
        %v6256 = vunpack.c.l.b16 %v1351
        %v6257 = vunpack.c.h.b16 %v1351
        %v6258 = vunpack.c.l.b16 %v1352
        %v6259 = vunpack.c.h.b16 %v1352
        %v6260 = vunpack.c.l.b16 %v1353
        %v6261 = vunpack.c.h.b16 %v1353
        %v6262 = vunpack.c.l.b16 %v1354
        %v6263 = vunpack.c.h.b16 %v1354
        %v6264 = vunpack.c.l.b16 %v1355
        %v6265 = vunpack.c.h.b16 %v1355
        %v6266 = vunpack.c.l.b16 %v1356
        %v6267 = vunpack.c.h.b16 %v1356
        %v6268 = vunpack.c.l.b16 %v1357
        %v6269 = vunpack.c.h.b16 %v1357
        %v6270 = vunpack.c.l.b16 %v1358
        %v6271 = vunpack.c.h.b16 %v1358
        %v6272 = vunpack.c.l.b16 %v1359
        %v6273 = vunpack.c.h.b16 %v1359
        %v6274 = vunpack.c.l.b16 %v1360
        %v6275 = vunpack.c.h.b16 %v1360
        %v6276 = vunpack.c.l.b16 %v1361
        %v6277 = vunpack.c.h.b16 %v1361
        %v6278 = vunpack.c.l.b16 %v1362
        %v6279 = vunpack.c.h.b16 %v1362
        %v6280 = vunpack.c.l.b16 %v1363
        %v6281 = vunpack.c.h.b16 %v1363
        %v6282 = vunpack.c.l.b16 %v1364
        %v6283 = vunpack.c.h.b16 %v1364
        %v6284 = vunpack.c.l.b16 %v1365
        %v6285 = vunpack.c.h.b16 %v1365
        %v6286 = vunpack.c.l.b16 %v1366
        %v6287 = vunpack.c.h.b16 %v1366
        %v6288 = vunpack.c.l.b16 %v1367
        %v6289 = vunpack.c.h.b16 %v1367
        %v6290 = vunpack.c.l.b16 %v1368
        %v6291 = vunpack.c.h.b16 %v1368
        %v6292 = vunpack.c.l.b16 %v1369
        %v6293 = vunpack.c.h.b16 %v1369
        %v6294 = vunpack.c.l.b16 %v1370
        %v6295 = vunpack.c.h.b16 %v1370
        %v6296 = vunpack.c.l.b16 %v1371
        %v6297 = vunpack.c.h.b16 %v1371
        %v6298 = vunpack.c.l.b16 %v1372
        %v6299 = vunpack.c.h.b16 %v1372
        %v6300 = vunpack.c.l.b16 %v1373
        %v6301 = vunpack.c.h.b16 %v1373
        %v6302 = vunpack.c.l.b16 %v1374
        %v6303 = vunpack.c.h.b16 %v1374
        %v6304 = vunpack.c.l.b16 %v1375
        %v6305 = vunpack.c.h.b16 %v1375
        %v6306 = vunpack.c.l.b16 %v1376
        %v6307 = vunpack.c.h.b16 %v1376
        %v6308 = vunpack.c.l.b16 %v1377
        %v6309 = vunpack.c.h.b16 %v1377
        %v6310 = vunpack.c.l.b16 %v1378
        %v6311 = vunpack.c.h.b16 %v1378
        %v6312 = vunpack.c.l.b16 %v1379
        %v6313 = vunpack.c.h.b16 %v1379
        %v6314 = vunpack.c.l.b16 %v1380
        %v6315 = vunpack.c.h.b16 %v1380
        %v6316 = vunpack.c.l.b16 %v1381
        %v6317 = vunpack.c.h.b16 %v1381
        %v6318 = vunpack.c.l.b16 %v1382
        %v6319 = vunpack.c.h.b16 %v1382
        %v6320 = vunpack.c.l.b16 %v1383
        %v6321 = vunpack.c.h.b16 %v1383
        %v6322 = vunpack.c.l.b16 %v1384
        %v6323 = vunpack.c.h.b16 %v1384
        %v6324 = vunpack.c.l.b16 %v1385
        %v6325 = vunpack.c.h.b16 %v1385
        %v6326 = vunpack.c.l.b16 %v1386
        %v6327 = vunpack.c.h.b16 %v1386
        %v6328 = vunpack.c.l.b16 %v1387
        %v6329 = vunpack.c.h.b16 %v1387
        %v6330 = vunpack.c.l.b16 %v1388
        %v6331 = vunpack.c.h.b16 %v1388
        %v6332 = vunpack.c.l.b16 %v1389
        %v6333 = vunpack.c.h.b16 %v1389
        %v6334 = vunpack.c.l.b16 %v1390
        %v6335 = vunpack.c.h.b16 %v1390
        %v6336 = vunpack.c.l.b16 %v1391
        %v6337 = vunpack.c.h.b16 %v1391
        %v6338 = vunpack.c.l.b16 %v1392
        %v6339 = vunpack.c.h.b16 %v1392
        %v6340 = vunpack.c.l.b16 %v1393
        %v6341 = vunpack.c.h.b16 %v1393
        %v6342 = vunpack.c.l.b16 %v1394
        %v6343 = vunpack.c.h.b16 %v1394
        %v6344 = vunpack.c.l.b16 %v1395
        %v6345 = vunpack.c.h.b16 %v1395
        %v6346 = vunpack.c.l.b16 %v1396
        %v6347 = vunpack.c.h.b16 %v1396
        %v6348 = vunpack.c.l.b16 %v1397
        %v6349 = vunpack.c.h.b16 %v1397
        %v6350 = vunpack.c.l.b16 %v1398
        %v6351 = vunpack.c.h.b16 %v1398
        %v6352 = vunpack.c.l.b16 %v1399
        %v6353 = vunpack.c.h.b16 %v1399
        %v6354 = vunpack.c.l.b16 %v1400
        %v6355 = vunpack.c.h.b16 %v1400
        %v6356 = vunpack.c.l.b16 %v1401
        %v6357 = vunpack.c.h.b16 %v1401
        %v6358 = vunpack.c.l.b16 %v1402
        %v6359 = vunpack.c.h.b16 %v1402
        %v6360 = vunpack.c.l.b16 %v1403
        %v6361 = vunpack.c.h.b16 %v1403
        %v6362 = vunpack.c.l.b16 %v1404
        %v6363 = vunpack.c.h.b16 %v1404
        %v6364 = vunpack.c.l.b16 %v1405
        %v6365 = vunpack.c.h.b16 %v1405
        %v6366 = vunpack.c.l.b16 %v1406
        %v6367 = vunpack.c.h.b16 %v1406
        %v6368 = vunpack.c.l.b16 %v1407
        %v6369 = vunpack.c.h.b16 %v1407
        %v6370 = vunpack.c.l.b16 %v1408
        %v6371 = vunpack.c.h.b16 %v1408
        %v6372 = vunpack.c.l.b16 %v1409
        %v6373 = vunpack.c.h.b16 %v1409
        %v6374 = vunpack.c.l.b16 %v1410
        %v6375 = vunpack.c.h.b16 %v1410
        %v6376 = vunpack.c.l.b16 %v1411
        %v6377 = vunpack.c.h.b16 %v1411
        %v6378 = vunpack.c.l.b16 %v1412
        %v6379 = vunpack.c.h.b16 %v1412
        %v6380 = vunpack.c.l.b16 %v1413
        %v6381 = vunpack.c.h.b16 %v1413
        %v6382 = vunpack.c.l.b16 %v1414
        %v6383 = vunpack.c.h.b16 %v1414
        %v6384 = vunpack.c.l.b16 %v1415
        %v6385 = vunpack.c.h.b16 %v1415
        %v6386 = vunpack.c.l.b16 %v1416
        %v6387 = vunpack.c.h.b16 %v1416
        %v6388 = vunpack.c.l.b16 %v1417
        %v6389 = vunpack.c.h.b16 %v1417
        %v6390 = vunpack.c.l.b16 %v1418
        %v6391 = vunpack.c.h.b16 %v1418
        %v6392 = vunpack.c.l.b16 %v1419
        %v6393 = vunpack.c.h.b16 %v1419
        %v6394 = vunpack.c.l.b16 %v1420
        %v6395 = vunpack.c.h.b16 %v1420
        %v6396 = vunpack.c.l.b16 %v1421
        %v6397 = vunpack.c.h.b16 %v1421
        %v6398 = vunpack.c.l.b16 %v1422
        %v6399 = vunpack.c.h.b16 %v1422
        %v6400 = vunpack.c.l.b16 %v1423
        %v6401 = vunpack.c.h.b16 %v1423
        %v6402 = vunpack.c.l.b16 %v1424
        %v6403 = vunpack.c.h.b16 %v1424
        %v6404 = vunpack.c.l.b16 %v1425
        %v6405 = vunpack.c.h.b16 %v1425
        %v6406 = vunpack.c.l.b16 %v1426
        %v6407 = vunpack.c.h.b16 %v1426
        %v6408 = vunpack.c.l.b16 %v1427
        %v6409 = vunpack.c.h.b16 %v1427
        %v6410 = vunpack.c.l.b16 %v1428
        %v6411 = vunpack.c.h.b16 %v1428
        %v6412 = vunpack.c.l.b16 %v1429
        %v6413 = vunpack.c.h.b16 %v1429
        %v6414 = vunpack.c.l.b16 %v1430
        %v6415 = vunpack.c.h.b16 %v1430
        %v6416 = vunpack.c.l.b16 %v1431
        %v6417 = vunpack.c.h.b16 %v1431
        %v6418 = vunpack.c.l.b16 %v1432
        %v6419 = vunpack.c.h.b16 %v1432
        %v6420 = vunpack.c.l.b16 %v1433
        %v6421 = vunpack.c.h.b16 %v1433
        %v6422 = vunpack.c.l.b16 %v1434
        %v6423 = vunpack.c.h.b16 %v1434
        %v6424 = vunpack.c.l.b16 %v1435
        %v6425 = vunpack.c.h.b16 %v1435
        %v6426 = vunpack.c.l.b16 %v1436
        %v6427 = vunpack.c.h.b16 %v1436
        %v6428 = vunpack.c.l.b16 %v1437
        %v6429 = vunpack.c.h.b16 %v1437
        %v6430 = vunpack.c.l.b16 %v1438
        %v6431 = vunpack.c.h.b16 %v1438
        %v6432 = vunpack.c.l.b16 %v1439
        %v6433 = vunpack.c.h.b16 %v1439
        %v6434 = vunpack.c.l.b16 %v1440
        %v6435 = vunpack.c.h.b16 %v1440
        %v6436 = vunpack.c.l.b16 %v1441
        %v6437 = vunpack.c.h.b16 %v1441
        %v6438 = vunpack.c.l.b16 %v1442
        %v6439 = vunpack.c.h.b16 %v1442
        %v6440 = vunpack.c.l.b16 %v1443
        %v6441 = vunpack.c.h.b16 %v1443
        %v6442 = vunpack.c.l.b16 %v1444
        %v6443 = vunpack.c.h.b16 %v1444
        %v6444 = vunpack.c.l.b16 %v1445
        %v6445 = vunpack.c.h.b16 %v1445
        %v6446 = vunpack.c.l.b16 %v1446
        %v6447 = vunpack.c.h.b16 %v1446
        %v6448 = vunpack.c.l.b16 %v1447
        %v6449 = vunpack.c.h.b16 %v1447
        %v6450 = vunpack.c.l.b16 %v1448
        %v6451 = vunpack.c.h.b16 %v1448
        %v6452 = vunpack.c.l.b16 %v1449
        %v6453 = vunpack.c.h.b16 %v1449
        %v6454 = vunpack.c.l.b16 %v1450
        %v6455 = vunpack.c.h.b16 %v1450
        %v6456 = vunpack.c.l.b16 %v1451
        %v6457 = vunpack.c.h.b16 %v1451
        %v6458 = vunpack.c.l.b16 %v1452
        %v6459 = vunpack.c.h.b16 %v1452
        %v6460 = vunpack.c.l.b16 %v1453
        %v6461 = vunpack.c.h.b16 %v1453
        %v6462 = vunpack.c.l.b16 %v1454
        %v6463 = vunpack.c.h.b16 %v1454
        %v6464 = vunpack.c.l.b16 %v1455
        %v6465 = vunpack.c.h.b16 %v1455
        %v6466 = vunpack.c.l.b16 %v1456
        %v6467 = vunpack.c.h.b16 %v1456
        %v6468 = vunpack.c.l.b16 %v1457
        %v6469 = vunpack.c.h.b16 %v1457
        %v6470 = vunpack.c.l.b16 %v1458
        %v6471 = vunpack.c.h.b16 %v1458
        %v6472 = vunpack.c.l.b16 %v1459
        %v6473 = vunpack.c.h.b16 %v1459
        %v6474 = vunpack.c.l.b16 %v1460
        %v6475 = vunpack.c.h.b16 %v1460
        %v6476 = vunpack.c.l.b16 %v1461
        %v6477 = vunpack.c.h.b16 %v1461
        %v6478 = vunpack.c.l.b16 %v1462
        %v6479 = vunpack.c.h.b16 %v1462
        %v6480 = vunpack.c.l.b16 %v1463
        %v6481 = vunpack.c.h.b16 %v1463
        %v6482 = vunpack.c.l.b16 %v1464
        %v6483 = vunpack.c.h.b16 %v1464
        %v6484 = vunpack.c.l.b16 %v1465
        %v6485 = vunpack.c.h.b16 %v1465
        %v6486 = vunpack.c.l.b16 %v1466
        %v6487 = vunpack.c.h.b16 %v1466
        %v6488 = vunpack.c.l.b16 %v1467
        %v6489 = vunpack.c.h.b16 %v1467
        %v6490 = vunpack.c.l.b16 %v1468
        %v6491 = vunpack.c.h.b16 %v1468
        %v6492 = vunpack.c.l.b16 %v1469
        %v6493 = vunpack.c.h.b16 %v1469
        %v6494 = vunpack.c.l.b16 %v1470
        %v6495 = vunpack.c.h.b16 %v1470
        %v6496 = vunpack.c.l.b16 %v1471
        %v6497 = vunpack.c.h.b16 %v1471
        %v6498 = vunpack.c.l.b16 %v1472
        %v6499 = vunpack.c.h.b16 %v1472
        %v6500 = vunpack.c.l.b16 %v1473
        %v6501 = vunpack.c.h.b16 %v1473
        %v6502 = vunpack.c.l.b16 %v1474
        %v6503 = vunpack.c.h.b16 %v1474
        %v6504 = vunpack.c.l.b16 %v1475
        %v6505 = vunpack.c.h.b16 %v1475
        %v6506 = vunpack.c.l.b16 %v1476
        %v6507 = vunpack.c.h.b16 %v1476
        %v6508 = vunpack.c.l.b16 %v1477
        %v6509 = vunpack.c.h.b16 %v1477
        %v6510 = vunpack.c.l.b16 %v1478
        %v6511 = vunpack.c.h.b16 %v1478
        %v6512 = vunpack.c.l.b16 %v1479
        %v6513 = vunpack.c.h.b16 %v1479
        %v6514 = vunpack.c.l.b16 %v1480
        %v6515 = vunpack.c.h.b16 %v1480
        %v6516 = vunpack.c.l.b16 %v1481
        %v6517 = vunpack.c.h.b16 %v1481
        %v6518 = vunpack.c.l.b16 %v1482
        %v6519 = vunpack.c.h.b16 %v1482
        %v6520 = vunpack.c.l.b16 %v1483
        %v6521 = vunpack.c.h.b16 %v1483
        %v6522 = vunpack.c.l.b16 %v1484
        %v6523 = vunpack.c.h.b16 %v1484
        %v6524 = vunpack.c.l.b16 %v1485
        %v6525 = vunpack.c.h.b16 %v1485
        %v6526 = vunpack.c.l.b16 %v1486
        %v6527 = vunpack.c.h.b16 %v1486
        %v6528 = vunpack.c.l.b16 %v1487
        %v6529 = vunpack.c.h.b16 %v1487
        %v6530 = vunpack.c.l.b16 %v1488
        %v6531 = vunpack.c.h.b16 %v1488
        %v6532 = vunpack.c.l.b16 %v1489
        %v6533 = vunpack.c.h.b16 %v1489
        %v6534 = vunpack.c.l.b16 %v1490
        %v6535 = vunpack.c.h.b16 %v1490
        %v6536 = vunpack.c.l.b16 %v1491
        %v6537 = vunpack.c.h.b16 %v1491
        %v6538 = vunpack.c.l.b16 %v1492
        %v6539 = vunpack.c.h.b16 %v1492
        %v6540 = vunpack.c.l.b16 %v1493
        %v6541 = vunpack.c.h.b16 %v1493
        %v6542 = vunpack.c.l.b16 %v1494
        %v6543 = vunpack.c.h.b16 %v1494
        %v6544 = vunpack.c.l.b16 %v1495
        %v6545 = vunpack.c.h.b16 %v1495
        %v6546 = vunpack.c.l.b16 %v1496
        %v6547 = vunpack.c.h.b16 %v1496
        %v6548 = vunpack.c.l.b16 %v1497
        %v6549 = vunpack.c.h.b16 %v1497
        %v6550 = vunpack.c.l.b16 %v1498
        %v6551 = vunpack.c.h.b16 %v1498
        %v6552 = vunpack.c.l.b16 %v1499
        %v6553 = vunpack.c.h.b16 %v1499
        %v6554 = vunpack.c.l.b16 %v1500
        %v6555 = vunpack.c.h.b16 %v1500
        %v6556 = vunpack.c.l.b16 %v1501
        %v6557 = vunpack.c.h.b16 %v1501
        %v6558 = vunpack.c.l.b16 %v1502
        %v6559 = vunpack.c.h.b16 %v1502
        %v6560 = vunpack.c.l.b16 %v1503
        %v6561 = vunpack.c.h.b16 %v1503
        %v6562 = vunpack.c.l.b16 %v1504
        %v6563 = vunpack.c.h.b16 %v1504
        %v6564 = vunpack.c.l.b16 %v1505
        %v6565 = vunpack.c.h.b16 %v1505
        %v6566 = vunpack.c.l.b16 %v1506
        %v6567 = vunpack.c.h.b16 %v1506
        %v6568 = vunpack.c.l.b16 %v1507
        %v6569 = vunpack.c.h.b16 %v1507
        %v6570 = vunpack.c.l.b16 %v1508
        %v6571 = vunpack.c.h.b16 %v1508
        %v6572 = vunpack.c.l.b16 %v1509
        %v6573 = vunpack.c.h.b16 %v1509
        %v6574 = vunpack.c.l.b16 %v1510
        %v6575 = vunpack.c.h.b16 %v1510
        %v6576 = vunpack.c.l.b16 %v1511
        %v6577 = vunpack.c.h.b16 %v1511
        %v6578 = vunpack.c.l.b16 %v1512
        %v6579 = vunpack.c.h.b16 %v1512
        %v6580 = vunpack.c.l.b16 %v1513
        %v6581 = vunpack.c.h.b16 %v1513
        %v6582 = vunpack.c.l.b16 %v1514
        %v6583 = vunpack.c.h.b16 %v1514
        %v6584 = vunpack.c.l.b16 %v1515
        %v6585 = vunpack.c.h.b16 %v1515
        %v6586 = vunpack.c.l.b16 %v1516
        %v6587 = vunpack.c.h.b16 %v1516
        %v6588 = vunpack.c.l.b16 %v1517
        %v6589 = vunpack.c.h.b16 %v1517
        %v6590 = vunpack.c.l.b16 %v1518
        %v6591 = vunpack.c.h.b16 %v1518
        %v6592 = vunpack.c.l.b16 %v1519
        %v6593 = vunpack.c.h.b16 %v1519
        %v6594 = vunpack.c.l.b16 %v1520
        %v6595 = vunpack.c.h.b16 %v1520
        %v6596 = vunpack.c.l.b16 %v1521
        %v6597 = vunpack.c.h.b16 %v1521
        %v6598 = vunpack.c.l.b16 %v1522
        %v6599 = vunpack.c.h.b16 %v1522
        %v6600 = vunpack.c.l.b16 %v1523
        %v6601 = vunpack.c.h.b16 %v1523
        %v6602 = vunpack.c.l.b16 %v1524
        %v6603 = vunpack.c.h.b16 %v1524
        %v6604 = vunpack.c.l.b16 %v1525
        %v6605 = vunpack.c.h.b16 %v1525
        %v6606 = vunpack.c.l.b16 %v1526
        %v6607 = vunpack.c.h.b16 %v1526
        %v6608 = vunpack.c.l.b16 %v1527
        %v6609 = vunpack.c.h.b16 %v1527
        %v6610 = vunpack.c.l.b16 %v1528
        %v6611 = vunpack.c.h.b16 %v1528
        %v6612 = vunpack.c.l.b16 %v1529
        %v6613 = vunpack.c.h.b16 %v1529
        %v6614 = vunpack.c.l.b16 %v1530
        %v6615 = vunpack.c.h.b16 %v1530
        %v6616 = vunpack.c.l.b16 %v1531
        %v6617 = vunpack.c.h.b16 %v1531
        %v6618 = vunpack.c.l.b16 %v1532
        %v6619 = vunpack.c.h.b16 %v1532
        %v6620 = vunpack.c.l.b16 %v1533
        %v6621 = vunpack.c.h.b16 %v1533
        %v6622 = vunpack.c.l.b16 %v1534
        %v6623 = vunpack.c.h.b16 %v1534
        %v6624 = vunpack.c.l.b16 %v1535
        %v6625 = vunpack.c.h.b16 %v1535
        %v6626 = vunpack.c.l.b16 %v1536
        %v6627 = vunpack.c.h.b16 %v1536
        %v6628 = vunpack.c.l.b16 %v1537
        %v6629 = vunpack.c.h.b16 %v1537
        %v6630 = vunpack.c.l.b16 %v1538
        %v6631 = vunpack.c.h.b16 %v1538
        %v6632 = vunpack.c.l.b16 %v1539
        %v6633 = vunpack.c.h.b16 %v1539
        %v6634 = vunpack.c.l.b16 %v1540
        %v6635 = vunpack.c.h.b16 %v1540
        %v6636 = vunpack.c.l.b16 %v1541
        %v6637 = vunpack.c.h.b16 %v1541
        %v6638 = vunpack.c.l.b16 %v1542
        %v6639 = vunpack.c.h.b16 %v1542
        %v6640 = vunpack.c.l.b16 %v1543
        %v6641 = vunpack.c.h.b16 %v1543
        %v6642 = vunpack.c.l.b16 %v1544
        %v6643 = vunpack.c.h.b16 %v1544
        %v6644 = vunpack.c.l.b16 %v1545
        %v6645 = vunpack.c.h.b16 %v1545
        %v6646 = vunpack.c.l.b16 %v1546
        %v6647 = vunpack.c.h.b16 %v1546
        %v6648 = vunpack.c.l.b16 %v1547
        %v6649 = vunpack.c.h.b16 %v1547
        %v6650 = vunpack.c.l.b16 %v1548
        %v6651 = vunpack.c.h.b16 %v1548
        %v6652 = vunpack.c.l.b16 %v1549
        %v6653 = vunpack.c.h.b16 %v1549
        %v6654 = vunpack.c.l.b16 %v1550
        %v6655 = vunpack.c.h.b16 %v1550
        %v6656 = vunpack.c.l.b16 %v1551
        %v6657 = vunpack.c.h.b16 %v1551
        %v6658 = vunpack.c.l.b16 %v1552
        %v6659 = vunpack.c.h.b16 %v1552
        %v6660 = vunpack.c.l.b16 %v1553
        %v6661 = vunpack.c.h.b16 %v1553
        %v6662 = vunpack.c.l.b16 %v1554
        %v6663 = vunpack.c.h.b16 %v1554
        %v6664 = vunpack.c.l.b16 %v1555
        %v6665 = vunpack.c.h.b16 %v1555
        %v6666 = vunpack.c.l.b16 %v1556
        %v6667 = vunpack.c.h.b16 %v1556
        %v6668 = vunpack.c.l.b16 %v1557
        %v6669 = vunpack.c.h.b16 %v1557
        %v6670 = vunpack.c.l.b16 %v1558
        %v6671 = vunpack.c.h.b16 %v1558
        %v6672 = vunpack.c.l.b16 %v1559
        %v6673 = vunpack.c.h.b16 %v1559
        %v6674 = vunpack.c.l.b16 %v1560
        %v6675 = vunpack.c.h.b16 %v1560
        %v6676 = vunpack.c.l.b16 %v1561
        %v6677 = vunpack.c.h.b16 %v1561
        %v6678 = vunpack.c.l.b16 %v1562
        %v6679 = vunpack.c.h.b16 %v1562
        %v6680 = vunpack.c.l.b16 %v1563
        %v6681 = vunpack.c.h.b16 %v1563
        %v6682 = vunpack.c.l.b16 %v1564
        %v6683 = vunpack.c.h.b16 %v1564
        %v6684 = vunpack.c.l.b16 %v1565
        %v6685 = vunpack.c.h.b16 %v1565
        %v6686 = vunpack.c.l.b16 %v1566
        %v6687 = vunpack.c.h.b16 %v1566
        %v6688 = vunpack.c.l.b16 %v1567
        %v6689 = vunpack.c.h.b16 %v1567
        %v6690 = vunpack.c.l.b16 %v1568
        %v6691 = vunpack.c.h.b16 %v1568
        %v6692 = vunpack.c.l.b16 %v1569
        %v6693 = vunpack.c.h.b16 %v1569
        %v6694 = vunpack.c.l.b16 %v1570
        %v6695 = vunpack.c.h.b16 %v1570
        %v6696 = vunpack.c.l.b16 %v1571
        %v6697 = vunpack.c.h.b16 %v1571
        %v6698 = vunpack.c.l.b16 %v1572
        %v6699 = vunpack.c.h.b16 %v1572
        %v6700 = vunpack.c.l.b16 %v1573
        %v6701 = vunpack.c.h.b16 %v1573
        %v6702 = vunpack.c.l.b16 %v1574
        %v6703 = vunpack.c.h.b16 %v1574
        %v6704 = vunpack.c.l.b16 %v1575
        %v6705 = vunpack.c.h.b16 %v1575
        %v6706 = vunpack.c.l.b16 %v1576
        %v6707 = vunpack.c.h.b16 %v1576
        %v6708 = vunpack.c.l.b16 %v1577
        %v6709 = vunpack.c.h.b16 %v1577
        %v6710 = vunpack.c.l.b16 %v1578
        %v6711 = vunpack.c.h.b16 %v1578
        %v6712 = vunpack.c.l.b16 %v1579
        %v6713 = vunpack.c.h.b16 %v1579
        %v6714 = vunpack.c.l.b16 %v1580
        %v6715 = vunpack.c.h.b16 %v1580
        %v6716 = vunpack.c.l.b16 %v1581
        %v6717 = vunpack.c.h.b16 %v1581
        %v6718 = vunpack.c.l.b16 %v1582
        %v6719 = vunpack.c.h.b16 %v1582
        %v6720 = vunpack.c.l.b16 %v1583
        %v6721 = vunpack.c.h.b16 %v1583
        %v6722 = vunpack.c.l.b16 %v1584
        %v6723 = vunpack.c.h.b16 %v1584
        %v6724 = vunpack.c.l.b16 %v1585
        %v6725 = vunpack.c.h.b16 %v1585
        %v6726 = vunpack.c.l.b16 %v1586
        %v6727 = vunpack.c.h.b16 %v1586
        %v6728 = vunpack.c.l.b16 %v1587
        %v6729 = vunpack.c.h.b16 %v1587
        %v6730 = vunpack.c.l.b16 %v1588
        %v6731 = vunpack.c.h.b16 %v1588
        %v6732 = vunpack.c.l.b16 %v1589
        %v6733 = vunpack.c.h.b16 %v1589
        %v6734 = vunpack.c.l.b16 %v1590
        %v6735 = vunpack.c.h.b16 %v1590
        %v6736 = vunpack.c.l.b16 %v1591
        %v6737 = vunpack.c.h.b16 %v1591
        %v6738 = vunpack.c.l.b16 %v1592
        %v6739 = vunpack.c.h.b16 %v1592
        %v6740 = vunpack.c.l.b16 %v1593
        %v6741 = vunpack.c.h.b16 %v1593
        %v6742 = vunpack.c.l.b16 %v1594
        %v6743 = vunpack.c.h.b16 %v1594
        %v6744 = vunpack.c.l.b16 %v1595
        %v6745 = vunpack.c.h.b16 %v1595
        %v6746 = vunpack.c.l.b16 %v1596
        %v6747 = vunpack.c.h.b16 %v1596
        %v6748 = vunpack.c.l.b16 %v1597
        %v6749 = vunpack.c.h.b16 %v1597
        %v6750 = vunpack.c.l.b16 %v1598
        %v6751 = vunpack.c.h.b16 %v1598
        %v6752 = vunpack.c.l.b16 %v1599
        %v6753 = vunpack.c.h.b16 %v1599
        %v6754 = vunpack.c.l.b16 %v1600
        %v6755 = vunpack.c.h.b16 %v1600
        %v6756 = vunpack.c.l.b16 %v1601
        %v6757 = vunpack.c.h.b16 %v1601
        %v6758 = vunpack.c.l.b16 %v1602
        %v6759 = vunpack.c.h.b16 %v1602
        %v6760 = vunpack.c.l.b16 %v1603
        %v6761 = vunpack.c.h.b16 %v1603
        %v6762 = vunpack.c.l.b16 %v1604
        %v6763 = vunpack.c.h.b16 %v1604
        %v6764 = vunpack.c.l.b16 %v1605
        %v6765 = vunpack.c.h.b16 %v1605
        %v6766 = vunpack.c.l.b16 %v1606
        %v6767 = vunpack.c.h.b16 %v1606
        %v6768 = vunpack.c.l.b16 %v1607
        %v6769 = vunpack.c.h.b16 %v1607
        %v6770 = vunpack.c.l.b16 %v1608
        %v6771 = vunpack.c.h.b16 %v1608
        %v6772 = vunpack.c.l.b16 %v1609
        %v6773 = vunpack.c.h.b16 %v1609
        %v6774 = vunpack.c.l.b16 %v1610
        %v6775 = vunpack.c.h.b16 %v1610
        %v6776 = vunpack.c.l.b16 %v1611
        %v6777 = vunpack.c.h.b16 %v1611
        %v6778 = vunpack.c.l.b16 %v1612
        %v6779 = vunpack.c.h.b16 %v1612
        %v6780 = vunpack.c.l.b16 %v1613
        %v6781 = vunpack.c.h.b16 %v1613
        %v6782 = vunpack.c.l.b16 %v1614
        %v6783 = vunpack.c.h.b16 %v1614
        %v6784 = vunpack.c.l.b16 %v1615
        %v6785 = vunpack.c.h.b16 %v1615
        %v6786 = vunpack.c.l.b16 %v1616
        %v6787 = vunpack.c.h.b16 %v1616
        %v6788 = vunpack.c.l.b16 %v1617
        %v6789 = vunpack.c.h.b16 %v1617
        %v6790 = vunpack.c.l.b16 %v1618
        %v6791 = vunpack.c.h.b16 %v1618
        %v6792 = vunpack.c.l.b16 %v1619
        %v6793 = vunpack.c.h.b16 %v1619
        %v6794 = vunpack.c.l.b16 %v1620
        %v6795 = vunpack.c.h.b16 %v1620
        %v6796 = vunpack.c.l.b16 %v1621
        %v6797 = vunpack.c.h.b16 %v1621
        %v6798 = vunpack.c.l.b16 %v1622
        %v6799 = vunpack.c.h.b16 %v1622
        %v6800 = vunpack.c.l.b16 %v1623
        %v6801 = vunpack.c.h.b16 %v1623
        %v6802 = vunpack.c.l.b16 %v1624
        %v6803 = vunpack.c.h.b16 %v1624
        %v6804 = vunpack.c.l.b16 %v1625
        %v6805 = vunpack.c.h.b16 %v1625
        %v6806 = vunpack.c.l.b16 %v1626
        %v6807 = vunpack.c.h.b16 %v1626
        %v6808 = vunpack.c.l.b16 %v1627
        %v6809 = vunpack.c.h.b16 %v1627
        %v6810 = vunpack.c.l.b16 %v1628
        %v6811 = vunpack.c.h.b16 %v1628
        %v6812 = vunpack.c.l.b16 %v1629
        %v6813 = vunpack.c.h.b16 %v1629
        %v6814 = vunpack.c.l.b16 %v1630
        %v6815 = vunpack.c.h.b16 %v1630
        %v6816 = vunpack.c.l.b16 %v1631
        %v6817 = vunpack.c.h.b16 %v1631
        %v6818 = vunpack.c.l.b16 %v1632
        %v6819 = vunpack.c.h.b16 %v1632
        %v6820 = vunpack.c.l.b16 %v1633
        %v6821 = vunpack.c.h.b16 %v1633
        %v6822 = vunpack.c.l.b16 %v1634
        %v6823 = vunpack.c.h.b16 %v1634
        %v6824 = vunpack.c.l.b16 %v1635
        %v6825 = vunpack.c.h.b16 %v1635
        %v6826 = vunpack.c.l.b16 %v1636
        %v6827 = vunpack.c.h.b16 %v1636
        %v6828 = vunpack.c.l.b16 %v1637
        %v6829 = vunpack.c.h.b16 %v1637
        %v6830 = vunpack.c.l.b16 %v1638
        %v6831 = vunpack.c.h.b16 %v1638
        %v6832 = vunpack.c.l.b16 %v1639
        %v6833 = vunpack.c.h.b16 %v1639
        %v6834 = vunpack.c.l.b16 %v1640
        %v6835 = vunpack.c.h.b16 %v1640
        %v6836 = vunpack.c.l.b16 %v1641
        %v6837 = vunpack.c.h.b16 %v1641
        %v6838 = vunpack.c.l.b16 %v1642
        %v6839 = vunpack.c.h.b16 %v1642
        %v6840 = vunpack.c.l.b16 %v1643
        %v6841 = vunpack.c.h.b16 %v1643
        %v6842 = vunpack.c.l.b16 %v1644
        %v6843 = vunpack.c.h.b16 %v1644
        %v6844 = vunpack.c.l.b16 %v1645
        %v6845 = vunpack.c.h.b16 %v1645
        %v6846 = vunpack.c.l.b16 %v1646
        %v6847 = vunpack.c.h.b16 %v1646
        %v6848 = vunpack.c.l.b16 %v1647
        %v6849 = vunpack.c.h.b16 %v1647
        %v6850 = vunpack.c.l.b16 %v1648
        %v6851 = vunpack.c.h.b16 %v1648
        %v6852 = vunpack.c.l.b16 %v1649
        %v6853 = vunpack.c.h.b16 %v1649
        %v6854 = vunpack.c.l.b16 %v1650
        %v6855 = vunpack.c.h.b16 %v1650
        %v6856 = vunpack.c.l.b16 %v1651
        %v6857 = vunpack.c.h.b16 %v1651
        %v6858 = vunpack.c.l.b16 %v1652
        %v6859 = vunpack.c.h.b16 %v1652
        %v6860 = vunpack.c.l.b16 %v1653
        %v6861 = vunpack.c.h.b16 %v1653
        %v6862 = vunpack.c.l.b16 %v1654
        %v6863 = vunpack.c.h.b16 %v1654
        %v6864 = vunpack.c.l.b16 %v1655
        %v6865 = vunpack.c.h.b16 %v1655
        %v6866 = vunpack.c.l.b16 %v1656
        %v6867 = vunpack.c.h.b16 %v1656
        %v6868 = vunpack.c.l.b16 %v1657
        %v6869 = vunpack.c.h.b16 %v1657
        %v6870 = vunpack.c.l.b16 %v1658
        %v6871 = vunpack.c.h.b16 %v1658
        %v6872 = vunpack.c.l.b16 %v1659
        %v6873 = vunpack.c.h.b16 %v1659
        %v6874 = vunpack.c.l.b16 %v1660
        %v6875 = vunpack.c.h.b16 %v1660
        %v6876 = vunpack.c.l.b16 %v1661
        %v6877 = vunpack.c.h.b16 %v1661
        %v6878 = vunpack.c.l.b16 %v1662
        %v6879 = vunpack.c.h.b16 %v1662
        %v6880 = vunpack.c.l.b16 %v1663
        %v6881 = vunpack.c.h.b16 %v1663
        %v6882 = vunpack.c.l.b16 %v1664
        %v6883 = vunpack.c.h.b16 %v1664
        %v6884 = vunpack.c.l.b16 %v1665
        %v6885 = vunpack.c.h.b16 %v1665
        %v6886 = vunpack.c.l.b16 %v1666
        %v6887 = vunpack.c.h.b16 %v1666
        %v6888 = vunpack.c.l.b16 %v1667
        %v6889 = vunpack.c.h.b16 %v1667
        %v6890 = vunpack.c.l.b16 %v1668
        %v6891 = vunpack.c.h.b16 %v1668
        %v6892 = vunpack.c.l.b16 %v1669
        %v6893 = vunpack.c.h.b16 %v1669
        %v6894 = vunpack.c.l.b16 %v1670
        %v6895 = vunpack.c.h.b16 %v1670
        %v6896 = vunpack.c.l.b16 %v1671
        %v6897 = vunpack.c.h.b16 %v1671
        %v6898 = vunpack.c.l.b16 %v1672
        %v6899 = vunpack.c.h.b16 %v1672
        %v6900 = vunpack.c.l.b16 %v1673
        %v6901 = vunpack.c.h.b16 %v1673
        %v6902 = vunpack.c.l.b16 %v1674
        %v6903 = vunpack.c.h.b16 %v1674
        %v6904 = vunpack.c.l.b16 %v1675
        %v6905 = vunpack.c.h.b16 %v1675
        %v6906 = vunpack.c.l.b16 %v1676
        %v6907 = vunpack.c.h.b16 %v1676
        %v6908 = vunpack.c.l.b16 %v1677
        %v6909 = vunpack.c.h.b16 %v1677
        %v6910 = vunpack.c.l.b16 %v1678
        %v6911 = vunpack.c.h.b16 %v1678
        %v6912 = vunpack.c.l.b16 %v1679
        %v6913 = vunpack.c.h.b16 %v1679
        %v6914 = vunpack.c.l.b16 %v1680
        %v6915 = vunpack.c.h.b16 %v1680
        %v6916 = vunpack.c.l.b16 %v1681
        %v6917 = vunpack.c.h.b16 %v1681
        %v6918 = vunpack.c.l.b16 %v1682
        %v6919 = vunpack.c.h.b16 %v1682
        %v6920 = vunpack.c.l.b16 %v1683
        %v6921 = vunpack.c.h.b16 %v1683
        %v6922 = vunpack.c.l.b16 %v1684
        %v6923 = vunpack.c.h.b16 %v1684
        %v6924 = vunpack.c.l.b16 %v1685
        %v6925 = vunpack.c.h.b16 %v1685
        %v6926 = vunpack.c.l.b16 %v1686
        %v6927 = vunpack.c.h.b16 %v1686
        %v6928 = vunpack.c.l.b16 %v1687
        %v6929 = vunpack.c.h.b16 %v1687
        %v6930 = vunpack.c.l.b16 %v1688
        %v6931 = vunpack.c.h.b16 %v1688
        %v6932 = vunpack.c.l.b16 %v1689
        %v6933 = vunpack.c.h.b16 %v1689
        %v6934 = vunpack.c.l.b16 %v1690
        %v6935 = vunpack.c.h.b16 %v1690
        %v6936 = vunpack.c.l.b16 %v1691
        %v6937 = vunpack.c.h.b16 %v1691
        %v6938 = vunpack.c.l.b16 %v1692
        %v6939 = vunpack.c.h.b16 %v1692
        %v6940 = vunpack.c.l.b16 %v1693
        %v6941 = vunpack.c.h.b16 %v1693
        %v6942 = vunpack.c.l.b16 %v1694
        %v6943 = vunpack.c.h.b16 %v1694
        %v6944 = vunpack.c.l.b16 %v1695
        %v6945 = vunpack.c.h.b16 %v1695
        %v6946 = vunpack.c.l.b16 %v1696
        %v6947 = vunpack.c.h.b16 %v1696
        %v6948 = vunpack.c.l.b16 %v1697
        %v6949 = vunpack.c.h.b16 %v1697
        %v6950 = vunpack.c.l.b16 %v1698
        %v6951 = vunpack.c.h.b16 %v1698
        %v6952 = vunpack.c.l.b16 %v1699
        %v6953 = vunpack.c.h.b16 %v1699
        %v6954 = vunpack.c.l.b16 %v1700
        %v6955 = vunpack.c.h.b16 %v1700
        %v6956 = vunpack.c.l.b16 %v1701
        %v6957 = vunpack.c.h.b16 %v1701
        %v6958 = vunpack.c.l.b16 %v1702
        %v6959 = vunpack.c.h.b16 %v1702
        %v6960 = vunpack.c.l.b16 %v1703
        %v6961 = vunpack.c.h.b16 %v1703
        %v6962 = vunpack.c.l.b16 %v1704
        %v6963 = vunpack.c.h.b16 %v1704
        %v6964 = vunpack.c.l.b16 %v1705
        %v6965 = vunpack.c.h.b16 %v1705
        %v6966 = vunpack.c.l.b16 %v1706
        %v6967 = vunpack.c.h.b16 %v1706
        %v6968 = vunpack.c.l.b16 %v1707
        %v6969 = vunpack.c.h.b16 %v1707
        %v6970 = vunpack.c.l.b16 %v1708
        %v6971 = vunpack.c.h.b16 %v1708
        %v6972 = vunpack.c.l.b16 %v1709
        %v6973 = vunpack.c.h.b16 %v1709
        %v6974 = vunpack.c.l.b16 %v1710
        %v6975 = vunpack.c.h.b16 %v1710
        %v6976 = vunpack.c.l.b16 %v1711
        %v6977 = vunpack.c.h.b16 %v1711
        %v6978 = vunpack.c.l.b16 %v1712
        %v6979 = vunpack.c.h.b16 %v1712
        %v6980 = vunpack.c.l.b16 %v1713
        %v6981 = vunpack.c.h.b16 %v1713
        %v6982 = vunpack.c.l.b16 %v1714
        %v6983 = vunpack.c.h.b16 %v1714
        %v6984 = vunpack.c.l.b16 %v1715
        %v6985 = vunpack.c.h.b16 %v1715
        %v6986 = vunpack.c.l.b16 %v1716
        %v6987 = vunpack.c.h.b16 %v1716
        %v6988 = vunpack.c.l.b16 %v1717
        %v6989 = vunpack.c.h.b16 %v1717
        %v6990 = vunpack.c.l.b16 %v1718
        %v6991 = vunpack.c.h.b16 %v1718
        %v6992 = vunpack.c.l.b16 %v1719
        %v6993 = vunpack.c.h.b16 %v1719
        %v6994 = vunpack.c.l.b16 %v1720
        %v6995 = vunpack.c.h.b16 %v1720
        %v6996 = vunpack.c.l.b16 %v1721
        %v6997 = vunpack.c.h.b16 %v1721
        %v6998 = vunpack.c.l.b16 %v1722
        %v6999 = vunpack.c.h.b16 %v1722
        %v7000 = vunpack.c.l.b16 %v1723
        %v7001 = vunpack.c.h.b16 %v1723
        %v7002 = vunpack.c.l.b16 %v1724
        %v7003 = vunpack.c.h.b16 %v1724
        %v7004 = vunpack.c.l.b16 %v1725
        %v7005 = vunpack.c.h.b16 %v1725
        %v7006 = vunpack.c.l.b16 %v1726
        %v7007 = vunpack.c.h.b16 %v1726
        %v7008 = vunpack.c.l.b16 %v1727
        %v7009 = vunpack.c.h.b16 %v1727
        %v7010 = vunpack.c.l.b16 %v1728
        %v7011 = vunpack.c.h.b16 %v1728
        %v7012 = vunpack.c.l.b16 %v1729
        %v7013 = vunpack.c.h.b16 %v1729
        %v7014 = vunpack.c.l.b16 %v1730
        %v7015 = vunpack.c.h.b16 %v1730
        %v7016 = vunpack.c.l.b16 %v1731
        %v7017 = vunpack.c.h.b16 %v1731
        %v7018 = vunpack.c.l.b16 %v1732
        %v7019 = vunpack.c.h.b16 %v1732
        %v7020 = vunpack.c.l.b16 %v1733
        %v7021 = vunpack.c.h.b16 %v1733
        %v7022 = vunpack.c.l.b16 %v1734
        %v7023 = vunpack.c.h.b16 %v1734
        %v7024 = vunpack.c.l.b16 %v1735
        %v7025 = vunpack.c.h.b16 %v1735
        %v7026 = vunpack.c.l.b16 %v1736
        %v7027 = vunpack.c.h.b16 %v1736
        %v7028 = vunpack.c.l.b16 %v1737
        %v7029 = vunpack.c.h.b16 %v1737
        %v7030 = vunpack.c.l.b16 %v1738
        %v7031 = vunpack.c.h.b16 %v1738
        %v7032 = vunpack.c.l.b16 %v1739
        %v7033 = vunpack.c.h.b16 %v1739
        %v7034 = vunpack.c.l.b16 %v1740
        %v7035 = vunpack.c.h.b16 %v1740
        %v7036 = vunpack.c.l.b16 %v1741
        %v7037 = vunpack.c.h.b16 %v1741
        %v7038 = vunpack.c.l.b16 %v1742
        %v7039 = vunpack.c.h.b16 %v1742
        %v7040 = vunpack.c.l.b16 %v1743
        %v7041 = vunpack.c.h.b16 %v1743
        %v7042 = vunpack.c.l.b16 %v1744
        %v7043 = vunpack.c.h.b16 %v1744
        %v7044 = vunpack.c.l.b16 %v1745
        %v7045 = vunpack.c.h.b16 %v1745
        %v7046 = vunpack.c.l.b16 %v1746
        %v7047 = vunpack.c.h.b16 %v1746
        %v7048 = vunpack.c.l.b16 %v1747
        %v7049 = vunpack.c.h.b16 %v1747
        %v7050 = vunpack.c.l.b16 %v1748
        %v7051 = vunpack.c.h.b16 %v1748
        %v7052 = vunpack.c.l.b16 %v1749
        %v7053 = vunpack.c.h.b16 %v1749
        %v7054 = vunpack.c.l.b16 %v1750
        %v7055 = vunpack.c.h.b16 %v1750
        %v7056 = vunpack.c.l.b16 %v1751
        %v7057 = vunpack.c.h.b16 %v1751
        %v7058 = vunpack.c.l.b16 %v1752
        %v7059 = vunpack.c.h.b16 %v1752
        %v7060 = vunpack.c.l.b16 %v1753
        %v7061 = vunpack.c.h.b16 %v1753
        %v7062 = vunpack.c.l.b16 %v1754
        %v7063 = vunpack.c.h.b16 %v1754
        %v7064 = vunpack.c.l.b16 %v1755
        %v7065 = vunpack.c.h.b16 %v1755
        %v7066 = vunpack.c.l.b16 %v1756
        %v7067 = vunpack.c.h.b16 %v1756
        %v7068 = vunpack.c.l.b16 %v1757
        %v7069 = vunpack.c.h.b16 %v1757
        %v7070 = vunpack.c.l.b16 %v1758
        %v7071 = vunpack.c.h.b16 %v1758
        %v7072 = vunpack.c.l.b16 %v1759
        %v7073 = vunpack.c.h.b16 %v1759
        %v7074 = vunpack.c.l.b16 %v1760
        %v7075 = vunpack.c.h.b16 %v1760
        %v7076 = vunpack.c.l.b16 %v1761
        %v7077 = vunpack.c.h.b16 %v1761
        %v7078 = vunpack.c.l.b16 %v1762
        %v7079 = vunpack.c.h.b16 %v1762
        %v7080 = vunpack.c.l.b16 %v1763
        %v7081 = vunpack.c.h.b16 %v1763
        %v7082 = vunpack.c.l.b16 %v1764
        %v7083 = vunpack.c.h.b16 %v1764
        %v7084 = vunpack.c.l.b16 %v1765
        %v7085 = vunpack.c.h.b16 %v1765
        %v7086 = vunpack.c.l.b16 %v1766
        %v7087 = vunpack.c.h.b16 %v1766
        %v7088 = vunpack.c.l.b16 %v1767
        %v7089 = vunpack.c.h.b16 %v1767
        %v7090 = vunpack.c.l.b16 %v1768
        %v7091 = vunpack.c.h.b16 %v1768
        %v7092 = vunpack.c.l.b16 %v1769
        %v7093 = vunpack.c.h.b16 %v1769
        %v7094 = vunpack.c.l.b16 %v1770
        %v7095 = vunpack.c.h.b16 %v1770
        %v7096 = vunpack.c.l.b16 %v1771
        %v7097 = vunpack.c.h.b16 %v1771
        %v7098 = vunpack.c.l.b16 %v1772
        %v7099 = vunpack.c.h.b16 %v1772
        %v7100 = vunpack.c.l.b16 %v1773
        %v7101 = vunpack.c.h.b16 %v1773
        %v7102 = vunpack.c.l.b16 %v1774
        %v7103 = vunpack.c.h.b16 %v1774
        %v7104 = vunpack.c.l.b16 %v1775
        %v7105 = vunpack.c.h.b16 %v1775
        %v7106 = vunpack.c.l.b16 %v1776
        %v7107 = vunpack.c.h.b16 %v1776
        %v7108 = vunpack.c.l.b16 %v1777
        %v7109 = vunpack.c.h.b16 %v1777
        %v7110 = vunpack.c.l.b16 %v1778
        %v7111 = vunpack.c.h.b16 %v1778
        %v7112 = vunpack.c.l.b16 %v1779
        %v7113 = vunpack.c.h.b16 %v1779
        %v7114 = vunpack.c.l.b16 %v1780
        %v7115 = vunpack.c.h.b16 %v1780
        %v7116 = vunpack.c.l.b16 %v1781
        %v7117 = vunpack.c.h.b16 %v1781
        %v7118 = vunpack.c.l.b16 %v1782
        %v7119 = vunpack.c.h.b16 %v1782
        %v7120 = vunpack.c.l.b16 %v1783
        %v7121 = vunpack.c.h.b16 %v1783
        %v7122 = vunpack.c.l.b16 %v1784
        %v7123 = vunpack.c.h.b16 %v1784
        %v7124 = vunpack.c.l.b16 %v1785
        %v7125 = vunpack.c.h.b16 %v1785
        %v7126 = vunpack.c.l.b16 %v1786
        %v7127 = vunpack.c.h.b16 %v1786
        %v7128 = vunpack.c.l.b16 %v1787
        %v7129 = vunpack.c.h.b16 %v1787
        %v7130 = vunpack.c.l.b16 %v1788
        %v7131 = vunpack.c.h.b16 %v1788
        %v7132 = vunpack.c.l.b16 %v1789
        %v7133 = vunpack.c.h.b16 %v1789
        %v7134 = vunpack.c.l.b16 %v1790
        %v7135 = vunpack.c.h.b16 %v1790
        %v7136 = vunpack.c.l.b16 %v1791
        %v7137 = vunpack.c.h.b16 %v1791
        %v7138 = vunpack.c.l.b16 %v1792
        %v7139 = vunpack.c.h.b16 %v1792
        %v7140 = vunpack.c.l.b16 %v1793
        %v7141 = vunpack.c.h.b16 %v1793
        %v7142 = vunpack.c.l.b16 %v1794
        %v7143 = vunpack.c.h.b16 %v1794
        %v7144 = vunpack.c.l.b16 %v1795
        %v7145 = vunpack.c.h.b16 %v1795
        %v7146 = vunpack.c.l.b16 %v1796
        %v7147 = vunpack.c.h.b16 %v1796
        %v7148 = vunpack.c.l.b16 %v1797
        %v7149 = vunpack.c.h.b16 %v1797
        %v7150 = vunpack.c.l.b16 %v1798
        %v7151 = vunpack.c.h.b16 %v1798
        %v7152 = vunpack.c.l.b16 %v1799
        %v7153 = vunpack.c.h.b16 %v1799
        %v7154 = vunpack.c.l.b16 %v1800
        %v7155 = vunpack.c.h.b16 %v1800
        %v7156 = vunpack.c.l.b16 %v1801
        %v7157 = vunpack.c.h.b16 %v1801
        %v7158 = vunpack.c.l.b16 %v1802
        %v7159 = vunpack.c.h.b16 %v1802
        %v7160 = vunpack.c.l.b16 %v1803
        %v7161 = vunpack.c.h.b16 %v1803
        %v7162 = vunpack.c.l.b16 %v1804
        %v7163 = vunpack.c.h.b16 %v1804
        %v7164 = vunpack.c.l.b16 %v1805
        %v7165 = vunpack.c.h.b16 %v1805
        %v7166 = vunpack.c.l.b16 %v1806
        %v7167 = vunpack.c.h.b16 %v1806
        %v7168 = vunpack.c.l.b16 %v1807
        %v7169 = vunpack.c.h.b16 %v1807
        %v7170 = vunpack.c.l.b16 %v1808
        %v7171 = vunpack.c.h.b16 %v1808
        %v7172 = vunpack.c.l.b16 %v1809
        %v7173 = vunpack.c.h.b16 %v1809
        %v7174 = vunpack.c.l.b16 %v1810
        %v7175 = vunpack.c.h.b16 %v1810
        %v7176 = vunpack.c.l.b16 %v1811
        %v7177 = vunpack.c.h.b16 %v1811
        %v7178 = vunpack.c.l.b16 %v1812
        %v7179 = vunpack.c.h.b16 %v1812
        %v7180 = vunpack.c.l.b16 %v1813
        %v7181 = vunpack.c.h.b16 %v1813
        %v7182 = vunpack.c.l.b16 %v1814
        %v7183 = vunpack.c.h.b16 %v1814
        %v7184 = vunpack.c.l.b16 %v1815
        %v7185 = vunpack.c.h.b16 %v1815
        %v7186 = vunpack.c.l.b16 %v1816
        %v7187 = vunpack.c.h.b16 %v1816
        %v7188 = vunpack.c.l.b16 %v1817
        %v7189 = vunpack.c.h.b16 %v1817
        %v7190 = vunpack.c.l.b16 %v1818
        %v7191 = vunpack.c.h.b16 %v1818
        %v7192 = vunpack.c.l.b16 %v1819
        %v7193 = vunpack.c.h.b16 %v1819
        %v7194 = vunpack.c.l.b16 %v1820
        %v7195 = vunpack.c.h.b16 %v1820
        %v7196 = vunpack.c.l.b16 %v1821
        %v7197 = vunpack.c.h.b16 %v1821
        %v7198 = vunpack.c.l.b16 %v1822
        %v7199 = vunpack.c.h.b16 %v1822
        %v7200 = vunpack.c.l.b16 %v1823
        %v7201 = vunpack.c.h.b16 %v1823
        %v7202 = vunpack.c.l.b16 %v1824
        %v7203 = vunpack.c.h.b16 %v1824
        %v7204 = vunpack.c.l.b16 %v1825
        %v7205 = vunpack.c.h.b16 %v1825
        %v7206 = vunpack.c.l.b16 %v1826
        %v7207 = vunpack.c.h.b16 %v1826
        %v7208 = vunpack.c.l.b16 %v1827
        %v7209 = vunpack.c.h.b16 %v1827
        %v7210 = vunpack.c.l.b16 %v1828
        %v7211 = vunpack.c.h.b16 %v1828
        %v7212 = vunpack.c.l.b16 %v1829
        %v7213 = vunpack.c.h.b16 %v1829
        %v7214 = vunpack.c.l.b16 %v1830
        %v7215 = vunpack.c.h.b16 %v1830
        %v7216 = vunpack.c.l.b16 %v1831
        %v7217 = vunpack.c.h.b16 %v1831
        %v7218 = vunpack.c.l.b16 %v1832
        %v7219 = vunpack.c.h.b16 %v1832
        %v7220 = vunpack.c.l.b16 %v1833
        %v7221 = vunpack.c.h.b16 %v1833
        %v7222 = vunpack.c.l.b16 %v1834
        %v7223 = vunpack.c.h.b16 %v1834
        %v7224 = vunpack.c.l.b16 %v1835
        %v7225 = vunpack.c.h.b16 %v1835
        %v7226 = vunpack.c.l.b16 %v1836
        %v7227 = vunpack.c.h.b16 %v1836
        %v7228 = vunpack.c.l.b16 %v1837
        %v7229 = vunpack.c.h.b16 %v1837
        %v7230 = vunpack.c.l.b16 %v1838
        %v7231 = vunpack.c.h.b16 %v1838
        %v7232 = vunpack.c.l.b16 %v1839
        %v7233 = vunpack.c.h.b16 %v1839
        %v7234 = vunpack.c.l.b16 %v1840
        %v7235 = vunpack.c.h.b16 %v1840
        %v7236 = vunpack.c.l.b16 %v1841
        %v7237 = vunpack.c.h.b16 %v1841
        %v7238 = vunpack.c.l.b16 %v1842
        %v7239 = vunpack.c.h.b16 %v1842
        %v7240 = vunpack.c.l.b16 %v1843
        %v7241 = vunpack.c.h.b16 %v1843
        %v7242 = vunpack.c.l.b16 %v1844
        %v7243 = vunpack.c.h.b16 %v1844
        %v7244 = vunpack.c.l.b16 %v1845
        %v7245 = vunpack.c.h.b16 %v1845
        %v7246 = vunpack.c.l.b16 %v1846
        %v7247 = vunpack.c.h.b16 %v1846
        %v7248 = vunpack.c.l.b16 %v1847
        %v7249 = vunpack.c.h.b16 %v1847
        %v7250 = vunpack.c.l.b16 %v1848
        %v7251 = vunpack.c.h.b16 %v1848
        %v7252 = vunpack.c.l.b16 %v1849
        %v7253 = vunpack.c.h.b16 %v1849
        %v7254 = vunpack.c.l.b16 %v1850
        %v7255 = vunpack.c.h.b16 %v1850
        %v7256 = vunpack.c.l.b16 %v1851
        %v7257 = vunpack.c.h.b16 %v1851
        %v7258 = vunpack.c.l.b16 %v1852
        %v7259 = vunpack.c.h.b16 %v1852
        %v7260 = vunpack.c.l.b16 %v1853
        %v7261 = vunpack.c.h.b16 %v1853
        %v7262 = vunpack.c.l.b16 %v1854
        %v7263 = vunpack.c.h.b16 %v1854
        %v7264 = vunpack.c.l.b16 %v1855
        %v7265 = vunpack.c.h.b16 %v1855
        %v7266 = vunpack.c.l.b16 %v1856
        %v7267 = vunpack.c.h.b16 %v1856
        %v7268 = vunpack.c.l.b16 %v1857
        %v7269 = vunpack.c.h.b16 %v1857
        %v7270 = vunpack.c.l.b16 %v1858
        %v7271 = vunpack.c.h.b16 %v1858
        %v7272 = vunpack.c.l.b16 %v1859
        %v7273 = vunpack.c.h.b16 %v1859
        %v7274 = vunpack.c.l.b16 %v1860
        %v7275 = vunpack.c.h.b16 %v1860
        %v7276 = vunpack.c.l.b16 %v1861
        %v7277 = vunpack.c.h.b16 %v1861
        %v7278 = vunpack.c.l.b16 %v1862
        %v7279 = vunpack.c.h.b16 %v1862
        %v7280 = vunpack.c.l.b16 %v1863
        %v7281 = vunpack.c.h.b16 %v1863
        %v7282 = vunpack.c.l.b16 %v1864
        %v7283 = vunpack.c.h.b16 %v1864
        %v7284 = vunpack.c.l.b16 %v1865
        %v7285 = vunpack.c.h.b16 %v1865
        %v7286 = vunpack.c.l.b16 %v1866
        %v7287 = vunpack.c.h.b16 %v1866
        %v7288 = vunpack.c.l.b16 %v1867
        %v7289 = vunpack.c.h.b16 %v1867
        %v7290 = vunpack.c.l.b16 %v1868
        %v7291 = vunpack.c.h.b16 %v1868
        %v7292 = vunpack.c.l.b16 %v1869
        %v7293 = vunpack.c.h.b16 %v1869
        %v7294 = vunpack.c.l.b16 %v1870
        %v7295 = vunpack.c.h.b16 %v1870
        %v7296 = vunpack.c.l.b16 %v1871
        %v7297 = vunpack.c.h.b16 %v1871
        %v7298 = vunpack.c.l.b16 %v1872
        %v7299 = vunpack.c.h.b16 %v1872
        %v7300 = vunpack.c.l.b16 %v1873
        %v7301 = vunpack.c.h.b16 %v1873
        %v7302 = vunpack.c.l.b16 %v1874
        %v7303 = vunpack.c.h.b16 %v1874
        %v7304 = vunpack.c.l.b16 %v1875
        %v7305 = vunpack.c.h.b16 %v1875
        %v7306 = vunpack.c.l.b16 %v1876
        %v7307 = vunpack.c.h.b16 %v1876
        %v7308 = vunpack.c.l.b16 %v1877
        %v7309 = vunpack.c.h.b16 %v1877
        %v7310 = vunpack.c.l.b16 %v1878
        %v7311 = vunpack.c.h.b16 %v1878
        %v7312 = vunpack.c.l.b16 %v1879
        %v7313 = vunpack.c.h.b16 %v1879
        %v7314 = vunpack.c.l.b16 %v1880
        %v7315 = vunpack.c.h.b16 %v1880
        %v7316 = vunpack.c.l.b16 %v1881
        %v7317 = vunpack.c.h.b16 %v1881
        %v7318 = vunpack.c.l.b16 %v1882
        %v7319 = vunpack.c.h.b16 %v1882
        %v7320 = vunpack.c.l.b16 %v1883
        %v7321 = vunpack.c.h.b16 %v1883
        %v7322 = vunpack.c.l.b16 %v1884
        %v7323 = vunpack.c.h.b16 %v1884
        %v7324 = vunpack.c.l.b16 %v1885
        %v7325 = vunpack.c.h.b16 %v1885
        %v7326 = vunpack.c.l.b16 %v1886
        %v7327 = vunpack.c.h.b16 %v1886
        %v7328 = vunpack.c.l.b16 %v1887
        %v7329 = vunpack.c.h.b16 %v1887
        %v7330 = vunpack.c.l.b16 %v1888
        %v7331 = vunpack.c.h.b16 %v1888
        %v7332 = vunpack.c.l.b16 %v1889
        %v7333 = vunpack.c.h.b16 %v1889
        %v7334 = vunpack.c.l.b16 %v1890
        %v7335 = vunpack.c.h.b16 %v1890
        %v7336 = vunpack.c.l.b16 %v1891
        %v7337 = vunpack.c.h.b16 %v1891
        %v7338 = vunpack.c.l.b16 %v1892
        %v7339 = vunpack.c.h.b16 %v1892
        %v7340 = vunpack.c.l.b16 %v1893
        %v7341 = vunpack.c.h.b16 %v1893
        %v7342 = vunpack.c.l.b16 %v1894
        %v7343 = vunpack.c.h.b16 %v1894
        %v7344 = vunpack.c.l.b16 %v1895
        %v7345 = vunpack.c.h.b16 %v1895
        %v7346 = vunpack.c.l.b16 %v1896
        %v7347 = vunpack.c.h.b16 %v1896
        %v7348 = vunpack.c.l.b16 %v1897
        %v7349 = vunpack.c.h.b16 %v1897
        %v7350 = vunpack.c.l.b16 %v1898
        %v7351 = vunpack.c.h.b16 %v1898
        %v7352 = vunpack.c.l.b16 %v1899
        %v7353 = vunpack.c.h.b16 %v1899
        %v7354 = vunpack.c.l.b16 %v1900
        %v7355 = vunpack.c.h.b16 %v1900
        %v7356 = vunpack.c.l.b16 %v1901
        %v7357 = vunpack.c.h.b16 %v1901
        %v7358 = vunpack.c.l.b16 %v1902
        %v7359 = vunpack.c.h.b16 %v1902
        %v7360 = vunpack.c.l.b16 %v1903
        %v7361 = vunpack.c.h.b16 %v1903
        %v7362 = vunpack.c.l.b16 %v1904
        %v7363 = vunpack.c.h.b16 %v1904
        %v7364 = vunpack.c.l.b16 %v1905
        %v7365 = vunpack.c.h.b16 %v1905
        %v7366 = vunpack.c.l.b16 %v1906
        %v7367 = vunpack.c.h.b16 %v1906
        %v7368 = vunpack.c.l.b16 %v1907
        %v7369 = vunpack.c.h.b16 %v1907
        %v7370 = vunpack.c.l.b16 %v1908
        %v7371 = vunpack.c.h.b16 %v1908
        %v7372 = vunpack.c.l.b16 %v1909
        %v7373 = vunpack.c.h.b16 %v1909
        %v7374 = vunpack.c.l.b16 %v1910
        %v7375 = vunpack.c.h.b16 %v1910
        %v7376 = vunpack.c.l.b16 %v1911
        %v7377 = vunpack.c.h.b16 %v1911
        %v7378 = vunpack.c.l.b16 %v1912
        %v7379 = vunpack.c.h.b16 %v1912
        %v7380 = vunpack.c.l.b16 %v1913
        %v7381 = vunpack.c.h.b16 %v1913
        %v7382 = vunpack.c.l.b16 %v1914
        %v7383 = vunpack.c.h.b16 %v1914
        %v7384 = vunpack.c.l.b16 %v1915
        %v7385 = vunpack.c.h.b16 %v1915
        %v7386 = vunpack.c.l.b16 %v1916
        %v7387 = vunpack.c.h.b16 %v1916
        %v7388 = vunpack.c.l.b16 %v1917
        %v7389 = vunpack.c.h.b16 %v1917
        %v7390 = vunpack.c.l.b16 %v1918
        %v7391 = vunpack.c.h.b16 %v1918
        %v7392 = vunpack.c.l.b16 %v1919
        %v7393 = vunpack.c.h.b16 %v1919
        %v7394 = vunpack.c.l.b16 %v1920
        %v7395 = vunpack.c.h.b16 %v1920
        %v7396 = vunpack.c.l.b16 %v1921
        %v7397 = vunpack.c.h.b16 %v1921
        %v7398 = vunpack.c.l.b16 %v1922
        %v7399 = vunpack.c.h.b16 %v1922
        %v7400 = vunpack.c.l.b16 %v1923
        %v7401 = vunpack.c.h.b16 %v1923
        %v7402 = vunpack.c.l.b16 %v1924
        %v7403 = vunpack.c.h.b16 %v1924
        %v7404 = vunpack.c.l.b16 %v1925
        %v7405 = vunpack.c.h.b16 %v1925
        %v7406 = vunpack.c.l.b16 %v1926
        %v7407 = vunpack.c.h.b16 %v1926
        %v7408 = vunpack.c.l.b16 %v1927
        %v7409 = vunpack.c.h.b16 %v1927
        %v7410 = vunpack.c.l.b16 %v1928
        %v7411 = vunpack.c.h.b16 %v1928
        %v7412 = vunpack.c.l.b16 %v1929
        %v7413 = vunpack.c.h.b16 %v1929
        %v7414 = vunpack.c.l.b16 %v1930
        %v7415 = vunpack.c.h.b16 %v1930
        %v7416 = vunpack.c.l.b16 %v1931
        %v7417 = vunpack.c.h.b16 %v1931
        %v7418 = vunpack.c.l.b16 %v1932
        %v7419 = vunpack.c.h.b16 %v1932
        %v7420 = vunpack.c.l.b16 %v1933
        %v7421 = vunpack.c.h.b16 %v1933
        %v7422 = vunpack.c.l.b16 %v1934
        %v7423 = vunpack.c.h.b16 %v1934
        %v7424 = vunpack.c.l.b16 %v1935
        %v7425 = vunpack.c.h.b16 %v1935
        %v7426 = vunpack.c.l.b16 %v1936
        %v7427 = vunpack.c.h.b16 %v1936
        %v7428 = vunpack.c.l.b16 %v1937
        %v7429 = vunpack.c.h.b16 %v1937
        %v7430 = vunpack.c.l.b16 %v1938
        %v7431 = vunpack.c.h.b16 %v1938
        %v7432 = vunpack.c.l.b16 %v1939
        %v7433 = vunpack.c.h.b16 %v1939
        %v7434 = vunpack.c.l.b16 %v1940
        %v7435 = vunpack.c.h.b16 %v1940
        %v7436 = vunpack.c.l.b16 %v1941
        %v7437 = vunpack.c.h.b16 %v1941
        %v7438 = vunpack.c.l.b16 %v1942
        %v7439 = vunpack.c.h.b16 %v1942
        %v7440 = vunpack.c.l.b16 %v1943
        %v7441 = vunpack.c.h.b16 %v1943
        %v7442 = vunpack.c.l.b16 %v1944
        %v7443 = vunpack.c.h.b16 %v1944
        %v7444 = vunpack.c.l.b16 %v1945
        %v7445 = vunpack.c.h.b16 %v1945
        %v7446 = vunpack.c.l.b16 %v1946
        %v7447 = vunpack.c.h.b16 %v1946
        %v7448 = vunpack.c.l.b16 %v1947
        %v7449 = vunpack.c.h.b16 %v1947
        %v7450 = vunpack.c.l.b16 %v1948
        %v7451 = vunpack.c.h.b16 %v1948
        %v7452 = vunpack.c.l.b16 %v1949
        %v7453 = vunpack.c.h.b16 %v1949
        %v7454 = vunpack.c.l.b16 %v1950
        %v7455 = vunpack.c.h.b16 %v1950
        %v7456 = vunpack.c.l.b16 %v1951
        %v7457 = vunpack.c.h.b16 %v1951
        %v7458 = vunpack.c.l.b16 %v1952
        %v7459 = vunpack.c.h.b16 %v1952
        %v7460 = vunpack.c.l.b16 %v1953
        %v7461 = vunpack.c.h.b16 %v1953
        %v7462 = vunpack.c.l.b16 %v1954
        %v7463 = vunpack.c.h.b16 %v1954
        %v7464 = vunpack.c.l.b16 %v1955
        %v7465 = vunpack.c.h.b16 %v1955
        %v7466 = vunpack.c.l.b16 %v1956
        %v7467 = vunpack.c.h.b16 %v1956
        %v7468 = vunpack.c.l.b16 %v1957
        %v7469 = vunpack.c.h.b16 %v1957
        %v7470 = vunpack.c.l.b16 %v1958
        %v7471 = vunpack.c.h.b16 %v1958
        %v7472 = vunpack.c.l.b16 %v1959
        %v7473 = vunpack.c.h.b16 %v1959
        %v7474 = vunpack.c.l.b16 %v1960
        %v7475 = vunpack.c.h.b16 %v1960
        %v7476 = vunpack.c.l.b16 %v1961
        %v7477 = vunpack.c.h.b16 %v1961
        %v7478 = vunpack.c.l.b16 %v1962
        %v7479 = vunpack.c.h.b16 %v1962
        %v7480 = vunpack.c.l.b16 %v1963
        %v7481 = vunpack.c.h.b16 %v1963
        %v7482 = vunpack.c.l.b16 %v1964
        %v7483 = vunpack.c.h.b16 %v1964
        %v7484 = vunpack.c.l.b16 %v1965
        %v7485 = vunpack.c.h.b16 %v1965
        %v7486 = vunpack.c.l.b16 %v1966
        %v7487 = vunpack.c.h.b16 %v1966
        %v7488 = vunpack.c.l.b16 %v1967
        %v7489 = vunpack.c.h.b16 %v1967
        %v7490 = vunpack.c.l.b16 %v1968
        %v7491 = vunpack.c.h.b16 %v1968
        %v7492 = vunpack.c.l.b16 %v1969
        %v7493 = vunpack.c.h.b16 %v1969
        %v7494 = vunpack.c.l.b16 %v1970
        %v7495 = vunpack.c.h.b16 %v1970
        %v7496 = vunpack.c.l.b16 %v1971
        %v7497 = vunpack.c.h.b16 %v1971
        %v7498 = vunpack.c.l.b16 %v1972
        %v7499 = vunpack.c.h.b16 %v1972
        %v7500 = vunpack.c.l.b16 %v1973
        %v7501 = vunpack.c.h.b16 %v1973
        %v7502 = vunpack.c.l.b16 %v1974
        %v7503 = vunpack.c.h.b16 %v1974
        %v7504 = vunpack.c.l.b16 %v1975
        %v7505 = vunpack.c.h.b16 %v1975
        %v7506 = vunpack.c.l.b16 %v1976
        %v7507 = vunpack.c.h.b16 %v1976
        %v7508 = vunpack.c.l.b16 %v1977
        %v7509 = vunpack.c.h.b16 %v1977
        %v7510 = vunpack.c.l.b16 %v1978
        %v7511 = vunpack.c.h.b16 %v1978
        %v7512 = vunpack.c.l.b16 %v1979
        %v7513 = vunpack.c.h.b16 %v1979
        %v7514 = vunpack.c.l.b16 %v1980
        %v7515 = vunpack.c.h.b16 %v1980
        %v7516 = vunpack.c.l.b16 %v1981
        %v7517 = vunpack.c.h.b16 %v1981
        %v7518 = vunpack.c.l.b16 %v1982
        %v7519 = vunpack.c.h.b16 %v1982
        %v7520 = vunpack.c.l.b16 %v1983
        %v7521 = vunpack.c.h.b16 %v1983
        %v7522 = vunpack.c.l.b16 %v1984
        %v7523 = vunpack.c.h.b16 %v1984
        %v7524 = vunpack.c.l.b16 %v1985
        %v7525 = vunpack.c.h.b16 %v1985
        %v7526 = vunpack.c.l.b16 %v1986
        %v7527 = vunpack.c.h.b16 %v1986
        %v7528 = vunpack.c.l.b16 %v1987
        %v7529 = vunpack.c.h.b16 %v1987
        %v7530 = vunpack.c.l.b16 %v1988
        %v7531 = vunpack.c.h.b16 %v1988
        %v7532 = vunpack.c.l.b16 %v1989
        %v7533 = vunpack.c.h.b16 %v1989
        %v7534 = vunpack.c.l.b16 %v1990
        %v7535 = vunpack.c.h.b16 %v1990
        %v7536 = vunpack.c.l.b16 %v1991
        %v7537 = vunpack.c.h.b16 %v1991
        %v7538 = vunpack.c.l.b16 %v1992
        %v7539 = vunpack.c.h.b16 %v1992
        %v7540 = vunpack.c.l.b16 %v1993
        %v7541 = vunpack.c.h.b16 %v1993
        %v7542 = vunpack.c.l.b16 %v1994
        %v7543 = vunpack.c.h.b16 %v1994
        %v7544 = vunpack.c.l.b16 %v1995
        %v7545 = vunpack.c.h.b16 %v1995
        %v7546 = vunpack.c.l.b16 %v1996
        %v7547 = vunpack.c.h.b16 %v1996
        %v7548 = vunpack.c.l.b16 %v1997
        %v7549 = vunpack.c.h.b16 %v1997
        %v7550 = vunpack.c.l.b16 %v1998
        %v7551 = vunpack.c.h.b16 %v1998
        %v7552 = vunpack.c.l.b16 %v1999
        %v7553 = vunpack.c.h.b16 %v1999
        %v7554 = vunpack.c.l.b16 %v2000
        %v7555 = vunpack.c.h.b16 %v2000
        %v7556 = vunpack.c.l.b16 %v2001
        %v7557 = vunpack.c.h.b16 %v2001
        %v7558 = vunpack.c.l.b16 %v2002
        %v7559 = vunpack.c.h.b16 %v2002
        %v7560 = vunpack.c.l.b16 %v2003
        %v7561 = vunpack.c.h.b16 %v2003
        %v7562 = vunpack.c.l.b16 %v2004
        %v7563 = vunpack.c.h.b16 %v2004
        %v7564 = vunpack.c.l.b16 %v2005
        %v7565 = vunpack.c.h.b16 %v2005
        %v7566 = vunpack.c.l.b16 %v2006
        %v7567 = vunpack.c.h.b16 %v2006
        %v7568 = vunpack.c.l.b16 %v2007
        %v7569 = vunpack.c.h.b16 %v2007
        %v7570 = vunpack.c.l.b16 %v2008
        %v7571 = vunpack.c.h.b16 %v2008
        %v7572 = vunpack.c.l.b16 %v2009
        %v7573 = vunpack.c.h.b16 %v2009
        %v7574 = vunpack.c.l.b16 %v2010
        %v7575 = vunpack.c.h.b16 %v2010
        %v7576 = vunpack.c.l.b16 %v2011
        %v7577 = vunpack.c.h.b16 %v2011
        %v7578 = vunpack.c.l.b16 %v2012
        %v7579 = vunpack.c.h.b16 %v2012
        %v7580 = vunpack.c.l.b16 %v2013
        %v7581 = vunpack.c.h.b16 %v2013
        %v7582 = vunpack.c.l.b16 %v2014
        %v7583 = vunpack.c.h.b16 %v2014
        %v7584 = vunpack.c.l.b16 %v2015
        %v7585 = vunpack.c.h.b16 %v2015
        %v7586 = vunpack.c.l.b16 %v2016
        %v7587 = vunpack.c.h.b16 %v2016
        %v7588 = vunpack.c.l.b16 %v2017
        %v7589 = vunpack.c.h.b16 %v2017
        %v7590 = vunpack.c.l.b16 %v2018
        %v7591 = vunpack.c.h.b16 %v2018
        %v7592 = vunpack.c.l.b16 %v2019
        %v7593 = vunpack.c.h.b16 %v2019
        %v7594 = vunpack.c.l.b16 %v2020
        %v7595 = vunpack.c.h.b16 %v2020
        %v7596 = vunpack.c.l.b16 %v2021
        %v7597 = vunpack.c.h.b16 %v2021
        %v7598 = vunpack.c.l.b16 %v2022
        %v7599 = vunpack.c.h.b16 %v2022
        %v7600 = vunpack.c.l.b16 %v2023
        %v7601 = vunpack.c.h.b16 %v2023
        %v7602 = vunpack.c.l.b16 %v2024
        %v7603 = vunpack.c.h.b16 %v2024
        %v7604 = vunpack.c.l.b16 %v2025
        %v7605 = vunpack.c.h.b16 %v2025
        %v7606 = vunpack.c.l.b16 %v2026
        %v7607 = vunpack.c.h.b16 %v2026
        %v7608 = vunpack.c.l.b16 %v2027
        %v7609 = vunpack.c.h.b16 %v2027
        %v7610 = vunpack.c.l.b16 %v2028
        %v7611 = vunpack.c.h.b16 %v2028
        %v7612 = vunpack.c.l.b16 %v2029
        %v7613 = vunpack.c.h.b16 %v2029
        %v7614 = vunpack.c.l.b16 %v2030
        %v7615 = vunpack.c.h.b16 %v2030
        %v7616 = vunpack.c.l.b16 %v2031
        %v7617 = vunpack.c.h.b16 %v2031
        %v7618 = vunpack.c.l.b16 %v2032
        %v7619 = vunpack.c.h.b16 %v2032
        %v7620 = vunpack.c.l.b16 %v2033
        %v7621 = vunpack.c.h.b16 %v2033
        %v7622 = vunpack.c.l.b16 %v2034
        %v7623 = vunpack.c.h.b16 %v2034
        %v7624 = vunpack.c.l.b16 %v2035
        %v7625 = vunpack.c.h.b16 %v2035
        %v7626 = vunpack.c.l.b16 %v2036
        %v7627 = vunpack.c.h.b16 %v2036
        %v7628 = vunpack.c.l.b16 %v2037
        %v7629 = vunpack.c.h.b16 %v2037
        %v7630 = vunpack.c.l.b16 %v2038
        %v7631 = vunpack.c.h.b16 %v2038
        %v7632 = vunpack.c.l.b16 %v2039
        %v7633 = vunpack.c.h.b16 %v2039
        %v7634 = vunpack.c.l.b16 %v2040
        %v7635 = vunpack.c.h.b16 %v2040
        %v7636 = vunpack.c.l.b16 %v2041
        %v7637 = vunpack.c.h.b16 %v2041
        %v7638 = vunpack.c.l.b16 %v2042
        %v7639 = vunpack.c.h.b16 %v2042
        %v7640 = vunpack.c.l.b16 %v2043
        %v7641 = vunpack.c.h.b16 %v2043
        %v7642 = vunpack.c.l.b16 %v2044
        %v7643 = vunpack.c.h.b16 %v2044
        %v7644 = vunpack.c.l.b16 %v2045
        %v7645 = vunpack.c.h.b16 %v2045
        %v7646 = vunpack.c.l.b16 %v2046
        %v7647 = vunpack.c.h.b16 %v2046
        %v7648 = vunpack.c.l.b16 %v2047
        %v7649 = vunpack.c.h.b16 %v2047
        %v7650 = vunpack.c.l.b16 %v2048
        %v7651 = vunpack.c.h.b16 %v2048
        %v7652 = vunpack.c.l.b16 %v2049
        %v7653 = vunpack.c.h.b16 %v2049
        %v7654 = vunpack.c.l.b16 %v2050
        %v7655 = vunpack.c.h.b16 %v2050
        %v7656 = vunpack.c.l.b16 %v2051
        %v7657 = vunpack.c.h.b16 %v2051
        %v7658 = vunpack.c.l.b16 %v2052
        %v7659 = vunpack.c.h.b16 %v2052
        %v7660 = vunpack.c.l.b16 %v2053
        %v7661 = vunpack.c.h.b16 %v2053
        %v7662 = vunpack.c.l.b16 %v2054
        %v7663 = vunpack.c.h.b16 %v2054
        %v7664 = vunpack.c.l.b16 %v2055
        %v7665 = vunpack.c.h.b16 %v2055
        %v7666 = vunpack.c.l.b16 %v2056
        %v7667 = vunpack.c.h.b16 %v2056
        %v7668 = vunpack.c.l.b16 %v2057
        %v7669 = vunpack.c.h.b16 %v2057
        %v7670 = vunpack.c.l.b16 %v2058
        %v7671 = vunpack.c.h.b16 %v2058
        %v7672 = vunpack.c.l.b16 %v2059
        %v7673 = vunpack.c.h.b16 %v2059
        %v7674 = vunpack.c.l.b16 %v2060
        %v7675 = vunpack.c.h.b16 %v2060
        %v7676 = vunpack.c.l.b16 %v2061
        %v7677 = vunpack.c.h.b16 %v2061
        %v7678 = vunpack.c.l.b16 %v2062
        %v7679 = vunpack.c.h.b16 %v2062
        %v7680 = vunpack.c.l.b16 %v2063
        %v7681 = vunpack.c.h.b16 %v2063
        %v7682 = vunpack.c.l.b16 %v2064
        %v7683 = vunpack.c.h.b16 %v2064
        %v7684 = vunpack.c.l.b16 %v2065
        %v7685 = vunpack.c.h.b16 %v2065
        %v7686 = vunpack.c.l.b16 %v2066
        %v7687 = vunpack.c.h.b16 %v2066
        %v7688 = vunpack.c.l.b16 %v2067
        %v7689 = vunpack.c.h.b16 %v2067
        %v7690 = vunpack.c.l.b16 %v2068
        %v7691 = vunpack.c.h.b16 %v2068
        %v7692 = vunpack.c.l.b16 %v2069
        %v7693 = vunpack.c.h.b16 %v2069
        %v7694 = vunpack.c.l.b16 %v2070
        %v7695 = vunpack.c.h.b16 %v2070
        %v7696 = vunpack.c.l.b16 %v2071
        %v7697 = vunpack.c.h.b16 %v2071
        %v7698 = vunpack.c.l.b16 %v2072
        %v7699 = vunpack.c.h.b16 %v2072
        %v7700 = vunpack.c.l.b16 %v2073
        %v7701 = vunpack.c.h.b16 %v2073
        %v7702 = vunpack.c.l.b16 %v2074
        %v7703 = vunpack.c.h.b16 %v2074
        %v7704 = vunpack.c.l.b16 %v2075
        %v7705 = vunpack.c.h.b16 %v2075
        %v7706 = vunpack.c.l.b16 %v2076
        %v7707 = vunpack.c.h.b16 %v2076
        %v7708 = vunpack.c.l.b16 %v2077
        %v7709 = vunpack.c.h.b16 %v2077
        %v7710 = vunpack.c.l.b16 %v2078
        %v7711 = vunpack.c.h.b16 %v2078
        %v7712 = vunpack.c.l.b16 %v2079
        %v7713 = vunpack.c.h.b16 %v2079
        %v7714 = vunpack.c.l.b16 %v2080
        %v7715 = vunpack.c.h.b16 %v2080
        %v7716 = vunpack.c.l.b16 %v2081
        %v7717 = vunpack.c.h.b16 %v2081
        %v7718 = vunpack.c.l.b16 %v2082
        %v7719 = vunpack.c.h.b16 %v2082
        %v7720 = vunpack.c.l.b16 %v2083
        %v7721 = vunpack.c.h.b16 %v2083
        %v7722 = vunpack.c.l.b16 %v2084
        %v7723 = vunpack.c.h.b16 %v2084
        %v7724 = vunpack.c.l.b16 %v2085
        %v7725 = vunpack.c.h.b16 %v2085
        %v7726 = vunpack.c.l.b16 %v2086
        %v7727 = vunpack.c.h.b16 %v2086
        %v7728 = vunpack.c.l.b16 %v2087
        %v7729 = vunpack.c.h.b16 %v2087
        %v7730 = vunpack.c.l.b16 %v2088
        %v7731 = vunpack.c.h.b16 %v2088
        %v7732 = vunpack.c.l.b16 %v2089
        %v7733 = vunpack.c.h.b16 %v2089
        %v7734 = vunpack.c.l.b16 %v2090
        %v7735 = vunpack.c.h.b16 %v2090
        %v7736 = vunpack.c.l.b16 %v2091
        %v7737 = vunpack.c.h.b16 %v2091
        %v7738 = vunpack.c.l.b16 %v2092
        %v7739 = vunpack.c.h.b16 %v2092
        %v7740 = vunpack.c.l.b16 %v2093
        %v7741 = vunpack.c.h.b16 %v2093
        %v7742 = vunpack.c.l.b16 %v2094
        %v7743 = vunpack.c.h.b16 %v2094
        %v7744 = vunpack.c.l.b16 %v2095
        %v7745 = vunpack.c.h.b16 %v2095
        %v7746 = vunpack.c.l.b16 %v2096
        %v7747 = vunpack.c.h.b16 %v2096
        %v7748 = vunpack.c.l.b16 %v2097
        %v7749 = vunpack.c.h.b16 %v2097
        %v7750 = vunpack.c.l.b16 %v2098
        %v7751 = vunpack.c.h.b16 %v2098
        %v7752 = vunpack.c.l.b16 %v2099
        %v7753 = vunpack.c.h.b16 %v2099
        %v7754 = vunpack.c.l.b16 %v2100
        %v7755 = vunpack.c.h.b16 %v2100
        %v7756 = vunpack.c.l.b16 %v2101
        %v7757 = vunpack.c.h.b16 %v2101
        %v7758 = vunpack.c.l.b16 %v2102
        %v7759 = vunpack.c.h.b16 %v2102
        %v7760 = vunpack.c.l.b16 %v2103
        %v7761 = vunpack.c.h.b16 %v2103
        %v7762 = vunpack.c.l.b16 %v2104
        %v7763 = vunpack.c.h.b16 %v2104
        %v7764 = vunpack.c.l.b16 %v2105
        %v7765 = vunpack.c.h.b16 %v2105
        %v7766 = vunpack.c.l.b16 %v2106
        %v7767 = vunpack.c.h.b16 %v2106
        %v7768 = vunpack.c.l.b16 %v2107
        %v7769 = vunpack.c.h.b16 %v2107
        %v7770 = vunpack.c.l.b16 %v2108
        %v7771 = vunpack.c.h.b16 %v2108
        %v7772 = vunpack.c.l.b16 %v2109
        %v7773 = vunpack.c.h.b16 %v2109
        %v7774 = vunpack.c.l.b16 %v2110
        %v7775 = vunpack.c.h.b16 %v2110
        %v7776 = vunpack.c.l.b16 %v2111
        %v7777 = vunpack.c.h.b16 %v2111
        %v7778 = vunpack.c.l.b16 %v2112
        %v7779 = vunpack.c.h.b16 %v2112
        %v7780 = vunpack.c.l.b16 %v2113
        %v7781 = vunpack.c.h.b16 %v2113
        %v7782 = vunpack.c.l.b16 %v2114
        %v7783 = vunpack.c.h.b16 %v2114
        %v7784 = vunpack.c.l.b16 %v2115
        %v7785 = vunpack.c.h.b16 %v2115
        %v7786 = vunpack.c.l.b16 %v2116
        %v7787 = vunpack.c.h.b16 %v2116
        %v7788 = vunpack.c.l.b16 %v2117
        %v7789 = vunpack.c.h.b16 %v2117
        %v7790 = vunpack.c.l.b16 %v2118
        %v7791 = vunpack.c.h.b16 %v2118
        %v7792 = vunpack.c.l.b16 %v2119
        %v7793 = vunpack.c.h.b16 %v2119
        %v7794 = vunpack.c.l.b16 %v2120
        %v7795 = vunpack.c.h.b16 %v2120
        %v7796 = vunpack.c.l.b16 %v2121
        %v7797 = vunpack.c.h.b16 %v2121
        %v7798 = vunpack.c.l.b16 %v2122
        %v7799 = vunpack.c.h.b16 %v2122
        %v7800 = vunpack.c.l.b16 %v2123
        %v7801 = vunpack.c.h.b16 %v2123
        %v7802 = vunpack.c.l.b16 %v2124
        %v7803 = vunpack.c.h.b16 %v2124
        %v7804 = vunpack.c.l.b16 %v2125
        %v7805 = vunpack.c.h.b16 %v2125
        %v7806 = vunpack.c.l.b16 %v2126
        %v7807 = vunpack.c.h.b16 %v2126
        %v7808 = vunpack.c.l.b16 %v2127
        %v7809 = vunpack.c.h.b16 %v2127
        %v7810 = vunpack.c.l.b16 %v2128
        %v7811 = vunpack.c.h.b16 %v2128
        %v7812 = vunpack.c.l.b16 %v2129
        %v7813 = vunpack.c.h.b16 %v2129
        %v7814 = vpack.c.b16 %v4298, %v4294
        %v7815 = vpack.c.b16 %v4299, %v4295
        %v7816 = vpack.c.b16 %v4300, %v4296
        %v7817 = vpack.c.b16 %v4301, %v4297
        %v7818 = vpack.c.b16 %v4306, %v4302
        %v7819 = vpack.c.b16 %v4307, %v4303
        %v7820 = vpack.c.b16 %v4308, %v4304
        %v7821 = vpack.c.b16 %v4309, %v4305
        %v7822 = vpack.c.b16 %v4314, %v4310
        %v7823 = vpack.c.b16 %v4315, %v4311
        %v7824 = vpack.c.b16 %v4316, %v4312
        %v7825 = vpack.c.b16 %v4317, %v4313
        %v7826 = vpack.c.b16 %v4322, %v4318
        %v7827 = vpack.c.b16 %v4323, %v4319
        %v7828 = vpack.c.b16 %v4324, %v4320
        %v7829 = vpack.c.b16 %v4325, %v4321
        %v7830 = vpack.c.b16 %v4330, %v4326
        %v7831 = vpack.c.b16 %v4331, %v4327
        %v7832 = vpack.c.b16 %v4332, %v4328
        %v7833 = vpack.c.b16 %v4333, %v4329
        %v7834 = vpack.c.b16 %v4338, %v4334
        %v7835 = vpack.c.b16 %v4339, %v4335
        %v7836 = vpack.c.b16 %v4340, %v4336
        %v7837 = vpack.c.b16 %v4341, %v4337
        %v7838 = vpack.c.b16 %v4346, %v4342
        %v7839 = vpack.c.b16 %v4347, %v4343
        %v7840 = vpack.c.b16 %v4348, %v4344
        %v7841 = vpack.c.b16 %v4349, %v4345
        %v7842 = vpack.c.b16 %v4354, %v4350
        %v7843 = vpack.c.b16 %v4355, %v4351
        %v7844 = vpack.c.b16 %v4356, %v4352
        %v7845 = vpack.c.b16 %v4357, %v4353
        %v7846 = vpack.c.b16 %v4362, %v4358
        %v7847 = vpack.c.b16 %v4363, %v4359
        %v7848 = vpack.c.b16 %v4364, %v4360
        %v7849 = vpack.c.b16 %v4365, %v4361
        %v7850 = vpack.c.b16 %v4370, %v4366
        %v7851 = vpack.c.b16 %v4371, %v4367
        %v7852 = vpack.c.b16 %v4372, %v4368
        %v7853 = vpack.c.b16 %v4373, %v4369
        %v7854 = vpack.c.b16 %v4378, %v4374
        %v7855 = vpack.c.b16 %v4379, %v4375
        %v7856 = vpack.c.b16 %v4380, %v4376
        %v7857 = vpack.c.b16 %v4381, %v4377
        %v7858 = vpack.c.b16 %v4386, %v4382
        %v7859 = vpack.c.b16 %v4387, %v4383
        %v7860 = vpack.c.b16 %v4388, %v4384
        %v7861 = vpack.c.b16 %v4389, %v4385
        %v7862 = vpack.c.b16 %v4394, %v4390
        %v7863 = vpack.c.b16 %v4395, %v4391
        %v7864 = vpack.c.b16 %v4396, %v4392
        %v7865 = vpack.c.b16 %v4397, %v4393
        %v7866 = vpack.c.b16 %v4402, %v4398
        %v7867 = vpack.c.b16 %v4403, %v4399
        %v7868 = vpack.c.b16 %v4404, %v4400
        %v7869 = vpack.c.b16 %v4405, %v4401
        %v7870 = vpack.c.b16 %v4410, %v4406
        %v7871 = vpack.c.b16 %v4411, %v4407
        %v7872 = vpack.c.b16 %v4412, %v4408
        %v7873 = vpack.c.b16 %v4413, %v4409
        %v7874 = vpack.c.b16 %v4418, %v4414
        %v7875 = vpack.c.b16 %v4419, %v4415
        %v7876 = vpack.c.b16 %v4420, %v4416
        %v7877 = vpack.c.b16 %v4421, %v4417
        %v7878 = vpack.c.b16 %v4426, %v4422
        %v7879 = vpack.c.b16 %v4427, %v4423
        %v7880 = vpack.c.b16 %v4428, %v4424
        %v7881 = vpack.c.b16 %v4429, %v4425
        %v7882 = vpack.c.b16 %v4434, %v4430
        %v7883 = vpack.c.b16 %v4435, %v4431
        %v7884 = vpack.c.b16 %v4436, %v4432
        %v7885 = vpack.c.b16 %v4437, %v4433
        %v7886 = vpack.c.b16 %v4442, %v4438
        %v7887 = vpack.c.b16 %v4443, %v4439
        %v7888 = vpack.c.b16 %v4444, %v4440
        %v7889 = vpack.c.b16 %v4445, %v4441
        %v7890 = vpack.c.b16 %v4450, %v4446
        %v7891 = vpack.c.b16 %v4451, %v4447
        %v7892 = vpack.c.b16 %v4452, %v4448
        %v7893 = vpack.c.b16 %v4453, %v4449
        %v7894 = vpack.c.b16 %v4458, %v4454
        %v7895 = vpack.c.b16 %v4459, %v4455
        %v7896 = vpack.c.b16 %v4460, %v4456
        %v7897 = vpack.c.b16 %v4461, %v4457
        %v7898 = vpack.c.b16 %v4466, %v4462
        %v7899 = vpack.c.b16 %v4467, %v4463
        %v7900 = vpack.c.b16 %v4468, %v4464
        %v7901 = vpack.c.b16 %v4469, %v4465
        %v7902 = vpack.c.b16 %v4474, %v4470
        %v7903 = vpack.c.b16 %v4475, %v4471
        %v7904 = vpack.c.b16 %v4476, %v4472
        %v7905 = vpack.c.b16 %v4477, %v4473
        %v7906 = vpack.c.b16 %v4482, %v4478
        %v7907 = vpack.c.b16 %v4483, %v4479
        %v7908 = vpack.c.b16 %v4484, %v4480
        %v7909 = vpack.c.b16 %v4485, %v4481
        %v7910 = vpack.c.b16 %v4490, %v4486
        %v7911 = vpack.c.b16 %v4491, %v4487
        %v7912 = vpack.c.b16 %v4492, %v4488
        %v7913 = vpack.c.b16 %v4493, %v4489
        %v7914 = vpack.c.b16 %v4498, %v4494
        %v7915 = vpack.c.b16 %v4499, %v4495
        %v7916 = vpack.c.b16 %v4500, %v4496
        %v7917 = vpack.c.b16 %v4501, %v4497
        %v7918 = vpack.c.b16 %v4506, %v4502
        %v7919 = vpack.c.b16 %v4507, %v4503
        %v7920 = vpack.c.b16 %v4508, %v4504
        %v7921 = vpack.c.b16 %v4509, %v4505
        %v7922 = vpack.c.b16 %v4514, %v4510
        %v7923 = vpack.c.b16 %v4515, %v4511
        %v7924 = vpack.c.b16 %v4516, %v4512
        %v7925 = vpack.c.b16 %v4517, %v4513
        %v7926 = vpack.c.b16 %v4522, %v4518
        %v7927 = vpack.c.b16 %v4523, %v4519
        %v7928 = vpack.c.b16 %v4524, %v4520
        %v7929 = vpack.c.b16 %v4525, %v4521
        %v7930 = vpack.c.b16 %v4530, %v4526
        %v7931 = vpack.c.b16 %v4531, %v4527
        %v7932 = vpack.c.b16 %v4532, %v4528
        %v7933 = vpack.c.b16 %v4533, %v4529
        %v7934 = vpack.c.b16 %v4538, %v4534
        %v7935 = vpack.c.b16 %v4539, %v4535
        %v7936 = vpack.c.b16 %v4540, %v4536
        %v7937 = vpack.c.b16 %v4541, %v4537
        %v7938 = vpack.c.b16 %v4546, %v4542
        %v7939 = vpack.c.b16 %v4547, %v4543
        %v7940 = vpack.c.b16 %v4548, %v4544
        %v7941 = vpack.c.b16 %v4549, %v4545
        %v7942 = vpack.c.b16 %v4554, %v4550
        %v7943 = vpack.c.b16 %v4555, %v4551
        %v7944 = vpack.c.b16 %v4556, %v4552
        %v7945 = vpack.c.b16 %v4557, %v4553
        %v7946 = vpack.c.b16 %v4562, %v4558
        %v7947 = vpack.c.b16 %v4563, %v4559
        %v7948 = vpack.c.b16 %v4564, %v4560
        %v7949 = vpack.c.b16 %v4565, %v4561
        %v7950 = vpack.c.b16 %v4570, %v4566
        %v7951 = vpack.c.b16 %v4571, %v4567
        %v7952 = vpack.c.b16 %v4572, %v4568
        %v7953 = vpack.c.b16 %v4573, %v4569
        %v7954 = vpack.c.b16 %v4578, %v4574
        %v7955 = vpack.c.b16 %v4579, %v4575
        %v7956 = vpack.c.b16 %v4580, %v4576
        %v7957 = vpack.c.b16 %v4581, %v4577
        %v7958 = vpack.c.b16 %v4586, %v4582
        %v7959 = vpack.c.b16 %v4587, %v4583
        %v7960 = vpack.c.b16 %v4588, %v4584
        %v7961 = vpack.c.b16 %v4589, %v4585
        %v7962 = vpack.c.b16 %v4594, %v4590
        %v7963 = vpack.c.b16 %v4595, %v4591
        %v7964 = vpack.c.b16 %v4596, %v4592
        %v7965 = vpack.c.b16 %v4597, %v4593
        %v7966 = vpack.c.b16 %v4602, %v4598
        %v7967 = vpack.c.b16 %v4603, %v4599
        %v7968 = vpack.c.b16 %v4604, %v4600
        %v7969 = vpack.c.b16 %v4605, %v4601
        %v7970 = vpack.c.b16 %v4610, %v4606
        %v7971 = vpack.c.b16 %v4611, %v4607
        %v7972 = vpack.c.b16 %v4612, %v4608
        %v7973 = vpack.c.b16 %v4613, %v4609
        %v7974 = vpack.c.b16 %v4618, %v4614
        %v7975 = vpack.c.b16 %v4619, %v4615
        %v7976 = vpack.c.b16 %v4620, %v4616
        %v7977 = vpack.c.b16 %v4621, %v4617
        %v7978 = vpack.c.b16 %v4626, %v4622
        %v7979 = vpack.c.b16 %v4627, %v4623
        %v7980 = vpack.c.b16 %v4628, %v4624
        %v7981 = vpack.c.b16 %v4629, %v4625
        %v7982 = vpack.c.b16 %v4634, %v4630
        %v7983 = vpack.c.b16 %v4635, %v4631
        %v7984 = vpack.c.b16 %v4636, %v4632
        %v7985 = vpack.c.b16 %v4637, %v4633
        %v7986 = vpack.c.b16 %v4642, %v4638
        %v7987 = vpack.c.b16 %v4643, %v4639
        %v7988 = vpack.c.b16 %v4644, %v4640
        %v7989 = vpack.c.b16 %v4645, %v4641
        %v7990 = vpack.c.b16 %v4650, %v4646
        %v7991 = vpack.c.b16 %v4651, %v4647
        %v7992 = vpack.c.b16 %v4652, %v4648
        %v7993 = vpack.c.b16 %v4653, %v4649
        %v7994 = vpack.c.b16 %v4658, %v4654
        %v7995 = vpack.c.b16 %v4659, %v4655
        %v7996 = vpack.c.b16 %v4660, %v4656
        %v7997 = vpack.c.b16 %v4661, %v4657
        %v7998 = vpack.c.b16 %v4666, %v4662
        %v7999 = vpack.c.b16 %v4667, %v4663
        %v8000 = vpack.c.b16 %v4668, %v4664
        %v8001 = vpack.c.b16 %v4669, %v4665
        %v8002 = vpack.c.b16 %v4674, %v4670
        %v8003 = vpack.c.b16 %v4675, %v4671
        %v8004 = vpack.c.b16 %v4676, %v4672
        %v8005 = vpack.c.b16 %v4677, %v4673
        %v8006 = vpack.c.b16 %v4682, %v4678
        %v8007 = vpack.c.b16 %v4683, %v4679
        %v8008 = vpack.c.b16 %v4684, %v4680
        %v8009 = vpack.c.b16 %v4685, %v4681
        %v8010 = vpack.c.b16 %v4690, %v4686
        %v8011 = vpack.c.b16 %v4691, %v4687
        %v8012 = vpack.c.b16 %v4692, %v4688
        %v8013 = vpack.c.b16 %v4693, %v4689
        %v8014 = vpack.c.b16 %v4698, %v4694
        %v8015 = vpack.c.b16 %v4699, %v4695
        %v8016 = vpack.c.b16 %v4700, %v4696
        %v8017 = vpack.c.b16 %v4701, %v4697
        %v8018 = vpack.c.b16 %v4706, %v4702
        %v8019 = vpack.c.b16 %v4707, %v4703
        %v8020 = vpack.c.b16 %v4708, %v4704
        %v8021 = vpack.c.b16 %v4709, %v4705
        %v8022 = vpack.c.b16 %v4714, %v4710
        %v8023 = vpack.c.b16 %v4715, %v4711
        %v8024 = vpack.c.b16 %v4716, %v4712
        %v8025 = vpack.c.b16 %v4717, %v4713
        %v8026 = vpack.c.b16 %v4722, %v4718
        %v8027 = vpack.c.b16 %v4723, %v4719
        %v8028 = vpack.c.b16 %v4724, %v4720
        %v8029 = vpack.c.b16 %v4725, %v4721
        %v8030 = vpack.c.b16 %v4730, %v4726
        %v8031 = vpack.c.b16 %v4731, %v4727
        %v8032 = vpack.c.b16 %v4732, %v4728
        %v8033 = vpack.c.b16 %v4733, %v4729
        %v8034 = vpack.c.b16 %v4738, %v4734
        %v8035 = vpack.c.b16 %v4739, %v4735
        %v8036 = vpack.c.b16 %v4740, %v4736
        %v8037 = vpack.c.b16 %v4741, %v4737
        %v8038 = vpack.c.b16 %v4746, %v4742
        %v8039 = vpack.c.b16 %v4747, %v4743
        %v8040 = vpack.c.b16 %v4748, %v4744
        %v8041 = vpack.c.b16 %v4749, %v4745
        %v8042 = vpack.c.b16 %v4754, %v4750
        %v8043 = vpack.c.b16 %v4755, %v4751
        %v8044 = vpack.c.b16 %v4756, %v4752
        %v8045 = vpack.c.b16 %v4757, %v4753
        %v8046 = vpack.c.b16 %v4762, %v4758
        %v8047 = vpack.c.b16 %v4763, %v4759
        %v8048 = vpack.c.b16 %v4764, %v4760
        %v8049 = vpack.c.b16 %v4765, %v4761
        %v8050 = vpack.c.b16 %v4770, %v4766
        %v8051 = vpack.c.b16 %v4771, %v4767
        %v8052 = vpack.c.b16 %v4772, %v4768
        %v8053 = vpack.c.b16 %v4773, %v4769
        %v8054 = vpack.c.b16 %v4778, %v4774
        %v8055 = vpack.c.b16 %v4779, %v4775
        %v8056 = vpack.c.b16 %v4780, %v4776
        %v8057 = vpack.c.b16 %v4781, %v4777
        %v8058 = vpack.c.b16 %v4786, %v4782
        %v8059 = vpack.c.b16 %v4787, %v4783
        %v8060 = vpack.c.b16 %v4788, %v4784
        %v8061 = vpack.c.b16 %v4789, %v4785
        %v8062 = vpack.c.b16 %v4794, %v4790
        %v8063 = vpack.c.b16 %v4795, %v4791
        %v8064 = vpack.c.b16 %v4796, %v4792
        %v8065 = vpack.c.b16 %v4797, %v4793
        %v8066 = vpack.c.b16 %v4802, %v4798
        %v8067 = vpack.c.b16 %v4803, %v4799
        %v8068 = vpack.c.b16 %v4804, %v4800
        %v8069 = vpack.c.b16 %v4805, %v4801
        %v8070 = vpack.c.b16 %v4810, %v4806
        %v8071 = vpack.c.b16 %v4811, %v4807
        %v8072 = vpack.c.b16 %v4812, %v4808
        %v8073 = vpack.c.b16 %v4813, %v4809
        %v8074 = vpack.c.b16 %v4818, %v4814
        %v8075 = vpack.c.b16 %v4819, %v4815
        %v8076 = vpack.c.b16 %v4820, %v4816
        %v8077 = vpack.c.b16 %v4821, %v4817
        %v8078 = vpack.c.b16 %v4826, %v4822
        %v8079 = vpack.c.b16 %v4827, %v4823
        %v8080 = vpack.c.b16 %v4828, %v4824
        %v8081 = vpack.c.b16 %v4829, %v4825
        %v8082 = vpack.c.b16 %v4834, %v4830
        %v8083 = vpack.c.b16 %v4835, %v4831
        %v8084 = vpack.c.b16 %v4836, %v4832
        %v8085 = vpack.c.b16 %v4837, %v4833
        %v8086 = vpack.c.b16 %v4842, %v4838
        %v8087 = vpack.c.b16 %v4843, %v4839
        %v8088 = vpack.c.b16 %v4844, %v4840
        %v8089 = vpack.c.b16 %v4845, %v4841
        %v8090 = vpack.c.b16 %v4850, %v4846
        %v8091 = vpack.c.b16 %v4851, %v4847
        %v8092 = vpack.c.b16 %v4852, %v4848
        %v8093 = vpack.c.b16 %v4853, %v4849
        %v8094 = vpack.c.b16 %v4858, %v4854
        %v8095 = vpack.c.b16 %v4859, %v4855
        %v8096 = vpack.c.b16 %v4860, %v4856
        %v8097 = vpack.c.b16 %v4861, %v4857
        %v8098 = vpack.c.b16 %v4866, %v4862
        %v8099 = vpack.c.b16 %v4867, %v4863
        %v8100 = vpack.c.b16 %v4868, %v4864
        %v8101 = vpack.c.b16 %v4869, %v4865
        %v8102 = vpack.c.b16 %v4874, %v4870
        %v8103 = vpack.c.b16 %v4875, %v4871
        %v8104 = vpack.c.b16 %v4876, %v4872
        %v8105 = vpack.c.b16 %v4877, %v4873
        %v8106 = vpack.c.b16 %v4882, %v4878
        %v8107 = vpack.c.b16 %v4883, %v4879
        %v8108 = vpack.c.b16 %v4884, %v4880
        %v8109 = vpack.c.b16 %v4885, %v4881
        %v8110 = vpack.c.b16 %v4890, %v4886
        %v8111 = vpack.c.b16 %v4891, %v4887
        %v8112 = vpack.c.b16 %v4892, %v4888
        %v8113 = vpack.c.b16 %v4893, %v4889
        %v8114 = vpack.c.b16 %v4898, %v4894
        %v8115 = vpack.c.b16 %v4899, %v4895
        %v8116 = vpack.c.b16 %v4900, %v4896
        %v8117 = vpack.c.b16 %v4901, %v4897
        %v8118 = vpack.c.b16 %v4906, %v4902
        %v8119 = vpack.c.b16 %v4907, %v4903
        %v8120 = vpack.c.b16 %v4908, %v4904
        %v8121 = vpack.c.b16 %v4909, %v4905
        %v8122 = vpack.c.b16 %v4914, %v4910
        %v8123 = vpack.c.b16 %v4915, %v4911
        %v8124 = vpack.c.b16 %v4916, %v4912
        %v8125 = vpack.c.b16 %v4917, %v4913
        %v8126 = vpack.c.b16 %v4922, %v4918
        %v8127 = vpack.c.b16 %v4923, %v4919
        %v8128 = vpack.c.b16 %v4924, %v4920
        %v8129 = vpack.c.b16 %v4925, %v4921
        %v8130 = vpack.c.b16 %v4930, %v4926
        %v8131 = vpack.c.b16 %v4931, %v4927
        %v8132 = vpack.c.b16 %v4932, %v4928
        %v8133 = vpack.c.b16 %v4933, %v4929
        %v8134 = vpack.c.b16 %v4938, %v4934
        %v8135 = vpack.c.b16 %v4939, %v4935
        %v8136 = vpack.c.b16 %v4940, %v4936
        %v8137 = vpack.c.b16 %v4941, %v4937
        %v8138 = vpack.c.b16 %v4946, %v4942
        %v8139 = vpack.c.b16 %v4947, %v4943
        %v8140 = vpack.c.b16 %v4948, %v4944
        %v8141 = vpack.c.b16 %v4949, %v4945
        %v8142 = vpack.c.b16 %v4954, %v4950
        %v8143 = vpack.c.b16 %v4955, %v4951
        %v8144 = vpack.c.b16 %v4956, %v4952
        %v8145 = vpack.c.b16 %v4957, %v4953
        %v8146 = vpack.c.b16 %v4962, %v4958
        %v8147 = vpack.c.b16 %v4963, %v4959
        %v8148 = vpack.c.b16 %v4964, %v4960
        %v8149 = vpack.c.b16 %v4965, %v4961
        %v8150 = vpack.c.b16 %v4970, %v4966
        %v8151 = vpack.c.b16 %v4971, %v4967
        %v8152 = vpack.c.b16 %v4972, %v4968
        %v8153 = vpack.c.b16 %v4973, %v4969
        %v8154 = vpack.c.b16 %v4978, %v4974
        %v8155 = vpack.c.b16 %v4979, %v4975
        %v8156 = vpack.c.b16 %v4980, %v4976
        %v8157 = vpack.c.b16 %v4981, %v4977
        %v8158 = vpack.c.b16 %v4986, %v4982
        %v8159 = vpack.c.b16 %v4987, %v4983
        %v8160 = vpack.c.b16 %v4988, %v4984
        %v8161 = vpack.c.b16 %v4989, %v4985
        %v8162 = vpack.c.b16 %v4994, %v4990
        %v8163 = vpack.c.b16 %v4995, %v4991
        %v8164 = vpack.c.b16 %v4996, %v4992
        %v8165 = vpack.c.b16 %v4997, %v4993
        %v8166 = vpack.c.b16 %v5002, %v4998
        %v8167 = vpack.c.b16 %v5003, %v4999
        %v8168 = vpack.c.b16 %v5004, %v5000
        %v8169 = vpack.c.b16 %v5005, %v5001
        %v8170 = vpack.c.b16 %v5010, %v5006
        %v8171 = vpack.c.b16 %v5011, %v5007
        %v8172 = vpack.c.b16 %v5012, %v5008
        %v8173 = vpack.c.b16 %v5013, %v5009
        %v8174 = vpack.c.b16 %v5018, %v5014
        %v8175 = vpack.c.b16 %v5019, %v5015
        %v8176 = vpack.c.b16 %v5020, %v5016
        %v8177 = vpack.c.b16 %v5021, %v5017
        %v8178 = vpack.c.b16 %v5026, %v5022
        %v8179 = vpack.c.b16 %v5027, %v5023
        %v8180 = vpack.c.b16 %v5028, %v5024
        %v8181 = vpack.c.b16 %v5029, %v5025
        %v8182 = vpack.c.b16 %v5034, %v5030
        %v8183 = vpack.c.b16 %v5035, %v5031
        %v8184 = vpack.c.b16 %v5036, %v5032
        %v8185 = vpack.c.b16 %v5037, %v5033
        %v8186 = vpack.c.b16 %v5042, %v5038
        %v8187 = vpack.c.b16 %v5043, %v5039
        %v8188 = vpack.c.b16 %v5044, %v5040
        %v8189 = vpack.c.b16 %v5045, %v5041
        %v8190 = vpack.c.b16 %v5050, %v5046
        %v8191 = vpack.c.b16 %v5051, %v5047
        %v8192 = vpack.c.b16 %v5052, %v5048
        %v8193 = vpack.c.b16 %v5053, %v5049
        %v8194 = vpack.c.b16 %v5058, %v5054
        %v8195 = vpack.c.b16 %v5059, %v5055
        %v8196 = vpack.c.b16 %v5060, %v5056
        %v8197 = vpack.c.b16 %v5061, %v5057
        %v8198 = vpack.c.b16 %v5066, %v5062
        %v8199 = vpack.c.b16 %v5067, %v5063
        %v8200 = vpack.c.b16 %v5068, %v5064
        %v8201 = vpack.c.b16 %v5069, %v5065
        %v8202 = vpack.c.b16 %v5074, %v5070
        %v8203 = vpack.c.b16 %v5075, %v5071
        %v8204 = vpack.c.b16 %v5076, %v5072
        %v8205 = vpack.c.b16 %v5077, %v5073
        %v8206 = vpack.c.b16 %v5082, %v5078
        %v8207 = vpack.c.b16 %v5083, %v5079
        %v8208 = vpack.c.b16 %v5084, %v5080
        %v8209 = vpack.c.b16 %v5085, %v5081
        %v8210 = vpack.c.b16 %v5090, %v5086
        %v8211 = vpack.c.b16 %v5091, %v5087
        %v8212 = vpack.c.b16 %v5092, %v5088
        %v8213 = vpack.c.b16 %v5093, %v5089
        %v8214 = vpack.c.b16 %v5098, %v5094
        %v8215 = vpack.c.b16 %v5099, %v5095
        %v8216 = vpack.c.b16 %v5100, %v5096
        %v8217 = vpack.c.b16 %v5101, %v5097
        %v8218 = vpack.c.b16 %v5106, %v5102
        %v8219 = vpack.c.b16 %v5107, %v5103
        %v8220 = vpack.c.b16 %v5108, %v5104
        %v8221 = vpack.c.b16 %v5109, %v5105
        %v8222 = vpack.c.b16 %v5114, %v5110
        %v8223 = vpack.c.b16 %v5115, %v5111
        %v8224 = vpack.c.b16 %v5116, %v5112
        %v8225 = vpack.c.b16 %v5117, %v5113
        %v8226 = vpack.c.b16 %v5122, %v5118
        %v8227 = vpack.c.b16 %v5123, %v5119
        %v8228 = vpack.c.b16 %v5124, %v5120
        %v8229 = vpack.c.b16 %v5125, %v5121
        %v8230 = vpack.c.b16 %v5130, %v5126
        %v8231 = vpack.c.b16 %v5131, %v5127
        %v8232 = vpack.c.b16 %v5132, %v5128
        %v8233 = vpack.c.b16 %v5133, %v5129
        %v8234 = vpack.c.b16 %v5138, %v5134
        %v8235 = vpack.c.b16 %v5139, %v5135
        %v8236 = vpack.c.b16 %v5140, %v5136
        %v8237 = vpack.c.b16 %v5141, %v5137
        %v8238 = vpack.c.b16 %v5146, %v5142
        %v8239 = vpack.c.b16 %v5147, %v5143
        %v8240 = vpack.c.b16 %v5148, %v5144
        %v8241 = vpack.c.b16 %v5149, %v5145
        %v8242 = vpack.c.b16 %v5154, %v5150
        %v8243 = vpack.c.b16 %v5155, %v5151
        %v8244 = vpack.c.b16 %v5156, %v5152
        %v8245 = vpack.c.b16 %v5157, %v5153
        %v8246 = vpack.c.b16 %v5162, %v5158
        %v8247 = vpack.c.b16 %v5163, %v5159
        %v8248 = vpack.c.b16 %v5164, %v5160
        %v8249 = vpack.c.b16 %v5165, %v5161
        %v8250 = vpack.c.b16 %v5170, %v5166
        %v8251 = vpack.c.b16 %v5171, %v5167
        %v8252 = vpack.c.b16 %v5172, %v5168
        %v8253 = vpack.c.b16 %v5173, %v5169
        %v8254 = vpack.c.b16 %v5178, %v5174
        %v8255 = vpack.c.b16 %v5179, %v5175
        %v8256 = vpack.c.b16 %v5180, %v5176
        %v8257 = vpack.c.b16 %v5181, %v5177
        %v8258 = vpack.c.b16 %v5186, %v5182
        %v8259 = vpack.c.b16 %v5187, %v5183
        %v8260 = vpack.c.b16 %v5188, %v5184
        %v8261 = vpack.c.b16 %v5189, %v5185
        %v8262 = vpack.c.b16 %v5194, %v5190
        %v8263 = vpack.c.b16 %v5195, %v5191
        %v8264 = vpack.c.b16 %v5196, %v5192
        %v8265 = vpack.c.b16 %v5197, %v5193
        %v8266 = vpack.c.b16 %v5202, %v5198
        %v8267 = vpack.c.b16 %v5203, %v5199
        %v8268 = vpack.c.b16 %v5204, %v5200
        %v8269 = vpack.c.b16 %v5205, %v5201
        %v8270 = vpack.c.b16 %v5210, %v5206
        %v8271 = vpack.c.b16 %v5211, %v5207
        %v8272 = vpack.c.b16 %v5212, %v5208
        %v8273 = vpack.c.b16 %v5213, %v5209
        %v8274 = vpack.c.b16 %v5218, %v5214
        %v8275 = vpack.c.b16 %v5219, %v5215
        %v8276 = vpack.c.b16 %v5220, %v5216
        %v8277 = vpack.c.b16 %v5221, %v5217
        %v8278 = vpack.c.b16 %v5226, %v5222
        %v8279 = vpack.c.b16 %v5227, %v5223
        %v8280 = vpack.c.b16 %v5228, %v5224
        %v8281 = vpack.c.b16 %v5229, %v5225
        %v8282 = vpack.c.b16 %v5234, %v5230
        %v8283 = vpack.c.b16 %v5235, %v5231
        %v8284 = vpack.c.b16 %v5236, %v5232
        %v8285 = vpack.c.b16 %v5237, %v5233
        %v8286 = vpack.c.b16 %v5242, %v5238
        %v8287 = vpack.c.b16 %v5243, %v5239
        %v8288 = vpack.c.b16 %v5244, %v5240
        %v8289 = vpack.c.b16 %v5245, %v5241
        %v8290 = vpack.c.b16 %v5250, %v5246
        %v8291 = vpack.c.b16 %v5251, %v5247
        %v8292 = vpack.c.b16 %v5252, %v5248
        %v8293 = vpack.c.b16 %v5253, %v5249
        %v8294 = vpack.c.b16 %v5258, %v5254
        %v8295 = vpack.c.b16 %v5259, %v5255
        %v8296 = vpack.c.b16 %v5260, %v5256
        %v8297 = vpack.c.b16 %v5261, %v5257
        %v8298 = vpack.c.b16 %v5266, %v5262
        %v8299 = vpack.c.b16 %v5267, %v5263
        %v8300 = vpack.c.b16 %v5268, %v5264
        %v8301 = vpack.c.b16 %v5269, %v5265
        %v8302 = vpack.c.b16 %v5274, %v5270
        %v8303 = vpack.c.b16 %v5275, %v5271
        %v8304 = vpack.c.b16 %v5276, %v5272
        %v8305 = vpack.c.b16 %v5277, %v5273
        %v8306 = vpack.c.b16 %v5282, %v5278
        %v8307 = vpack.c.b16 %v5283, %v5279
        %v8308 = vpack.c.b16 %v5284, %v5280
        %v8309 = vpack.c.b16 %v5285, %v5281
        %v8310 = vpack.c.b16 %v5290, %v5286
        %v8311 = vpack.c.b16 %v5291, %v5287
        %v8312 = vpack.c.b16 %v5292, %v5288
        %v8313 = vpack.c.b16 %v5293, %v5289
        %v8314 = vpack.c.b16 %v5298, %v5294
        %v8315 = vpack.c.b16 %v5299, %v5295
        %v8316 = vpack.c.b16 %v5300, %v5296
        %v8317 = vpack.c.b16 %v5301, %v5297
        %v8318 = vpack.c.b16 %v5306, %v5302
        %v8319 = vpack.c.b16 %v5307, %v5303
        %v8320 = vpack.c.b16 %v5308, %v5304
        %v8321 = vpack.c.b16 %v5309, %v5305
        %v8322 = vpack.c.b16 %v5314, %v5310
        %v8323 = vpack.c.b16 %v5315, %v5311
        %v8324 = vpack.c.b16 %v5316, %v5312
        %v8325 = vpack.c.b16 %v5317, %v5313
        %v8326 = vpack.c.b16 %v5322, %v5318
        %v8327 = vpack.c.b16 %v5323, %v5319
        %v8328 = vpack.c.b16 %v5324, %v5320
        %v8329 = vpack.c.b16 %v5325, %v5321
        %v8330 = vpack.c.b16 %v5330, %v5326
        %v8331 = vpack.c.b16 %v5331, %v5327
        %v8332 = vpack.c.b16 %v5332, %v5328
        %v8333 = vpack.c.b16 %v5333, %v5329
        %v8334 = vpack.c.b16 %v5338, %v5334
        %v8335 = vpack.c.b16 %v5339, %v5335
        %v8336 = vpack.c.b16 %v5340, %v5336
        %v8337 = vpack.c.b16 %v5341, %v5337
        %v8338 = vpack.c.b16 %v5346, %v5342
        %v8339 = vpack.c.b16 %v5347, %v5343
        %v8340 = vpack.c.b16 %v5348, %v5344
        %v8341 = vpack.c.b16 %v5349, %v5345
        %v8342 = vpack.c.b16 %v5354, %v5350
        %v8343 = vpack.c.b16 %v5355, %v5351
        %v8344 = vpack.c.b16 %v5356, %v5352
        %v8345 = vpack.c.b16 %v5357, %v5353
        %v8346 = vpack.c.b16 %v5362, %v5358
        %v8347 = vpack.c.b16 %v5363, %v5359
        %v8348 = vpack.c.b16 %v5364, %v5360
        %v8349 = vpack.c.b16 %v5365, %v5361
        %v8350 = vpack.c.b16 %v5370, %v5366
        %v8351 = vpack.c.b16 %v5371, %v5367
        %v8352 = vpack.c.b16 %v5372, %v5368
        %v8353 = vpack.c.b16 %v5373, %v5369
        %v8354 = vpack.c.b16 %v5378, %v5374
        %v8355 = vpack.c.b16 %v5379, %v5375
        %v8356 = vpack.c.b16 %v5380, %v5376
        %v8357 = vpack.c.b16 %v5381, %v5377
        %v8358 = vpack.c.b16 %v5386, %v5382
        %v8359 = vpack.c.b16 %v5387, %v5383
        %v8360 = vpack.c.b16 %v5388, %v5384
        %v8361 = vpack.c.b16 %v5389, %v5385
        %v8362 = vpack.c.b16 %v5394, %v5390
        %v8363 = vpack.c.b16 %v5395, %v5391
        %v8364 = vpack.c.b16 %v5396, %v5392
        %v8365 = vpack.c.b16 %v5397, %v5393
        %v8366 = vpack.c.b16 %v5402, %v5398
        %v8367 = vpack.c.b16 %v5403, %v5399
        %v8368 = vpack.c.b16 %v5404, %v5400
        %v8369 = vpack.c.b16 %v5405, %v5401
        %v8370 = vpack.c.b16 %v5410, %v5406
        %v8371 = vpack.c.b16 %v5411, %v5407
        %v8372 = vpack.c.b16 %v5412, %v5408
        %v8373 = vpack.c.b16 %v5413, %v5409
        %v8374 = vpack.c.b16 %v5418, %v5414
        %v8375 = vpack.c.b16 %v5419, %v5415
        %v8376 = vpack.c.b16 %v5420, %v5416
        %v8377 = vpack.c.b16 %v5421, %v5417
        %v8378 = vpack.c.b16 %v5426, %v5422
        %v8379 = vpack.c.b16 %v5427, %v5423
        %v8380 = vpack.c.b16 %v5428, %v5424
        %v8381 = vpack.c.b16 %v5429, %v5425
        %v8382 = vpack.c.b16 %v5434, %v5430
        %v8383 = vpack.c.b16 %v5435, %v5431
        %v8384 = vpack.c.b16 %v5436, %v5432
        %v8385 = vpack.c.b16 %v5437, %v5433
        %v8386 = vpack.c.b16 %v5442, %v5438
        %v8387 = vpack.c.b16 %v5443, %v5439
        %v8388 = vpack.c.b16 %v5444, %v5440
        %v8389 = vpack.c.b16 %v5445, %v5441
        %v8390 = vpack.c.b16 %v5450, %v5446
        %v8391 = vpack.c.b16 %v5451, %v5447
        %v8392 = vpack.c.b16 %v5452, %v5448
        %v8393 = vpack.c.b16 %v5453, %v5449
        %v8394 = vpack.c.b16 %v5458, %v5454
        %v8395 = vpack.c.b16 %v5459, %v5455
        %v8396 = vpack.c.b16 %v5460, %v5456
        %v8397 = vpack.c.b16 %v5461, %v5457
        %v8398 = vpack.c.b16 %v5466, %v5462
        %v8399 = vpack.c.b16 %v5467, %v5463
        %v8400 = vpack.c.b16 %v5468, %v5464
        %v8401 = vpack.c.b16 %v5469, %v5465
        %v8402 = vpack.c.b16 %v5474, %v5470
        %v8403 = vpack.c.b16 %v5475, %v5471
        %v8404 = vpack.c.b16 %v5476, %v5472
        %v8405 = vpack.c.b16 %v5477, %v5473
        %v8406 = vpack.c.b16 %v5482, %v5478
        %v8407 = vpack.c.b16 %v5483, %v5479
        %v8408 = vpack.c.b16 %v5484, %v5480
        %v8409 = vpack.c.b16 %v5485, %v5481
        %v8410 = vpack.c.b16 %v5490, %v5486
        %v8411 = vpack.c.b16 %v5491, %v5487
        %v8412 = vpack.c.b16 %v5492, %v5488
        %v8413 = vpack.c.b16 %v5493, %v5489
        %v8414 = vpack.c.b16 %v5498, %v5494
        %v8415 = vpack.c.b16 %v5499, %v5495
        %v8416 = vpack.c.b16 %v5500, %v5496
        %v8417 = vpack.c.b16 %v5501, %v5497
        %v8418 = vpack.c.b16 %v5506, %v5502
        %v8419 = vpack.c.b16 %v5507, %v5503
        %v8420 = vpack.c.b16 %v5508, %v5504
        %v8421 = vpack.c.b16 %v5509, %v5505
        %v8422 = vpack.c.b16 %v5514, %v5510
        %v8423 = vpack.c.b16 %v5515, %v5511
        %v8424 = vpack.c.b16 %v5516, %v5512
        %v8425 = vpack.c.b16 %v5517, %v5513
        %v8426 = vpack.c.b16 %v5522, %v5518
        %v8427 = vpack.c.b16 %v5523, %v5519
        %v8428 = vpack.c.b16 %v5524, %v5520
        %v8429 = vpack.c.b16 %v5525, %v5521
        %v8430 = vpack.c.b16 %v5530, %v5526
        %v8431 = vpack.c.b16 %v5531, %v5527
        %v8432 = vpack.c.b16 %v5532, %v5528
        %v8433 = vpack.c.b16 %v5533, %v5529
        %v8434 = vpack.c.b16 %v5538, %v5534
        %v8435 = vpack.c.b16 %v5539, %v5535
        %v8436 = vpack.c.b16 %v5540, %v5536
        %v8437 = vpack.c.b16 %v5541, %v5537
        %v8438 = vpack.c.b16 %v5546, %v5542
        %v8439 = vpack.c.b16 %v5547, %v5543
        %v8440 = vpack.c.b16 %v5548, %v5544
        %v8441 = vpack.c.b16 %v5549, %v5545
        %v8442 = vpack.c.b16 %v5554, %v5550
        %v8443 = vpack.c.b16 %v5555, %v5551
        %v8444 = vpack.c.b16 %v5556, %v5552
        %v8445 = vpack.c.b16 %v5557, %v5553
        %v8446 = vpack.c.b16 %v5562, %v5558
        %v8447 = vpack.c.b16 %v5563, %v5559
        %v8448 = vpack.c.b16 %v5564, %v5560
        %v8449 = vpack.c.b16 %v5565, %v5561
        %v8450 = vpack.c.b16 %v5570, %v5566
        %v8451 = vpack.c.b16 %v5571, %v5567
        %v8452 = vpack.c.b16 %v5572, %v5568
        %v8453 = vpack.c.b16 %v5573, %v5569
        %v8454 = vpack.c.b16 %v5578, %v5574
        %v8455 = vpack.c.b16 %v5579, %v5575
        %v8456 = vpack.c.b16 %v5580, %v5576
        %v8457 = vpack.c.b16 %v5581, %v5577
        %v8458 = vpack.c.b16 %v5586, %v5582
        %v8459 = vpack.c.b16 %v5587, %v5583
        %v8460 = vpack.c.b16 %v5588, %v5584
        %v8461 = vpack.c.b16 %v5589, %v5585
        %v8462 = vpack.c.b16 %v5594, %v5590
        %v8463 = vpack.c.b16 %v5595, %v5591
        %v8464 = vpack.c.b16 %v5596, %v5592
        %v8465 = vpack.c.b16 %v5597, %v5593
        %v8466 = vpack.c.b16 %v5602, %v5598
        %v8467 = vpack.c.b16 %v5603, %v5599
        %v8468 = vpack.c.b16 %v5604, %v5600
        %v8469 = vpack.c.b16 %v5605, %v5601
        %v8470 = vpack.c.b16 %v5610, %v5606
        %v8471 = vpack.c.b16 %v5611, %v5607
        %v8472 = vpack.c.b16 %v5612, %v5608
        %v8473 = vpack.c.b16 %v5613, %v5609
        %v8474 = vpack.c.b16 %v5618, %v5614
        %v8475 = vpack.c.b16 %v5619, %v5615
        %v8476 = vpack.c.b16 %v5620, %v5616
        %v8477 = vpack.c.b16 %v5621, %v5617
        %v8478 = vpack.c.b16 %v5626, %v5622
        %v8479 = vpack.c.b16 %v5627, %v5623
        %v8480 = vpack.c.b16 %v5628, %v5624
        %v8481 = vpack.c.b16 %v5629, %v5625
        %v8482 = vpack.c.b16 %v5634, %v5630
        %v8483 = vpack.c.b16 %v5635, %v5631
        %v8484 = vpack.c.b16 %v5636, %v5632
        %v8485 = vpack.c.b16 %v5637, %v5633
        %v8486 = vpack.c.b16 %v5642, %v5638
        %v8487 = vpack.c.b16 %v5643, %v5639
        %v8488 = vpack.c.b16 %v5644, %v5640
        %v8489 = vpack.c.b16 %v5645, %v5641
        %v8490 = vpack.c.b16 %v5650, %v5646
        %v8491 = vpack.c.b16 %v5651, %v5647
        %v8492 = vpack.c.b16 %v5652, %v5648
        %v8493 = vpack.c.b16 %v5653, %v5649
        %v8494 = vpack.c.b16 %v5658, %v5654
        %v8495 = vpack.c.b16 %v5659, %v5655
        %v8496 = vpack.c.b16 %v5660, %v5656
        %v8497 = vpack.c.b16 %v5661, %v5657
        %v8498 = vpack.c.b16 %v5666, %v5662
        %v8499 = vpack.c.b16 %v5667, %v5663
        %v8500 = vpack.c.b16 %v5668, %v5664
        %v8501 = vpack.c.b16 %v5669, %v5665
        %v8502 = vpack.c.b16 %v5674, %v5670
        %v8503 = vpack.c.b16 %v5675, %v5671
        %v8504 = vpack.c.b16 %v5676, %v5672
        %v8505 = vpack.c.b16 %v5677, %v5673
        %v8506 = vpack.c.b16 %v5682, %v5678
        %v8507 = vpack.c.b16 %v5683, %v5679
        %v8508 = vpack.c.b16 %v5684, %v5680
        %v8509 = vpack.c.b16 %v5685, %v5681
        %v8510 = vpack.c.b16 %v5690, %v5686
        %v8511 = vpack.c.b16 %v5691, %v5687
        %v8512 = vpack.c.b16 %v5692, %v5688
        %v8513 = vpack.c.b16 %v5693, %v5689
        %v8514 = vpack.c.b16 %v5698, %v5694
        %v8515 = vpack.c.b16 %v5699, %v5695
        %v8516 = vpack.c.b16 %v5700, %v5696
        %v8517 = vpack.c.b16 %v5701, %v5697
        %v8518 = vpack.c.b16 %v5706, %v5702
        %v8519 = vpack.c.b16 %v5707, %v5703
        %v8520 = vpack.c.b16 %v5708, %v5704
        %v8521 = vpack.c.b16 %v5709, %v5705
        %v8522 = vpack.c.b16 %v5714, %v5710
        %v8523 = vpack.c.b16 %v5715, %v5711
        %v8524 = vpack.c.b16 %v5716, %v5712
        %v8525 = vpack.c.b16 %v5717, %v5713
        %v8526 = vpack.c.b16 %v5722, %v5718
        %v8527 = vpack.c.b16 %v5723, %v5719
        %v8528 = vpack.c.b16 %v5724, %v5720
        %v8529 = vpack.c.b16 %v5725, %v5721
        %v8530 = vpack.c.b16 %v5730, %v5726
        %v8531 = vpack.c.b16 %v5731, %v5727
        %v8532 = vpack.c.b16 %v5732, %v5728
        %v8533 = vpack.c.b16 %v5733, %v5729
        %v8534 = vpack.c.b16 %v5738, %v5734
        %v8535 = vpack.c.b16 %v5739, %v5735
        %v8536 = vpack.c.b16 %v5740, %v5736
        %v8537 = vpack.c.b16 %v5741, %v5737
        %v8538 = vpack.c.b16 %v5746, %v5742
        %v8539 = vpack.c.b16 %v5747, %v5743
        %v8540 = vpack.c.b16 %v5748, %v5744
        %v8541 = vpack.c.b16 %v5749, %v5745
        %v8542 = vpack.c.b16 %v5754, %v5750
        %v8543 = vpack.c.b16 %v5755, %v5751
        %v8544 = vpack.c.b16 %v5756, %v5752
        %v8545 = vpack.c.b16 %v5757, %v5753
        %v8546 = vpack.c.b16 %v5762, %v5758
        %v8547 = vpack.c.b16 %v5763, %v5759
        %v8548 = vpack.c.b16 %v5764, %v5760
        %v8549 = vpack.c.b16 %v5765, %v5761
        %v8550 = vpack.c.b16 %v5770, %v5766
        %v8551 = vpack.c.b16 %v5771, %v5767
        %v8552 = vpack.c.b16 %v5772, %v5768
        %v8553 = vpack.c.b16 %v5773, %v5769
        %v8554 = vpack.c.b16 %v5778, %v5774
        %v8555 = vpack.c.b16 %v5779, %v5775
        %v8556 = vpack.c.b16 %v5780, %v5776
        %v8557 = vpack.c.b16 %v5781, %v5777
        %v8558 = vpack.c.b16 %v5786, %v5782
        %v8559 = vpack.c.b16 %v5787, %v5783
        %v8560 = vpack.c.b16 %v5788, %v5784
        %v8561 = vpack.c.b16 %v5789, %v5785
        %v8562 = vpack.c.b16 %v5794, %v5790
        %v8563 = vpack.c.b16 %v5795, %v5791
        %v8564 = vpack.c.b16 %v5796, %v5792
        %v8565 = vpack.c.b16 %v5797, %v5793
        %v8566 = vpack.c.b16 %v5802, %v5798
        %v8567 = vpack.c.b16 %v5803, %v5799
        %v8568 = vpack.c.b16 %v5804, %v5800
        %v8569 = vpack.c.b16 %v5805, %v5801
        %v8570 = vpack.c.b16 %v5810, %v5806
        %v8571 = vpack.c.b16 %v5811, %v5807
        %v8572 = vpack.c.b16 %v5812, %v5808
        %v8573 = vpack.c.b16 %v5813, %v5809
        %v8574 = vpack.c.b16 %v5818, %v5814
        %v8575 = vpack.c.b16 %v5819, %v5815
        %v8576 = vpack.c.b16 %v5820, %v5816
        %v8577 = vpack.c.b16 %v5821, %v5817
        %v8578 = vpack.c.b16 %v5826, %v5822
        %v8579 = vpack.c.b16 %v5827, %v5823
        %v8580 = vpack.c.b16 %v5828, %v5824
        %v8581 = vpack.c.b16 %v5829, %v5825
        %v8582 = vpack.c.b16 %v5834, %v5830
        %v8583 = vpack.c.b16 %v5835, %v5831
        %v8584 = vpack.c.b16 %v5836, %v5832
        %v8585 = vpack.c.b16 %v5837, %v5833
        %v8586 = vpack.c.b16 %v5842, %v5838
        %v8587 = vpack.c.b16 %v5843, %v5839
        %v8588 = vpack.c.b16 %v5844, %v5840
        %v8589 = vpack.c.b16 %v5845, %v5841
        %v8590 = vpack.c.b16 %v5850, %v5846
        %v8591 = vpack.c.b16 %v5851, %v5847
        %v8592 = vpack.c.b16 %v5852, %v5848
        %v8593 = vpack.c.b16 %v5853, %v5849
        %v8594 = vpack.c.b16 %v5858, %v5854
        %v8595 = vpack.c.b16 %v5859, %v5855
        %v8596 = vpack.c.b16 %v5860, %v5856
        %v8597 = vpack.c.b16 %v5861, %v5857
        %v8598 = vpack.c.b16 %v5866, %v5862
        %v8599 = vpack.c.b16 %v5867, %v5863
        %v8600 = vpack.c.b16 %v5868, %v5864
        %v8601 = vpack.c.b16 %v5869, %v5865
        %v8602 = vpack.c.b16 %v5874, %v5870
        %v8603 = vpack.c.b16 %v5875, %v5871
        %v8604 = vpack.c.b16 %v5876, %v5872
        %v8605 = vpack.c.b16 %v5877, %v5873
        %v8606 = vpack.c.b16 %v5882, %v5878
        %v8607 = vpack.c.b16 %v5883, %v5879
        %v8608 = vpack.c.b16 %v5884, %v5880
        %v8609 = vpack.c.b16 %v5885, %v5881
        %v8610 = vpack.c.b16 %v5890, %v5886
        %v8611 = vpack.c.b16 %v5891, %v5887
        %v8612 = vpack.c.b16 %v5892, %v5888
        %v8613 = vpack.c.b16 %v5893, %v5889
        %v8614 = vpack.c.b16 %v5898, %v5894
        %v8615 = vpack.c.b16 %v5899, %v5895
        %v8616 = vpack.c.b16 %v5900, %v5896
        %v8617 = vpack.c.b16 %v5901, %v5897
        %v8618 = vpack.c.b16 %v5906, %v5902
        %v8619 = vpack.c.b16 %v5907, %v5903
        %v8620 = vpack.c.b16 %v5908, %v5904
        %v8621 = vpack.c.b16 %v5909, %v5905
        %v8622 = vpack.c.b16 %v5914, %v5910
        %v8623 = vpack.c.b16 %v5915, %v5911
        %v8624 = vpack.c.b16 %v5916, %v5912
        %v8625 = vpack.c.b16 %v5917, %v5913
        %v8626 = vpack.c.b16 %v5922, %v5918
        %v8627 = vpack.c.b16 %v5923, %v5919
        %v8628 = vpack.c.b16 %v5924, %v5920
        %v8629 = vpack.c.b16 %v5925, %v5921
        %v8630 = vpack.c.b16 %v5930, %v5926
        %v8631 = vpack.c.b16 %v5931, %v5927
        %v8632 = vpack.c.b16 %v5932, %v5928
        %v8633 = vpack.c.b16 %v5933, %v5929
        %v8634 = vpack.c.b16 %v5938, %v5934
        %v8635 = vpack.c.b16 %v5939, %v5935
        %v8636 = vpack.c.b16 %v5940, %v5936
        %v8637 = vpack.c.b16 %v5941, %v5937
        %v8638 = vpack.c.b16 %v5946, %v5942
        %v8639 = vpack.c.b16 %v5947, %v5943
        %v8640 = vpack.c.b16 %v5948, %v5944
        %v8641 = vpack.c.b16 %v5949, %v5945
        %v8642 = vpack.c.b16 %v5954, %v5950
        %v8643 = vpack.c.b16 %v5955, %v5951
        %v8644 = vpack.c.b16 %v5956, %v5952
        %v8645 = vpack.c.b16 %v5957, %v5953
        %v8646 = vpack.c.b16 %v5962, %v5958
        %v8647 = vpack.c.b16 %v5963, %v5959
        %v8648 = vpack.c.b16 %v5964, %v5960
        %v8649 = vpack.c.b16 %v5965, %v5961
        %v8650 = vpack.c.b16 %v5970, %v5966
        %v8651 = vpack.c.b16 %v5971, %v5967
        %v8652 = vpack.c.b16 %v5972, %v5968
        %v8653 = vpack.c.b16 %v5973, %v5969
        %v8654 = vpack.c.b16 %v5978, %v5974
        %v8655 = vpack.c.b16 %v5979, %v5975
        %v8656 = vpack.c.b16 %v5980, %v5976
        %v8657 = vpack.c.b16 %v5981, %v5977
        %v8658 = vpack.c.b16 %v5986, %v5982
        %v8659 = vpack.c.b16 %v5987, %v5983
        %v8660 = vpack.c.b16 %v5988, %v5984
        %v8661 = vpack.c.b16 %v5989, %v5985
        %v8662 = vpack.c.b16 %v5994, %v5990
        %v8663 = vpack.c.b16 %v5995, %v5991
        %v8664 = vpack.c.b16 %v5996, %v5992
        %v8665 = vpack.c.b16 %v5997, %v5993
        %v8666 = vpack.c.b16 %v6002, %v5998
        %v8667 = vpack.c.b16 %v6003, %v5999
        %v8668 = vpack.c.b16 %v6004, %v6000
        %v8669 = vpack.c.b16 %v6005, %v6001
        %v8670 = vpack.c.b16 %v6010, %v6006
        %v8671 = vpack.c.b16 %v6011, %v6007
        %v8672 = vpack.c.b16 %v6012, %v6008
        %v8673 = vpack.c.b16 %v6013, %v6009
        %v8674 = vpack.c.b16 %v6018, %v6014
        %v8675 = vpack.c.b16 %v6019, %v6015
        %v8676 = vpack.c.b16 %v6020, %v6016
        %v8677 = vpack.c.b16 %v6021, %v6017
        %v8678 = vpack.c.b16 %v6026, %v6022
        %v8679 = vpack.c.b16 %v6027, %v6023
        %v8680 = vpack.c.b16 %v6028, %v6024
        %v8681 = vpack.c.b16 %v6029, %v6025
        %v8682 = vpack.c.b16 %v6034, %v6030
        %v8683 = vpack.c.b16 %v6035, %v6031
        %v8684 = vpack.c.b16 %v6036, %v6032
        %v8685 = vpack.c.b16 %v6037, %v6033
        %v8686 = vpack.c.b16 %v6042, %v6038
        %v8687 = vpack.c.b16 %v6043, %v6039
        %v8688 = vpack.c.b16 %v6044, %v6040
        %v8689 = vpack.c.b16 %v6045, %v6041
        %v8690 = vpack.c.b16 %v6050, %v6046
        %v8691 = vpack.c.b16 %v6051, %v6047
        %v8692 = vpack.c.b16 %v6052, %v6048
        %v8693 = vpack.c.b16 %v6053, %v6049
        %v8694 = vpack.c.b16 %v6058, %v6054
        %v8695 = vpack.c.b16 %v6059, %v6055
        %v8696 = vpack.c.b16 %v6060, %v6056
        %v8697 = vpack.c.b16 %v6061, %v6057
        %v8698 = vpack.c.b16 %v6066, %v6062
        %v8699 = vpack.c.b16 %v6067, %v6063
        %v8700 = vpack.c.b16 %v6068, %v6064
        %v8701 = vpack.c.b16 %v6069, %v6065
        %v8702 = vpack.c.b16 %v6074, %v6070
        %v8703 = vpack.c.b16 %v6075, %v6071
        %v8704 = vpack.c.b16 %v6076, %v6072
        %v8705 = vpack.c.b16 %v6077, %v6073
        %v8706 = vpack.c.b16 %v6082, %v6078
        %v8707 = vpack.c.b16 %v6083, %v6079
        %v8708 = vpack.c.b16 %v6084, %v6080
        %v8709 = vpack.c.b16 %v6085, %v6081
        %v8710 = vpack.c.b16 %v6090, %v6086
        %v8711 = vpack.c.b16 %v6091, %v6087
        %v8712 = vpack.c.b16 %v6092, %v6088
        %v8713 = vpack.c.b16 %v6093, %v6089
        %v8714 = vpack.c.b16 %v6098, %v6094
        %v8715 = vpack.c.b16 %v6099, %v6095
        %v8716 = vpack.c.b16 %v6100, %v6096
        %v8717 = vpack.c.b16 %v6101, %v6097
        %v8718 = vpack.c.b16 %v6106, %v6102
        %v8719 = vpack.c.b16 %v6107, %v6103
        %v8720 = vpack.c.b16 %v6108, %v6104
        %v8721 = vpack.c.b16 %v6109, %v6105
        %v8722 = vpack.c.b16 %v6114, %v6110
        %v8723 = vpack.c.b16 %v6115, %v6111
        %v8724 = vpack.c.b16 %v6116, %v6112
        %v8725 = vpack.c.b16 %v6117, %v6113
        %v8726 = vpack.c.b16 %v6122, %v6118
        %v8727 = vpack.c.b16 %v6123, %v6119
        %v8728 = vpack.c.b16 %v6124, %v6120
        %v8729 = vpack.c.b16 %v6125, %v6121
        %v8730 = vpack.c.b16 %v6130, %v6126
        %v8731 = vpack.c.b16 %v6131, %v6127
        %v8732 = vpack.c.b16 %v6132, %v6128
        %v8733 = vpack.c.b16 %v6133, %v6129
        %v8734 = vpack.c.b16 %v6138, %v6134
        %v8735 = vpack.c.b16 %v6139, %v6135
        %v8736 = vpack.c.b16 %v6140, %v6136
        %v8737 = vpack.c.b16 %v6141, %v6137
        %v8738 = vpack.c.b16 %v6146, %v6142
        %v8739 = vpack.c.b16 %v6147, %v6143
        %v8740 = vpack.c.b16 %v6148, %v6144
        %v8741 = vpack.c.b16 %v6149, %v6145
        %v8742 = vpack.c.b16 %v6154, %v6150
        %v8743 = vpack.c.b16 %v6155, %v6151
        %v8744 = vpack.c.b16 %v6156, %v6152
        %v8745 = vpack.c.b16 %v6157, %v6153
        %v8746 = vpack.c.b16 %v6162, %v6158
        %v8747 = vpack.c.b16 %v6163, %v6159
        %v8748 = vpack.c.b16 %v6164, %v6160
        %v8749 = vpack.c.b16 %v6165, %v6161
        %v8750 = vpack.c.b16 %v6170, %v6166
        %v8751 = vpack.c.b16 %v6171, %v6167
        %v8752 = vpack.c.b16 %v6172, %v6168
        %v8753 = vpack.c.b16 %v6173, %v6169
        %v8754 = vpack.c.b16 %v6178, %v6174
        %v8755 = vpack.c.b16 %v6179, %v6175
        %v8756 = vpack.c.b16 %v6180, %v6176
        %v8757 = vpack.c.b16 %v6181, %v6177
        %v8758 = vpack.c.b16 %v6186, %v6182
        %v8759 = vpack.c.b16 %v6187, %v6183
        %v8760 = vpack.c.b16 %v6188, %v6184
        %v8761 = vpack.c.b16 %v6189, %v6185
        %v8762 = vpack.c.b16 %v6194, %v6190
        %v8763 = vpack.c.b16 %v6195, %v6191
        %v8764 = vpack.c.b16 %v6196, %v6192
        %v8765 = vpack.c.b16 %v6197, %v6193
        %v8766 = vpack.c.b16 %v6202, %v6198
        %v8767 = vpack.c.b16 %v6203, %v6199
        %v8768 = vpack.c.b16 %v6204, %v6200
        %v8769 = vpack.c.b16 %v6205, %v6201
        %v8770 = vpack.c.b16 %v6210, %v6206
        %v8771 = vpack.c.b16 %v6211, %v6207
        %v8772 = vpack.c.b16 %v6212, %v6208
        %v8773 = vpack.c.b16 %v6213, %v6209
        %v8774 = vpack.c.b16 %v6218, %v6214
        %v8775 = vpack.c.b16 %v6219, %v6215
        %v8776 = vpack.c.b16 %v6220, %v6216
        %v8777 = vpack.c.b16 %v6221, %v6217
        %v8778 = vpack.c.b16 %v6226, %v6222
        %v8779 = vpack.c.b16 %v6227, %v6223
        %v8780 = vpack.c.b16 %v6228, %v6224
        %v8781 = vpack.c.b16 %v6229, %v6225
        %v8782 = vpack.c.b16 %v6234, %v6230
        %v8783 = vpack.c.b16 %v6235, %v6231
        %v8784 = vpack.c.b16 %v6236, %v6232
        %v8785 = vpack.c.b16 %v6237, %v6233
        %v8786 = vpack.c.b16 %v6242, %v6238
        %v8787 = vpack.c.b16 %v6243, %v6239
        %v8788 = vpack.c.b16 %v6244, %v6240
        %v8789 = vpack.c.b16 %v6245, %v6241
        %v8790 = vpack.c.b16 %v6250, %v6246
        %v8791 = vpack.c.b16 %v6251, %v6247
        %v8792 = vpack.c.b16 %v6252, %v6248
        %v8793 = vpack.c.b16 %v6253, %v6249
        %v8794 = vpack.c.b16 %v6258, %v6254
        %v8795 = vpack.c.b16 %v6259, %v6255
        %v8796 = vpack.c.b16 %v6260, %v6256
        %v8797 = vpack.c.b16 %v6261, %v6257
        %v8798 = vpack.c.b16 %v6266, %v6262
        %v8799 = vpack.c.b16 %v6267, %v6263
        %v8800 = vpack.c.b16 %v6268, %v6264
        %v8801 = vpack.c.b16 %v6269, %v6265
        %v8802 = vpack.c.b16 %v6274, %v6270
        %v8803 = vpack.c.b16 %v6275, %v6271
        %v8804 = vpack.c.b16 %v6276, %v6272
        %v8805 = vpack.c.b16 %v6277, %v6273
        %v8806 = vpack.c.b16 %v6282, %v6278
        %v8807 = vpack.c.b16 %v6283, %v6279
        %v8808 = vpack.c.b16 %v6284, %v6280
        %v8809 = vpack.c.b16 %v6285, %v6281
        %v8810 = vpack.c.b16 %v6290, %v6286
        %v8811 = vpack.c.b16 %v6291, %v6287
        %v8812 = vpack.c.b16 %v6292, %v6288
        %v8813 = vpack.c.b16 %v6293, %v6289
        %v8814 = vpack.c.b16 %v6298, %v6294
        %v8815 = vpack.c.b16 %v6299, %v6295
        %v8816 = vpack.c.b16 %v6300, %v6296
        %v8817 = vpack.c.b16 %v6301, %v6297
        %v8818 = vpack.c.b16 %v6306, %v6302
        %v8819 = vpack.c.b16 %v6307, %v6303
        %v8820 = vpack.c.b16 %v6308, %v6304
        %v8821 = vpack.c.b16 %v6309, %v6305
        %v8822 = vpack.c.b16 %v6314, %v6310
        %v8823 = vpack.c.b16 %v6315, %v6311
        %v8824 = vpack.c.b16 %v6316, %v6312
        %v8825 = vpack.c.b16 %v6317, %v6313
        %v8826 = vpack.c.b16 %v6322, %v6318
        %v8827 = vpack.c.b16 %v6323, %v6319
        %v8828 = vpack.c.b16 %v6324, %v6320
        %v8829 = vpack.c.b16 %v6325, %v6321
        %v8830 = vpack.c.b16 %v6330, %v6326
        %v8831 = vpack.c.b16 %v6331, %v6327
        %v8832 = vpack.c.b16 %v6332, %v6328
        %v8833 = vpack.c.b16 %v6333, %v6329
        %v8834 = vpack.c.b16 %v6338, %v6334
        %v8835 = vpack.c.b16 %v6339, %v6335
        %v8836 = vpack.c.b16 %v6340, %v6336
        %v8837 = vpack.c.b16 %v6341, %v6337
        %v8838 = vpack.c.b16 %v6346, %v6342
        %v8839 = vpack.c.b16 %v6347, %v6343
        %v8840 = vpack.c.b16 %v6348, %v6344
        %v8841 = vpack.c.b16 %v6349, %v6345
        %v8842 = vpack.c.b16 %v6354, %v6350
        %v8843 = vpack.c.b16 %v6355, %v6351
        %v8844 = vpack.c.b16 %v6356, %v6352
        %v8845 = vpack.c.b16 %v6357, %v6353
        %v8846 = vpack.c.b16 %v6362, %v6358
        %v8847 = vpack.c.b16 %v6363, %v6359
        %v8848 = vpack.c.b16 %v6364, %v6360
        %v8849 = vpack.c.b16 %v6365, %v6361
        %v8850 = vpack.c.b16 %v6370, %v6366
        %v8851 = vpack.c.b16 %v6371, %v6367
        %v8852 = vpack.c.b16 %v6372, %v6368
        %v8853 = vpack.c.b16 %v6373, %v6369
        %v8854 = vpack.c.b16 %v6378, %v6374
        %v8855 = vpack.c.b16 %v6379, %v6375
        %v8856 = vpack.c.b16 %v6380, %v6376
        %v8857 = vpack.c.b16 %v6381, %v6377
        %v8858 = vpack.c.b16 %v6386, %v6382
        %v8859 = vpack.c.b16 %v6387, %v6383
        %v8860 = vpack.c.b16 %v6388, %v6384
        %v8861 = vpack.c.b16 %v6389, %v6385
        %v8862 = vpack.c.b16 %v6394, %v6390
        %v8863 = vpack.c.b16 %v6395, %v6391
        %v8864 = vpack.c.b16 %v6396, %v6392
        %v8865 = vpack.c.b16 %v6397, %v6393
        %v8866 = vpack.c.b16 %v6402, %v6398
        %v8867 = vpack.c.b16 %v6403, %v6399
        %v8868 = vpack.c.b16 %v6404, %v6400
        %v8869 = vpack.c.b16 %v6405, %v6401
        %v8870 = vpack.c.b16 %v6410, %v6406
        %v8871 = vpack.c.b16 %v6411, %v6407
        %v8872 = vpack.c.b16 %v6412, %v6408
        %v8873 = vpack.c.b16 %v6413, %v6409
        %v8874 = vpack.c.b16 %v6418, %v6414
        %v8875 = vpack.c.b16 %v6419, %v6415
        %v8876 = vpack.c.b16 %v6420, %v6416
        %v8877 = vpack.c.b16 %v6421, %v6417
        %v8878 = vpack.c.b16 %v6426, %v6422
        %v8879 = vpack.c.b16 %v6427, %v6423
        %v8880 = vpack.c.b16 %v6428, %v6424
        %v8881 = vpack.c.b16 %v6429, %v6425
        %v8882 = vpack.c.b16 %v6434, %v6430
        %v8883 = vpack.c.b16 %v6435, %v6431
        %v8884 = vpack.c.b16 %v6436, %v6432
        %v8885 = vpack.c.b16 %v6437, %v6433
        %v8886 = vpack.c.b16 %v6442, %v6438
        %v8887 = vpack.c.b16 %v6443, %v6439
        %v8888 = vpack.c.b16 %v6444, %v6440
        %v8889 = vpack.c.b16 %v6445, %v6441
        %v8890 = vpack.c.b16 %v6450, %v6446
        %v8891 = vpack.c.b16 %v6451, %v6447
        %v8892 = vpack.c.b16 %v6452, %v6448
        %v8893 = vpack.c.b16 %v6453, %v6449
        %v8894 = vpack.c.b16 %v6458, %v6454
        %v8895 = vpack.c.b16 %v6459, %v6455
        %v8896 = vpack.c.b16 %v6460, %v6456
        %v8897 = vpack.c.b16 %v6461, %v6457
        %v8898 = vpack.c.b16 %v6466, %v6462
        %v8899 = vpack.c.b16 %v6467, %v6463
        %v8900 = vpack.c.b16 %v6468, %v6464
        %v8901 = vpack.c.b16 %v6469, %v6465
        %v8902 = vpack.c.b16 %v6474, %v6470
        %v8903 = vpack.c.b16 %v6475, %v6471
        %v8904 = vpack.c.b16 %v6476, %v6472
        %v8905 = vpack.c.b16 %v6477, %v6473
        %v8906 = vpack.c.b16 %v6482, %v6478
        %v8907 = vpack.c.b16 %v6483, %v6479
        %v8908 = vpack.c.b16 %v6484, %v6480
        %v8909 = vpack.c.b16 %v6485, %v6481
        %v8910 = vpack.c.b16 %v6490, %v6486
        %v8911 = vpack.c.b16 %v6491, %v6487
        %v8912 = vpack.c.b16 %v6492, %v6488
        %v8913 = vpack.c.b16 %v6493, %v6489
        %v8914 = vpack.c.b16 %v6498, %v6494
        %v8915 = vpack.c.b16 %v6499, %v6495
        %v8916 = vpack.c.b16 %v6500, %v6496
        %v8917 = vpack.c.b16 %v6501, %v6497
        %v8918 = vpack.c.b16 %v6506, %v6502
        %v8919 = vpack.c.b16 %v6507, %v6503
        %v8920 = vpack.c.b16 %v6508, %v6504
        %v8921 = vpack.c.b16 %v6509, %v6505
        %v8922 = vpack.c.b16 %v6514, %v6510
        %v8923 = vpack.c.b16 %v6515, %v6511
        %v8924 = vpack.c.b16 %v6516, %v6512
        %v8925 = vpack.c.b16 %v6517, %v6513
        %v8926 = vpack.c.b16 %v6522, %v6518
        %v8927 = vpack.c.b16 %v6523, %v6519
        %v8928 = vpack.c.b16 %v6524, %v6520
        %v8929 = vpack.c.b16 %v6525, %v6521
        %v8930 = vpack.c.b16 %v6530, %v6526
        %v8931 = vpack.c.b16 %v6531, %v6527
        %v8932 = vpack.c.b16 %v6532, %v6528
        %v8933 = vpack.c.b16 %v6533, %v6529
        %v8934 = vpack.c.b16 %v6538, %v6534
        %v8935 = vpack.c.b16 %v6539, %v6535
        %v8936 = vpack.c.b16 %v6540, %v6536
        %v8937 = vpack.c.b16 %v6541, %v6537
        %v8938 = vpack.c.b16 %v6546, %v6542
        %v8939 = vpack.c.b16 %v6547, %v6543
        %v8940 = vpack.c.b16 %v6548, %v6544
        %v8941 = vpack.c.b16 %v6549, %v6545
        %v8942 = vpack.c.b16 %v6554, %v6550
        %v8943 = vpack.c.b16 %v6555, %v6551
        %v8944 = vpack.c.b16 %v6556, %v6552
        %v8945 = vpack.c.b16 %v6557, %v6553
        %v8946 = vpack.c.b16 %v6562, %v6558
        %v8947 = vpack.c.b16 %v6563, %v6559
        %v8948 = vpack.c.b16 %v6564, %v6560
        %v8949 = vpack.c.b16 %v6565, %v6561
        %v8950 = vpack.c.b16 %v6570, %v6566
        %v8951 = vpack.c.b16 %v6571, %v6567
        %v8952 = vpack.c.b16 %v6572, %v6568
        %v8953 = vpack.c.b16 %v6573, %v6569
        %v8954 = vpack.c.b16 %v6578, %v6574
        %v8955 = vpack.c.b16 %v6579, %v6575
        %v8956 = vpack.c.b16 %v6580, %v6576
        %v8957 = vpack.c.b16 %v6581, %v6577
        %v8958 = vpack.c.b16 %v6586, %v6582
        %v8959 = vpack.c.b16 %v6587, %v6583
        %v8960 = vpack.c.b16 %v6588, %v6584
        %v8961 = vpack.c.b16 %v6589, %v6585
        %v8962 = vpack.c.b16 %v6594, %v6590
        %v8963 = vpack.c.b16 %v6595, %v6591
        %v8964 = vpack.c.b16 %v6596, %v6592
        %v8965 = vpack.c.b16 %v6597, %v6593
        %v8966 = vpack.c.b16 %v6602, %v6598
        %v8967 = vpack.c.b16 %v6603, %v6599
        %v8968 = vpack.c.b16 %v6604, %v6600
        %v8969 = vpack.c.b16 %v6605, %v6601
        %v8970 = vpack.c.b16 %v6610, %v6606
        %v8971 = vpack.c.b16 %v6611, %v6607
        %v8972 = vpack.c.b16 %v6612, %v6608
        %v8973 = vpack.c.b16 %v6613, %v6609
        %v8974 = vpack.c.b16 %v6618, %v6614
        %v8975 = vpack.c.b16 %v6619, %v6615
        %v8976 = vpack.c.b16 %v6620, %v6616
        %v8977 = vpack.c.b16 %v6621, %v6617
        %v8978 = vpack.c.b16 %v6626, %v6622
        %v8979 = vpack.c.b16 %v6627, %v6623
        %v8980 = vpack.c.b16 %v6628, %v6624
        %v8981 = vpack.c.b16 %v6629, %v6625
        %v8982 = vpack.c.b16 %v6634, %v6630
        %v8983 = vpack.c.b16 %v6635, %v6631
        %v8984 = vpack.c.b16 %v6636, %v6632
        %v8985 = vpack.c.b16 %v6637, %v6633
        %v8986 = vpack.c.b16 %v6642, %v6638
        %v8987 = vpack.c.b16 %v6643, %v6639
        %v8988 = vpack.c.b16 %v6644, %v6640
        %v8989 = vpack.c.b16 %v6645, %v6641
        %v8990 = vpack.c.b16 %v6650, %v6646
        %v8991 = vpack.c.b16 %v6651, %v6647
        %v8992 = vpack.c.b16 %v6652, %v6648
        %v8993 = vpack.c.b16 %v6653, %v6649
        %v8994 = vpack.c.b16 %v6658, %v6654
        %v8995 = vpack.c.b16 %v6659, %v6655
        %v8996 = vpack.c.b16 %v6660, %v6656
        %v8997 = vpack.c.b16 %v6661, %v6657
        %v8998 = vpack.c.b16 %v6666, %v6662
        %v8999 = vpack.c.b16 %v6667, %v6663
        %v9000 = vpack.c.b16 %v6668, %v6664
        %v9001 = vpack.c.b16 %v6669, %v6665
        %v9002 = vpack.c.b16 %v6674, %v6670
        %v9003 = vpack.c.b16 %v6675, %v6671
        %v9004 = vpack.c.b16 %v6676, %v6672
        %v9005 = vpack.c.b16 %v6677, %v6673
        %v9006 = vpack.c.b16 %v6682, %v6678
        %v9007 = vpack.c.b16 %v6683, %v6679
        %v9008 = vpack.c.b16 %v6684, %v6680
        %v9009 = vpack.c.b16 %v6685, %v6681
        %v9010 = vpack.c.b16 %v6690, %v6686
        %v9011 = vpack.c.b16 %v6691, %v6687
        %v9012 = vpack.c.b16 %v6692, %v6688
        %v9013 = vpack.c.b16 %v6693, %v6689
        %v9014 = vpack.c.b16 %v6698, %v6694
        %v9015 = vpack.c.b16 %v6699, %v6695
        %v9016 = vpack.c.b16 %v6700, %v6696
        %v9017 = vpack.c.b16 %v6701, %v6697
        %v9018 = vpack.c.b16 %v6706, %v6702
        %v9019 = vpack.c.b16 %v6707, %v6703
        %v9020 = vpack.c.b16 %v6708, %v6704
        %v9021 = vpack.c.b16 %v6709, %v6705
        %v9022 = vpack.c.b16 %v6714, %v6710
        %v9023 = vpack.c.b16 %v6715, %v6711
        %v9024 = vpack.c.b16 %v6716, %v6712
        %v9025 = vpack.c.b16 %v6717, %v6713
        %v9026 = vpack.c.b16 %v6722, %v6718
        %v9027 = vpack.c.b16 %v6723, %v6719
        %v9028 = vpack.c.b16 %v6724, %v6720
        %v9029 = vpack.c.b16 %v6725, %v6721
        %v9030 = vpack.c.b16 %v6730, %v6726
        %v9031 = vpack.c.b16 %v6731, %v6727
        %v9032 = vpack.c.b16 %v6732, %v6728
        %v9033 = vpack.c.b16 %v6733, %v6729
        %v9034 = vpack.c.b16 %v6738, %v6734
        %v9035 = vpack.c.b16 %v6739, %v6735
        %v9036 = vpack.c.b16 %v6740, %v6736
        %v9037 = vpack.c.b16 %v6741, %v6737
        %v9038 = vpack.c.b16 %v6746, %v6742
        %v9039 = vpack.c.b16 %v6747, %v6743
        %v9040 = vpack.c.b16 %v6748, %v6744
        %v9041 = vpack.c.b16 %v6749, %v6745
        %v9042 = vpack.c.b16 %v6754, %v6750
        %v9043 = vpack.c.b16 %v6755, %v6751
        %v9044 = vpack.c.b16 %v6756, %v6752
        %v9045 = vpack.c.b16 %v6757, %v6753
        %v9046 = vpack.c.b16 %v6762, %v6758
        %v9047 = vpack.c.b16 %v6763, %v6759
        %v9048 = vpack.c.b16 %v6764, %v6760
        %v9049 = vpack.c.b16 %v6765, %v6761
        %v9050 = vpack.c.b16 %v6770, %v6766
        %v9051 = vpack.c.b16 %v6771, %v6767
        %v9052 = vpack.c.b16 %v6772, %v6768
        %v9053 = vpack.c.b16 %v6773, %v6769
        %v9054 = vpack.c.b16 %v6778, %v6774
        %v9055 = vpack.c.b16 %v6779, %v6775
        %v9056 = vpack.c.b16 %v6780, %v6776
        %v9057 = vpack.c.b16 %v6781, %v6777
        %v9058 = vpack.c.b16 %v6786, %v6782
        %v9059 = vpack.c.b16 %v6787, %v6783
        %v9060 = vpack.c.b16 %v6788, %v6784
        %v9061 = vpack.c.b16 %v6789, %v6785
        %v9062 = vpack.c.b16 %v6794, %v6790
        %v9063 = vpack.c.b16 %v6795, %v6791
        %v9064 = vpack.c.b16 %v6796, %v6792
        %v9065 = vpack.c.b16 %v6797, %v6793
        %v9066 = vpack.c.b16 %v6802, %v6798
        %v9067 = vpack.c.b16 %v6803, %v6799
        %v9068 = vpack.c.b16 %v6804, %v6800
        %v9069 = vpack.c.b16 %v6805, %v6801
        %v9070 = vpack.c.b16 %v6810, %v6806
        %v9071 = vpack.c.b16 %v6811, %v6807
        %v9072 = vpack.c.b16 %v6812, %v6808
        %v9073 = vpack.c.b16 %v6813, %v6809
        %v9074 = vpack.c.b16 %v6818, %v6814
        %v9075 = vpack.c.b16 %v6819, %v6815
        %v9076 = vpack.c.b16 %v6820, %v6816
        %v9077 = vpack.c.b16 %v6821, %v6817
        %v9078 = vpack.c.b16 %v6826, %v6822
        %v9079 = vpack.c.b16 %v6827, %v6823
        %v9080 = vpack.c.b16 %v6828, %v6824
        %v9081 = vpack.c.b16 %v6829, %v6825
        %v9082 = vpack.c.b16 %v6834, %v6830
        %v9083 = vpack.c.b16 %v6835, %v6831
        %v9084 = vpack.c.b16 %v6836, %v6832
        %v9085 = vpack.c.b16 %v6837, %v6833
        %v9086 = vpack.c.b16 %v6842, %v6838
        %v9087 = vpack.c.b16 %v6843, %v6839
        %v9088 = vpack.c.b16 %v6844, %v6840
        %v9089 = vpack.c.b16 %v6845, %v6841
        %v9090 = vpack.c.b16 %v6850, %v6846
        %v9091 = vpack.c.b16 %v6851, %v6847
        %v9092 = vpack.c.b16 %v6852, %v6848
        %v9093 = vpack.c.b16 %v6853, %v6849
        %v9094 = vpack.c.b16 %v6858, %v6854
        %v9095 = vpack.c.b16 %v6859, %v6855
        %v9096 = vpack.c.b16 %v6860, %v6856
        %v9097 = vpack.c.b16 %v6861, %v6857
        %v9098 = vpack.c.b16 %v6866, %v6862
        %v9099 = vpack.c.b16 %v6867, %v6863
        %v9100 = vpack.c.b16 %v6868, %v6864
        %v9101 = vpack.c.b16 %v6869, %v6865
        %v9102 = vpack.c.b16 %v6874, %v6870
        %v9103 = vpack.c.b16 %v6875, %v6871
        %v9104 = vpack.c.b16 %v6876, %v6872
        %v9105 = vpack.c.b16 %v6877, %v6873
        %v9106 = vpack.c.b16 %v6882, %v6878
        %v9107 = vpack.c.b16 %v6883, %v6879
        %v9108 = vpack.c.b16 %v6884, %v6880
        %v9109 = vpack.c.b16 %v6885, %v6881
        %v9110 = vpack.c.b16 %v6890, %v6886
        %v9111 = vpack.c.b16 %v6891, %v6887
        %v9112 = vpack.c.b16 %v6892, %v6888
        %v9113 = vpack.c.b16 %v6893, %v6889
        %v9114 = vpack.c.b16 %v6898, %v6894
        %v9115 = vpack.c.b16 %v6899, %v6895
        %v9116 = vpack.c.b16 %v6900, %v6896
        %v9117 = vpack.c.b16 %v6901, %v6897
        %v9118 = vpack.c.b16 %v6906, %v6902
        %v9119 = vpack.c.b16 %v6907, %v6903
        %v9120 = vpack.c.b16 %v6908, %v6904
        %v9121 = vpack.c.b16 %v6909, %v6905
        %v9122 = vpack.c.b16 %v6914, %v6910
        %v9123 = vpack.c.b16 %v6915, %v6911
        %v9124 = vpack.c.b16 %v6916, %v6912
        %v9125 = vpack.c.b16 %v6917, %v6913
        %v9126 = vpack.c.b16 %v6922, %v6918
        %v9127 = vpack.c.b16 %v6923, %v6919
        %v9128 = vpack.c.b16 %v6924, %v6920
        %v9129 = vpack.c.b16 %v6925, %v6921
        %v9130 = vpack.c.b16 %v6930, %v6926
        %v9131 = vpack.c.b16 %v6931, %v6927
        %v9132 = vpack.c.b16 %v6932, %v6928
        %v9133 = vpack.c.b16 %v6933, %v6929
        %v9134 = vpack.c.b16 %v6938, %v6934
        %v9135 = vpack.c.b16 %v6939, %v6935
        %v9136 = vpack.c.b16 %v6940, %v6936
        %v9137 = vpack.c.b16 %v6941, %v6937
        %v9138 = vpack.c.b16 %v6946, %v6942
        %v9139 = vpack.c.b16 %v6947, %v6943
        %v9140 = vpack.c.b16 %v6948, %v6944
        %v9141 = vpack.c.b16 %v6949, %v6945
        %v9142 = vpack.c.b16 %v6954, %v6950
        %v9143 = vpack.c.b16 %v6955, %v6951
        %v9144 = vpack.c.b16 %v6956, %v6952
        %v9145 = vpack.c.b16 %v6957, %v6953
        %v9146 = vpack.c.b16 %v6962, %v6958
        %v9147 = vpack.c.b16 %v6963, %v6959
        %v9148 = vpack.c.b16 %v6964, %v6960
        %v9149 = vpack.c.b16 %v6965, %v6961
        %v9150 = vpack.c.b16 %v6970, %v6966
        %v9151 = vpack.c.b16 %v6971, %v6967
        %v9152 = vpack.c.b16 %v6972, %v6968
        %v9153 = vpack.c.b16 %v6973, %v6969
        %v9154 = vpack.c.b16 %v6978, %v6974
        %v9155 = vpack.c.b16 %v6979, %v6975
        %v9156 = vpack.c.b16 %v6980, %v6976
        %v9157 = vpack.c.b16 %v6981, %v6977
        %v9158 = vpack.c.b16 %v6986, %v6982
        %v9159 = vpack.c.b16 %v6987, %v6983
        %v9160 = vpack.c.b16 %v6988, %v6984
        %v9161 = vpack.c.b16 %v6989, %v6985
        %v9162 = vpack.c.b16 %v6994, %v6990
        %v9163 = vpack.c.b16 %v6995, %v6991
        %v9164 = vpack.c.b16 %v6996, %v6992
        %v9165 = vpack.c.b16 %v6997, %v6993
        %v9166 = vpack.c.b16 %v7002, %v6998
        %v9167 = vpack.c.b16 %v7003, %v6999
        %v9168 = vpack.c.b16 %v7004, %v7000
        %v9169 = vpack.c.b16 %v7005, %v7001
        %v9170 = vpack.c.b16 %v7010, %v7006
        %v9171 = vpack.c.b16 %v7011, %v7007
        %v9172 = vpack.c.b16 %v7012, %v7008
        %v9173 = vpack.c.b16 %v7013, %v7009
        %v9174 = vpack.c.b16 %v7018, %v7014
        %v9175 = vpack.c.b16 %v7019, %v7015
        %v9176 = vpack.c.b16 %v7020, %v7016
        %v9177 = vpack.c.b16 %v7021, %v7017
        %v9178 = vpack.c.b16 %v7026, %v7022
        %v9179 = vpack.c.b16 %v7027, %v7023
        %v9180 = vpack.c.b16 %v7028, %v7024
        %v9181 = vpack.c.b16 %v7029, %v7025
        %v9182 = vpack.c.b16 %v7034, %v7030
        %v9183 = vpack.c.b16 %v7035, %v7031
        %v9184 = vpack.c.b16 %v7036, %v7032
        %v9185 = vpack.c.b16 %v7037, %v7033
        %v9186 = vpack.c.b16 %v7042, %v7038
        %v9187 = vpack.c.b16 %v7043, %v7039
        %v9188 = vpack.c.b16 %v7044, %v7040
        %v9189 = vpack.c.b16 %v7045, %v7041
        %v9190 = vpack.c.b16 %v7050, %v7046
        %v9191 = vpack.c.b16 %v7051, %v7047
        %v9192 = vpack.c.b16 %v7052, %v7048
        %v9193 = vpack.c.b16 %v7053, %v7049
        %v9194 = vpack.c.b16 %v7058, %v7054
        %v9195 = vpack.c.b16 %v7059, %v7055
        %v9196 = vpack.c.b16 %v7060, %v7056
        %v9197 = vpack.c.b16 %v7061, %v7057
        %v9198 = vpack.c.b16 %v7066, %v7062
        %v9199 = vpack.c.b16 %v7067, %v7063
        %v9200 = vpack.c.b16 %v7068, %v7064
        %v9201 = vpack.c.b16 %v7069, %v7065
        %v9202 = vpack.c.b16 %v7074, %v7070
        %v9203 = vpack.c.b16 %v7075, %v7071
        %v9204 = vpack.c.b16 %v7076, %v7072
        %v9205 = vpack.c.b16 %v7077, %v7073
        %v9206 = vpack.c.b16 %v7082, %v7078
        %v9207 = vpack.c.b16 %v7083, %v7079
        %v9208 = vpack.c.b16 %v7084, %v7080
        %v9209 = vpack.c.b16 %v7085, %v7081
        %v9210 = vpack.c.b16 %v7090, %v7086
        %v9211 = vpack.c.b16 %v7091, %v7087
        %v9212 = vpack.c.b16 %v7092, %v7088
        %v9213 = vpack.c.b16 %v7093, %v7089
        %v9214 = vpack.c.b16 %v7098, %v7094
        %v9215 = vpack.c.b16 %v7099, %v7095
        %v9216 = vpack.c.b16 %v7100, %v7096
        %v9217 = vpack.c.b16 %v7101, %v7097
        %v9218 = vpack.c.b16 %v7106, %v7102
        %v9219 = vpack.c.b16 %v7107, %v7103
        %v9220 = vpack.c.b16 %v7108, %v7104
        %v9221 = vpack.c.b16 %v7109, %v7105
        %v9222 = vpack.c.b16 %v7114, %v7110
        %v9223 = vpack.c.b16 %v7115, %v7111
        %v9224 = vpack.c.b16 %v7116, %v7112
        %v9225 = vpack.c.b16 %v7117, %v7113
        %v9226 = vpack.c.b16 %v7122, %v7118
        %v9227 = vpack.c.b16 %v7123, %v7119
        %v9228 = vpack.c.b16 %v7124, %v7120
        %v9229 = vpack.c.b16 %v7125, %v7121
        %v9230 = vpack.c.b16 %v7130, %v7126
        %v9231 = vpack.c.b16 %v7131, %v7127
        %v9232 = vpack.c.b16 %v7132, %v7128
        %v9233 = vpack.c.b16 %v7133, %v7129
        %v9234 = vpack.c.b16 %v7138, %v7134
        %v9235 = vpack.c.b16 %v7139, %v7135
        %v9236 = vpack.c.b16 %v7140, %v7136
        %v9237 = vpack.c.b16 %v7141, %v7137
        %v9238 = vpack.c.b16 %v7146, %v7142
        %v9239 = vpack.c.b16 %v7147, %v7143
        %v9240 = vpack.c.b16 %v7148, %v7144
        %v9241 = vpack.c.b16 %v7149, %v7145
        %v9242 = vpack.c.b16 %v7154, %v7150
        %v9243 = vpack.c.b16 %v7155, %v7151
        %v9244 = vpack.c.b16 %v7156, %v7152
        %v9245 = vpack.c.b16 %v7157, %v7153
        %v9246 = vpack.c.b16 %v7162, %v7158
        %v9247 = vpack.c.b16 %v7163, %v7159
        %v9248 = vpack.c.b16 %v7164, %v7160
        %v9249 = vpack.c.b16 %v7165, %v7161
        %v9250 = vpack.c.b16 %v7170, %v7166
        %v9251 = vpack.c.b16 %v7171, %v7167
        %v9252 = vpack.c.b16 %v7172, %v7168
        %v9253 = vpack.c.b16 %v7173, %v7169
        %v9254 = vpack.c.b16 %v7178, %v7174
        %v9255 = vpack.c.b16 %v7179, %v7175
        %v9256 = vpack.c.b16 %v7180, %v7176
        %v9257 = vpack.c.b16 %v7181, %v7177
        %v9258 = vpack.c.b16 %v7186, %v7182
        %v9259 = vpack.c.b16 %v7187, %v7183
        %v9260 = vpack.c.b16 %v7188, %v7184
        %v9261 = vpack.c.b16 %v7189, %v7185
        %v9262 = vpack.c.b16 %v7194, %v7190
        %v9263 = vpack.c.b16 %v7195, %v7191
        %v9264 = vpack.c.b16 %v7196, %v7192
        %v9265 = vpack.c.b16 %v7197, %v7193
        %v9266 = vpack.c.b16 %v7202, %v7198
        %v9267 = vpack.c.b16 %v7203, %v7199
        %v9268 = vpack.c.b16 %v7204, %v7200
        %v9269 = vpack.c.b16 %v7205, %v7201
        %v9270 = vpack.c.b16 %v7210, %v7206
        %v9271 = vpack.c.b16 %v7211, %v7207
        %v9272 = vpack.c.b16 %v7212, %v7208
        %v9273 = vpack.c.b16 %v7213, %v7209
        %v9274 = vpack.c.b16 %v7218, %v7214
        %v9275 = vpack.c.b16 %v7219, %v7215
        %v9276 = vpack.c.b16 %v7220, %v7216
        %v9277 = vpack.c.b16 %v7221, %v7217
        %v9278 = vpack.c.b16 %v7226, %v7222
        %v9279 = vpack.c.b16 %v7227, %v7223
        %v9280 = vpack.c.b16 %v7228, %v7224
        %v9281 = vpack.c.b16 %v7229, %v7225
        %v9282 = vpack.c.b16 %v7234, %v7230
        %v9283 = vpack.c.b16 %v7235, %v7231
        %v9284 = vpack.c.b16 %v7236, %v7232
        %v9285 = vpack.c.b16 %v7237, %v7233
        %v9286 = vpack.c.b16 %v7242, %v7238
        %v9287 = vpack.c.b16 %v7243, %v7239
        %v9288 = vpack.c.b16 %v7244, %v7240
        %v9289 = vpack.c.b16 %v7245, %v7241
        %v9290 = vpack.c.b16 %v7250, %v7246
        %v9291 = vpack.c.b16 %v7251, %v7247
        %v9292 = vpack.c.b16 %v7252, %v7248
        %v9293 = vpack.c.b16 %v7253, %v7249
        %v9294 = vpack.c.b16 %v7258, %v7254
        %v9295 = vpack.c.b16 %v7259, %v7255
        %v9296 = vpack.c.b16 %v7260, %v7256
        %v9297 = vpack.c.b16 %v7261, %v7257
        %v9298 = vpack.c.b16 %v7266, %v7262
        %v9299 = vpack.c.b16 %v7267, %v7263
        %v9300 = vpack.c.b16 %v7268, %v7264
        %v9301 = vpack.c.b16 %v7269, %v7265
        %v9302 = vpack.c.b16 %v7274, %v7270
        %v9303 = vpack.c.b16 %v7275, %v7271
        %v9304 = vpack.c.b16 %v7276, %v7272
        %v9305 = vpack.c.b16 %v7277, %v7273
        %v9306 = vpack.c.b16 %v7282, %v7278
        %v9307 = vpack.c.b16 %v7283, %v7279
        %v9308 = vpack.c.b16 %v7284, %v7280
        %v9309 = vpack.c.b16 %v7285, %v7281
        %v9310 = vpack.c.b16 %v7290, %v7286
        %v9311 = vpack.c.b16 %v7291, %v7287
        %v9312 = vpack.c.b16 %v7292, %v7288
        %v9313 = vpack.c.b16 %v7293, %v7289
        %v9314 = vpack.c.b16 %v7298, %v7294
        %v9315 = vpack.c.b16 %v7299, %v7295
        %v9316 = vpack.c.b16 %v7300, %v7296
        %v9317 = vpack.c.b16 %v7301, %v7297
        %v9318 = vpack.c.b16 %v7306, %v7302
        %v9319 = vpack.c.b16 %v7307, %v7303
        %v9320 = vpack.c.b16 %v7308, %v7304
        %v9321 = vpack.c.b16 %v7309, %v7305
        %v9322 = vpack.c.b16 %v7314, %v7310
        %v9323 = vpack.c.b16 %v7315, %v7311
        %v9324 = vpack.c.b16 %v7316, %v7312
        %v9325 = vpack.c.b16 %v7317, %v7313
        %v9326 = vpack.c.b16 %v7322, %v7318
        %v9327 = vpack.c.b16 %v7323, %v7319
        %v9328 = vpack.c.b16 %v7324, %v7320
        %v9329 = vpack.c.b16 %v7325, %v7321
        %v9330 = vpack.c.b16 %v7330, %v7326
        %v9331 = vpack.c.b16 %v7331, %v7327
        %v9332 = vpack.c.b16 %v7332, %v7328
        %v9333 = vpack.c.b16 %v7333, %v7329
        %v9334 = vpack.c.b16 %v7338, %v7334
        %v9335 = vpack.c.b16 %v7339, %v7335
        %v9336 = vpack.c.b16 %v7340, %v7336
        %v9337 = vpack.c.b16 %v7341, %v7337
        %v9338 = vpack.c.b16 %v7346, %v7342
        %v9339 = vpack.c.b16 %v7347, %v7343
        %v9340 = vpack.c.b16 %v7348, %v7344
        %v9341 = vpack.c.b16 %v7349, %v7345
        %v9342 = vpack.c.b16 %v7354, %v7350
        %v9343 = vpack.c.b16 %v7355, %v7351
        %v9344 = vpack.c.b16 %v7356, %v7352
        %v9345 = vpack.c.b16 %v7357, %v7353
        %v9346 = vpack.c.b16 %v7362, %v7358
        %v9347 = vpack.c.b16 %v7363, %v7359
        %v9348 = vpack.c.b16 %v7364, %v7360
        %v9349 = vpack.c.b16 %v7365, %v7361
        %v9350 = vpack.c.b16 %v7370, %v7366
        %v9351 = vpack.c.b16 %v7371, %v7367
        %v9352 = vpack.c.b16 %v7372, %v7368
        %v9353 = vpack.c.b16 %v7373, %v7369
        %v9354 = vpack.c.b16 %v7378, %v7374
        %v9355 = vpack.c.b16 %v7379, %v7375
        %v9356 = vpack.c.b16 %v7380, %v7376
        %v9357 = vpack.c.b16 %v7381, %v7377
        %v9358 = vpack.c.b16 %v7386, %v7382
        %v9359 = vpack.c.b16 %v7387, %v7383
        %v9360 = vpack.c.b16 %v7388, %v7384
        %v9361 = vpack.c.b16 %v7389, %v7385
        %v9362 = vpack.c.b16 %v7394, %v7390
        %v9363 = vpack.c.b16 %v7395, %v7391
        %v9364 = vpack.c.b16 %v7396, %v7392
        %v9365 = vpack.c.b16 %v7397, %v7393
        %v9366 = vpack.c.b16 %v7402, %v7398
        %v9367 = vpack.c.b16 %v7403, %v7399
        %v9368 = vpack.c.b16 %v7404, %v7400
        %v9369 = vpack.c.b16 %v7405, %v7401
        %v9370 = vpack.c.b16 %v7410, %v7406
        %v9371 = vpack.c.b16 %v7411, %v7407
        %v9372 = vpack.c.b16 %v7412, %v7408
        %v9373 = vpack.c.b16 %v7413, %v7409
        %v9374 = vpack.c.b16 %v7418, %v7414
        %v9375 = vpack.c.b16 %v7419, %v7415
        %v9376 = vpack.c.b16 %v7420, %v7416
        %v9377 = vpack.c.b16 %v7421, %v7417
        %v9378 = vpack.c.b16 %v7426, %v7422
        %v9379 = vpack.c.b16 %v7427, %v7423
        %v9380 = vpack.c.b16 %v7428, %v7424
        %v9381 = vpack.c.b16 %v7429, %v7425
        %v9382 = vpack.c.b16 %v7434, %v7430
        %v9383 = vpack.c.b16 %v7435, %v7431
        %v9384 = vpack.c.b16 %v7436, %v7432
        %v9385 = vpack.c.b16 %v7437, %v7433
        %v9386 = vpack.c.b16 %v7442, %v7438
        %v9387 = vpack.c.b16 %v7443, %v7439
        %v9388 = vpack.c.b16 %v7444, %v7440
        %v9389 = vpack.c.b16 %v7445, %v7441
        %v9390 = vpack.c.b16 %v7450, %v7446
        %v9391 = vpack.c.b16 %v7451, %v7447
        %v9392 = vpack.c.b16 %v7452, %v7448
        %v9393 = vpack.c.b16 %v7453, %v7449
        %v9394 = vpack.c.b16 %v7458, %v7454
        %v9395 = vpack.c.b16 %v7459, %v7455
        %v9396 = vpack.c.b16 %v7460, %v7456
        %v9397 = vpack.c.b16 %v7461, %v7457
        %v9398 = vpack.c.b16 %v7466, %v7462
        %v9399 = vpack.c.b16 %v7467, %v7463
        %v9400 = vpack.c.b16 %v7468, %v7464
        %v9401 = vpack.c.b16 %v7469, %v7465
        %v9402 = vpack.c.b16 %v7474, %v7470
        %v9403 = vpack.c.b16 %v7475, %v7471
        %v9404 = vpack.c.b16 %v7476, %v7472
        %v9405 = vpack.c.b16 %v7477, %v7473
        %v9406 = vpack.c.b16 %v7482, %v7478
        %v9407 = vpack.c.b16 %v7483, %v7479
        %v9408 = vpack.c.b16 %v7484, %v7480
        %v9409 = vpack.c.b16 %v7485, %v7481
        %v9410 = vpack.c.b16 %v7490, %v7486
        %v9411 = vpack.c.b16 %v7491, %v7487
        %v9412 = vpack.c.b16 %v7492, %v7488
        %v9413 = vpack.c.b16 %v7493, %v7489
        %v9414 = vpack.c.b16 %v7498, %v7494
        %v9415 = vpack.c.b16 %v7499, %v7495
        %v9416 = vpack.c.b16 %v7500, %v7496
        %v9417 = vpack.c.b16 %v7501, %v7497
        %v9418 = vpack.c.b16 %v7506, %v7502
        %v9419 = vpack.c.b16 %v7507, %v7503
        %v9420 = vpack.c.b16 %v7508, %v7504
        %v9421 = vpack.c.b16 %v7509, %v7505
        %v9422 = vpack.c.b16 %v7514, %v7510
        %v9423 = vpack.c.b16 %v7515, %v7511
        %v9424 = vpack.c.b16 %v7516, %v7512
        %v9425 = vpack.c.b16 %v7517, %v7513
        %v9426 = vpack.c.b16 %v7522, %v7518
        %v9427 = vpack.c.b16 %v7523, %v7519
        %v9428 = vpack.c.b16 %v7524, %v7520
        %v9429 = vpack.c.b16 %v7525, %v7521
        %v9430 = vpack.c.b16 %v7530, %v7526
        %v9431 = vpack.c.b16 %v7531, %v7527
        %v9432 = vpack.c.b16 %v7532, %v7528
        %v9433 = vpack.c.b16 %v7533, %v7529
        %v9434 = vpack.c.b16 %v7538, %v7534
        %v9435 = vpack.c.b16 %v7539, %v7535
        %v9436 = vpack.c.b16 %v7540, %v7536
        %v9437 = vpack.c.b16 %v7541, %v7537
        %v9438 = vpack.c.b16 %v7546, %v7542
        %v9439 = vpack.c.b16 %v7547, %v7543
        %v9440 = vpack.c.b16 %v7548, %v7544
        %v9441 = vpack.c.b16 %v7549, %v7545
        %v9442 = vpack.c.b16 %v7554, %v7550
        %v9443 = vpack.c.b16 %v7555, %v7551
        %v9444 = vpack.c.b16 %v7556, %v7552
        %v9445 = vpack.c.b16 %v7557, %v7553
        %v9446 = vpack.c.b16 %v7562, %v7558
        %v9447 = vpack.c.b16 %v7563, %v7559
        %v9448 = vpack.c.b16 %v7564, %v7560
        %v9449 = vpack.c.b16 %v7565, %v7561
        %v9450 = vpack.c.b16 %v7570, %v7566
        %v9451 = vpack.c.b16 %v7571, %v7567
        %v9452 = vpack.c.b16 %v7572, %v7568
        %v9453 = vpack.c.b16 %v7573, %v7569
        %v9454 = vpack.c.b16 %v7578, %v7574
        %v9455 = vpack.c.b16 %v7579, %v7575
        %v9456 = vpack.c.b16 %v7580, %v7576
        %v9457 = vpack.c.b16 %v7581, %v7577
        %v9458 = vpack.c.b16 %v7586, %v7582
        %v9459 = vpack.c.b16 %v7587, %v7583
        %v9460 = vpack.c.b16 %v7588, %v7584
        %v9461 = vpack.c.b16 %v7589, %v7585
        %v9462 = vpack.c.b16 %v7594, %v7590
        %v9463 = vpack.c.b16 %v7595, %v7591
        %v9464 = vpack.c.b16 %v7596, %v7592
        %v9465 = vpack.c.b16 %v7597, %v7593
        %v9466 = vpack.c.b16 %v7602, %v7598
        %v9467 = vpack.c.b16 %v7603, %v7599
        %v9468 = vpack.c.b16 %v7604, %v7600
        %v9469 = vpack.c.b16 %v7605, %v7601
        %v9470 = vpack.c.b16 %v7610, %v7606
        %v9471 = vpack.c.b16 %v7611, %v7607
        %v9472 = vpack.c.b16 %v7612, %v7608
        %v9473 = vpack.c.b16 %v7613, %v7609
        %v9474 = vpack.c.b16 %v7618, %v7614
        %v9475 = vpack.c.b16 %v7619, %v7615
        %v9476 = vpack.c.b16 %v7620, %v7616
        %v9477 = vpack.c.b16 %v7621, %v7617
        %v9478 = vpack.c.b16 %v7626, %v7622
        %v9479 = vpack.c.b16 %v7627, %v7623
        %v9480 = vpack.c.b16 %v7628, %v7624
        %v9481 = vpack.c.b16 %v7629, %v7625
        %v9482 = vpack.c.b16 %v7634, %v7630
        %v9483 = vpack.c.b16 %v7635, %v7631
        %v9484 = vpack.c.b16 %v7636, %v7632
        %v9485 = vpack.c.b16 %v7637, %v7633
        %v9486 = vpack.c.b16 %v7642, %v7638
        %v9487 = vpack.c.b16 %v7643, %v7639
        %v9488 = vpack.c.b16 %v7644, %v7640
        %v9489 = vpack.c.b16 %v7645, %v7641
        %v9490 = vpack.c.b16 %v7650, %v7646
        %v9491 = vpack.c.b16 %v7651, %v7647
        %v9492 = vpack.c.b16 %v7652, %v7648
        %v9493 = vpack.c.b16 %v7653, %v7649
        %v9494 = vpack.c.b16 %v7658, %v7654
        %v9495 = vpack.c.b16 %v7659, %v7655
        %v9496 = vpack.c.b16 %v7660, %v7656
        %v9497 = vpack.c.b16 %v7661, %v7657
        %v9498 = vpack.c.b16 %v7666, %v7662
        %v9499 = vpack.c.b16 %v7667, %v7663
        %v9500 = vpack.c.b16 %v7668, %v7664
        %v9501 = vpack.c.b16 %v7669, %v7665
        %v9502 = vpack.c.b16 %v7674, %v7670
        %v9503 = vpack.c.b16 %v7675, %v7671
        %v9504 = vpack.c.b16 %v7676, %v7672
        %v9505 = vpack.c.b16 %v7677, %v7673
        %v9506 = vpack.c.b16 %v7682, %v7678
        %v9507 = vpack.c.b16 %v7683, %v7679
        %v9508 = vpack.c.b16 %v7684, %v7680
        %v9509 = vpack.c.b16 %v7685, %v7681
        %v9510 = vpack.c.b16 %v7690, %v7686
        %v9511 = vpack.c.b16 %v7691, %v7687
        %v9512 = vpack.c.b16 %v7692, %v7688
        %v9513 = vpack.c.b16 %v7693, %v7689
        %v9514 = vpack.c.b16 %v7698, %v7694
        %v9515 = vpack.c.b16 %v7699, %v7695
        %v9516 = vpack.c.b16 %v7700, %v7696
        %v9517 = vpack.c.b16 %v7701, %v7697
        %v9518 = vpack.c.b16 %v7706, %v7702
        %v9519 = vpack.c.b16 %v7707, %v7703
        %v9520 = vpack.c.b16 %v7708, %v7704
        %v9521 = vpack.c.b16 %v7709, %v7705
        %v9522 = vpack.c.b16 %v7714, %v7710
        %v9523 = vpack.c.b16 %v7715, %v7711
        %v9524 = vpack.c.b16 %v7716, %v7712
        %v9525 = vpack.c.b16 %v7717, %v7713
        %v9526 = vpack.c.b16 %v7722, %v7718
        %v9527 = vpack.c.b16 %v7723, %v7719
        %v9528 = vpack.c.b16 %v7724, %v7720
        %v9529 = vpack.c.b16 %v7725, %v7721
        %v9530 = vpack.c.b16 %v7730, %v7726
        %v9531 = vpack.c.b16 %v7731, %v7727
        %v9532 = vpack.c.b16 %v7732, %v7728
        %v9533 = vpack.c.b16 %v7733, %v7729
        %v9534 = vpack.c.b16 %v7738, %v7734
        %v9535 = vpack.c.b16 %v7739, %v7735
        %v9536 = vpack.c.b16 %v7740, %v7736
        %v9537 = vpack.c.b16 %v7741, %v7737
        %v9538 = vpack.c.b16 %v7746, %v7742
        %v9539 = vpack.c.b16 %v7747, %v7743
        %v9540 = vpack.c.b16 %v7748, %v7744
        %v9541 = vpack.c.b16 %v7749, %v7745
        %v9542 = vpack.c.b16 %v7754, %v7750
        %v9543 = vpack.c.b16 %v7755, %v7751
        %v9544 = vpack.c.b16 %v7756, %v7752
        %v9545 = vpack.c.b16 %v7757, %v7753
        %v9546 = vpack.c.b16 %v7762, %v7758
        %v9547 = vpack.c.b16 %v7763, %v7759
        %v9548 = vpack.c.b16 %v7764, %v7760
        %v9549 = vpack.c.b16 %v7765, %v7761
        %v9550 = vpack.c.b16 %v7770, %v7766
        %v9551 = vpack.c.b16 %v7771, %v7767
        %v9552 = vpack.c.b16 %v7772, %v7768
        %v9553 = vpack.c.b16 %v7773, %v7769
        %v9554 = vpack.c.b16 %v7778, %v7774
        %v9555 = vpack.c.b16 %v7779, %v7775
        %v9556 = vpack.c.b16 %v7780, %v7776
        %v9557 = vpack.c.b16 %v7781, %v7777
        %v9558 = vpack.c.b16 %v7786, %v7782
        %v9559 = vpack.c.b16 %v7787, %v7783
        %v9560 = vpack.c.b16 %v7788, %v7784
        %v9561 = vpack.c.b16 %v7789, %v7785
        %v9562 = vpack.c.b16 %v7794, %v7790
        %v9563 = vpack.c.b16 %v7795, %v7791
        %v9564 = vpack.c.b16 %v7796, %v7792
        %v9565 = vpack.c.b16 %v7797, %v7793
        %v9566 = vpack.c.b16 %v7802, %v7798
        %v9567 = vpack.c.b16 %v7803, %v7799
        %v9568 = vpack.c.b16 %v7804, %v7800
        %v9569 = vpack.c.b16 %v7805, %v7801
        %v9570 = vpack.c.b16 %v7810, %v7806
        %v9571 = vpack.c.b16 %v7811, %v7807
        %v9572 = vpack.c.b16 %v7812, %v7808
        %v9573 = vpack.c.b16 %v7813, %v7809
        %11334 = vmatprep.subr.bf16.mxu0 %v7815
        %11335 = vmatpush1.bf16.msra.mxu0 %v7814
        %11336 = vmatprep.subr.bf16.mxu0 %v7819
        %11337 = vmatpush1.bf16.msra.mxu0 %v7818
        %11338 = vmatprep.subr.bf16.mxu0 %v7823
        %11339 = vmatpush1.bf16.msra.mxu0 %v7822
        %11340 = vmatprep.subr.bf16.mxu0 %v7827
        %11341 = vmatpush1.bf16.msra.mxu0 %v7826
        %11342 = vmatprep.subr.bf16.mxu0 %v7831
        %11343 = vmatpush1.bf16.msra.mxu0 %v7830
        %11344 = vmatprep.subr.bf16.mxu0 %v7835
        %11345 = vmatpush1.bf16.msra.mxu0 %v7834
        %11346 = vmatprep.subr.bf16.mxu0 %v7839
        %11347 = vmatpush1.bf16.msra.mxu0 %v7838
        %11348 = vmatprep.subr.bf16.mxu0 %v7843
        %11349 = vmatpush1.bf16.msra.mxu0 %v7842
        %11350 = vmatprep.subr.bf16.mxu0 %v7847
        %11351 = vmatpush1.bf16.msra.mxu0 %v7846
        %11352 = vmatprep.subr.bf16.mxu0 %v7851
        %11353 = vmatpush1.bf16.msra.mxu0 %v7850
        %11354 = vmatprep.subr.bf16.mxu0 %v7855
        %11355 = vmatpush1.bf16.msra.mxu0 %v7854
        %11356 = vmatprep.subr.bf16.mxu0 %v7859
        %11357 = vmatpush1.bf16.msra.mxu0 %v7858
        %11358 = vmatprep.subr.bf16.mxu0 %v7863
        %11359 = vmatpush1.bf16.msra.mxu0 %v7862
        %11360 = vmatprep.subr.bf16.mxu0 %v7867
        %11361 = vmatpush1.bf16.msra.mxu0 %v7866
        %11362 = vmatprep.subr.bf16.mxu0 %v7871
        %11363 = vmatpush1.bf16.msra.mxu0 %v7870
        %11364 = vmatprep.subr.bf16.mxu0 %v7875
        %11365 = vmatpush1.bf16.msra.mxu0 %v7874
        %11366 = vmatprep.mubr.bf16.mxu0 %v2174
        %11367 = vmatmul.mubr.bf16.gmra.mrb[0].mxu0 %v2160
        %v11368 = vpop.f32.mrb[0].mxu0
        %v11369 = vadd.f32 0.0, %v11368
        %v11370 = vpop.f32.mrb[0].mxu0
        %v11371 = vadd.f32 0.0, %v11370
        %v11372 = vpop.f32.mrb[0].mxu0
        %v11373 = vpop.f32.mrb[0].mxu0
        %11374 = vdwg.mxu0
        %11375 = vmatprep.subr.bf16.mxu0 %v7879
        %11376 = vmatpush1.bf16.msra.mxu0 %v7878
        %11377 = vmatprep.subr.bf16.mxu0 %v7883
        %11378 = vmatpush1.bf16.msra.mxu0 %v7882
        %11379 = vmatprep.subr.bf16.mxu0 %v7887
        %11380 = vmatpush1.bf16.msra.mxu0 %v7886
        %11381 = vmatprep.subr.bf16.mxu0 %v7891
        %11382 = vmatpush1.bf16.msra.mxu0 %v7890
        %11383 = vmatprep.subr.bf16.mxu0 %v7895
        %11384 = vmatpush1.bf16.msra.mxu0 %v7894
        %11385 = vmatprep.subr.bf16.mxu0 %v7899
        %11386 = vmatpush1.bf16.msra.mxu0 %v7898
        %11387 = vmatprep.subr.bf16.mxu0 %v7903
        %11388 = vmatpush1.bf16.msra.mxu0 %v7902
        %11389 = vmatprep.subr.bf16.mxu0 %v7907
        %11390 = vmatpush1.bf16.msra.mxu0 %v7906
        %11391 = vmatprep.subr.bf16.mxu0 %v7911
        %11392 = vmatpush1.bf16.msra.mxu0 %v7910
        %11393 = vmatprep.subr.bf16.mxu0 %v7915
        %11394 = vmatpush1.bf16.msra.mxu0 %v7914
        %11395 = vmatprep.subr.bf16.mxu0 %v7919
        %11396 = vmatpush1.bf16.msra.mxu0 %v7918
        %11397 = vmatprep.subr.bf16.mxu0 %v7923
        %11398 = vmatpush1.bf16.msra.mxu0 %v7922
        %11399 = vmatprep.subr.bf16.mxu0 %v7927
        %11400 = vmatpush1.bf16.msra.mxu0 %v7926
        %11401 = vmatprep.subr.bf16.mxu0 %v7931
        %11402 = vmatpush1.bf16.msra.mxu0 %v7930
        %11403 = vmatprep.subr.bf16.mxu0 %v7935
        %11404 = vmatpush1.bf16.msra.mxu0 %v7934
        %11405 = vmatprep.subr.bf16.mxu0 %v7939
        %11406 = vmatpush1.bf16.msra.mxu0 %v7938
        %11407 = vmatprep.mubr.bf16.mxu0 %v2184
        %11408 = vmatmul.mubr.bf16.gmra.mrb[0].mxu0 %v2182
        %v11409 = vpop.f32.mrb[0].mxu0
        %v11410 = vadd.f32 %v11369, %v11409
        %v11411 = vpop.f32.mrb[0].mxu0
        %v11412 = vadd.f32 %v11371, %v11411
        %v11413 = vpop.f32.mrb[0].mxu0
        %v11414 = vpop.f32.mrb[0].mxu0
        %11415 = vdwg.mxu0
        %11416 = vmatprep.subr.bf16.mxu0 %v7943
        %11417 = vmatpush1.bf16.msra.mxu0 %v7942
        %11418 = vmatprep.subr.bf16.mxu0 %v7947
        %11419 = vmatpush1.bf16.msra.mxu0 %v7946
        %11420 = vmatprep.subr.bf16.mxu0 %v7951
        %11421 = vmatpush1.bf16.msra.mxu0 %v7950
        %11422 = vmatprep.subr.bf16.mxu0 %v7955
        %11423 = vmatpush1.bf16.msra.mxu0 %v7954
        %11424 = vmatprep.subr.bf16.mxu0 %v7959
        %11425 = vmatpush1.bf16.msra.mxu0 %v7958
        %11426 = vmatprep.subr.bf16.mxu0 %v7963
        %11427 = vmatpush1.bf16.msra.mxu0 %v7962
        %11428 = vmatprep.subr.bf16.mxu0 %v7967
        %11429 = vmatpush1.bf16.msra.mxu0 %v7966
        %11430 = vmatprep.subr.bf16.mxu0 %v7971
        %11431 = vmatpush1.bf16.msra.mxu0 %v7970
        %11432 = vmatprep.subr.bf16.mxu0 %v7975
        %11433 = vmatpush1.bf16.msra.mxu0 %v7974
        %11434 = vmatprep.subr.bf16.mxu0 %v7979
        %11435 = vmatpush1.bf16.msra.mxu0 %v7978
        %11436 = vmatprep.subr.bf16.mxu0 %v7983
        %11437 = vmatpush1.bf16.msra.mxu0 %v7982
        %11438 = vmatprep.subr.bf16.mxu0 %v7987
        %11439 = vmatpush1.bf16.msra.mxu0 %v7986
        %11440 = vmatprep.subr.bf16.mxu0 %v7991
        %11441 = vmatpush1.bf16.msra.mxu0 %v7990
        %11442 = vmatprep.subr.bf16.mxu0 %v7995
        %11443 = vmatpush1.bf16.msra.mxu0 %v7994
        %11444 = vmatprep.subr.bf16.mxu0 %v7999
        %11445 = vmatpush1.bf16.msra.mxu0 %v7998
        %11446 = vmatprep.subr.bf16.mxu0 %v8003
        %11447 = vmatpush1.bf16.msra.mxu0 %v8002
        %11448 = vmatprep.mubr.bf16.mxu0 %v2181
        %11449 = vmatmul.mubr.bf16.gmra.mrb[0].mxu0 %v2167
        %v11450 = vpop.f32.mrb[0].mxu0
        %v11451 = vadd.f32 %v11410, %v11450
        %v11452 = vpop.f32.mrb[0].mxu0
        %v11453 = vadd.f32 %v11412, %v11452
        %v11454 = vpop.f32.mrb[0].mxu0
        %v11455 = vpop.f32.mrb[0].mxu0
        %11456 = vdwg.mxu0
        %11457 = vmatprep.subr.bf16.mxu0 %v8007
        %11458 = vmatpush1.bf16.msra.mxu0 %v8006
        %11459 = vmatprep.subr.bf16.mxu0 %v8011
        %11460 = vmatpush1.bf16.msra.mxu0 %v8010
        %11461 = vmatprep.subr.bf16.mxu0 %v8015
        %11462 = vmatpush1.bf16.msra.mxu0 %v8014
        %11463 = vmatprep.subr.bf16.mxu0 %v8019
        %11464 = vmatpush1.bf16.msra.mxu0 %v8018
        %11465 = vmatprep.subr.bf16.mxu0 %v8023
        %11466 = vmatpush1.bf16.msra.mxu0 %v8022
        %11467 = vmatprep.subr.bf16.mxu0 %v8027
        %11468 = vmatpush1.bf16.msra.mxu0 %v8026
        %11469 = vmatprep.subr.bf16.mxu0 %v8031
        %11470 = vmatpush1.bf16.msra.mxu0 %v8030
        %11471 = vmatprep.subr.bf16.mxu0 %v8035
        %11472 = vmatpush1.bf16.msra.mxu0 %v8034
        %11473 = vmatprep.subr.bf16.mxu0 %v8039
        %11474 = vmatpush1.bf16.msra.mxu0 %v8038
        %11475 = vmatprep.subr.bf16.mxu0 %v8043
        %11476 = vmatpush1.bf16.msra.mxu0 %v8042
        %11477 = vmatprep.subr.bf16.mxu0 %v8047
        %11478 = vmatpush1.bf16.msra.mxu0 %v8046
        %11479 = vmatprep.subr.bf16.mxu0 %v8051
        %11480 = vmatpush1.bf16.msra.mxu0 %v8050
        %11481 = vmatprep.subr.bf16.mxu0 %v8055
        %11482 = vmatpush1.bf16.msra.mxu0 %v8054
        %11483 = vmatprep.subr.bf16.mxu0 %v8059
        %11484 = vmatpush1.bf16.msra.mxu0 %v8058
        %11485 = vmatprep.subr.bf16.mxu0 %v8063
        %11486 = vmatpush1.bf16.msra.mxu0 %v8062
        %11487 = vmatprep.subr.bf16.mxu0 %v8067
        %11488 = vmatpush1.bf16.msra.mxu0 %v8066
        %11489 = vmatprep.mubr.bf16.mxu0 %v2185
        %11490 = vmatmul.mubr.bf16.gmra.mrb[0].mxu0 %v2183
        %v11491 = vpop.f32.mrb[0].mxu0
        %v11492 = vadd.f32 %v11451, %v11491
        %v11493 = vpop.f32.mrb[0].mxu0
        %v11494 = vadd.f32 %v11453, %v11493
        %v11495 = vpop.f32.mrb[0].mxu0
        %v11496 = vpop.f32.mrb[0].mxu0
        %11497 = vdwg.mxu0
        %11498 = vmatprep.subr.bf16.mxu0 %v8071
        %11499 = vmatpush1.bf16.msra.mxu0 %v8070
        %11500 = vmatprep.subr.bf16.mxu0 %v8075
        %11501 = vmatpush1.bf16.msra.mxu0 %v8074
        %11502 = vmatprep.subr.bf16.mxu0 %v8079
        %11503 = vmatpush1.bf16.msra.mxu0 %v8078
        %11504 = vmatprep.subr.bf16.mxu0 %v8083
        %11505 = vmatpush1.bf16.msra.mxu0 %v8082
        %11506 = vmatprep.subr.bf16.mxu0 %v8087
        %11507 = vmatpush1.bf16.msra.mxu0 %v8086
        %11508 = vmatprep.subr.bf16.mxu0 %v8091
        %11509 = vmatpush1.bf16.msra.mxu0 %v8090
        %11510 = vmatprep.subr.bf16.mxu0 %v8095
        %11511 = vmatpush1.bf16.msra.mxu0 %v8094
        %11512 = vmatprep.subr.bf16.mxu0 %v8099
        %11513 = vmatpush1.bf16.msra.mxu0 %v8098
        %11514 = vmatprep.subr.bf16.mxu0 %v8103
        %11515 = vmatpush1.bf16.msra.mxu0 %v8102
        %11516 = vmatprep.subr.bf16.mxu0 %v8107
        %11517 = vmatpush1.bf16.msra.mxu0 %v8106
        %11518 = vmatprep.subr.bf16.mxu0 %v8111
        %11519 = vmatpush1.bf16.msra.mxu0 %v8110
        %11520 = vmatprep.subr.bf16.mxu0 %v8115
        %11521 = vmatpush1.bf16.msra.mxu0 %v8114
        %11522 = vmatprep.subr.bf16.mxu0 %v8119
        %11523 = vmatpush1.bf16.msra.mxu0 %v8118
        %11524 = vmatprep.subr.bf16.mxu0 %v8123
        %11525 = vmatpush1.bf16.msra.mxu0 %v8122
        %11526 = vmatprep.subr.bf16.mxu0 %v8127
        %11527 = vmatpush1.bf16.msra.mxu0 %v8126
        %11528 = vmatprep.subr.bf16.mxu0 %v8131
        %11529 = vmatpush1.bf16.msra.mxu0 %v8130
        %11530 = vmatprep.mubr.bf16.mxu0 %v2223
        %11531 = vmatmul.mubr.bf16.gmra.mrb[0].mxu0 %v2209
        %v11532 = vpop.f32.mrb[0].mxu0
        %v11533 = vadd.f32 %v11492, %v11532
        %v11534 = vpop.f32.mrb[0].mxu0
        %v11535 = vadd.f32 %v11494, %v11534
        %v11536 = vpop.f32.mrb[0].mxu0
        %v11537 = vpop.f32.mrb[0].mxu0
        %11538 = vdwg.mxu0
        %11539 = vmatprep.subr.bf16.mxu0 %v8135
        %11540 = vmatpush1.bf16.msra.mxu0 %v8134
        %11541 = vmatprep.subr.bf16.mxu0 %v8139
        %11542 = vmatpush1.bf16.msra.mxu0 %v8138
        %11543 = vmatprep.subr.bf16.mxu0 %v8143
        %11544 = vmatpush1.bf16.msra.mxu0 %v8142
        %11545 = vmatprep.subr.bf16.mxu0 %v8147
        %11546 = vmatpush1.bf16.msra.mxu0 %v8146
        %11547 = vmatprep.subr.bf16.mxu0 %v8151
        %11548 = vmatpush1.bf16.msra.mxu0 %v8150
        %11549 = vmatprep.subr.bf16.mxu0 %v8155
        %11550 = vmatpush1.bf16.msra.mxu0 %v8154
        %11551 = vmatprep.subr.bf16.mxu0 %v8159
        %11552 = vmatpush1.bf16.msra.mxu0 %v8158
        %11553 = vmatprep.subr.bf16.mxu0 %v8163
        %11554 = vmatpush1.bf16.msra.mxu0 %v8162
        %11555 = vmatprep.subr.bf16.mxu0 %v8167
        %11556 = vmatpush1.bf16.msra.mxu0 %v8166
        %11557 = vmatprep.subr.bf16.mxu0 %v8171
        %11558 = vmatpush1.bf16.msra.mxu0 %v8170
        %11559 = vmatprep.subr.bf16.mxu0 %v8175
        %11560 = vmatpush1.bf16.msra.mxu0 %v8174
        %11561 = vmatprep.subr.bf16.mxu0 %v8179
        %11562 = vmatpush1.bf16.msra.mxu0 %v8178
        %11563 = vmatprep.subr.bf16.mxu0 %v8183
        %11564 = vmatpush1.bf16.msra.mxu0 %v8182
        %11565 = vmatprep.subr.bf16.mxu0 %v8187
        %11566 = vmatpush1.bf16.msra.mxu0 %v8186
        %11567 = vmatprep.subr.bf16.mxu0 %v8191
        %11568 = vmatpush1.bf16.msra.mxu0 %v8190
        %11569 = vmatprep.subr.bf16.mxu0 %v8195
        %11570 = vmatpush1.bf16.msra.mxu0 %v8194
        %11571 = vmatprep.mubr.bf16.mxu0 %v2233
        %11572 = vmatmul.mubr.bf16.gmra.mrb[0].mxu0 %v2231
        %v11573 = vpop.f32.mrb[0].mxu0
        %v11574 = vadd.f32 %v11533, %v11573
        %v11575 = vpop.f32.mrb[0].mxu0
        %v11576 = vadd.f32 %v11535, %v11575
        %v11577 = vpop.f32.mrb[0].mxu0
        %v11578 = vpop.f32.mrb[0].mxu0
        %11579 = vdwg.mxu0
        %11580 = vmatprep.subr.bf16.mxu0 %v8199
        %11581 = vmatpush1.bf16.msra.mxu0 %v8198
        %11582 = vmatprep.subr.bf16.mxu0 %v8203
        %11583 = vmatpush1.bf16.msra.mxu0 %v8202
        %11584 = vmatprep.subr.bf16.mxu0 %v8207
        %11585 = vmatpush1.bf16.msra.mxu0 %v8206
        %11586 = vmatprep.subr.bf16.mxu0 %v8211
        %11587 = vmatpush1.bf16.msra.mxu0 %v8210
        %11588 = vmatprep.subr.bf16.mxu0 %v8215
        %11589 = vmatpush1.bf16.msra.mxu0 %v8214
        %11590 = vmatprep.subr.bf16.mxu0 %v8219
        %11591 = vmatpush1.bf16.msra.mxu0 %v8218
        %11592 = vmatprep.subr.bf16.mxu0 %v8223
        %11593 = vmatpush1.bf16.msra.mxu0 %v8222
        %11594 = vmatprep.subr.bf16.mxu0 %v8227
        %11595 = vmatpush1.bf16.msra.mxu0 %v8226
        %11596 = vmatprep.subr.bf16.mxu0 %v8231
        %11597 = vmatpush1.bf16.msra.mxu0 %v8230
        %11598 = vmatprep.subr.bf16.mxu0 %v8235
        %11599 = vmatpush1.bf16.msra.mxu0 %v8234
        %11600 = vmatprep.subr.bf16.mxu0 %v8239
        %11601 = vmatpush1.bf16.msra.mxu0 %v8238
        %11602 = vmatprep.subr.bf16.mxu0 %v8243
        %11603 = vmatpush1.bf16.msra.mxu0 %v8242
        %11604 = vmatprep.subr.bf16.mxu0 %v8247
        %11605 = vmatpush1.bf16.msra.mxu0 %v8246
        %11606 = vmatprep.subr.bf16.mxu0 %v8251
        %11607 = vmatpush1.bf16.msra.mxu0 %v8250
        %11608 = vmatprep.subr.bf16.mxu0 %v8255
        %11609 = vmatpush1.bf16.msra.mxu0 %v8254
        %11610 = vmatprep.subr.bf16.mxu0 %v8259
        %11611 = vmatpush1.bf16.msra.mxu0 %v8258
        %11612 = vmatprep.mubr.bf16.mxu0 %v2230
        %11613 = vmatmul.mubr.bf16.gmra.mrb[0].mxu0 %v2216
        %v11614 = vpop.f32.mrb[0].mxu0
        %v11615 = vadd.f32 %v11574, %v11614
        %v11616 = vpop.f32.mrb[0].mxu0
        %v11617 = vadd.f32 %v11576, %v11616
        %v11618 = vpop.f32.mrb[0].mxu0
        %v11619 = vpop.f32.mrb[0].mxu0
        %11620 = vdwg.mxu0
        %11621 = vmatprep.subr.bf16.mxu0 %v8263
        %11622 = vmatpush1.bf16.msra.mxu0 %v8262
        %11623 = vmatprep.subr.bf16.mxu0 %v8267
        %11624 = vmatpush1.bf16.msra.mxu0 %v8266
        %11625 = vmatprep.subr.bf16.mxu0 %v8271
        %11626 = vmatpush1.bf16.msra.mxu0 %v8270
        %11627 = vmatprep.subr.bf16.mxu0 %v8275
        %11628 = vmatpush1.bf16.msra.mxu0 %v8274
        %11629 = vmatprep.subr.bf16.mxu0 %v8279
        %11630 = vmatpush1.bf16.msra.mxu0 %v8278
        %11631 = vmatprep.subr.bf16.mxu0 %v8283
        %11632 = vmatpush1.bf16.msra.mxu0 %v8282
        %11633 = vmatprep.subr.bf16.mxu0 %v8287
        %11634 = vmatpush1.bf16.msra.mxu0 %v8286
        %11635 = vmatprep.subr.bf16.mxu0 %v8291
        %11636 = vmatpush1.bf16.msra.mxu0 %v8290
        %11637 = vmatprep.subr.bf16.mxu0 %v8295
        %11638 = vmatpush1.bf16.msra.mxu0 %v8294
        %11639 = vmatprep.subr.bf16.mxu0 %v8299
        %11640 = vmatpush1.bf16.msra.mxu0 %v8298
        %11641 = vmatprep.subr.bf16.mxu0 %v8303
        %11642 = vmatpush1.bf16.msra.mxu0 %v8302
        %11643 = vmatprep.subr.bf16.mxu0 %v8307
        %11644 = vmatpush1.bf16.msra.mxu0 %v8306
        %11645 = vmatprep.subr.bf16.mxu0 %v8311
        %11646 = vmatpush1.bf16.msra.mxu0 %v8310
        %11647 = vmatprep.subr.bf16.mxu0 %v8315
        %11648 = vmatpush1.bf16.msra.mxu0 %v8314
        %11649 = vmatprep.subr.bf16.mxu0 %v8319
        %11650 = vmatpush1.bf16.msra.mxu0 %v8318
        %11651 = vmatprep.subr.bf16.mxu0 %v8323
        %11652 = vmatpush1.bf16.msra.mxu0 %v8322
        %11653 = vmatprep.mubr.bf16.mxu0 %v2234
        %11654 = vmatmul.mubr.bf16.gmra.mrb[0].mxu0 %v2232
        %v11655 = vpop.f32.mrb[0].mxu0
        %v11656 = vadd.f32 %v11615, %v11655
        %v11657 = vpop.f32.mrb[0].mxu0
        %v11658 = vadd.f32 %v11617, %v11657
        %v11659 = vpop.f32.mrb[0].mxu0
        %v11660 = vpop.f32.mrb[0].mxu0
        %11661 = vdwg.mxu0
        %11662 = vmatprep.subr.bf16.mxu0 %v8327
        %11663 = vmatpush1.bf16.msra.mxu0 %v8326
        %11664 = vmatprep.subr.bf16.mxu0 %v8331
        %11665 = vmatpush1.bf16.msra.mxu0 %v8330
        %11666 = vmatprep.subr.bf16.mxu0 %v8335
        %11667 = vmatpush1.bf16.msra.mxu0 %v8334
        %11668 = vmatprep.subr.bf16.mxu0 %v8339
        %11669 = vmatpush1.bf16.msra.mxu0 %v8338
        %11670 = vmatprep.subr.bf16.mxu0 %v8343
        %11671 = vmatpush1.bf16.msra.mxu0 %v8342
        %11672 = vmatprep.subr.bf16.mxu0 %v8347
        %11673 = vmatpush1.bf16.msra.mxu0 %v8346
        %11674 = vmatprep.subr.bf16.mxu0 %v8351
        %11675 = vmatpush1.bf16.msra.mxu0 %v8350
        %11676 = vmatprep.subr.bf16.mxu0 %v8355
        %11677 = vmatpush1.bf16.msra.mxu0 %v8354
        %11678 = vmatprep.subr.bf16.mxu0 %v8359
        %11679 = vmatpush1.bf16.msra.mxu0 %v8358
        %11680 = vmatprep.subr.bf16.mxu0 %v8363
        %11681 = vmatpush1.bf16.msra.mxu0 %v8362
        %11682 = vmatprep.subr.bf16.mxu0 %v8367
        %11683 = vmatpush1.bf16.msra.mxu0 %v8366
        %11684 = vmatprep.subr.bf16.mxu0 %v8371
        %11685 = vmatpush1.bf16.msra.mxu0 %v8370
        %11686 = vmatprep.subr.bf16.mxu0 %v8375
        %11687 = vmatpush1.bf16.msra.mxu0 %v8374
        %11688 = vmatprep.subr.bf16.mxu0 %v8379
        %11689 = vmatpush1.bf16.msra.mxu0 %v8378
        %11690 = vmatprep.subr.bf16.mxu0 %v8383
        %11691 = vmatpush1.bf16.msra.mxu0 %v8382
        %11692 = vmatprep.subr.bf16.mxu0 %v8387
        %11693 = vmatpush1.bf16.msra.mxu0 %v8386
        %11694 = vmatprep.mubr.bf16.mxu0 %v2272
        %11695 = vmatmul.mubr.bf16.gmra.mrb[0].mxu0 %v2258
        %v11696 = vpop.f32.mrb[0].mxu0
        %v11697 = vadd.f32 %v11656, %v11696
        %v11698 = vpop.f32.mrb[0].mxu0
        %v11699 = vadd.f32 %v11658, %v11698
        %v11700 = vpop.f32.mrb[0].mxu0
        %v11701 = vpop.f32.mrb[0].mxu0
        %11702 = vdwg.mxu0
        %11703 = vmatprep.subr.bf16.mxu0 %v8391
        %11704 = vmatpush1.bf16.msra.mxu0 %v8390
        %11705 = vmatprep.subr.bf16.mxu0 %v8395
        %11706 = vmatpush1.bf16.msra.mxu0 %v8394
        %11707 = vmatprep.subr.bf16.mxu0 %v8399
        %11708 = vmatpush1.bf16.msra.mxu0 %v8398
        %11709 = vmatprep.subr.bf16.mxu0 %v8403
        %11710 = vmatpush1.bf16.msra.mxu0 %v8402
        %11711 = vmatprep.subr.bf16.mxu0 %v8407
        %11712 = vmatpush1.bf16.msra.mxu0 %v8406
        %11713 = vmatprep.subr.bf16.mxu0 %v8411
        %11714 = vmatpush1.bf16.msra.mxu0 %v8410
        %11715 = vmatprep.subr.bf16.mxu0 %v8415
        %11716 = vmatpush1.bf16.msra.mxu0 %v8414
        %11717 = vmatprep.subr.bf16.mxu0 %v8419
        %11718 = vmatpush1.bf16.msra.mxu0 %v8418
        %11719 = vmatprep.subr.bf16.mxu0 %v8423
        %11720 = vmatpush1.bf16.msra.mxu0 %v8422
        %11721 = vmatprep.subr.bf16.mxu0 %v8427
        %11722 = vmatpush1.bf16.msra.mxu0 %v8426
        %11723 = vmatprep.subr.bf16.mxu0 %v8431
        %11724 = vmatpush1.bf16.msra.mxu0 %v8430
        %11725 = vmatprep.subr.bf16.mxu0 %v8435
        %11726 = vmatpush1.bf16.msra.mxu0 %v8434
        %11727 = vmatprep.subr.bf16.mxu0 %v8439
        %11728 = vmatpush1.bf16.msra.mxu0 %v8438
        %11729 = vmatprep.subr.bf16.mxu0 %v8443
        %11730 = vmatpush1.bf16.msra.mxu0 %v8442
        %11731 = vmatprep.subr.bf16.mxu0 %v8447
        %11732 = vmatpush1.bf16.msra.mxu0 %v8446
        %11733 = vmatprep.subr.bf16.mxu0 %v8451
        %11734 = vmatpush1.bf16.msra.mxu0 %v8450
        %11735 = vmatprep.mubr.bf16.mxu0 %v2282
        %11736 = vmatmul.mubr.bf16.gmra.mrb[0].mxu0 %v2280
        %v11737 = vpop.f32.mrb[0].mxu0
        %v11738 = vadd.f32 %v11697, %v11737
        %v11739 = vpop.f32.mrb[0].mxu0
        %v11740 = vadd.f32 %v11699, %v11739
        %v11741 = vpop.f32.mrb[0].mxu0
        %v11742 = vpop.f32.mrb[0].mxu0
        %11743 = vdwg.mxu0
        %11744 = vmatprep.subr.bf16.mxu0 %v8455
        %11745 = vmatpush1.bf16.msra.mxu0 %v8454
        %11746 = vmatprep.subr.bf16.mxu0 %v8459
        %11747 = vmatpush1.bf16.msra.mxu0 %v8458
        %11748 = vmatprep.subr.bf16.mxu0 %v8463
        %11749 = vmatpush1.bf16.msra.mxu0 %v8462
        %11750 = vmatprep.subr.bf16.mxu0 %v8467
        %11751 = vmatpush1.bf16.msra.mxu0 %v8466
        %11752 = vmatprep.subr.bf16.mxu0 %v8471
        %11753 = vmatpush1.bf16.msra.mxu0 %v8470
        %11754 = vmatprep.subr.bf16.mxu0 %v8475
        %11755 = vmatpush1.bf16.msra.mxu0 %v8474
        %11756 = vmatprep.subr.bf16.mxu0 %v8479
        %11757 = vmatpush1.bf16.msra.mxu0 %v8478
        %11758 = vmatprep.subr.bf16.mxu0 %v8483
        %11759 = vmatpush1.bf16.msra.mxu0 %v8482
        %11760 = vmatprep.subr.bf16.mxu0 %v8487
        %11761 = vmatpush1.bf16.msra.mxu0 %v8486
        %11762 = vmatprep.subr.bf16.mxu0 %v8491
        %11763 = vmatpush1.bf16.msra.mxu0 %v8490
        %11764 = vmatprep.subr.bf16.mxu0 %v8495
        %11765 = vmatpush1.bf16.msra.mxu0 %v8494
        %11766 = vmatprep.subr.bf16.mxu0 %v8499
        %11767 = vmatpush1.bf16.msra.mxu0 %v8498
        %11768 = vmatprep.subr.bf16.mxu0 %v8503
        %11769 = vmatpush1.bf16.msra.mxu0 %v8502
        %11770 = vmatprep.subr.bf16.mxu0 %v8507
        %11771 = vmatpush1.bf16.msra.mxu0 %v8506
        %11772 = vmatprep.subr.bf16.mxu0 %v8511
        %11773 = vmatpush1.bf16.msra.mxu0 %v8510
        %11774 = vmatprep.subr.bf16.mxu0 %v8515
        %11775 = vmatpush1.bf16.msra.mxu0 %v8514
        %11776 = vmatprep.mubr.bf16.mxu0 %v2279
        %11777 = vmatmul.mubr.bf16.gmra.mrb[0].mxu0 %v2265
        %v11778 = vpop.f32.mrb[0].mxu0
        %v11779 = vadd.f32 %v11738, %v11778
        %v11780 = vpop.f32.mrb[0].mxu0
        %v11781 = vadd.f32 %v11740, %v11780
        %v11782 = vpop.f32.mrb[0].mxu0
        %v11783 = vpop.f32.mrb[0].mxu0
        %11784 = vdwg.mxu0
        %11785 = vmatprep.subr.bf16.mxu0 %v8519
        %11786 = vmatpush1.bf16.msra.mxu0 %v8518
        %11787 = vmatprep.subr.bf16.mxu0 %v8523
        %11788 = vmatpush1.bf16.msra.mxu0 %v8522
        %11789 = vmatprep.subr.bf16.mxu0 %v8527
        %11790 = vmatpush1.bf16.msra.mxu0 %v8526
        %11791 = vmatprep.subr.bf16.mxu0 %v8531
        %11792 = vmatpush1.bf16.msra.mxu0 %v8530
        %11793 = vmatprep.subr.bf16.mxu0 %v8535
        %11794 = vmatpush1.bf16.msra.mxu0 %v8534
        %11795 = vmatprep.subr.bf16.mxu0 %v8539
        %11796 = vmatpush1.bf16.msra.mxu0 %v8538
        %11797 = vmatprep.subr.bf16.mxu0 %v8543
        %11798 = vmatpush1.bf16.msra.mxu0 %v8542
        %11799 = vmatprep.subr.bf16.mxu0 %v8547
        %11800 = vmatpush1.bf16.msra.mxu0 %v8546
        %11801 = vmatprep.subr.bf16.mxu0 %v8551
        %11802 = vmatpush1.bf16.msra.mxu0 %v8550
        %11803 = vmatprep.subr.bf16.mxu0 %v8555
        %11804 = vmatpush1.bf16.msra.mxu0 %v8554
        %11805 = vmatprep.subr.bf16.mxu0 %v8559
        %11806 = vmatpush1.bf16.msra.mxu0 %v8558
        %11807 = vmatprep.subr.bf16.mxu0 %v8563
        %11808 = vmatpush1.bf16.msra.mxu0 %v8562
        %11809 = vmatprep.subr.bf16.mxu0 %v8567
        %11810 = vmatpush1.bf16.msra.mxu0 %v8566
        %11811 = vmatprep.subr.bf16.mxu0 %v8571
        %11812 = vmatpush1.bf16.msra.mxu0 %v8570
        %11813 = vmatprep.subr.bf16.mxu0 %v8575
        %11814 = vmatpush1.bf16.msra.mxu0 %v8574
        %11815 = vmatprep.subr.bf16.mxu0 %v8579
        %11816 = vmatpush1.bf16.msra.mxu0 %v8578
        %11817 = vmatprep.mubr.bf16.mxu0 %v2283
        %11818 = vmatmul.mubr.bf16.gmra.mrb[0].mxu0 %v2281
        %v11819 = vpop.f32.mrb[0].mxu0
        %v11820 = vadd.f32 %v11779, %v11819
        %v11821 = vpop.f32.mrb[0].mxu0
        %v11822 = vadd.f32 %v11781, %v11821
        %v11823 = vpop.f32.mrb[0].mxu0
        %v11824 = vpop.f32.mrb[0].mxu0
        %11825 = vdwg.mxu0
        %11826 = vmatprep.subr.bf16.mxu0 %v8583
        %11827 = vmatpush1.bf16.msra.mxu0 %v8582
        %11828 = vmatprep.subr.bf16.mxu0 %v8587
        %11829 = vmatpush1.bf16.msra.mxu0 %v8586
        %11830 = vmatprep.subr.bf16.mxu0 %v8591
        %11831 = vmatpush1.bf16.msra.mxu0 %v8590
        %11832 = vmatprep.subr.bf16.mxu0 %v8595
        %11833 = vmatpush1.bf16.msra.mxu0 %v8594
        %11834 = vmatprep.subr.bf16.mxu0 %v8599
        %11835 = vmatpush1.bf16.msra.mxu0 %v8598
        %11836 = vmatprep.subr.bf16.mxu0 %v8603
        %11837 = vmatpush1.bf16.msra.mxu0 %v8602
        %11838 = vmatprep.subr.bf16.mxu0 %v8607
        %11839 = vmatpush1.bf16.msra.mxu0 %v8606
        %11840 = vmatprep.subr.bf16.mxu0 %v8611
        %11841 = vmatpush1.bf16.msra.mxu0 %v8610
        %11842 = vmatprep.subr.bf16.mxu0 %v8615
        %11843 = vmatpush1.bf16.msra.mxu0 %v8614
        %11844 = vmatprep.subr.bf16.mxu0 %v8619
        %11845 = vmatpush1.bf16.msra.mxu0 %v8618
        %11846 = vmatprep.subr.bf16.mxu0 %v8623
        %11847 = vmatpush1.bf16.msra.mxu0 %v8622
        %11848 = vmatprep.subr.bf16.mxu0 %v8627
        %11849 = vmatpush1.bf16.msra.mxu0 %v8626
        %11850 = vmatprep.subr.bf16.mxu0 %v8631
        %11851 = vmatpush1.bf16.msra.mxu0 %v8630
        %11852 = vmatprep.subr.bf16.mxu0 %v8635
        %11853 = vmatpush1.bf16.msra.mxu0 %v8634
        %11854 = vmatprep.subr.bf16.mxu0 %v8639
        %11855 = vmatpush1.bf16.msra.mxu0 %v8638
        %11856 = vmatprep.subr.bf16.mxu0 %v8643
        %11857 = vmatpush1.bf16.msra.mxu0 %v8642
        %11858 = vmatprep.mubr.bf16.mxu0 %v2321
        %11859 = vmatmul.mubr.bf16.gmra.mrb[0].mxu0 %v2307
        %v11860 = vpop.f32.mrb[0].mxu0
        %v11861 = vadd.f32 %v11820, %v11860
        %v11862 = vpop.f32.mrb[0].mxu0
        %v11863 = vadd.f32 %v11822, %v11862
        %v11864 = vpop.f32.mrb[0].mxu0
        %v11865 = vpop.f32.mrb[0].mxu0
        %11866 = vdwg.mxu0
        %11867 = vmatprep.subr.bf16.mxu0 %v8647
        %11868 = vmatpush1.bf16.msra.mxu0 %v8646
        %11869 = vmatprep.subr.bf16.mxu0 %v8651
        %11870 = vmatpush1.bf16.msra.mxu0 %v8650
        %11871 = vmatprep.subr.bf16.mxu0 %v8655
        %11872 = vmatpush1.bf16.msra.mxu0 %v8654
        %11873 = vmatprep.subr.bf16.mxu0 %v8659
        %11874 = vmatpush1.bf16.msra.mxu0 %v8658
        %11875 = vmatprep.subr.bf16.mxu0 %v8663
        %11876 = vmatpush1.bf16.msra.mxu0 %v8662
        %11877 = vmatprep.subr.bf16.mxu0 %v8667
        %11878 = vmatpush1.bf16.msra.mxu0 %v8666
        %11879 = vmatprep.subr.bf16.mxu0 %v8671
        %11880 = vmatpush1.bf16.msra.mxu0 %v8670
        %11881 = vmatprep.subr.bf16.mxu0 %v8675
        %11882 = vmatpush1.bf16.msra.mxu0 %v8674
        %11883 = vmatprep.subr.bf16.mxu0 %v8679
        %11884 = vmatpush1.bf16.msra.mxu0 %v8678
        %11885 = vmatprep.subr.bf16.mxu0 %v8683
        %11886 = vmatpush1.bf16.msra.mxu0 %v8682
        %11887 = vmatprep.subr.bf16.mxu0 %v8687
        %11888 = vmatpush1.bf16.msra.mxu0 %v8686
        %11889 = vmatprep.subr.bf16.mxu0 %v8691
        %11890 = vmatpush1.bf16.msra.mxu0 %v8690
        %11891 = vmatprep.subr.bf16.mxu0 %v8695
        %11892 = vmatpush1.bf16.msra.mxu0 %v8694
        %11893 = vmatprep.subr.bf16.mxu0 %v8699
        %11894 = vmatpush1.bf16.msra.mxu0 %v8698
        %11895 = vmatprep.subr.bf16.mxu0 %v8703
        %11896 = vmatpush1.bf16.msra.mxu0 %v8702
        %11897 = vmatprep.subr.bf16.mxu0 %v8707
        %11898 = vmatpush1.bf16.msra.mxu0 %v8706
        %11899 = vmatprep.mubr.bf16.mxu0 %v2331
        %11900 = vmatmul.mubr.bf16.gmra.mrb[0].mxu0 %v2329
        %v11901 = vpop.f32.mrb[0].mxu0
        %v11902 = vadd.f32 %v11861, %v11901
        %v11903 = vpop.f32.mrb[0].mxu0
        %v11904 = vadd.f32 %v11863, %v11903
        %v11905 = vpop.f32.mrb[0].mxu0
        %v11906 = vpop.f32.mrb[0].mxu0
        %11907 = vdwg.mxu0
        %11908 = vmatprep.subr.bf16.mxu0 %v8711
        %11909 = vmatpush1.bf16.msra.mxu0 %v8710
        %11910 = vmatprep.subr.bf16.mxu0 %v8715
        %11911 = vmatpush1.bf16.msra.mxu0 %v8714
        %11912 = vmatprep.subr.bf16.mxu0 %v8719
        %11913 = vmatpush1.bf16.msra.mxu0 %v8718
        %11914 = vmatprep.subr.bf16.mxu0 %v8723
        %11915 = vmatpush1.bf16.msra.mxu0 %v8722
        %11916 = vmatprep.subr.bf16.mxu0 %v8727
        %11917 = vmatpush1.bf16.msra.mxu0 %v8726
        %11918 = vmatprep.subr.bf16.mxu0 %v8731
        %11919 = vmatpush1.bf16.msra.mxu0 %v8730
        %11920 = vmatprep.subr.bf16.mxu0 %v8735
        %11921 = vmatpush1.bf16.msra.mxu0 %v8734
        %11922 = vmatprep.subr.bf16.mxu0 %v8739
        %11923 = vmatpush1.bf16.msra.mxu0 %v8738
        %11924 = vmatprep.subr.bf16.mxu0 %v8743
        %11925 = vmatpush1.bf16.msra.mxu0 %v8742
        %11926 = vmatprep.subr.bf16.mxu0 %v8747
        %11927 = vmatpush1.bf16.msra.mxu0 %v8746
        %11928 = vmatprep.subr.bf16.mxu0 %v8751
        %11929 = vmatpush1.bf16.msra.mxu0 %v8750
        %11930 = vmatprep.subr.bf16.mxu0 %v8755
        %11931 = vmatpush1.bf16.msra.mxu0 %v8754
        %11932 = vmatprep.subr.bf16.mxu0 %v8759
        %11933 = vmatpush1.bf16.msra.mxu0 %v8758
        %11934 = vmatprep.subr.bf16.mxu0 %v8763
        %11935 = vmatpush1.bf16.msra.mxu0 %v8762
        %11936 = vmatprep.subr.bf16.mxu0 %v8767
        %11937 = vmatpush1.bf16.msra.mxu0 %v8766
        %11938 = vmatprep.subr.bf16.mxu0 %v8771
        %11939 = vmatpush1.bf16.msra.mxu0 %v8770
        %11940 = vmatprep.mubr.bf16.mxu0 %v2328
        %11941 = vmatmul.mubr.bf16.gmra.mrb[0].mxu0 %v2314
        %v11942 = vpop.f32.mrb[0].mxu0
        %v11943 = vadd.f32 %v11902, %v11942
        %v11944 = vpop.f32.mrb[0].mxu0
        %v11945 = vadd.f32 %v11904, %v11944
        %v11946 = vpop.f32.mrb[0].mxu0
        %v11947 = vpop.f32.mrb[0].mxu0
        %11948 = vdwg.mxu0
        %11949 = vmatprep.subr.bf16.mxu0 %v8775
        %11950 = vmatpush1.bf16.msra.mxu0 %v8774
        %11951 = vmatprep.subr.bf16.mxu0 %v8779
        %11952 = vmatpush1.bf16.msra.mxu0 %v8778
        %11953 = vmatprep.subr.bf16.mxu0 %v8783
        %11954 = vmatpush1.bf16.msra.mxu0 %v8782
        %11955 = vmatprep.subr.bf16.mxu0 %v8787
        %11956 = vmatpush1.bf16.msra.mxu0 %v8786
        %11957 = vmatprep.subr.bf16.mxu0 %v8791
        %11958 = vmatpush1.bf16.msra.mxu0 %v8790
        %11959 = vmatprep.subr.bf16.mxu0 %v8795
        %11960 = vmatpush1.bf16.msra.mxu0 %v8794
        %11961 = vmatprep.subr.bf16.mxu0 %v8799
        %11962 = vmatpush1.bf16.msra.mxu0 %v8798
        %11963 = vmatprep.subr.bf16.mxu0 %v8803
        %11964 = vmatpush1.bf16.msra.mxu0 %v8802
        %11965 = vmatprep.subr.bf16.mxu0 %v8807
        %11966 = vmatpush1.bf16.msra.mxu0 %v8806
        %11967 = vmatprep.subr.bf16.mxu0 %v8811
        %11968 = vmatpush1.bf16.msra.mxu0 %v8810
        %11969 = vmatprep.subr.bf16.mxu0 %v8815
        %11970 = vmatpush1.bf16.msra.mxu0 %v8814
        %11971 = vmatprep.subr.bf16.mxu0 %v8819
        %11972 = vmatpush1.bf16.msra.mxu0 %v8818
        %11973 = vmatprep.subr.bf16.mxu0 %v8823
        %11974 = vmatpush1.bf16.msra.mxu0 %v8822
        %11975 = vmatprep.subr.bf16.mxu0 %v8827
        %11976 = vmatpush1.bf16.msra.mxu0 %v8826
        %11977 = vmatprep.subr.bf16.mxu0 %v8831
        %11978 = vmatpush1.bf16.msra.mxu0 %v8830
        %11979 = vmatprep.subr.bf16.mxu0 %v8835
        %11980 = vmatpush1.bf16.msra.mxu0 %v8834
        %11981 = vmatprep.mubr.bf16.mxu0 %v2332
        %11982 = vmatmul.mubr.bf16.gmra.mrb[0].mxu0 %v2330
        %v11983 = vpop.f32.mrb[0].mxu0
        %v11984 = vadd.f32 %v11943, %v11983
        %v11985 = vpop.f32.mrb[0].mxu0
        %v11986 = vadd.f32 %v11945, %v11985
        %v11987 = vpop.f32.mrb[0].mxu0
        %v11988 = vpop.f32.mrb[0].mxu0
        %11989 = vdwg.mxu0
        %11990 = vmatprep.subr.bf16.mxu0 %v8839
        %11991 = vmatpush1.bf16.msra.mxu0 %v8838
        %11992 = vmatprep.subr.bf16.mxu0 %v8843
        %11993 = vmatpush1.bf16.msra.mxu0 %v8842
        %11994 = vmatprep.subr.bf16.mxu0 %v8847
        %11995 = vmatpush1.bf16.msra.mxu0 %v8846
        %11996 = vmatprep.subr.bf16.mxu0 %v8851
        %11997 = vmatpush1.bf16.msra.mxu0 %v8850
        %11998 = vmatprep.subr.bf16.mxu0 %v8855
        %11999 = vmatpush1.bf16.msra.mxu0 %v8854
        %12000 = vmatprep.subr.bf16.mxu0 %v8859
        %12001 = vmatpush1.bf16.msra.mxu0 %v8858
        %12002 = vmatprep.subr.bf16.mxu0 %v8863
        %12003 = vmatpush1.bf16.msra.mxu0 %v8862
        %12004 = vmatprep.subr.bf16.mxu0 %v8867
        %12005 = vmatpush1.bf16.msra.mxu0 %v8866
        %12006 = vmatprep.subr.bf16.mxu0 %v8871
        %12007 = vmatpush1.bf16.msra.mxu0 %v8870
        %12008 = vmatprep.subr.bf16.mxu0 %v8875
        %12009 = vmatpush1.bf16.msra.mxu0 %v8874
        %12010 = vmatprep.subr.bf16.mxu0 %v8879
        %12011 = vmatpush1.bf16.msra.mxu0 %v8878
        %12012 = vmatprep.subr.bf16.mxu0 %v8883
        %12013 = vmatpush1.bf16.msra.mxu0 %v8882
        %12014 = vmatprep.subr.bf16.mxu0 %v8887
        %12015 = vmatpush1.bf16.msra.mxu0 %v8886
        %12016 = vmatprep.subr.bf16.mxu0 %v8891
        %12017 = vmatpush1.bf16.msra.mxu0 %v8890
        %12018 = vmatprep.subr.bf16.mxu0 %v8895
        %12019 = vmatpush1.bf16.msra.mxu0 %v8894
        %12020 = vmatprep.subr.bf16.mxu0 %v8899
        %12021 = vmatpush1.bf16.msra.mxu0 %v8898
        %12022 = vmatprep.mubr.bf16.mxu0 %v2370
        %12023 = vmatmul.mubr.bf16.gmra.mrb[0].mxu0 %v2356
        %v12024 = vpop.f32.mrb[0].mxu0
        %v12025 = vadd.f32 %v11984, %v12024
        %v12026 = vpop.f32.mrb[0].mxu0
        %v12027 = vadd.f32 %v11986, %v12026
        %v12028 = vpop.f32.mrb[0].mxu0
        %v12029 = vpop.f32.mrb[0].mxu0
        %12030 = vdwg.mxu0
        %12031 = vmatprep.subr.bf16.mxu0 %v8903
        %12032 = vmatpush1.bf16.msra.mxu0 %v8902
        %12033 = vmatprep.subr.bf16.mxu0 %v8907
        %12034 = vmatpush1.bf16.msra.mxu0 %v8906
        %12035 = vmatprep.subr.bf16.mxu0 %v8911
        %12036 = vmatpush1.bf16.msra.mxu0 %v8910
        %12037 = vmatprep.subr.bf16.mxu0 %v8915
        %12038 = vmatpush1.bf16.msra.mxu0 %v8914
        %12039 = vmatprep.subr.bf16.mxu0 %v8919
        %12040 = vmatpush1.bf16.msra.mxu0 %v8918
        %12041 = vmatprep.subr.bf16.mxu0 %v8923
        %12042 = vmatpush1.bf16.msra.mxu0 %v8922
        %12043 = vmatprep.subr.bf16.mxu0 %v8927
        %12044 = vmatpush1.bf16.msra.mxu0 %v8926
        %12045 = vmatprep.subr.bf16.mxu0 %v8931
        %12046 = vmatpush1.bf16.msra.mxu0 %v8930
        %12047 = vmatprep.subr.bf16.mxu0 %v8935
        %12048 = vmatpush1.bf16.msra.mxu0 %v8934
        %12049 = vmatprep.subr.bf16.mxu0 %v8939
        %12050 = vmatpush1.bf16.msra.mxu0 %v8938
        %12051 = vmatprep.subr.bf16.mxu0 %v8943
        %12052 = vmatpush1.bf16.msra.mxu0 %v8942
        %12053 = vmatprep.subr.bf16.mxu0 %v8947
        %12054 = vmatpush1.bf16.msra.mxu0 %v8946
        %12055 = vmatprep.subr.bf16.mxu0 %v8951
        %12056 = vmatpush1.bf16.msra.mxu0 %v8950
        %12057 = vmatprep.subr.bf16.mxu0 %v8955
        %12058 = vmatpush1.bf16.msra.mxu0 %v8954
        %12059 = vmatprep.subr.bf16.mxu0 %v8959
        %12060 = vmatpush1.bf16.msra.mxu0 %v8958
        %12061 = vmatprep.subr.bf16.mxu0 %v8963
        %12062 = vmatpush1.bf16.msra.mxu0 %v8962
        %12063 = vmatprep.mubr.bf16.mxu0 %v2380
        %12064 = vmatmul.mubr.bf16.gmra.mrb[0].mxu0 %v2378
        %v12065 = vpop.f32.mrb[0].mxu0
        %v12066 = vadd.f32 %v12025, %v12065
        %v12067 = vpop.f32.mrb[0].mxu0
        %v12068 = vadd.f32 %v12027, %v12067
        %v12069 = vpop.f32.mrb[0].mxu0
        %v12070 = vpop.f32.mrb[0].mxu0
        %12071 = vdwg.mxu0
        %12072 = vmatprep.subr.bf16.mxu0 %v8967
        %12073 = vmatpush1.bf16.msra.mxu0 %v8966
        %12074 = vmatprep.subr.bf16.mxu0 %v8971
        %12075 = vmatpush1.bf16.msra.mxu0 %v8970
        %12076 = vmatprep.subr.bf16.mxu0 %v8975
        %12077 = vmatpush1.bf16.msra.mxu0 %v8974
        %12078 = vmatprep.subr.bf16.mxu0 %v8979
        %12079 = vmatpush1.bf16.msra.mxu0 %v8978
        %12080 = vmatprep.subr.bf16.mxu0 %v8983
        %12081 = vmatpush1.bf16.msra.mxu0 %v8982
        %12082 = vmatprep.subr.bf16.mxu0 %v8987
        %12083 = vmatpush1.bf16.msra.mxu0 %v8986
        %12084 = vmatprep.subr.bf16.mxu0 %v8991
        %12085 = vmatpush1.bf16.msra.mxu0 %v8990
        %12086 = vmatprep.subr.bf16.mxu0 %v8995
        %12087 = vmatpush1.bf16.msra.mxu0 %v8994
        %12088 = vmatprep.subr.bf16.mxu0 %v8999
        %12089 = vmatpush1.bf16.msra.mxu0 %v8998
        %12090 = vmatprep.subr.bf16.mxu0 %v9003
        %12091 = vmatpush1.bf16.msra.mxu0 %v9002
        %12092 = vmatprep.subr.bf16.mxu0 %v9007
        %12093 = vmatpush1.bf16.msra.mxu0 %v9006
        %12094 = vmatprep.subr.bf16.mxu0 %v9011
        %12095 = vmatpush1.bf16.msra.mxu0 %v9010
        %12096 = vmatprep.subr.bf16.mxu0 %v9015
        %12097 = vmatpush1.bf16.msra.mxu0 %v9014
        %12098 = vmatprep.subr.bf16.mxu0 %v9019
        %12099 = vmatpush1.bf16.msra.mxu0 %v9018
        %12100 = vmatprep.subr.bf16.mxu0 %v9023
        %12101 = vmatpush1.bf16.msra.mxu0 %v9022
        %12102 = vmatprep.subr.bf16.mxu0 %v9027
        %12103 = vmatpush1.bf16.msra.mxu0 %v9026
        %12104 = vmatprep.mubr.bf16.mxu0 %v2377
        %12105 = vmatmul.mubr.bf16.gmra.mrb[0].mxu0 %v2363
        %v12106 = vpop.f32.mrb[0].mxu0
        %v12107 = vadd.f32 %v12066, %v12106
        %v12108 = vpop.f32.mrb[0].mxu0
        %v12109 = vadd.f32 %v12068, %v12108
        %v12110 = vpop.f32.mrb[0].mxu0
        %v12111 = vpop.f32.mrb[0].mxu0
        %12112 = vdwg.mxu0
        %12113 = vmatprep.subr.bf16.mxu0 %v9031
        %12114 = vmatpush1.bf16.msra.mxu0 %v9030
        %12115 = vmatprep.subr.bf16.mxu0 %v9035
        %12116 = vmatpush1.bf16.msra.mxu0 %v9034
        %12117 = vmatprep.subr.bf16.mxu0 %v9039
        %12118 = vmatpush1.bf16.msra.mxu0 %v9038
        %12119 = vmatprep.subr.bf16.mxu0 %v9043
        %12120 = vmatpush1.bf16.msra.mxu0 %v9042
        %12121 = vmatprep.subr.bf16.mxu0 %v9047
        %12122 = vmatpush1.bf16.msra.mxu0 %v9046
        %12123 = vmatprep.subr.bf16.mxu0 %v9051
        %12124 = vmatpush1.bf16.msra.mxu0 %v9050
        %12125 = vmatprep.subr.bf16.mxu0 %v9055
        %12126 = vmatpush1.bf16.msra.mxu0 %v9054
        %12127 = vmatprep.subr.bf16.mxu0 %v9059
        %12128 = vmatpush1.bf16.msra.mxu0 %v9058
        %12129 = vmatprep.subr.bf16.mxu0 %v9063
        %12130 = vmatpush1.bf16.msra.mxu0 %v9062
        %12131 = vmatprep.subr.bf16.mxu0 %v9067
        %12132 = vmatpush1.bf16.msra.mxu0 %v9066
        %12133 = vmatprep.subr.bf16.mxu0 %v9071
        %12134 = vmatpush1.bf16.msra.mxu0 %v9070
        %12135 = vmatprep.subr.bf16.mxu0 %v9075
        %12136 = vmatpush1.bf16.msra.mxu0 %v9074
        %12137 = vmatprep.subr.bf16.mxu0 %v9079
        %12138 = vmatpush1.bf16.msra.mxu0 %v9078
        %12139 = vmatprep.subr.bf16.mxu0 %v9083
        %12140 = vmatpush1.bf16.msra.mxu0 %v9082
        %12141 = vmatprep.subr.bf16.mxu0 %v9087
        %12142 = vmatpush1.bf16.msra.mxu0 %v9086
        %12143 = vmatprep.subr.bf16.mxu0 %v9091
        %12144 = vmatpush1.bf16.msra.mxu0 %v9090
        %12145 = vmatprep.mubr.bf16.mxu0 %v2381
        %12146 = vmatmul.mubr.bf16.gmra.mrb[0].mxu0 %v2379
        %v12147 = vpop.f32.mrb[0].mxu0
        %v12148 = vadd.f32 %v12107, %v12147
        %v12149 = vpop.f32.mrb[0].mxu0
        %v12150 = vadd.f32 %v12109, %v12149
        %v12151 = vpop.f32.mrb[0].mxu0
        %v12152 = vpop.f32.mrb[0].mxu0
        %12153 = vdwg.mxu0
        %12154 = vmatprep.subr.bf16.mxu0 %v9095
        %12155 = vmatpush1.bf16.msra.mxu0 %v9094
        %12156 = vmatprep.subr.bf16.mxu0 %v9099
        %12157 = vmatpush1.bf16.msra.mxu0 %v9098
        %12158 = vmatprep.subr.bf16.mxu0 %v9103
        %12159 = vmatpush1.bf16.msra.mxu0 %v9102
        %12160 = vmatprep.subr.bf16.mxu0 %v9107
        %12161 = vmatpush1.bf16.msra.mxu0 %v9106
        %12162 = vmatprep.subr.bf16.mxu0 %v9111
        %12163 = vmatpush1.bf16.msra.mxu0 %v9110
        %12164 = vmatprep.subr.bf16.mxu0 %v9115
        %12165 = vmatpush1.bf16.msra.mxu0 %v9114
        %12166 = vmatprep.subr.bf16.mxu0 %v9119
        %12167 = vmatpush1.bf16.msra.mxu0 %v9118
        %12168 = vmatprep.subr.bf16.mxu0 %v9123
        %12169 = vmatpush1.bf16.msra.mxu0 %v9122
        %12170 = vmatprep.subr.bf16.mxu0 %v9127
        %12171 = vmatpush1.bf16.msra.mxu0 %v9126
        %12172 = vmatprep.subr.bf16.mxu0 %v9131
        %12173 = vmatpush1.bf16.msra.mxu0 %v9130
        %12174 = vmatprep.subr.bf16.mxu0 %v9135
        %12175 = vmatpush1.bf16.msra.mxu0 %v9134
        %12176 = vmatprep.subr.bf16.mxu0 %v9139
        %12177 = vmatpush1.bf16.msra.mxu0 %v9138
        %12178 = vmatprep.subr.bf16.mxu0 %v9143
        %12179 = vmatpush1.bf16.msra.mxu0 %v9142
        %12180 = vmatprep.subr.bf16.mxu0 %v9147
        %12181 = vmatpush1.bf16.msra.mxu0 %v9146
        %12182 = vmatprep.subr.bf16.mxu0 %v9151
        %12183 = vmatpush1.bf16.msra.mxu0 %v9150
        %12184 = vmatprep.subr.bf16.mxu0 %v9155
        %12185 = vmatpush1.bf16.msra.mxu0 %v9154
        %12186 = vmatprep.mubr.bf16.mxu0 %v2419
        %12187 = vmatmul.mubr.bf16.gmra.mrb[0].mxu0 %v2405
        %v12188 = vpop.f32.mrb[0].mxu0
        %v12189 = vadd.f32 %v12148, %v12188
        %v12190 = vpop.f32.mrb[0].mxu0
        %v12191 = vadd.f32 %v12150, %v12190
        %v12192 = vpop.f32.mrb[0].mxu0
        %v12193 = vpop.f32.mrb[0].mxu0
        %12194 = vdwg.mxu0
        %12195 = vmatprep.subr.bf16.mxu0 %v9159
        %12196 = vmatpush1.bf16.msra.mxu0 %v9158
        %12197 = vmatprep.subr.bf16.mxu0 %v9163
        %12198 = vmatpush1.bf16.msra.mxu0 %v9162
        %12199 = vmatprep.subr.bf16.mxu0 %v9167
        %12200 = vmatpush1.bf16.msra.mxu0 %v9166
        %12201 = vmatprep.subr.bf16.mxu0 %v9171
        %12202 = vmatpush1.bf16.msra.mxu0 %v9170
        %12203 = vmatprep.subr.bf16.mxu0 %v9175
        %12204 = vmatpush1.bf16.msra.mxu0 %v9174
        %12205 = vmatprep.subr.bf16.mxu0 %v9179
        %12206 = vmatpush1.bf16.msra.mxu0 %v9178
        %12207 = vmatprep.subr.bf16.mxu0 %v9183
        %12208 = vmatpush1.bf16.msra.mxu0 %v9182
        %12209 = vmatprep.subr.bf16.mxu0 %v9187
        %12210 = vmatpush1.bf16.msra.mxu0 %v9186
        %12211 = vmatprep.subr.bf16.mxu0 %v9191
        %12212 = vmatpush1.bf16.msra.mxu0 %v9190
        %12213 = vmatprep.subr.bf16.mxu0 %v9195
        %12214 = vmatpush1.bf16.msra.mxu0 %v9194
        %12215 = vmatprep.subr.bf16.mxu0 %v9199
        %12216 = vmatpush1.bf16.msra.mxu0 %v9198
        %12217 = vmatprep.subr.bf16.mxu0 %v9203
        %12218 = vmatpush1.bf16.msra.mxu0 %v9202
        %12219 = vmatprep.subr.bf16.mxu0 %v9207
        %12220 = vmatpush1.bf16.msra.mxu0 %v9206
        %12221 = vmatprep.subr.bf16.mxu0 %v9211
        %12222 = vmatpush1.bf16.msra.mxu0 %v9210
        %12223 = vmatprep.subr.bf16.mxu0 %v9215
        %12224 = vmatpush1.bf16.msra.mxu0 %v9214
        %12225 = vmatprep.subr.bf16.mxu0 %v9219
        %12226 = vmatpush1.bf16.msra.mxu0 %v9218
        %12227 = vmatprep.mubr.bf16.mxu0 %v2429
        %12228 = vmatmul.mubr.bf16.gmra.mrb[0].mxu0 %v2427
        %v12229 = vpop.f32.mrb[0].mxu0
        %v12230 = vadd.f32 %v12189, %v12229
        %v12231 = vpop.f32.mrb[0].mxu0
        %v12232 = vadd.f32 %v12191, %v12231
        %v12233 = vpop.f32.mrb[0].mxu0
        %v12234 = vpop.f32.mrb[0].mxu0
        %12235 = vdwg.mxu0
        %12236 = vmatprep.subr.bf16.mxu0 %v9223
        %12237 = vmatpush1.bf16.msra.mxu0 %v9222
        %12238 = vmatprep.subr.bf16.mxu0 %v9227
        %12239 = vmatpush1.bf16.msra.mxu0 %v9226
        %12240 = vmatprep.subr.bf16.mxu0 %v9231
        %12241 = vmatpush1.bf16.msra.mxu0 %v9230
        %12242 = vmatprep.subr.bf16.mxu0 %v9235
        %12243 = vmatpush1.bf16.msra.mxu0 %v9234
        %12244 = vmatprep.subr.bf16.mxu0 %v9239
        %12245 = vmatpush1.bf16.msra.mxu0 %v9238
        %12246 = vmatprep.subr.bf16.mxu0 %v9243
        %12247 = vmatpush1.bf16.msra.mxu0 %v9242
        %12248 = vmatprep.subr.bf16.mxu0 %v9247
        %12249 = vmatpush1.bf16.msra.mxu0 %v9246
        %12250 = vmatprep.subr.bf16.mxu0 %v9251
        %12251 = vmatpush1.bf16.msra.mxu0 %v9250
        %12252 = vmatprep.subr.bf16.mxu0 %v9255
        %12253 = vmatpush1.bf16.msra.mxu0 %v9254
        %12254 = vmatprep.subr.bf16.mxu0 %v9259
        %12255 = vmatpush1.bf16.msra.mxu0 %v9258
        %12256 = vmatprep.subr.bf16.mxu0 %v9263
        %12257 = vmatpush1.bf16.msra.mxu0 %v9262
        %12258 = vmatprep.subr.bf16.mxu0 %v9267
        %12259 = vmatpush1.bf16.msra.mxu0 %v9266
        %12260 = vmatprep.subr.bf16.mxu0 %v9271
        %12261 = vmatpush1.bf16.msra.mxu0 %v9270
        %12262 = vmatprep.subr.bf16.mxu0 %v9275
        %12263 = vmatpush1.bf16.msra.mxu0 %v9274
        %12264 = vmatprep.subr.bf16.mxu0 %v9279
        %12265 = vmatpush1.bf16.msra.mxu0 %v9278
        %12266 = vmatprep.subr.bf16.mxu0 %v9283
        %12267 = vmatpush1.bf16.msra.mxu0 %v9282
        %12268 = vmatprep.mubr.bf16.mxu0 %v2426
        %12269 = vmatmul.mubr.bf16.gmra.mrb[0].mxu0 %v2412
        %v12270 = vpop.f32.mrb[0].mxu0
        %v12271 = vadd.f32 %v12230, %v12270
        %v12272 = vpop.f32.mrb[0].mxu0
        %v12273 = vadd.f32 %v12232, %v12272
        %v12274 = vpop.f32.mrb[0].mxu0
        %v12275 = vpop.f32.mrb[0].mxu0
        %12276 = vdwg.mxu0
        %12277 = vmatprep.subr.bf16.mxu0 %v9287
        %12278 = vmatpush1.bf16.msra.mxu0 %v9286
        %12279 = vmatprep.subr.bf16.mxu0 %v9291
        %12280 = vmatpush1.bf16.msra.mxu0 %v9290
        %12281 = vmatprep.subr.bf16.mxu0 %v9295
        %12282 = vmatpush1.bf16.msra.mxu0 %v9294
        %12283 = vmatprep.subr.bf16.mxu0 %v9299
        %12284 = vmatpush1.bf16.msra.mxu0 %v9298
        %12285 = vmatprep.subr.bf16.mxu0 %v9303
        %12286 = vmatpush1.bf16.msra.mxu0 %v9302
        %12287 = vmatprep.subr.bf16.mxu0 %v9307
        %12288 = vmatpush1.bf16.msra.mxu0 %v9306
        %12289 = vmatprep.subr.bf16.mxu0 %v9311
        %12290 = vmatpush1.bf16.msra.mxu0 %v9310
        %12291 = vmatprep.subr.bf16.mxu0 %v9315
        %12292 = vmatpush1.bf16.msra.mxu0 %v9314
        %12293 = vmatprep.subr.bf16.mxu0 %v9319
        %12294 = vmatpush1.bf16.msra.mxu0 %v9318
        %12295 = vmatprep.subr.bf16.mxu0 %v9323
        %12296 = vmatpush1.bf16.msra.mxu0 %v9322
        %12297 = vmatprep.subr.bf16.mxu0 %v9327
        %12298 = vmatpush1.bf16.msra.mxu0 %v9326
        %12299 = vmatprep.subr.bf16.mxu0 %v9331
        %12300 = vmatpush1.bf16.msra.mxu0 %v9330
        %12301 = vmatprep.subr.bf16.mxu0 %v9335
        %12302 = vmatpush1.bf16.msra.mxu0 %v9334
        %12303 = vmatprep.subr.bf16.mxu0 %v9339
        %12304 = vmatpush1.bf16.msra.mxu0 %v9338
        %12305 = vmatprep.subr.bf16.mxu0 %v9343
        %12306 = vmatpush1.bf16.msra.mxu0 %v9342
        %12307 = vmatprep.subr.bf16.mxu0 %v9347
        %12308 = vmatpush1.bf16.msra.mxu0 %v9346
        %12309 = vmatprep.mubr.bf16.mxu0 %v2430
        %12310 = vmatmul.mubr.bf16.gmra.mrb[0].mxu0 %v2428
        %v12311 = vpop.f32.mrb[0].mxu0
        %v12312 = vadd.f32 %v12271, %v12311
        %v12313 = vpop.f32.mrb[0].mxu0
        %v12314 = vadd.f32 %v12273, %v12313
        %v12315 = vpop.f32.mrb[0].mxu0
        %v12316 = vpop.f32.mrb[0].mxu0
        %12317 = vdwg.mxu0
        %12318 = vmatprep.subr.bf16.mxu0 %v9351
        %12319 = vmatpush1.bf16.msra.mxu0 %v9350
        %12320 = vmatprep.subr.bf16.mxu0 %v9355
        %12321 = vmatpush1.bf16.msra.mxu0 %v9354
        %12322 = vmatprep.subr.bf16.mxu0 %v9359
        %12323 = vmatpush1.bf16.msra.mxu0 %v9358
        %12324 = vmatprep.subr.bf16.mxu0 %v9363
        %12325 = vmatpush1.bf16.msra.mxu0 %v9362
        %12326 = vmatprep.subr.bf16.mxu0 %v9367
        %12327 = vmatpush1.bf16.msra.mxu0 %v9366
        %12328 = vmatprep.subr.bf16.mxu0 %v9371
        %12329 = vmatpush1.bf16.msra.mxu0 %v9370
        %12330 = vmatprep.subr.bf16.mxu0 %v9375
        %12331 = vmatpush1.bf16.msra.mxu0 %v9374
        %12332 = vmatprep.subr.bf16.mxu0 %v9379
        %12333 = vmatpush1.bf16.msra.mxu0 %v9378
        %12334 = vmatprep.subr.bf16.mxu0 %v9383
        %12335 = vmatpush1.bf16.msra.mxu0 %v9382
        %12336 = vmatprep.subr.bf16.mxu0 %v9387
        %12337 = vmatpush1.bf16.msra.mxu0 %v9386
        %12338 = vmatprep.subr.bf16.mxu0 %v9391
        %12339 = vmatpush1.bf16.msra.mxu0 %v9390
        %12340 = vmatprep.subr.bf16.mxu0 %v9395
        %12341 = vmatpush1.bf16.msra.mxu0 %v9394
        %12342 = vmatprep.subr.bf16.mxu0 %v9399
        %12343 = vmatpush1.bf16.msra.mxu0 %v9398
        %12344 = vmatprep.subr.bf16.mxu0 %v9403
        %12345 = vmatpush1.bf16.msra.mxu0 %v9402
        %12346 = vmatprep.subr.bf16.mxu0 %v9407
        %12347 = vmatpush1.bf16.msra.mxu0 %v9406
        %12348 = vmatprep.subr.bf16.mxu0 %v9411
        %12349 = vmatpush1.bf16.msra.mxu0 %v9410
        %12350 = vmatprep.mubr.bf16.mxu0 %v2468
        %12351 = vmatmul.mubr.bf16.gmra.mrb[0].mxu0 %v2454
        %v12352 = vpop.f32.mrb[0].mxu0
        %v12353 = vadd.f32 %v12312, %v12352
        %v12354 = vpop.f32.mrb[0].mxu0
        %v12355 = vadd.f32 %v12314, %v12354
        %v12356 = vpop.f32.mrb[0].mxu0
        %v12357 = vpop.f32.mrb[0].mxu0
        %12358 = vdwg.mxu0
        %12359 = vmatprep.subr.bf16.mxu0 %v9415
        %12360 = vmatpush1.bf16.msra.mxu0 %v9414
        %12361 = vmatprep.subr.bf16.mxu0 %v9419
        %12362 = vmatpush1.bf16.msra.mxu0 %v9418
        %12363 = vmatprep.subr.bf16.mxu0 %v9423
        %12364 = vmatpush1.bf16.msra.mxu0 %v9422
        %12365 = vmatprep.subr.bf16.mxu0 %v9427
        %12366 = vmatpush1.bf16.msra.mxu0 %v9426
        %12367 = vmatprep.subr.bf16.mxu0 %v9431
        %12368 = vmatpush1.bf16.msra.mxu0 %v9430
        %12369 = vmatprep.subr.bf16.mxu0 %v9435
        %12370 = vmatpush1.bf16.msra.mxu0 %v9434
        %12371 = vmatprep.subr.bf16.mxu0 %v9439
        %12372 = vmatpush1.bf16.msra.mxu0 %v9438
        %12373 = vmatprep.subr.bf16.mxu0 %v9443
        %12374 = vmatpush1.bf16.msra.mxu0 %v9442
        %12375 = vmatprep.subr.bf16.mxu0 %v9447
        %12376 = vmatpush1.bf16.msra.mxu0 %v9446
        %12377 = vmatprep.subr.bf16.mxu0 %v9451
        %12378 = vmatpush1.bf16.msra.mxu0 %v9450
        %12379 = vmatprep.subr.bf16.mxu0 %v9455
        %12380 = vmatpush1.bf16.msra.mxu0 %v9454
        %12381 = vmatprep.subr.bf16.mxu0 %v9459
        %12382 = vmatpush1.bf16.msra.mxu0 %v9458
        %12383 = vmatprep.subr.bf16.mxu0 %v9463
        %12384 = vmatpush1.bf16.msra.mxu0 %v9462
        %12385 = vmatprep.subr.bf16.mxu0 %v9467
        %12386 = vmatpush1.bf16.msra.mxu0 %v9466
        %12387 = vmatprep.subr.bf16.mxu0 %v9471
        %12388 = vmatpush1.bf16.msra.mxu0 %v9470
        %12389 = vmatprep.subr.bf16.mxu0 %v9475
        %12390 = vmatpush1.bf16.msra.mxu0 %v9474
        %12391 = vmatprep.mubr.bf16.mxu0 %v2478
        %12392 = vmatmul.mubr.bf16.gmra.mrb[0].mxu0 %v2476
        %v12393 = vpop.f32.mrb[0].mxu0
        %v12394 = vadd.f32 %v12353, %v12393
        %v12395 = vpop.f32.mrb[0].mxu0
        %v12396 = vadd.f32 %v12355, %v12395
        %v12397 = vpop.f32.mrb[0].mxu0
        %v12398 = vpop.f32.mrb[0].mxu0
        %12399 = vdwg.mxu0
        %12400 = vmatprep.subr.bf16.mxu0 %v9479
        %12401 = vmatpush1.bf16.msra.mxu0 %v9478
        %12402 = vmatprep.subr.bf16.mxu0 %v9483
        %12403 = vmatpush1.bf16.msra.mxu0 %v9482
        %12404 = vmatprep.subr.bf16.mxu0 %v9487
        %12405 = vmatpush1.bf16.msra.mxu0 %v9486
        %12406 = vmatprep.subr.bf16.mxu0 %v9491
        %12407 = vmatpush1.bf16.msra.mxu0 %v9490
        %12408 = vmatprep.subr.bf16.mxu0 %v9495
        %12409 = vmatpush1.bf16.msra.mxu0 %v9494
        %12410 = vmatprep.subr.bf16.mxu0 %v9499
        %12411 = vmatpush1.bf16.msra.mxu0 %v9498
        %12412 = vmatprep.subr.bf16.mxu0 %v9503
        %12413 = vmatpush1.bf16.msra.mxu0 %v9502
        %12414 = vmatprep.subr.bf16.mxu0 %v9507
        %12415 = vmatpush1.bf16.msra.mxu0 %v9506
        %12416 = vmatprep.subr.bf16.mxu0 %v9511
        %12417 = vmatpush1.bf16.msra.mxu0 %v9510
        %12418 = vmatprep.subr.bf16.mxu0 %v9515
        %12419 = vmatpush1.bf16.msra.mxu0 %v9514
        %12420 = vmatprep.subr.bf16.mxu0 %v9519
        %12421 = vmatpush1.bf16.msra.mxu0 %v9518
        %12422 = vmatprep.subr.bf16.mxu0 %v9523
        %12423 = vmatpush1.bf16.msra.mxu0 %v9522
        %12424 = vmatprep.subr.bf16.mxu0 %v9527
        %12425 = vmatpush1.bf16.msra.mxu0 %v9526
        %12426 = vmatprep.subr.bf16.mxu0 %v9531
        %12427 = vmatpush1.bf16.msra.mxu0 %v9530
        %12428 = vmatprep.subr.bf16.mxu0 %v9535
        %12429 = vmatpush1.bf16.msra.mxu0 %v9534
        %12430 = vmatprep.subr.bf16.mxu0 %v9539
        %12431 = vmatpush1.bf16.msra.mxu0 %v9538
        %12432 = vmatprep.mubr.bf16.mxu0 %v2475
        %12433 = vmatmul.mubr.bf16.gmra.mrb[0].mxu0 %v2461
        %v12434 = vpop.f32.mrb[0].mxu0
        %v12435 = vadd.f32 %v12394, %v12434
        %v12436 = vpop.f32.mrb[0].mxu0
        %v12437 = vadd.f32 %v12396, %v12436
        %v12438 = vpop.f32.mrb[0].mxu0
        %v12439 = vpop.f32.mrb[0].mxu0
        %12440 = vdwg.mxu0
        %12441 = vmatprep.subr.bf16.mxu0 %v9543
        %12442 = vmatpush1.bf16.msra.mxu0 %v9542
        %12443 = vmatprep.subr.bf16.mxu0 %v9547
        %12444 = vmatpush1.bf16.msra.mxu0 %v9546
        %12445 = vmatprep.subr.bf16.mxu0 %v9551
        %12446 = vmatpush1.bf16.msra.mxu0 %v9550
        %12447 = vmatprep.subr.bf16.mxu0 %v9555
        %12448 = vmatpush1.bf16.msra.mxu0 %v9554
        %12449 = vmatprep.subr.bf16.mxu0 %v9559
        %12450 = vmatpush1.bf16.msra.mxu0 %v9558
        %12451 = vmatprep.subr.bf16.mxu0 %v9563
        %12452 = vmatpush1.bf16.msra.mxu0 %v9562
        %12453 = vmatprep.subr.bf16.mxu0 %v9567
        %12454 = vmatpush1.bf16.msra.mxu0 %v9566
        %12455 = vmatprep.subr.bf16.mxu0 %v9571
        %12456 = vmatpush1.bf16.msra.mxu0 %v9570
        %12457 = vmatprep.subr.bf16.mxu0 0
        %12458 = vmatpush1.bf16.msra.mxu0 0
        %12459 = vmatprep.subr.bf16.mxu0 0
        %12460 = vmatpush1.bf16.msra.mxu0 0
        %12461 = vmatprep.subr.bf16.mxu0 0
        %12462 = vmatpush1.bf16.msra.mxu0 0
        %12463 = vmatprep.subr.bf16.mxu0 0
        %12464 = vmatpush1.bf16.msra.mxu0 0
        %12465 = vmatprep.subr.bf16.mxu0 0
        %12466 = vmatpush1.bf16.msra.mxu0 0
        %12467 = vmatprep.subr.bf16.mxu0 0
        %12468 = vmatpush1.bf16.msra.mxu0 0
        %12469 = vmatprep.subr.bf16.mxu0 0
        %12470 = vmatpush1.bf16.msra.mxu0 0
        %12471 = vmatprep.subr.bf16.mxu0 0
        %12472 = vmatpush1.bf16.msra.mxu0 0
        %12473 = vmatprep.mubr.bf16.mxu0 0
        %12474 = vmatmul.mubr.bf16.gmra.mrb[0].mxu0 %v2477
        %v12475 = vpop.f32.mrb[0].mxu0
        %v12476 = vadd.f32 %v12435, %v12475
        %v12477 = vpop.f32.mrb[0].mxu0
        %v12478 = vadd.f32 %v12437, %v12477
        %v12479 = vpop.f32.mrb[0].mxu0
        %v12480 = vpop.f32.mrb[0].mxu0
        %12481 = vdwg.mxu0
        %12482 = vmatprep.subr.bf16.mxu0 %v7817
        %12483 = vmatpush1.bf16.msra.mxu0 %v7816
        %12484 = vmatprep.subr.bf16.mxu0 %v7821
        %12485 = vmatpush1.bf16.msra.mxu0 %v7820
        %12486 = vmatprep.subr.bf16.mxu0 %v7825
        %12487 = vmatpush1.bf16.msra.mxu0 %v7824
        %12488 = vmatprep.subr.bf16.mxu0 %v7829
        %12489 = vmatpush1.bf16.msra.mxu0 %v7828
        %12490 = vmatprep.subr.bf16.mxu0 %v7833
        %12491 = vmatpush1.bf16.msra.mxu0 %v7832
        %12492 = vmatprep.subr.bf16.mxu0 %v7837
        %12493 = vmatpush1.bf16.msra.mxu0 %v7836
        %12494 = vmatprep.subr.bf16.mxu0 %v7841
        %12495 = vmatpush1.bf16.msra.mxu0 %v7840
        %12496 = vmatprep.subr.bf16.mxu0 %v7845
        %12497 = vmatpush1.bf16.msra.mxu0 %v7844
        %12498 = vmatprep.subr.bf16.mxu0 %v7849
        %12499 = vmatpush1.bf16.msra.mxu0 %v7848
        %12500 = vmatprep.subr.bf16.mxu0 %v7853
        %12501 = vmatpush1.bf16.msra.mxu0 %v7852
        %12502 = vmatprep.subr.bf16.mxu0 %v7857
        %12503 = vmatpush1.bf16.msra.mxu0 %v7856
        %12504 = vmatprep.subr.bf16.mxu0 %v7861
        %12505 = vmatpush1.bf16.msra.mxu0 %v7860
        %12506 = vmatprep.subr.bf16.mxu0 %v7865
        %12507 = vmatpush1.bf16.msra.mxu0 %v7864
        %12508 = vmatprep.subr.bf16.mxu0 %v7869
        %12509 = vmatpush1.bf16.msra.mxu0 %v7868
        %12510 = vmatprep.subr.bf16.mxu0 %v7873
        %12511 = vmatpush1.bf16.msra.mxu0 %v7872
        %12512 = vmatprep.subr.bf16.mxu0 %v7877
        %12513 = vmatpush1.bf16.msra.mxu0 %v7876
        %12514 = vmatprep.mubr.bf16.mxu0 %v2174
        %12515 = vmatmul.mubr.bf16.gmra.mrb[0].mxu0 %v2160
        %v12516 = vpop.f32.mrb[0].mxu0
        %v12517 = vadd.f32 0.0, %v12516
        %v12518 = vpop.f32.mrb[0].mxu0
        %v12519 = vadd.f32 0.0, %v12518
        %v12520 = vpop.f32.mrb[0].mxu0
        %v12521 = vpop.f32.mrb[0].mxu0
        %12522 = vdwg.mxu0
        %12523 = vmatprep.subr.bf16.mxu0 %v7881
        %12524 = vmatpush1.bf16.msra.mxu0 %v7880
        %12525 = vmatprep.subr.bf16.mxu0 %v7885
        %12526 = vmatpush1.bf16.msra.mxu0 %v7884
        %12527 = vmatprep.subr.bf16.mxu0 %v7889
        %12528 = vmatpush1.bf16.msra.mxu0 %v7888
        %12529 = vmatprep.subr.bf16.mxu0 %v7893
        %12530 = vmatpush1.bf16.msra.mxu0 %v7892
        %12531 = vmatprep.subr.bf16.mxu0 %v7897
        %12532 = vmatpush1.bf16.msra.mxu0 %v7896
        %12533 = vmatprep.subr.bf16.mxu0 %v7901
        %12534 = vmatpush1.bf16.msra.mxu0 %v7900
        %12535 = vmatprep.subr.bf16.mxu0 %v7905
        %12536 = vmatpush1.bf16.msra.mxu0 %v7904
        %12537 = vmatprep.subr.bf16.mxu0 %v7909
        %12538 = vmatpush1.bf16.msra.mxu0 %v7908
        %12539 = vmatprep.subr.bf16.mxu0 %v7913
        %12540 = vmatpush1.bf16.msra.mxu0 %v7912
        %12541 = vmatprep.subr.bf16.mxu0 %v7917
        %12542 = vmatpush1.bf16.msra.mxu0 %v7916
        %12543 = vmatprep.subr.bf16.mxu0 %v7921
        %12544 = vmatpush1.bf16.msra.mxu0 %v7920
        %12545 = vmatprep.subr.bf16.mxu0 %v7925
        %12546 = vmatpush1.bf16.msra.mxu0 %v7924
        %12547 = vmatprep.subr.bf16.mxu0 %v7929
        %12548 = vmatpush1.bf16.msra.mxu0 %v7928
        %12549 = vmatprep.subr.bf16.mxu0 %v7933
        %12550 = vmatpush1.bf16.msra.mxu0 %v7932
        %12551 = vmatprep.subr.bf16.mxu0 %v7937
        %12552 = vmatpush1.bf16.msra.mxu0 %v7936
        %12553 = vmatprep.subr.bf16.mxu0 %v7941
        %12554 = vmatpush1.bf16.msra.mxu0 %v7940
        %12555 = vmatprep.mubr.bf16.mxu0 %v2184
        %12556 = vmatmul.mubr.bf16.gmra.mrb[0].mxu0 %v2182
        %v12557 = vpop.f32.mrb[0].mxu0
        %v12558 = vadd.f32 %v12517, %v12557
        %v12559 = vpop.f32.mrb[0].mxu0
        %v12560 = vadd.f32 %v12519, %v12559
        %v12561 = vpop.f32.mrb[0].mxu0
        %v12562 = vpop.f32.mrb[0].mxu0
        %12563 = vdwg.mxu0
        %12564 = vmatprep.subr.bf16.mxu0 %v7945
        %12565 = vmatpush1.bf16.msra.mxu0 %v7944
        %12566 = vmatprep.subr.bf16.mxu0 %v7949
        %12567 = vmatpush1.bf16.msra.mxu0 %v7948
        %12568 = vmatprep.subr.bf16.mxu0 %v7953
        %12569 = vmatpush1.bf16.msra.mxu0 %v7952
        %12570 = vmatprep.subr.bf16.mxu0 %v7957
        %12571 = vmatpush1.bf16.msra.mxu0 %v7956
        %12572 = vmatprep.subr.bf16.mxu0 %v7961
        %12573 = vmatpush1.bf16.msra.mxu0 %v7960
        %12574 = vmatprep.subr.bf16.mxu0 %v7965
        %12575 = vmatpush1.bf16.msra.mxu0 %v7964
        %12576 = vmatprep.subr.bf16.mxu0 %v7969
        %12577 = vmatpush1.bf16.msra.mxu0 %v7968
        %12578 = vmatprep.subr.bf16.mxu0 %v7973
        %12579 = vmatpush1.bf16.msra.mxu0 %v7972
        %12580 = vmatprep.subr.bf16.mxu0 %v7977
        %12581 = vmatpush1.bf16.msra.mxu0 %v7976
        %12582 = vmatprep.subr.bf16.mxu0 %v7981
        %12583 = vmatpush1.bf16.msra.mxu0 %v7980
        %12584 = vmatprep.subr.bf16.mxu0 %v7985
        %12585 = vmatpush1.bf16.msra.mxu0 %v7984
        %12586 = vmatprep.subr.bf16.mxu0 %v7989
        %12587 = vmatpush1.bf16.msra.mxu0 %v7988
        %12588 = vmatprep.subr.bf16.mxu0 %v7993
        %12589 = vmatpush1.bf16.msra.mxu0 %v7992
        %12590 = vmatprep.subr.bf16.mxu0 %v7997
        %12591 = vmatpush1.bf16.msra.mxu0 %v7996
        %12592 = vmatprep.subr.bf16.mxu0 %v8001
        %12593 = vmatpush1.bf16.msra.mxu0 %v8000
        %12594 = vmatprep.subr.bf16.mxu0 %v8005
        %12595 = vmatpush1.bf16.msra.mxu0 %v8004
        %12596 = vmatprep.mubr.bf16.mxu0 %v2181
        %12597 = vmatmul.mubr.bf16.gmra.mrb[0].mxu0 %v2167
        %v12598 = vpop.f32.mrb[0].mxu0
        %v12599 = vadd.f32 %v12558, %v12598
        %v12600 = vpop.f32.mrb[0].mxu0
        %v12601 = vadd.f32 %v12560, %v12600
        %v12602 = vpop.f32.mrb[0].mxu0
        %v12603 = vpop.f32.mrb[0].mxu0
        %12604 = vdwg.mxu0
        %12605 = vmatprep.subr.bf16.mxu0 %v8009
        %12606 = vmatpush1.bf16.msra.mxu0 %v8008
        %12607 = vmatprep.subr.bf16.mxu0 %v8013
        %12608 = vmatpush1.bf16.msra.mxu0 %v8012
        %12609 = vmatprep.subr.bf16.mxu0 %v8017
        %12610 = vmatpush1.bf16.msra.mxu0 %v8016
        %12611 = vmatprep.subr.bf16.mxu0 %v8021
        %12612 = vmatpush1.bf16.msra.mxu0 %v8020
        %12613 = vmatprep.subr.bf16.mxu0 %v8025
        %12614 = vmatpush1.bf16.msra.mxu0 %v8024
        %12615 = vmatprep.subr.bf16.mxu0 %v8029
        %12616 = vmatpush1.bf16.msra.mxu0 %v8028
        %12617 = vmatprep.subr.bf16.mxu0 %v8033
        %12618 = vmatpush1.bf16.msra.mxu0 %v8032
        %12619 = vmatprep.subr.bf16.mxu0 %v8037
        %12620 = vmatpush1.bf16.msra.mxu0 %v8036
        %12621 = vmatprep.subr.bf16.mxu0 %v8041
        %12622 = vmatpush1.bf16.msra.mxu0 %v8040
        %12623 = vmatprep.subr.bf16.mxu0 %v8045
        %12624 = vmatpush1.bf16.msra.mxu0 %v8044
        %12625 = vmatprep.subr.bf16.mxu0 %v8049
        %12626 = vmatpush1.bf16.msra.mxu0 %v8048
        %12627 = vmatprep.subr.bf16.mxu0 %v8053
        %12628 = vmatpush1.bf16.msra.mxu0 %v8052
        %12629 = vmatprep.subr.bf16.mxu0 %v8057
        %12630 = vmatpush1.bf16.msra.mxu0 %v8056
        %12631 = vmatprep.subr.bf16.mxu0 %v8061
        %12632 = vmatpush1.bf16.msra.mxu0 %v8060
        %12633 = vmatprep.subr.bf16.mxu0 %v8065
        %12634 = vmatpush1.bf16.msra.mxu0 %v8064
        %12635 = vmatprep.subr.bf16.mxu0 %v8069
        %12636 = vmatpush1.bf16.msra.mxu0 %v8068
        %12637 = vmatprep.mubr.bf16.mxu0 %v2185
        %12638 = vmatmul.mubr.bf16.gmra.mrb[0].mxu0 %v2183
        %v12639 = vpop.f32.mrb[0].mxu0
        %v12640 = vadd.f32 %v12599, %v12639
        %v12641 = vpop.f32.mrb[0].mxu0
        %v12642 = vadd.f32 %v12601, %v12641
        %v12643 = vpop.f32.mrb[0].mxu0
        %v12644 = vpop.f32.mrb[0].mxu0
        %12645 = vdwg.mxu0
        %12646 = vmatprep.subr.bf16.mxu0 %v8073
        %12647 = vmatpush1.bf16.msra.mxu0 %v8072
        %12648 = vmatprep.subr.bf16.mxu0 %v8077
        %12649 = vmatpush1.bf16.msra.mxu0 %v8076
        %12650 = vmatprep.subr.bf16.mxu0 %v8081
        %12651 = vmatpush1.bf16.msra.mxu0 %v8080
        %12652 = vmatprep.subr.bf16.mxu0 %v8085
        %12653 = vmatpush1.bf16.msra.mxu0 %v8084
        %12654 = vmatprep.subr.bf16.mxu0 %v8089
        %12655 = vmatpush1.bf16.msra.mxu0 %v8088
        %12656 = vmatprep.subr.bf16.mxu0 %v8093
        %12657 = vmatpush1.bf16.msra.mxu0 %v8092
        %12658 = vmatprep.subr.bf16.mxu0 %v8097
        %12659 = vmatpush1.bf16.msra.mxu0 %v8096
        %12660 = vmatprep.subr.bf16.mxu0 %v8101
        %12661 = vmatpush1.bf16.msra.mxu0 %v8100
        %12662 = vmatprep.subr.bf16.mxu0 %v8105
        %12663 = vmatpush1.bf16.msra.mxu0 %v8104
        %12664 = vmatprep.subr.bf16.mxu0 %v8109
        %12665 = vmatpush1.bf16.msra.mxu0 %v8108
        %12666 = vmatprep.subr.bf16.mxu0 %v8113
        %12667 = vmatpush1.bf16.msra.mxu0 %v8112
        %12668 = vmatprep.subr.bf16.mxu0 %v8117
        %12669 = vmatpush1.bf16.msra.mxu0 %v8116
        %12670 = vmatprep.subr.bf16.mxu0 %v8121
        %12671 = vmatpush1.bf16.msra.mxu0 %v8120
        %12672 = vmatprep.subr.bf16.mxu0 %v8125
        %12673 = vmatpush1.bf16.msra.mxu0 %v8124
        %12674 = vmatprep.subr.bf16.mxu0 %v8129
        %12675 = vmatpush1.bf16.msra.mxu0 %v8128
        %12676 = vmatprep.subr.bf16.mxu0 %v8133
        %12677 = vmatpush1.bf16.msra.mxu0 %v8132
        %12678 = vmatprep.mubr.bf16.mxu0 %v2223
        %12679 = vmatmul.mubr.bf16.gmra.mrb[0].mxu0 %v2209
        %v12680 = vpop.f32.mrb[0].mxu0
        %v12681 = vadd.f32 %v12640, %v12680
        %v12682 = vpop.f32.mrb[0].mxu0
        %v12683 = vadd.f32 %v12642, %v12682
        %v12684 = vpop.f32.mrb[0].mxu0
        %v12685 = vpop.f32.mrb[0].mxu0
        %12686 = vdwg.mxu0
        %12687 = vmatprep.subr.bf16.mxu0 %v8137
        %12688 = vmatpush1.bf16.msra.mxu0 %v8136
        %12689 = vmatprep.subr.bf16.mxu0 %v8141
        %12690 = vmatpush1.bf16.msra.mxu0 %v8140
        %12691 = vmatprep.subr.bf16.mxu0 %v8145
        %12692 = vmatpush1.bf16.msra.mxu0 %v8144
        %12693 = vmatprep.subr.bf16.mxu0 %v8149
        %12694 = vmatpush1.bf16.msra.mxu0 %v8148
        %12695 = vmatprep.subr.bf16.mxu0 %v8153
        %12696 = vmatpush1.bf16.msra.mxu0 %v8152
        %12697 = vmatprep.subr.bf16.mxu0 %v8157
        %12698 = vmatpush1.bf16.msra.mxu0 %v8156
        %12699 = vmatprep.subr.bf16.mxu0 %v8161
        %12700 = vmatpush1.bf16.msra.mxu0 %v8160
        %12701 = vmatprep.subr.bf16.mxu0 %v8165
        %12702 = vmatpush1.bf16.msra.mxu0 %v8164
        %12703 = vmatprep.subr.bf16.mxu0 %v8169
        %12704 = vmatpush1.bf16.msra.mxu0 %v8168
        %12705 = vmatprep.subr.bf16.mxu0 %v8173
        %12706 = vmatpush1.bf16.msra.mxu0 %v8172
        %12707 = vmatprep.subr.bf16.mxu0 %v8177
        %12708 = vmatpush1.bf16.msra.mxu0 %v8176
        %12709 = vmatprep.subr.bf16.mxu0 %v8181
        %12710 = vmatpush1.bf16.msra.mxu0 %v8180
        %12711 = vmatprep.subr.bf16.mxu0 %v8185
        %12712 = vmatpush1.bf16.msra.mxu0 %v8184
        %12713 = vmatprep.subr.bf16.mxu0 %v8189
        %12714 = vmatpush1.bf16.msra.mxu0 %v8188
        %12715 = vmatprep.subr.bf16.mxu0 %v8193
        %12716 = vmatpush1.bf16.msra.mxu0 %v8192
        %12717 = vmatprep.subr.bf16.mxu0 %v8197
        %12718 = vmatpush1.bf16.msra.mxu0 %v8196
        %12719 = vmatprep.mubr.bf16.mxu0 %v2233
        %12720 = vmatmul.mubr.bf16.gmra.mrb[0].mxu0 %v2231
        %v12721 = vpop.f32.mrb[0].mxu0
        %v12722 = vadd.f32 %v12681, %v12721
        %v12723 = vpop.f32.mrb[0].mxu0
        %v12724 = vadd.f32 %v12683, %v12723
        %v12725 = vpop.f32.mrb[0].mxu0
        %v12726 = vpop.f32.mrb[0].mxu0
        %12727 = vdwg.mxu0
        %12728 = vmatprep.subr.bf16.mxu0 %v8201
        %12729 = vmatpush1.bf16.msra.mxu0 %v8200
        %12730 = vmatprep.subr.bf16.mxu0 %v8205
        %12731 = vmatpush1.bf16.msra.mxu0 %v8204
        %12732 = vmatprep.subr.bf16.mxu0 %v8209
        %12733 = vmatpush1.bf16.msra.mxu0 %v8208
        %12734 = vmatprep.subr.bf16.mxu0 %v8213
        %12735 = vmatpush1.bf16.msra.mxu0 %v8212
        %12736 = vmatprep.subr.bf16.mxu0 %v8217
        %12737 = vmatpush1.bf16.msra.mxu0 %v8216
        %12738 = vmatprep.subr.bf16.mxu0 %v8221
        %12739 = vmatpush1.bf16.msra.mxu0 %v8220
        %12740 = vmatprep.subr.bf16.mxu0 %v8225
        %12741 = vmatpush1.bf16.msra.mxu0 %v8224
        %12742 = vmatprep.subr.bf16.mxu0 %v8229
        %12743 = vmatpush1.bf16.msra.mxu0 %v8228
        %12744 = vmatprep.subr.bf16.mxu0 %v8233
        %12745 = vmatpush1.bf16.msra.mxu0 %v8232
        %12746 = vmatprep.subr.bf16.mxu0 %v8237
        %12747 = vmatpush1.bf16.msra.mxu0 %v8236
        %12748 = vmatprep.subr.bf16.mxu0 %v8241
        %12749 = vmatpush1.bf16.msra.mxu0 %v8240
        %12750 = vmatprep.subr.bf16.mxu0 %v8245
        %12751 = vmatpush1.bf16.msra.mxu0 %v8244
        %12752 = vmatprep.subr.bf16.mxu0 %v8249
        %12753 = vmatpush1.bf16.msra.mxu0 %v8248
        %12754 = vmatprep.subr.bf16.mxu0 %v8253
        %12755 = vmatpush1.bf16.msra.mxu0 %v8252
        %12756 = vmatprep.subr.bf16.mxu0 %v8257
        %12757 = vmatpush1.bf16.msra.mxu0 %v8256
        %12758 = vmatprep.subr.bf16.mxu0 %v8261
        %12759 = vmatpush1.bf16.msra.mxu0 %v8260
        %12760 = vmatprep.mubr.bf16.mxu0 %v2230
        %12761 = vmatmul.mubr.bf16.gmra.mrb[0].mxu0 %v2216
        %v12762 = vpop.f32.mrb[0].mxu0
        %v12763 = vadd.f32 %v12722, %v12762
        %v12764 = vpop.f32.mrb[0].mxu0
        %v12765 = vadd.f32 %v12724, %v12764
        %v12766 = vpop.f32.mrb[0].mxu0
        %v12767 = vpop.f32.mrb[0].mxu0
        %12768 = vdwg.mxu0
        %12769 = vmatprep.subr.bf16.mxu0 %v8265
        %12770 = vmatpush1.bf16.msra.mxu0 %v8264
        %12771 = vmatprep.subr.bf16.mxu0 %v8269
        %12772 = vmatpush1.bf16.msra.mxu0 %v8268
        %12773 = vmatprep.subr.bf16.mxu0 %v8273
        %12774 = vmatpush1.bf16.msra.mxu0 %v8272
        %12775 = vmatprep.subr.bf16.mxu0 %v8277
        %12776 = vmatpush1.bf16.msra.mxu0 %v8276
        %12777 = vmatprep.subr.bf16.mxu0 %v8281
        %12778 = vmatpush1.bf16.msra.mxu0 %v8280
        %12779 = vmatprep.subr.bf16.mxu0 %v8285
        %12780 = vmatpush1.bf16.msra.mxu0 %v8284
        %12781 = vmatprep.subr.bf16.mxu0 %v8289
        %12782 = vmatpush1.bf16.msra.mxu0 %v8288
        %12783 = vmatprep.subr.bf16.mxu0 %v8293
        %12784 = vmatpush1.bf16.msra.mxu0 %v8292
        %12785 = vmatprep.subr.bf16.mxu0 %v8297
        %12786 = vmatpush1.bf16.msra.mxu0 %v8296
        %12787 = vmatprep.subr.bf16.mxu0 %v8301
        %12788 = vmatpush1.bf16.msra.mxu0 %v8300
        %12789 = vmatprep.subr.bf16.mxu0 %v8305
        %12790 = vmatpush1.bf16.msra.mxu0 %v8304
        %12791 = vmatprep.subr.bf16.mxu0 %v8309
        %12792 = vmatpush1.bf16.msra.mxu0 %v8308
        %12793 = vmatprep.subr.bf16.mxu0 %v8313
        %12794 = vmatpush1.bf16.msra.mxu0 %v8312
        %12795 = vmatprep.subr.bf16.mxu0 %v8317
        %12796 = vmatpush1.bf16.msra.mxu0 %v8316
        %12797 = vmatprep.subr.bf16.mxu0 %v8321
        %12798 = vmatpush1.bf16.msra.mxu0 %v8320
        %12799 = vmatprep.subr.bf16.mxu0 %v8325
        %12800 = vmatpush1.bf16.msra.mxu0 %v8324
        %12801 = vmatprep.mubr.bf16.mxu0 %v2234
        %12802 = vmatmul.mubr.bf16.gmra.mrb[0].mxu0 %v2232
        %v12803 = vpop.f32.mrb[0].mxu0
        %v12804 = vadd.f32 %v12763, %v12803
        %v12805 = vpop.f32.mrb[0].mxu0
        %v12806 = vadd.f32 %v12765, %v12805
        %v12807 = vpop.f32.mrb[0].mxu0
        %v12808 = vpop.f32.mrb[0].mxu0
        %12809 = vdwg.mxu0
        %12810 = vmatprep.subr.bf16.mxu0 %v8329
        %12811 = vmatpush1.bf16.msra.mxu0 %v8328
        %12812 = vmatprep.subr.bf16.mxu0 %v8333
        %12813 = vmatpush1.bf16.msra.mxu0 %v8332
        %12814 = vmatprep.subr.bf16.mxu0 %v8337
        %12815 = vmatpush1.bf16.msra.mxu0 %v8336
        %12816 = vmatprep.subr.bf16.mxu0 %v8341
        %12817 = vmatpush1.bf16.msra.mxu0 %v8340
        %12818 = vmatprep.subr.bf16.mxu0 %v8345
        %12819 = vmatpush1.bf16.msra.mxu0 %v8344
        %12820 = vmatprep.subr.bf16.mxu0 %v8349
        %12821 = vmatpush1.bf16.msra.mxu0 %v8348
        %12822 = vmatprep.subr.bf16.mxu0 %v8353
        %12823 = vmatpush1.bf16.msra.mxu0 %v8352
        %12824 = vmatprep.subr.bf16.mxu0 %v8357
        %12825 = vmatpush1.bf16.msra.mxu0 %v8356
        %12826 = vmatprep.subr.bf16.mxu0 %v8361
        %12827 = vmatpush1.bf16.msra.mxu0 %v8360
        %12828 = vmatprep.subr.bf16.mxu0 %v8365
        %12829 = vmatpush1.bf16.msra.mxu0 %v8364
        %12830 = vmatprep.subr.bf16.mxu0 %v8369
        %12831 = vmatpush1.bf16.msra.mxu0 %v8368
        %12832 = vmatprep.subr.bf16.mxu0 %v8373
        %12833 = vmatpush1.bf16.msra.mxu0 %v8372
        %12834 = vmatprep.subr.bf16.mxu0 %v8377
        %12835 = vmatpush1.bf16.msra.mxu0 %v8376
        %12836 = vmatprep.subr.bf16.mxu0 %v8381
        %12837 = vmatpush1.bf16.msra.mxu0 %v8380
        %12838 = vmatprep.subr.bf16.mxu0 %v8385
        %12839 = vmatpush1.bf16.msra.mxu0 %v8384
        %12840 = vmatprep.subr.bf16.mxu0 %v8389
        %12841 = vmatpush1.bf16.msra.mxu0 %v8388
        %12842 = vmatprep.mubr.bf16.mxu0 %v2272
        %12843 = vmatmul.mubr.bf16.gmra.mrb[0].mxu0 %v2258
        %v12844 = vpop.f32.mrb[0].mxu0
        %v12845 = vadd.f32 %v12804, %v12844
        %v12846 = vpop.f32.mrb[0].mxu0
        %v12847 = vadd.f32 %v12806, %v12846
        %v12848 = vpop.f32.mrb[0].mxu0
        %v12849 = vpop.f32.mrb[0].mxu0
        %12850 = vdwg.mxu0
        %12851 = vmatprep.subr.bf16.mxu0 %v8393
        %12852 = vmatpush1.bf16.msra.mxu0 %v8392
        %12853 = vmatprep.subr.bf16.mxu0 %v8397
        %12854 = vmatpush1.bf16.msra.mxu0 %v8396
        %12855 = vmatprep.subr.bf16.mxu0 %v8401
        %12856 = vmatpush1.bf16.msra.mxu0 %v8400
        %12857 = vmatprep.subr.bf16.mxu0 %v8405
        %12858 = vmatpush1.bf16.msra.mxu0 %v8404
        %12859 = vmatprep.subr.bf16.mxu0 %v8409
        %12860 = vmatpush1.bf16.msra.mxu0 %v8408
        %12861 = vmatprep.subr.bf16.mxu0 %v8413
        %12862 = vmatpush1.bf16.msra.mxu0 %v8412
        %12863 = vmatprep.subr.bf16.mxu0 %v8417
        %12864 = vmatpush1.bf16.msra.mxu0 %v8416
        %12865 = vmatprep.subr.bf16.mxu0 %v8421
        %12866 = vmatpush1.bf16.msra.mxu0 %v8420
        %12867 = vmatprep.subr.bf16.mxu0 %v8425
        %12868 = vmatpush1.bf16.msra.mxu0 %v8424
        %12869 = vmatprep.subr.bf16.mxu0 %v8429
        %12870 = vmatpush1.bf16.msra.mxu0 %v8428
        %12871 = vmatprep.subr.bf16.mxu0 %v8433
        %12872 = vmatpush1.bf16.msra.mxu0 %v8432
        %12873 = vmatprep.subr.bf16.mxu0 %v8437
        %12874 = vmatpush1.bf16.msra.mxu0 %v8436
        %12875 = vmatprep.subr.bf16.mxu0 %v8441
        %12876 = vmatpush1.bf16.msra.mxu0 %v8440
        %12877 = vmatprep.subr.bf16.mxu0 %v8445
        %12878 = vmatpush1.bf16.msra.mxu0 %v8444
        %12879 = vmatprep.subr.bf16.mxu0 %v8449
        %12880 = vmatpush1.bf16.msra.mxu0 %v8448
        %12881 = vmatprep.subr.bf16.mxu0 %v8453
        %12882 = vmatpush1.bf16.msra.mxu0 %v8452
        %12883 = vmatprep.mubr.bf16.mxu0 %v2282
        %12884 = vmatmul.mubr.bf16.gmra.mrb[0].mxu0 %v2280
        %v12885 = vpop.f32.mrb[0].mxu0
        %v12886 = vadd.f32 %v12845, %v12885
        %v12887 = vpop.f32.mrb[0].mxu0
        %v12888 = vadd.f32 %v12847, %v12887
        %v12889 = vpop.f32.mrb[0].mxu0
        %v12890 = vpop.f32.mrb[0].mxu0
        %12891 = vdwg.mxu0
        %12892 = vmatprep.subr.bf16.mxu0 %v8457
        %12893 = vmatpush1.bf16.msra.mxu0 %v8456
        %12894 = vmatprep.subr.bf16.mxu0 %v8461
        %12895 = vmatpush1.bf16.msra.mxu0 %v8460
        %12896 = vmatprep.subr.bf16.mxu0 %v8465
        %12897 = vmatpush1.bf16.msra.mxu0 %v8464
        %12898 = vmatprep.subr.bf16.mxu0 %v8469
        %12899 = vmatpush1.bf16.msra.mxu0 %v8468
        %12900 = vmatprep.subr.bf16.mxu0 %v8473
        %12901 = vmatpush1.bf16.msra.mxu0 %v8472
        %12902 = vmatprep.subr.bf16.mxu0 %v8477
        %12903 = vmatpush1.bf16.msra.mxu0 %v8476
        %12904 = vmatprep.subr.bf16.mxu0 %v8481
        %12905 = vmatpush1.bf16.msra.mxu0 %v8480
        %12906 = vmatprep.subr.bf16.mxu0 %v8485
        %12907 = vmatpush1.bf16.msra.mxu0 %v8484
        %12908 = vmatprep.subr.bf16.mxu0 %v8489
        %12909 = vmatpush1.bf16.msra.mxu0 %v8488
        %12910 = vmatprep.subr.bf16.mxu0 %v8493
        %12911 = vmatpush1.bf16.msra.mxu0 %v8492
        %12912 = vmatprep.subr.bf16.mxu0 %v8497
        %12913 = vmatpush1.bf16.msra.mxu0 %v8496
        %12914 = vmatprep.subr.bf16.mxu0 %v8501
        %12915 = vmatpush1.bf16.msra.mxu0 %v8500
        %12916 = vmatprep.subr.bf16.mxu0 %v8505
        %12917 = vmatpush1.bf16.msra.mxu0 %v8504
        %12918 = vmatprep.subr.bf16.mxu0 %v8509
        %12919 = vmatpush1.bf16.msra.mxu0 %v8508
        %12920 = vmatprep.subr.bf16.mxu0 %v8513
        %12921 = vmatpush1.bf16.msra.mxu0 %v8512
        %12922 = vmatprep.subr.bf16.mxu0 %v8517
        %12923 = vmatpush1.bf16.msra.mxu0 %v8516
        %12924 = vmatprep.mubr.bf16.mxu0 %v2279
        %12925 = vmatmul.mubr.bf16.gmra.mrb[0].mxu0 %v2265
        %v12926 = vpop.f32.mrb[0].mxu0
        %v12927 = vadd.f32 %v12886, %v12926
        %v12928 = vpop.f32.mrb[0].mxu0
        %v12929 = vadd.f32 %v12888, %v12928
        %v12930 = vpop.f32.mrb[0].mxu0
        %v12931 = vpop.f32.mrb[0].mxu0
        %12932 = vdwg.mxu0
        %12933 = vmatprep.subr.bf16.mxu0 %v8521
        %12934 = vmatpush1.bf16.msra.mxu0 %v8520
        %12935 = vmatprep.subr.bf16.mxu0 %v8525
        %12936 = vmatpush1.bf16.msra.mxu0 %v8524
        %12937 = vmatprep.subr.bf16.mxu0 %v8529
        %12938 = vmatpush1.bf16.msra.mxu0 %v8528
        %12939 = vmatprep.subr.bf16.mxu0 %v8533
        %12940 = vmatpush1.bf16.msra.mxu0 %v8532
        %12941 = vmatprep.subr.bf16.mxu0 %v8537
        %12942 = vmatpush1.bf16.msra.mxu0 %v8536
        %12943 = vmatprep.subr.bf16.mxu0 %v8541
        %12944 = vmatpush1.bf16.msra.mxu0 %v8540
        %12945 = vmatprep.subr.bf16.mxu0 %v8545
        %12946 = vmatpush1.bf16.msra.mxu0 %v8544
        %12947 = vmatprep.subr.bf16.mxu0 %v8549
        %12948 = vmatpush1.bf16.msra.mxu0 %v8548
        %12949 = vmatprep.subr.bf16.mxu0 %v8553
        %12950 = vmatpush1.bf16.msra.mxu0 %v8552
        %12951 = vmatprep.subr.bf16.mxu0 %v8557
        %12952 = vmatpush1.bf16.msra.mxu0 %v8556
        %12953 = vmatprep.subr.bf16.mxu0 %v8561
        %12954 = vmatpush1.bf16.msra.mxu0 %v8560
        %12955 = vmatprep.subr.bf16.mxu0 %v8565
        %12956 = vmatpush1.bf16.msra.mxu0 %v8564
        %12957 = vmatprep.subr.bf16.mxu0 %v8569
        %12958 = vmatpush1.bf16.msra.mxu0 %v8568
        %12959 = vmatprep.subr.bf16.mxu0 %v8573
        %12960 = vmatpush1.bf16.msra.mxu0 %v8572
        %12961 = vmatprep.subr.bf16.mxu0 %v8577
        %12962 = vmatpush1.bf16.msra.mxu0 %v8576
        %12963 = vmatprep.subr.bf16.mxu0 %v8581
        %12964 = vmatpush1.bf16.msra.mxu0 %v8580
        %12965 = vmatprep.mubr.bf16.mxu0 %v2283
        %12966 = vmatmul.mubr.bf16.gmra.mrb[0].mxu0 %v2281
        %v12967 = vpop.f32.mrb[0].mxu0
        %v12968 = vadd.f32 %v12927, %v12967
        %v12969 = vpop.f32.mrb[0].mxu0
        %v12970 = vadd.f32 %v12929, %v12969
        %v12971 = vpop.f32.mrb[0].mxu0
        %v12972 = vpop.f32.mrb[0].mxu0
        %12973 = vdwg.mxu0
        %12974 = vmatprep.subr.bf16.mxu0 %v8585
        %12975 = vmatpush1.bf16.msra.mxu0 %v8584
        %12976 = vmatprep.subr.bf16.mxu0 %v8589
        %12977 = vmatpush1.bf16.msra.mxu0 %v8588
        %12978 = vmatprep.subr.bf16.mxu0 %v8593
        %12979 = vmatpush1.bf16.msra.mxu0 %v8592
        %12980 = vmatprep.subr.bf16.mxu0 %v8597
        %12981 = vmatpush1.bf16.msra.mxu0 %v8596
        %12982 = vmatprep.subr.bf16.mxu0 %v8601
        %12983 = vmatpush1.bf16.msra.mxu0 %v8600
        %12984 = vmatprep.subr.bf16.mxu0 %v8605
        %12985 = vmatpush1.bf16.msra.mxu0 %v8604
        %12986 = vmatprep.subr.bf16.mxu0 %v8609
        %12987 = vmatpush1.bf16.msra.mxu0 %v8608
        %12988 = vmatprep.subr.bf16.mxu0 %v8613
        %12989 = vmatpush1.bf16.msra.mxu0 %v8612
        %12990 = vmatprep.subr.bf16.mxu0 %v8617
        %12991 = vmatpush1.bf16.msra.mxu0 %v8616
        %12992 = vmatprep.subr.bf16.mxu0 %v8621
        %12993 = vmatpush1.bf16.msra.mxu0 %v8620
        %12994 = vmatprep.subr.bf16.mxu0 %v8625
        %12995 = vmatpush1.bf16.msra.mxu0 %v8624
        %12996 = vmatprep.subr.bf16.mxu0 %v8629
        %12997 = vmatpush1.bf16.msra.mxu0 %v8628
        %12998 = vmatprep.subr.bf16.mxu0 %v8633
        %12999 = vmatpush1.bf16.msra.mxu0 %v8632
        %13000 = vmatprep.subr.bf16.mxu0 %v8637
        %13001 = vmatpush1.bf16.msra.mxu0 %v8636
        %13002 = vmatprep.subr.bf16.mxu0 %v8641
        %13003 = vmatpush1.bf16.msra.mxu0 %v8640
        %13004 = vmatprep.subr.bf16.mxu0 %v8645
        %13005 = vmatpush1.bf16.msra.mxu0 %v8644
        %13006 = vmatprep.mubr.bf16.mxu0 %v2321
        %13007 = vmatmul.mubr.bf16.gmra.mrb[0].mxu0 %v2307
        %v13008 = vpop.f32.mrb[0].mxu0
        %v13009 = vadd.f32 %v12968, %v13008
        %v13010 = vpop.f32.mrb[0].mxu0
        %v13011 = vadd.f32 %v12970, %v13010
        %v13012 = vpop.f32.mrb[0].mxu0
        %v13013 = vpop.f32.mrb[0].mxu0
        %13014 = vdwg.mxu0
        %13015 = vmatprep.subr.bf16.mxu0 %v8649
        %13016 = vmatpush1.bf16.msra.mxu0 %v8648
        %13017 = vmatprep.subr.bf16.mxu0 %v8653
        %13018 = vmatpush1.bf16.msra.mxu0 %v8652
        %13019 = vmatprep.subr.bf16.mxu0 %v8657
        %13020 = vmatpush1.bf16.msra.mxu0 %v8656
        %13021 = vmatprep.subr.bf16.mxu0 %v8661
        %13022 = vmatpush1.bf16.msra.mxu0 %v8660
        %13023 = vmatprep.subr.bf16.mxu0 %v8665
        %13024 = vmatpush1.bf16.msra.mxu0 %v8664
        %13025 = vmatprep.subr.bf16.mxu0 %v8669
        %13026 = vmatpush1.bf16.msra.mxu0 %v8668
        %13027 = vmatprep.subr.bf16.mxu0 %v8673
        %13028 = vmatpush1.bf16.msra.mxu0 %v8672
        %13029 = vmatprep.subr.bf16.mxu0 %v8677
        %13030 = vmatpush1.bf16.msra.mxu0 %v8676
        %13031 = vmatprep.subr.bf16.mxu0 %v8681
        %13032 = vmatpush1.bf16.msra.mxu0 %v8680
        %13033 = vmatprep.subr.bf16.mxu0 %v8685
        %13034 = vmatpush1.bf16.msra.mxu0 %v8684
        %13035 = vmatprep.subr.bf16.mxu0 %v8689
        %13036 = vmatpush1.bf16.msra.mxu0 %v8688
        %13037 = vmatprep.subr.bf16.mxu0 %v8693
        %13038 = vmatpush1.bf16.msra.mxu0 %v8692
        %13039 = vmatprep.subr.bf16.mxu0 %v8697
        %13040 = vmatpush1.bf16.msra.mxu0 %v8696
        %13041 = vmatprep.subr.bf16.mxu0 %v8701
        %13042 = vmatpush1.bf16.msra.mxu0 %v8700
        %13043 = vmatprep.subr.bf16.mxu0 %v8705
        %13044 = vmatpush1.bf16.msra.mxu0 %v8704
        %13045 = vmatprep.subr.bf16.mxu0 %v8709
        %13046 = vmatpush1.bf16.msra.mxu0 %v8708
        %13047 = vmatprep.mubr.bf16.mxu0 %v2331
        %13048 = vmatmul.mubr.bf16.gmra.mrb[0].mxu0 %v2329
        %v13049 = vpop.f32.mrb[0].mxu0
        %v13050 = vadd.f32 %v13009, %v13049
        %v13051 = vpop.f32.mrb[0].mxu0
        %v13052 = vadd.f32 %v13011, %v13051
        %v13053 = vpop.f32.mrb[0].mxu0
        %v13054 = vpop.f32.mrb[0].mxu0
        %13055 = vdwg.mxu0
        %13056 = vmatprep.subr.bf16.mxu0 %v8713
        %13057 = vmatpush1.bf16.msra.mxu0 %v8712
        %13058 = vmatprep.subr.bf16.mxu0 %v8717
        %13059 = vmatpush1.bf16.msra.mxu0 %v8716
        %13060 = vmatprep.subr.bf16.mxu0 %v8721
        %13061 = vmatpush1.bf16.msra.mxu0 %v8720
        %13062 = vmatprep.subr.bf16.mxu0 %v8725
        %13063 = vmatpush1.bf16.msra.mxu0 %v8724
        %13064 = vmatprep.subr.bf16.mxu0 %v8729
        %13065 = vmatpush1.bf16.msra.mxu0 %v8728
        %13066 = vmatprep.subr.bf16.mxu0 %v8733
        %13067 = vmatpush1.bf16.msra.mxu0 %v8732
        %13068 = vmatprep.subr.bf16.mxu0 %v8737
        %13069 = vmatpush1.bf16.msra.mxu0 %v8736
        %13070 = vmatprep.subr.bf16.mxu0 %v8741
        %13071 = vmatpush1.bf16.msra.mxu0 %v8740
        %13072 = vmatprep.subr.bf16.mxu0 %v8745
        %13073 = vmatpush1.bf16.msra.mxu0 %v8744
        %13074 = vmatprep.subr.bf16.mxu0 %v8749
        %13075 = vmatpush1.bf16.msra.mxu0 %v8748
        %13076 = vmatprep.subr.bf16.mxu0 %v8753
        %13077 = vmatpush1.bf16.msra.mxu0 %v8752
        %13078 = vmatprep.subr.bf16.mxu0 %v8757
        %13079 = vmatpush1.bf16.msra.mxu0 %v8756
        %13080 = vmatprep.subr.bf16.mxu0 %v8761
        %13081 = vmatpush1.bf16.msra.mxu0 %v8760
        %13082 = vmatprep.subr.bf16.mxu0 %v8765
        %13083 = vmatpush1.bf16.msra.mxu0 %v8764
        %13084 = vmatprep.subr.bf16.mxu0 %v8769
        %13085 = vmatpush1.bf16.msra.mxu0 %v8768
        %13086 = vmatprep.subr.bf16.mxu0 %v8773
        %13087 = vmatpush1.bf16.msra.mxu0 %v8772
        %13088 = vmatprep.mubr.bf16.mxu0 %v2328
        %13089 = vmatmul.mubr.bf16.gmra.mrb[0].mxu0 %v2314
        %v13090 = vpop.f32.mrb[0].mxu0
        %v13091 = vadd.f32 %v13050, %v13090
        %v13092 = vpop.f32.mrb[0].mxu0
        %v13093 = vadd.f32 %v13052, %v13092
        %v13094 = vpop.f32.mrb[0].mxu0
        %v13095 = vpop.f32.mrb[0].mxu0
        %13096 = vdwg.mxu0
        %13097 = vmatprep.subr.bf16.mxu0 %v8777
        %13098 = vmatpush1.bf16.msra.mxu0 %v8776
        %13099 = vmatprep.subr.bf16.mxu0 %v8781
        %13100 = vmatpush1.bf16.msra.mxu0 %v8780
        %13101 = vmatprep.subr.bf16.mxu0 %v8785
        %13102 = vmatpush1.bf16.msra.mxu0 %v8784
        %13103 = vmatprep.subr.bf16.mxu0 %v8789
        %13104 = vmatpush1.bf16.msra.mxu0 %v8788
        %13105 = vmatprep.subr.bf16.mxu0 %v8793
        %13106 = vmatpush1.bf16.msra.mxu0 %v8792
        %13107 = vmatprep.subr.bf16.mxu0 %v8797
        %13108 = vmatpush1.bf16.msra.mxu0 %v8796
        %13109 = vmatprep.subr.bf16.mxu0 %v8801
        %13110 = vmatpush1.bf16.msra.mxu0 %v8800
        %13111 = vmatprep.subr.bf16.mxu0 %v8805
        %13112 = vmatpush1.bf16.msra.mxu0 %v8804
        %13113 = vmatprep.subr.bf16.mxu0 %v8809
        %13114 = vmatpush1.bf16.msra.mxu0 %v8808
        %13115 = vmatprep.subr.bf16.mxu0 %v8813
        %13116 = vmatpush1.bf16.msra.mxu0 %v8812
        %13117 = vmatprep.subr.bf16.mxu0 %v8817
        %13118 = vmatpush1.bf16.msra.mxu0 %v8816
        %13119 = vmatprep.subr.bf16.mxu0 %v8821
        %13120 = vmatpush1.bf16.msra.mxu0 %v8820
        %13121 = vmatprep.subr.bf16.mxu0 %v8825
        %13122 = vmatpush1.bf16.msra.mxu0 %v8824
        %13123 = vmatprep.subr.bf16.mxu0 %v8829
        %13124 = vmatpush1.bf16.msra.mxu0 %v8828
        %13125 = vmatprep.subr.bf16.mxu0 %v8833
        %13126 = vmatpush1.bf16.msra.mxu0 %v8832
        %13127 = vmatprep.subr.bf16.mxu0 %v8837
        %13128 = vmatpush1.bf16.msra.mxu0 %v8836
        %13129 = vmatprep.mubr.bf16.mxu0 %v2332
        %13130 = vmatmul.mubr.bf16.gmra.mrb[0].mxu0 %v2330
        %v13131 = vpop.f32.mrb[0].mxu0
        %v13132 = vadd.f32 %v13091, %v13131
        %v13133 = vpop.f32.mrb[0].mxu0
        %v13134 = vadd.f32 %v13093, %v13133
        %v13135 = vpop.f32.mrb[0].mxu0
        %v13136 = vpop.f32.mrb[0].mxu0
        %13137 = vdwg.mxu0
        %13138 = vmatprep.subr.bf16.mxu0 %v8841
        %13139 = vmatpush1.bf16.msra.mxu0 %v8840
        %13140 = vmatprep.subr.bf16.mxu0 %v8845
        %13141 = vmatpush1.bf16.msra.mxu0 %v8844
        %13142 = vmatprep.subr.bf16.mxu0 %v8849
        %13143 = vmatpush1.bf16.msra.mxu0 %v8848
        %13144 = vmatprep.subr.bf16.mxu0 %v8853
        %13145 = vmatpush1.bf16.msra.mxu0 %v8852
        %13146 = vmatprep.subr.bf16.mxu0 %v8857
        %13147 = vmatpush1.bf16.msra.mxu0 %v8856
        %13148 = vmatprep.subr.bf16.mxu0 %v8861
        %13149 = vmatpush1.bf16.msra.mxu0 %v8860
        %13150 = vmatprep.subr.bf16.mxu0 %v8865
        %13151 = vmatpush1.bf16.msra.mxu0 %v8864
        %13152 = vmatprep.subr.bf16.mxu0 %v8869
        %13153 = vmatpush1.bf16.msra.mxu0 %v8868
        %13154 = vmatprep.subr.bf16.mxu0 %v8873
        %13155 = vmatpush1.bf16.msra.mxu0 %v8872
        %13156 = vmatprep.subr.bf16.mxu0 %v8877
        %13157 = vmatpush1.bf16.msra.mxu0 %v8876
        %13158 = vmatprep.subr.bf16.mxu0 %v8881
        %13159 = vmatpush1.bf16.msra.mxu0 %v8880
        %13160 = vmatprep.subr.bf16.mxu0 %v8885
        %13161 = vmatpush1.bf16.msra.mxu0 %v8884
        %13162 = vmatprep.subr.bf16.mxu0 %v8889
        %13163 = vmatpush1.bf16.msra.mxu0 %v8888
        %13164 = vmatprep.subr.bf16.mxu0 %v8893
        %13165 = vmatpush1.bf16.msra.mxu0 %v8892
        %13166 = vmatprep.subr.bf16.mxu0 %v8897
        %13167 = vmatpush1.bf16.msra.mxu0 %v8896
        %13168 = vmatprep.subr.bf16.mxu0 %v8901
        %13169 = vmatpush1.bf16.msra.mxu0 %v8900
        %13170 = vmatprep.mubr.bf16.mxu0 %v2370
        %13171 = vmatmul.mubr.bf16.gmra.mrb[0].mxu0 %v2356
        %v13172 = vpop.f32.mrb[0].mxu0
        %v13173 = vadd.f32 %v13132, %v13172
        %v13174 = vpop.f32.mrb[0].mxu0
        %v13175 = vadd.f32 %v13134, %v13174
        %v13176 = vpop.f32.mrb[0].mxu0
        %v13177 = vpop.f32.mrb[0].mxu0
        %13178 = vdwg.mxu0
        %13179 = vmatprep.subr.bf16.mxu0 %v8905
        %13180 = vmatpush1.bf16.msra.mxu0 %v8904
        %13181 = vmatprep.subr.bf16.mxu0 %v8909
        %13182 = vmatpush1.bf16.msra.mxu0 %v8908
        %13183 = vmatprep.subr.bf16.mxu0 %v8913
        %13184 = vmatpush1.bf16.msra.mxu0 %v8912
        %13185 = vmatprep.subr.bf16.mxu0 %v8917
        %13186 = vmatpush1.bf16.msra.mxu0 %v8916
        %13187 = vmatprep.subr.bf16.mxu0 %v8921
        %13188 = vmatpush1.bf16.msra.mxu0 %v8920
        %13189 = vmatprep.subr.bf16.mxu0 %v8925
        %13190 = vmatpush1.bf16.msra.mxu0 %v8924
        %13191 = vmatprep.subr.bf16.mxu0 %v8929
        %13192 = vmatpush1.bf16.msra.mxu0 %v8928
        %13193 = vmatprep.subr.bf16.mxu0 %v8933
        %13194 = vmatpush1.bf16.msra.mxu0 %v8932
        %13195 = vmatprep.subr.bf16.mxu0 %v8937
        %13196 = vmatpush1.bf16.msra.mxu0 %v8936
        %13197 = vmatprep.subr.bf16.mxu0 %v8941
        %13198 = vmatpush1.bf16.msra.mxu0 %v8940
        %13199 = vmatprep.subr.bf16.mxu0 %v8945
        %13200 = vmatpush1.bf16.msra.mxu0 %v8944
        %13201 = vmatprep.subr.bf16.mxu0 %v8949
        %13202 = vmatpush1.bf16.msra.mxu0 %v8948
        %13203 = vmatprep.subr.bf16.mxu0 %v8953
        %13204 = vmatpush1.bf16.msra.mxu0 %v8952
        %13205 = vmatprep.subr.bf16.mxu0 %v8957
        %13206 = vmatpush1.bf16.msra.mxu0 %v8956
        %13207 = vmatprep.subr.bf16.mxu0 %v8961
        %13208 = vmatpush1.bf16.msra.mxu0 %v8960
        %13209 = vmatprep.subr.bf16.mxu0 %v8965
        %13210 = vmatpush1.bf16.msra.mxu0 %v8964
        %13211 = vmatprep.mubr.bf16.mxu0 %v2380
        %13212 = vmatmul.mubr.bf16.gmra.mrb[0].mxu0 %v2378
        %v13213 = vpop.f32.mrb[0].mxu0
        %v13214 = vadd.f32 %v13173, %v13213
        %v13215 = vpop.f32.mrb[0].mxu0
        %v13216 = vadd.f32 %v13175, %v13215
        %v13217 = vpop.f32.mrb[0].mxu0
        %v13218 = vpop.f32.mrb[0].mxu0
        %13219 = vdwg.mxu0
        %13220 = vmatprep.subr.bf16.mxu0 %v8969
        %13221 = vmatpush1.bf16.msra.mxu0 %v8968
        %13222 = vmatprep.subr.bf16.mxu0 %v8973
        %13223 = vmatpush1.bf16.msra.mxu0 %v8972
        %13224 = vmatprep.subr.bf16.mxu0 %v8977
        %13225 = vmatpush1.bf16.msra.mxu0 %v8976
        %13226 = vmatprep.subr.bf16.mxu0 %v8981
        %13227 = vmatpush1.bf16.msra.mxu0 %v8980
        %13228 = vmatprep.subr.bf16.mxu0 %v8985
        %13229 = vmatpush1.bf16.msra.mxu0 %v8984
        %13230 = vmatprep.subr.bf16.mxu0 %v8989
        %13231 = vmatpush1.bf16.msra.mxu0 %v8988
        %13232 = vmatprep.subr.bf16.mxu0 %v8993
        %13233 = vmatpush1.bf16.msra.mxu0 %v8992
        %13234 = vmatprep.subr.bf16.mxu0 %v8997
        %13235 = vmatpush1.bf16.msra.mxu0 %v8996
        %13236 = vmatprep.subr.bf16.mxu0 %v9001
        %13237 = vmatpush1.bf16.msra.mxu0 %v9000
        %13238 = vmatprep.subr.bf16.mxu0 %v9005
        %13239 = vmatpush1.bf16.msra.mxu0 %v9004
        %13240 = vmatprep.subr.bf16.mxu0 %v9009
        %13241 = vmatpush1.bf16.msra.mxu0 %v9008
        %13242 = vmatprep.subr.bf16.mxu0 %v9013
        %13243 = vmatpush1.bf16.msra.mxu0 %v9012
        %13244 = vmatprep.subr.bf16.mxu0 %v9017
        %13245 = vmatpush1.bf16.msra.mxu0 %v9016
        %13246 = vmatprep.subr.bf16.mxu0 %v9021
        %13247 = vmatpush1.bf16.msra.mxu0 %v9020
        %13248 = vmatprep.subr.bf16.mxu0 %v9025
        %13249 = vmatpush1.bf16.msra.mxu0 %v9024
        %13250 = vmatprep.subr.bf16.mxu0 %v9029
        %13251 = vmatpush1.bf16.msra.mxu0 %v9028
        %13252 = vmatprep.mubr.bf16.mxu0 %v2377
        %13253 = vmatmul.mubr.bf16.gmra.mrb[0].mxu0 %v2363
        %v13254 = vpop.f32.mrb[0].mxu0
        %v13255 = vadd.f32 %v13214, %v13254
        %v13256 = vpop.f32.mrb[0].mxu0
        %v13257 = vadd.f32 %v13216, %v13256
        %v13258 = vpop.f32.mrb[0].mxu0
        %v13259 = vpop.f32.mrb[0].mxu0
        %13260 = vdwg.mxu0
        %13261 = vmatprep.subr.bf16.mxu0 %v9033
        %13262 = vmatpush1.bf16.msra.mxu0 %v9032
        %13263 = vmatprep.subr.bf16.mxu0 %v9037
        %13264 = vmatpush1.bf16.msra.mxu0 %v9036
        %13265 = vmatprep.subr.bf16.mxu0 %v9041
        %13266 = vmatpush1.bf16.msra.mxu0 %v9040
        %13267 = vmatprep.subr.bf16.mxu0 %v9045
        %13268 = vmatpush1.bf16.msra.mxu0 %v9044
        %13269 = vmatprep.subr.bf16.mxu0 %v9049
        %13270 = vmatpush1.bf16.msra.mxu0 %v9048
        %13271 = vmatprep.subr.bf16.mxu0 %v9053
        %13272 = vmatpush1.bf16.msra.mxu0 %v9052
        %13273 = vmatprep.subr.bf16.mxu0 %v9057
        %13274 = vmatpush1.bf16.msra.mxu0 %v9056
        %13275 = vmatprep.subr.bf16.mxu0 %v9061
        %13276 = vmatpush1.bf16.msra.mxu0 %v9060
        %13277 = vmatprep.subr.bf16.mxu0 %v9065
        %13278 = vmatpush1.bf16.msra.mxu0 %v9064
        %13279 = vmatprep.subr.bf16.mxu0 %v9069
        %13280 = vmatpush1.bf16.msra.mxu0 %v9068
        %13281 = vmatprep.subr.bf16.mxu0 %v9073
        %13282 = vmatpush1.bf16.msra.mxu0 %v9072
        %13283 = vmatprep.subr.bf16.mxu0 %v9077
        %13284 = vmatpush1.bf16.msra.mxu0 %v9076
        %13285 = vmatprep.subr.bf16.mxu0 %v9081
        %13286 = vmatpush1.bf16.msra.mxu0 %v9080
        %13287 = vmatprep.subr.bf16.mxu0 %v9085
        %13288 = vmatpush1.bf16.msra.mxu0 %v9084
        %13289 = vmatprep.subr.bf16.mxu0 %v9089
        %13290 = vmatpush1.bf16.msra.mxu0 %v9088
        %13291 = vmatprep.subr.bf16.mxu0 %v9093
        %13292 = vmatpush1.bf16.msra.mxu0 %v9092
        %13293 = vmatprep.mubr.bf16.mxu0 %v2381
        %13294 = vmatmul.mubr.bf16.gmra.mrb[0].mxu0 %v2379
        %v13295 = vpop.f32.mrb[0].mxu0
        %v13296 = vadd.f32 %v13255, %v13295
        %v13297 = vpop.f32.mrb[0].mxu0
        %v13298 = vadd.f32 %v13257, %v13297
        %v13299 = vpop.f32.mrb[0].mxu0
        %v13300 = vpop.f32.mrb[0].mxu0
        %13301 = vdwg.mxu0
        %13302 = vmatprep.subr.bf16.mxu0 %v9097
        %13303 = vmatpush1.bf16.msra.mxu0 %v9096
        %13304 = vmatprep.subr.bf16.mxu0 %v9101
        %13305 = vmatpush1.bf16.msra.mxu0 %v9100
        %13306 = vmatprep.subr.bf16.mxu0 %v9105
        %13307 = vmatpush1.bf16.msra.mxu0 %v9104
        %13308 = vmatprep.subr.bf16.mxu0 %v9109
        %13309 = vmatpush1.bf16.msra.mxu0 %v9108
        %13310 = vmatprep.subr.bf16.mxu0 %v9113
        %13311 = vmatpush1.bf16.msra.mxu0 %v9112
        %13312 = vmatprep.subr.bf16.mxu0 %v9117
        %13313 = vmatpush1.bf16.msra.mxu0 %v9116
        %13314 = vmatprep.subr.bf16.mxu0 %v9121
        %13315 = vmatpush1.bf16.msra.mxu0 %v9120
        %13316 = vmatprep.subr.bf16.mxu0 %v9125
        %13317 = vmatpush1.bf16.msra.mxu0 %v9124
        %13318 = vmatprep.subr.bf16.mxu0 %v9129
        %13319 = vmatpush1.bf16.msra.mxu0 %v9128
        %13320 = vmatprep.subr.bf16.mxu0 %v9133
        %13321 = vmatpush1.bf16.msra.mxu0 %v9132
        %13322 = vmatprep.subr.bf16.mxu0 %v9137
        %13323 = vmatpush1.bf16.msra.mxu0 %v9136
        %13324 = vmatprep.subr.bf16.mxu0 %v9141
        %13325 = vmatpush1.bf16.msra.mxu0 %v9140
        %13326 = vmatprep.subr.bf16.mxu0 %v9145
        %13327 = vmatpush1.bf16.msra.mxu0 %v9144
        %13328 = vmatprep.subr.bf16.mxu0 %v9149
        %13329 = vmatpush1.bf16.msra.mxu0 %v9148
        %13330 = vmatprep.subr.bf16.mxu0 %v9153
        %13331 = vmatpush1.bf16.msra.mxu0 %v9152
        %13332 = vmatprep.subr.bf16.mxu0 %v9157
        %13333 = vmatpush1.bf16.msra.mxu0 %v9156
        %13334 = vmatprep.mubr.bf16.mxu0 %v2419
        %13335 = vmatmul.mubr.bf16.gmra.mrb[0].mxu0 %v2405
        %v13336 = vpop.f32.mrb[0].mxu0
        %v13337 = vadd.f32 %v13296, %v13336
        %v13338 = vpop.f32.mrb[0].mxu0
        %v13339 = vadd.f32 %v13298, %v13338
        %v13340 = vpop.f32.mrb[0].mxu0
        %v13341 = vpop.f32.mrb[0].mxu0
        %13342 = vdwg.mxu0
        %13343 = vmatprep.subr.bf16.mxu0 %v9161
        %13344 = vmatpush1.bf16.msra.mxu0 %v9160
        %13345 = vmatprep.subr.bf16.mxu0 %v9165
        %13346 = vmatpush1.bf16.msra.mxu0 %v9164
        %13347 = vmatprep.subr.bf16.mxu0 %v9169
        %13348 = vmatpush1.bf16.msra.mxu0 %v9168
        %13349 = vmatprep.subr.bf16.mxu0 %v9173
        %13350 = vmatpush1.bf16.msra.mxu0 %v9172
        %13351 = vmatprep.subr.bf16.mxu0 %v9177
        %13352 = vmatpush1.bf16.msra.mxu0 %v9176
        %13353 = vmatprep.subr.bf16.mxu0 %v9181
        %13354 = vmatpush1.bf16.msra.mxu0 %v9180
        %13355 = vmatprep.subr.bf16.mxu0 %v9185
        %13356 = vmatpush1.bf16.msra.mxu0 %v9184
        %13357 = vmatprep.subr.bf16.mxu0 %v9189
        %13358 = vmatpush1.bf16.msra.mxu0 %v9188
        %13359 = vmatprep.subr.bf16.mxu0 %v9193
        %13360 = vmatpush1.bf16.msra.mxu0 %v9192
        %13361 = vmatprep.subr.bf16.mxu0 %v9197
        %13362 = vmatpush1.bf16.msra.mxu0 %v9196
        %13363 = vmatprep.subr.bf16.mxu0 %v9201
        %13364 = vmatpush1.bf16.msra.mxu0 %v9200
        %13365 = vmatprep.subr.bf16.mxu0 %v9205
        %13366 = vmatpush1.bf16.msra.mxu0 %v9204
        %13367 = vmatprep.subr.bf16.mxu0 %v9209
        %13368 = vmatpush1.bf16.msra.mxu0 %v9208
        %13369 = vmatprep.subr.bf16.mxu0 %v9213
        %13370 = vmatpush1.bf16.msra.mxu0 %v9212
        %13371 = vmatprep.subr.bf16.mxu0 %v9217
        %13372 = vmatpush1.bf16.msra.mxu0 %v9216
        %13373 = vmatprep.subr.bf16.mxu0 %v9221
        %13374 = vmatpush1.bf16.msra.mxu0 %v9220
        %13375 = vmatprep.mubr.bf16.mxu0 %v2429
        %13376 = vmatmul.mubr.bf16.gmra.mrb[0].mxu0 %v2427
        %v13377 = vpop.f32.mrb[0].mxu0
        %v13378 = vadd.f32 %v13337, %v13377
        %v13379 = vpop.f32.mrb[0].mxu0
        %v13380 = vadd.f32 %v13339, %v13379
        %v13381 = vpop.f32.mrb[0].mxu0
        %v13382 = vpop.f32.mrb[0].mxu0
        %13383 = vdwg.mxu0
        %13384 = vmatprep.subr.bf16.mxu0 %v9225
        %13385 = vmatpush1.bf16.msra.mxu0 %v9224
        %13386 = vmatprep.subr.bf16.mxu0 %v9229
        %13387 = vmatpush1.bf16.msra.mxu0 %v9228
        %13388 = vmatprep.subr.bf16.mxu0 %v9233
        %13389 = vmatpush1.bf16.msra.mxu0 %v9232
        %13390 = vmatprep.subr.bf16.mxu0 %v9237
        %13391 = vmatpush1.bf16.msra.mxu0 %v9236
        %13392 = vmatprep.subr.bf16.mxu0 %v9241
        %13393 = vmatpush1.bf16.msra.mxu0 %v9240
        %13394 = vmatprep.subr.bf16.mxu0 %v9245
        %13395 = vmatpush1.bf16.msra.mxu0 %v9244
        %13396 = vmatprep.subr.bf16.mxu0 %v9249
        %13397 = vmatpush1.bf16.msra.mxu0 %v9248
        %13398 = vmatprep.subr.bf16.mxu0 %v9253
        %13399 = vmatpush1.bf16.msra.mxu0 %v9252
        %13400 = vmatprep.subr.bf16.mxu0 %v9257
        %13401 = vmatpush1.bf16.msra.mxu0 %v9256
        %13402 = vmatprep.subr.bf16.mxu0 %v9261
        %13403 = vmatpush1.bf16.msra.mxu0 %v9260
        %13404 = vmatprep.subr.bf16.mxu0 %v9265
        %13405 = vmatpush1.bf16.msra.mxu0 %v9264
        %13406 = vmatprep.subr.bf16.mxu0 %v9269
        %13407 = vmatpush1.bf16.msra.mxu0 %v9268
        %13408 = vmatprep.subr.bf16.mxu0 %v9273
        %13409 = vmatpush1.bf16.msra.mxu0 %v9272
        %13410 = vmatprep.subr.bf16.mxu0 %v9277
        %13411 = vmatpush1.bf16.msra.mxu0 %v9276
        %13412 = vmatprep.subr.bf16.mxu0 %v9281
        %13413 = vmatpush1.bf16.msra.mxu0 %v9280
        %13414 = vmatprep.subr.bf16.mxu0 %v9285
        %13415 = vmatpush1.bf16.msra.mxu0 %v9284
        %13416 = vmatprep.mubr.bf16.mxu0 %v2426
        %13417 = vmatmul.mubr.bf16.gmra.mrb[0].mxu0 %v2412
        %v13418 = vpop.f32.mrb[0].mxu0
        %v13419 = vadd.f32 %v13378, %v13418
        %v13420 = vpop.f32.mrb[0].mxu0
        %v13421 = vadd.f32 %v13380, %v13420
        %v13422 = vpop.f32.mrb[0].mxu0
        %v13423 = vpop.f32.mrb[0].mxu0
        %13424 = vdwg.mxu0
        %13425 = vmatprep.subr.bf16.mxu0 %v9289
        %13426 = vmatpush1.bf16.msra.mxu0 %v9288
        %13427 = vmatprep.subr.bf16.mxu0 %v9293
        %13428 = vmatpush1.bf16.msra.mxu0 %v9292
        %13429 = vmatprep.subr.bf16.mxu0 %v9297
        %13430 = vmatpush1.bf16.msra.mxu0 %v9296
        %13431 = vmatprep.subr.bf16.mxu0 %v9301
        %13432 = vmatpush1.bf16.msra.mxu0 %v9300
        %13433 = vmatprep.subr.bf16.mxu0 %v9305
        %13434 = vmatpush1.bf16.msra.mxu0 %v9304
        %13435 = vmatprep.subr.bf16.mxu0 %v9309
        %13436 = vmatpush1.bf16.msra.mxu0 %v9308
        %13437 = vmatprep.subr.bf16.mxu0 %v9313
        %13438 = vmatpush1.bf16.msra.mxu0 %v9312
        %13439 = vmatprep.subr.bf16.mxu0 %v9317
        %13440 = vmatpush1.bf16.msra.mxu0 %v9316
        %13441 = vmatprep.subr.bf16.mxu0 %v9321
        %13442 = vmatpush1.bf16.msra.mxu0 %v9320
        %13443 = vmatprep.subr.bf16.mxu0 %v9325
        %13444 = vmatpush1.bf16.msra.mxu0 %v9324
        %13445 = vmatprep.subr.bf16.mxu0 %v9329
        %13446 = vmatpush1.bf16.msra.mxu0 %v9328
        %13447 = vmatprep.subr.bf16.mxu0 %v9333
        %13448 = vmatpush1.bf16.msra.mxu0 %v9332
        %13449 = vmatprep.subr.bf16.mxu0 %v9337
        %13450 = vmatpush1.bf16.msra.mxu0 %v9336
        %13451 = vmatprep.subr.bf16.mxu0 %v9341
        %13452 = vmatpush1.bf16.msra.mxu0 %v9340
        %13453 = vmatprep.subr.bf16.mxu0 %v9345
        %13454 = vmatpush1.bf16.msra.mxu0 %v9344
        %13455 = vmatprep.subr.bf16.mxu0 %v9349
        %13456 = vmatpush1.bf16.msra.mxu0 %v9348
        %13457 = vmatprep.mubr.bf16.mxu0 %v2430
        %13458 = vmatmul.mubr.bf16.gmra.mrb[0].mxu0 %v2428
        %v13459 = vpop.f32.mrb[0].mxu0
        %v13460 = vadd.f32 %v13419, %v13459
        %v13461 = vpop.f32.mrb[0].mxu0
        %v13462 = vadd.f32 %v13421, %v13461
        %v13463 = vpop.f32.mrb[0].mxu0
        %v13464 = vpop.f32.mrb[0].mxu0
        %13465 = vdwg.mxu0
        %13466 = vmatprep.subr.bf16.mxu0 %v9353
        %13467 = vmatpush1.bf16.msra.mxu0 %v9352
        %13468 = vmatprep.subr.bf16.mxu0 %v9357
        %13469 = vmatpush1.bf16.msra.mxu0 %v9356
        %13470 = vmatprep.subr.bf16.mxu0 %v9361
        %13471 = vmatpush1.bf16.msra.mxu0 %v9360
        %13472 = vmatprep.subr.bf16.mxu0 %v9365
        %13473 = vmatpush1.bf16.msra.mxu0 %v9364
        %13474 = vmatprep.subr.bf16.mxu0 %v9369
        %13475 = vmatpush1.bf16.msra.mxu0 %v9368
        %13476 = vmatprep.subr.bf16.mxu0 %v9373
        %13477 = vmatpush1.bf16.msra.mxu0 %v9372
        %13478 = vmatprep.subr.bf16.mxu0 %v9377
        %13479 = vmatpush1.bf16.msra.mxu0 %v9376
        %13480 = vmatprep.subr.bf16.mxu0 %v9381
        %13481 = vmatpush1.bf16.msra.mxu0 %v9380
        %13482 = vmatprep.subr.bf16.mxu0 %v9385
        %13483 = vmatpush1.bf16.msra.mxu0 %v9384
        %13484 = vmatprep.subr.bf16.mxu0 %v9389
        %13485 = vmatpush1.bf16.msra.mxu0 %v9388
        %13486 = vmatprep.subr.bf16.mxu0 %v9393
        %13487 = vmatpush1.bf16.msra.mxu0 %v9392
        %13488 = vmatprep.subr.bf16.mxu0 %v9397
        %13489 = vmatpush1.bf16.msra.mxu0 %v9396
        %13490 = vmatprep.subr.bf16.mxu0 %v9401
        %13491 = vmatpush1.bf16.msra.mxu0 %v9400
        %13492 = vmatprep.subr.bf16.mxu0 %v9405
        %13493 = vmatpush1.bf16.msra.mxu0 %v9404
        %13494 = vmatprep.subr.bf16.mxu0 %v9409
        %13495 = vmatpush1.bf16.msra.mxu0 %v9408
        %13496 = vmatprep.subr.bf16.mxu0 %v9413
        %13497 = vmatpush1.bf16.msra.mxu0 %v9412
        %13498 = vmatprep.mubr.bf16.mxu0 %v2468
        %13499 = vmatmul.mubr.bf16.gmra.mrb[0].mxu0 %v2454
        %v13500 = vpop.f32.mrb[0].mxu0
        %v13501 = vadd.f32 %v13460, %v13500
        %v13502 = vpop.f32.mrb[0].mxu0
        %v13503 = vadd.f32 %v13462, %v13502
        %v13504 = vpop.f32.mrb[0].mxu0
        %v13505 = vpop.f32.mrb[0].mxu0
        %13506 = vdwg.mxu0
        %13507 = vmatprep.subr.bf16.mxu0 %v9417
        %13508 = vmatpush1.bf16.msra.mxu0 %v9416
        %13509 = vmatprep.subr.bf16.mxu0 %v9421
        %13510 = vmatpush1.bf16.msra.mxu0 %v9420
        %13511 = vmatprep.subr.bf16.mxu0 %v9425
        %13512 = vmatpush1.bf16.msra.mxu0 %v9424
        %13513 = vmatprep.subr.bf16.mxu0 %v9429
        %13514 = vmatpush1.bf16.msra.mxu0 %v9428
        %13515 = vmatprep.subr.bf16.mxu0 %v9433
        %13516 = vmatpush1.bf16.msra.mxu0 %v9432
        %13517 = vmatprep.subr.bf16.mxu0 %v9437
        %13518 = vmatpush1.bf16.msra.mxu0 %v9436
        %13519 = vmatprep.subr.bf16.mxu0 %v9441
        %13520 = vmatpush1.bf16.msra.mxu0 %v9440
        %13521 = vmatprep.subr.bf16.mxu0 %v9445
        %13522 = vmatpush1.bf16.msra.mxu0 %v9444
        %13523 = vmatprep.subr.bf16.mxu0 %v9449
        %13524 = vmatpush1.bf16.msra.mxu0 %v9448
        %13525 = vmatprep.subr.bf16.mxu0 %v9453
        %13526 = vmatpush1.bf16.msra.mxu0 %v9452
        %13527 = vmatprep.subr.bf16.mxu0 %v9457
        %13528 = vmatpush1.bf16.msra.mxu0 %v9456
        %13529 = vmatprep.subr.bf16.mxu0 %v9461
        %13530 = vmatpush1.bf16.msra.mxu0 %v9460
        %13531 = vmatprep.subr.bf16.mxu0 %v9465
        %13532 = vmatpush1.bf16.msra.mxu0 %v9464
        %13533 = vmatprep.subr.bf16.mxu0 %v9469
        %13534 = vmatpush1.bf16.msra.mxu0 %v9468
        %13535 = vmatprep.subr.bf16.mxu0 %v9473
        %13536 = vmatpush1.bf16.msra.mxu0 %v9472
        %13537 = vmatprep.subr.bf16.mxu0 %v9477
        %13538 = vmatpush1.bf16.msra.mxu0 %v9476
        %13539 = vmatprep.mubr.bf16.mxu0 %v2478
        %13540 = vmatmul.mubr.bf16.gmra.mrb[0].mxu0 %v2476
        %v13541 = vpop.f32.mrb[0].mxu0
        %v13542 = vadd.f32 %v13501, %v13541
        %v13543 = vpop.f32.mrb[0].mxu0
        %v13544 = vadd.f32 %v13503, %v13543
        %v13545 = vpop.f32.mrb[0].mxu0
        %v13546 = vpop.f32.mrb[0].mxu0
        %13547 = vdwg.mxu0
        %13548 = vmatprep.subr.bf16.mxu0 %v9481
        %13549 = vmatpush1.bf16.msra.mxu0 %v9480
        %13550 = vmatprep.subr.bf16.mxu0 %v9485
        %13551 = vmatpush1.bf16.msra.mxu0 %v9484
        %13552 = vmatprep.subr.bf16.mxu0 %v9489
        %13553 = vmatpush1.bf16.msra.mxu0 %v9488
        %13554 = vmatprep.subr.bf16.mxu0 %v9493
        %13555 = vmatpush1.bf16.msra.mxu0 %v9492
        %13556 = vmatprep.subr.bf16.mxu0 %v9497
        %13557 = vmatpush1.bf16.msra.mxu0 %v9496
        %13558 = vmatprep.subr.bf16.mxu0 %v9501
        %13559 = vmatpush1.bf16.msra.mxu0 %v9500
        %13560 = vmatprep.subr.bf16.mxu0 %v9505
        %13561 = vmatpush1.bf16.msra.mxu0 %v9504
        %13562 = vmatprep.subr.bf16.mxu0 %v9509
        %13563 = vmatpush1.bf16.msra.mxu0 %v9508
        %13564 = vmatprep.subr.bf16.mxu0 %v9513
        %13565 = vmatpush1.bf16.msra.mxu0 %v9512
        %13566 = vmatprep.subr.bf16.mxu0 %v9517
        %13567 = vmatpush1.bf16.msra.mxu0 %v9516
        %13568 = vmatprep.subr.bf16.mxu0 %v9521
        %13569 = vmatpush1.bf16.msra.mxu0 %v9520
        %13570 = vmatprep.subr.bf16.mxu0 %v9525
        %13571 = vmatpush1.bf16.msra.mxu0 %v9524
        %13572 = vmatprep.subr.bf16.mxu0 %v9529
        %13573 = vmatpush1.bf16.msra.mxu0 %v9528
        %13574 = vmatprep.subr.bf16.mxu0 %v9533
        %13575 = vmatpush1.bf16.msra.mxu0 %v9532
        %13576 = vmatprep.subr.bf16.mxu0 %v9537
        %13577 = vmatpush1.bf16.msra.mxu0 %v9536
        %13578 = vmatprep.subr.bf16.mxu0 %v9541
        %13579 = vmatpush1.bf16.msra.mxu0 %v9540
        %13580 = vmatprep.mubr.bf16.mxu0 %v2475
        %13581 = vmatmul.mubr.bf16.gmra.mrb[0].mxu0 %v2461
        %v13582 = vpop.f32.mrb[0].mxu0
        %v13583 = vadd.f32 %v13542, %v13582
        %v13584 = vpop.f32.mrb[0].mxu0
        %v13585 = vadd.f32 %v13544, %v13584
        %v13586 = vpop.f32.mrb[0].mxu0
        %v13587 = vpop.f32.mrb[0].mxu0
        %13588 = vdwg.mxu0
        %13589 = vmatprep.subr.bf16.mxu0 %v9545
        %13590 = vmatpush1.bf16.msra.mxu0 %v9544
        %13591 = vmatprep.subr.bf16.mxu0 %v9549
        %13592 = vmatpush1.bf16.msra.mxu0 %v9548
        %13593 = vmatprep.subr.bf16.mxu0 %v9553
        %13594 = vmatpush1.bf16.msra.mxu0 %v9552
        %13595 = vmatprep.subr.bf16.mxu0 %v9557
        %13596 = vmatpush1.bf16.msra.mxu0 %v9556
        %13597 = vmatprep.subr.bf16.mxu0 %v9561
        %13598 = vmatpush1.bf16.msra.mxu0 %v9560
        %13599 = vmatprep.subr.bf16.mxu0 %v9565
        %13600 = vmatpush1.bf16.msra.mxu0 %v9564
        %13601 = vmatprep.subr.bf16.mxu0 %v9569
        %13602 = vmatpush1.bf16.msra.mxu0 %v9568
        %13603 = vmatprep.subr.bf16.mxu0 %v9573
        %13604 = vmatpush1.bf16.msra.mxu0 %v9572
        %13605 = vmatprep.subr.bf16.mxu0 0
        %13606 = vmatpush1.bf16.msra.mxu0 0
        %13607 = vmatprep.subr.bf16.mxu0 0
        %13608 = vmatpush1.bf16.msra.mxu0 0
        %13609 = vmatprep.subr.bf16.mxu0 0
        %13610 = vmatpush1.bf16.msra.mxu0 0
        %13611 = vmatprep.subr.bf16.mxu0 0
        %13612 = vmatpush1.bf16.msra.mxu0 0
        %13613 = vmatprep.subr.bf16.mxu0 0
        %13614 = vmatpush1.bf16.msra.mxu0 0
        %13615 = vmatprep.subr.bf16.mxu0 0
        %13616 = vmatpush1.bf16.msra.mxu0 0
        %13617 = vmatprep.subr.bf16.mxu0 0
        %13618 = vmatpush1.bf16.msra.mxu0 0
        %13619 = vmatprep.subr.bf16.mxu0 0
        %13620 = vmatpush1.bf16.msra.mxu0 0
        %13621 = vmatprep.mubr.bf16.mxu0 0
        %13622 = vmatmul.mubr.bf16.gmra.mrb[0].mxu0 %v2477
        %v13623 = vpop.f32.mrb[0].mxu0
        %v13624 = vadd.f32 %v13583, %v13623
        %v13625 = vpop.f32.mrb[0].mxu0
        %v13626 = vadd.f32 %v13585, %v13625
        %v13627 = vpop.f32.mrb[0].mxu0
        %v13628 = vpop.f32.mrb[0].mxu0
        %13629 = vdwg.mxu0
        %v13634 = vcombine.low %v12476, %v12478
        %v13635 = vcombine.low %v13624, %v13626
        %v13637 = vunpack.c.l.s4 1983009808
        %v13638 = vunpack.c.0.s8 %v13637
        %v13639 = vlaneseq
        %v13640 = vshrl.u32 %v13639, 7
        %v13641 = vsub.s32 %v13638, %v13640
        %v13642 = vrot.slane %v13634, %v13641
        %v13644 = vunpack.c.l.s4 1983009808
        %v13645 = vunpack.c.0.s8 %v13644
        %v13646 = vlaneseq
        %v13647 = vshrl.u32 %v13646, 7
        %v13648 = vsub.s32 %v13645, %v13647
        %v13649 = vrot.slane %v13635, %v13648
        %v13650 = vcombine.low %v13642, %v13649
        %v13652 = vadd.f32 %v369, %v13650
        %13653 = vst [vmem:[#allocation2] sm:$0xff] %v13652
        %p13654 = scmp.eq.s32.totalorder %s25, 6
        // Predicated region
        $region77: #{tpu_custom_call.1} parent=47 // pred_check
          %p13655 = pneg %p13654
        $region78: #{tpu_custom_call.1} parent=47 // pred_check_branch
          %13657 = sbr.rel (%p13655) target = $region80
        $region79: #{tpu_custom_call.1} parent=47 // pred_region
          %v13658 = vld [vmem:[#allocation2] sm:$0xff]
          %v13659 = vld [vmem:[#allocation8] sm:$0xf]
          %v13661 = vlaneseq
          %v13662 = vshrl.u32 %v13661, 7
          %v13663 = vsub.s32 0, %v13662
          %v13664 = vrot.slane %v13659, %v13663
          %v13665 = vlaneseq
          %v13666 = vshrl.u32 %v13665, 7
          %v13667 = vsub.s32 1, %v13666
          %v13668 = vrot.slane %v13659, %v13667
          %v13669 = vlaneseq
          %v13670 = vshrl.u32 %v13669, 7
          %v13671 = vsub.s32 2, %v13670
          %v13672 = vrot.slane %v13659, %v13671
          %v13673 = vlaneseq
          %v13674 = vshrl.u32 %v13673, 7
          %v13675 = vsub.s32 3, %v13674
          %v13676 = vrot.slane %v13659, %v13675
          %v13677 = vcombine.low %v13664, %v13668
          %v13678 = vcombine.low %v13672, %v13676
          %v13680 = vunpack.c.l.s4 1983009808
          %v13681 = vunpack.c.0.s8 %v13680
          %v13682 = vlaneseq
          %v13683 = vshrl.u32 %v13682, 7
          %v13684 = vsub.s32 %v13681, %v13683
          %v13685 = vrot.slane %v13677, %v13684
          %v13687 = vunpack.c.l.s4 1983009808
          %v13688 = vunpack.c.0.s8 %v13687
          %v13689 = vlaneseq
          %v13690 = vshrl.u32 %v13689, 7
          %v13691 = vsub.s32 %v13688, %v13690
          %v13692 = vrot.slane %v13678, %v13691
          %v13693 = vcombine.low %v13685, %v13692
          %v13695 = vadd.f32 %v13658, %v13693
          %v13696 = vmax.f32 %v13695, 0.0
          %v13697 = vld [vmem:[#allocation9] sm:$0xff]
          %v13698 = vld [vmem:[#allocation9 + $0x8] sm:$0xff]
          %v13699 = vld [vmem:[#allocation9 + $0x10] sm:$0xff]
          %v13700 = vld [vmem:[#allocation9 + $0x18] sm:$0xff]
          %v13701 = vld [vmem:[#allocation9 + $0x20] sm:$0xff]
          %v13702 = vld [vmem:[#allocation9 + $0x28] sm:$0xff]
          %v13703 = vld [vmem:[#allocation9 + $0x30] sm:$0xff]
          %v13704 = vld [vmem:[#allocation9 + $0x38] sm:$0xff]
          %v13705 = vld [vmem:[#allocation9 + $0x40] sm:$0xff]
          %v13706 = vld [vmem:[#allocation9 + $0x48] sm:$0xff]
          %v13707 = vld [vmem:[#allocation9 + $0x50] sm:$0xff]
          %v13708 = vld [vmem:[#allocation9 + $0x58] sm:$0xff]
          %v13709 = vld [vmem:[#allocation9 + $0x60] sm:$0xff]
          %v13710 = vld [vmem:[#allocation9 + $0x68] sm:$0xff]
          %v13711 = vld [vmem:[#allocation9 + $0x70] sm:$0xff]
          %v13712 = vld [vmem:[#allocation9 + $0x78] sm:$0xff]
          %v13713 = vld [vmem:[#allocation9 + $0x80] sm:$0xff]
          %v13714 = vld [vmem:[#allocation9 + $0x88] sm:$0xff]
          %v13715 = vld [vmem:[#allocation9 + $0x90] sm:$0xff]
          %v13716 = vld [vmem:[#allocation9 + $0x98] sm:$0xff]
          %v13717 = vld [vmem:[#allocation9 + $0xa0] sm:$0xff]
          %v13718 = vld [vmem:[#allocation9 + $0xa8] sm:$0xff]
          %v13719 = vld [vmem:[#allocation9 + $0xb0] sm:$0xff]
          %v13720 = vld [vmem:[#allocation9 + $0xb8] sm:$0xff]
          %v13721 = vld [vmem:[#allocation9 + $0xc0] sm:$0xff]
          %v13722 = vld [vmem:[#allocation9 + $0xc8] sm:$0xff]
          %v13723 = vld [vmem:[#allocation9 + $0xd0] sm:$0xff]
          %v13724 = vld [vmem:[#allocation9 + $0xd8] sm:$0xff]
          %v13725 = vld [vmem:[#allocation9 + $0xe0] sm:$0xff]
          %v13726 = vld [vmem:[#allocation9 + $0xe8] sm:$0xff]
          %v13727 = vld [vmem:[#allocation9 + $0xf0] sm:$0xff]
          %v13728 = vld [vmem:[#allocation9 + $0xf8] sm:$0xff]
          %v13729 = vld [vmem:[#allocation9 + $0x100] sm:$0xff]
          %v13730 = vld [vmem:[#allocation9 + $0x108] sm:$0xff]
          %v13731 = vld [vmem:[#allocation9 + $0x110] sm:$0xff]
          %v13732 = vld [vmem:[#allocation9 + $0x118] sm:$0xff]
          %v13733 = vld [vmem:[#allocation9 + $0x120] sm:$0xff]
          %v13734 = vld [vmem:[#allocation9 + $0x128] sm:$0xff]
          %v13735 = vld [vmem:[#allocation9 + $0x130] sm:$0xff]
          %v13736 = vld [vmem:[#allocation9 + $0x138] sm:$0xff]
          %v13737 = vld [vmem:[#allocation9 + $0x140] sm:$0xff]
          %v13738 = vld [vmem:[#allocation9 + $0x148] sm:$0xff]
          %v13739 = vld [vmem:[#allocation9 + $0x150] sm:$0xff]
          %v13740 = vld [vmem:[#allocation9 + $0x158] sm:$0xff]
          %v13741 = vld [vmem:[#allocation9 + $0x160] sm:$0xff]
          %v13742 = vld [vmem:[#allocation9 + $0x168] sm:$0xff]
          %v13743 = vld [vmem:[#allocation9 + $0x170] sm:$0xff]
          %v13744 = vld [vmem:[#allocation9 + $0x178] sm:$0xff]
          %v13745 = vld [vmem:[#allocation9 + $0x180] sm:$0xff]
          %v13746 = vld [vmem:[#allocation9 + $0x188] sm:$0xff]
          %v13747 = vld [vmem:[#allocation9 + $0x190] sm:$0xff]
          %v13748 = vld [vmem:[#allocation9 + $0x198] sm:$0xff]
          %v13749 = vld [vmem:[#allocation9 + $0x1a0] sm:$0xff]
          %v13750 = vld [vmem:[#allocation9 + $0x1a8] sm:$0xff]
          %v13751 = vld [vmem:[#allocation9 + $0x1b0] sm:$0xff]
          %v13752 = vld [vmem:[#allocation9 + $0x1b8] sm:$0xff]
          %v13753 = vld [vmem:[#allocation9 + $0x1c0] sm:$0xff]
          %v13754 = vld [vmem:[#allocation9 + $0x1c8] sm:$0xff]
          %v13755 = vld [vmem:[#allocation9 + $0x1d0] sm:$0xff]
          %v13756 = vld [vmem:[#allocation9 + $0x1d8] sm:$0xff]
          %v13757 = vld [vmem:[#allocation9 + $0x1e0] sm:$0xff]
          %v13758 = vld [vmem:[#allocation9 + $0x1e8] sm:$0xff]
          %v13759 = vld [vmem:[#allocation9 + $0x1f0] sm:$0xff]
          %v13760 = vld [vmem:[#allocation9 + $0x1f8] sm:$0xff]
          %v13761 = vld [vmem:[#allocation9 + $0x200] sm:$0xff]
          %v13762 = vld [vmem:[#allocation9 + $0x208] sm:$0xff]
          %v13763 = vld [vmem:[#allocation9 + $0x210] sm:$0xff]
          %v13764 = vld [vmem:[#allocation9 + $0x218] sm:$0xff]
          %v13765 = vld [vmem:[#allocation9 + $0x220] sm:$0xff]
          %v13766 = vld [vmem:[#allocation9 + $0x228] sm:$0xff]
          %v13767 = vld [vmem:[#allocation9 + $0x230] sm:$0xff]
          %v13768 = vld [vmem:[#allocation9 + $0x238] sm:$0xff]
          %v13769 = vld [vmem:[#allocation9 + $0x240] sm:$0xff]
          %v13770 = vld [vmem:[#allocation9 + $0x248] sm:$0xff]
          %v13771 = vld [vmem:[#allocation9 + $0x250] sm:$0xff]
          %v13772 = vld [vmem:[#allocation9 + $0x258] sm:$0xff]
          %v13773 = vld [vmem:[#allocation9 + $0x260] sm:$0xff]
          %v13774 = vld [vmem:[#allocation9 + $0x268] sm:$0xff]
          %v13775 = vld [vmem:[#allocation9 + $0x270] sm:$0xff]
          %v13776 = vld [vmem:[#allocation9 + $0x278] sm:$0xff]
          %v13777 = vld [vmem:[#allocation9 + $0x280] sm:$0xff]
          %v13778 = vld [vmem:[#allocation9 + $0x288] sm:$0xff]
          %v13779 = vld [vmem:[#allocation9 + $0x290] sm:$0xff]
          %v13780 = vld [vmem:[#allocation9 + $0x298] sm:$0xff]
          %v13781 = vld [vmem:[#allocation9 + $0x2a0] sm:$0xff]
          %v13782 = vld [vmem:[#allocation9 + $0x2a8] sm:$0xff]
          %v13783 = vld [vmem:[#allocation9 + $0x2b0] sm:$0xff]
          %v13784 = vld [vmem:[#allocation9 + $0x2b8] sm:$0xff]
          %v13785 = vld [vmem:[#allocation9 + $0x2c0] sm:$0xff]
          %v13786 = vld [vmem:[#allocation9 + $0x2c8] sm:$0xff]
          %v13787 = vld [vmem:[#allocation9 + $0x2d0] sm:$0xff]
          %v13788 = vld [vmem:[#allocation9 + $0x2d8] sm:$0xff]
          %v13789 = vld [vmem:[#allocation9 + $0x2e0] sm:$0xff]
          %v13790 = vld [vmem:[#allocation9 + $0x2e8] sm:$0xff]
          %v13791 = vld [vmem:[#allocation9 + $0x2f0] sm:$0xff]
          %v13792 = vld [vmem:[#allocation9 + $0x2f8] sm:$0xff]
          %v13793 = vld [vmem:[#allocation9 + $0x300] sm:$0xff]
          %v13794 = vld [vmem:[#allocation9 + $0x308] sm:$0xff]
          %v13795 = vld [vmem:[#allocation9 + $0x310] sm:$0xff]
          %v13796 = vld [vmem:[#allocation9 + $0x318] sm:$0xff]
          %v13797 = vld [vmem:[#allocation9 + $0x320] sm:$0xff]
          %v13798 = vld [vmem:[#allocation9 + $0x328] sm:$0xff]
          %v13799 = vld [vmem:[#allocation9 + $0x330] sm:$0xff]
          %v13800 = vld [vmem:[#allocation9 + $0x338] sm:$0xff]
          %v13801 = vld [vmem:[#allocation9 + $0x340] sm:$0xff]
          %v13802 = vld [vmem:[#allocation9 + $0x348] sm:$0xff]
          %v13803 = vld [vmem:[#allocation9 + $0x350] sm:$0xff]
          %v13804 = vld [vmem:[#allocation9 + $0x358] sm:$0xff]
          %v13805 = vld [vmem:[#allocation9 + $0x360] sm:$0xff]
          %v13806 = vld [vmem:[#allocation9 + $0x368] sm:$0xff]
          %v13807 = vld [vmem:[#allocation9 + $0x370] sm:$0xff]
          %v13808 = vld [vmem:[#allocation9 + $0x378] sm:$0xff]
          %v13809 = vld [vmem:[#allocation9 + $0x380] sm:$0xff]
          %v13810 = vld [vmem:[#allocation9 + $0x388] sm:$0xff]
          %v13811 = vld [vmem:[#allocation9 + $0x390] sm:$0xff]
          %v13812 = vld [vmem:[#allocation9 + $0x398] sm:$0xff]
          %v13813 = vld [vmem:[#allocation9 + $0x3a0] sm:$0xff]
          %v13814 = vld [vmem:[#allocation9 + $0x3a8] sm:$0xff]
          %v13815 = vld [vmem:[#allocation9 + $0x3b0] sm:$0xff]
          %v13816 = vld [vmem:[#allocation9 + $0x3b8] sm:$0xff]
          %v13817 = vld [vmem:[#allocation9 + $0x3c0] sm:$0xff]
          %v13818 = vld [vmem:[#allocation9 + $0x3c8] sm:$0xff]
          %v13819 = vld [vmem:[#allocation9 + $0x3d0] sm:$0xff]
          %v13820 = vld [vmem:[#allocation9 + $0x3d8] sm:$0xff]
          %v13821 = vld [vmem:[#allocation9 + $0x3e0] sm:$0xff]
          %v13822 = vld [vmem:[#allocation9 + $0x3e8] sm:$0xff]
          %v13823 = vld [vmem:[#allocation9 + $0x3f0] sm:$0xff]
          %v13824 = vld [vmem:[#allocation9 + $0x3f8] sm:$0xff]
          %v13825 = vld [vmem:[#allocation11] sm:$0x3]
          %v13827 = vlaneseq
          %v13828 = vshrl.u32 %v13827, 7
          %v13829 = vsub.s32 0, %v13828
          %v13830 = vrot.slane %v13825, %v13829
          %v13831 = vlaneseq
          %v13832 = vshrl.u32 %v13831, 7
          %v13833 = vsub.s32 1, %v13832
          %v13834 = vrot.slane %v13825, %v13833
          %v13838 = vcombine.high %v13696, %v13696
          %v13840 = vunpack.c.l.s4 1983009808
          %v13841 = vunpack.c.0.s8 %v13840
          %v13842 = vlaneseq
          %v13843 = vshrl.u32 %v13842, 7
          %v13844 = vsub.s32 %v13841, %v13843
          %v13845 = vrot.slane %v13696, %v13844
          %v13847 = vunpack.c.l.s4 1983009808
          %v13848 = vunpack.c.0.s8 %v13847
          %v13849 = vlaneseq
          %v13850 = vshrl.u32 %v13849, 7
          %v13851 = vsub.s32 %v13848, %v13850
          %v13852 = vrot.slane %v13838, %v13851
          %v13853 = vcombine.high %v13845, %v13845
          %v13854 = vcombine.high %v13852, %v13852
          %13859 = vmatprep.subr.mxu0 %v13698
          %13860 = vmatpush1.msra.mxu0 %v13697
          %13861 = vmatprep.subr.mxu0 %v13700
          %13862 = vmatpush1.msra.mxu0 %v13699
          %13863 = vmatprep.subr.mxu0 %v13702
          %13864 = vmatpush1.msra.mxu0 %v13701
          %13865 = vmatprep.subr.mxu0 %v13704
          %13866 = vmatpush1.msra.mxu0 %v13703
          %13867 = vmatprep.subr.mxu0 %v13706
          %13868 = vmatpush1.msra.mxu0 %v13705
          %13869 = vmatprep.subr.mxu0 %v13708
          %13870 = vmatpush1.msra.mxu0 %v13707
          %13871 = vmatprep.subr.mxu0 %v13710
          %13872 = vmatpush1.msra.mxu0 %v13709
          %13873 = vmatprep.subr.mxu0 %v13712
          %13874 = vmatpush1.msra.mxu0 %v13711
          %13875 = vmatprep.subr.mxu0 %v13714
          %13876 = vmatpush1.msra.mxu0 %v13713
          %13877 = vmatprep.subr.mxu0 %v13716
          %13878 = vmatpush1.msra.mxu0 %v13715
          %13879 = vmatprep.subr.mxu0 %v13718
          %13880 = vmatpush1.msra.mxu0 %v13717
          %13881 = vmatprep.subr.mxu0 %v13720
          %13882 = vmatpush1.msra.mxu0 %v13719
          %13883 = vmatprep.subr.mxu0 %v13722
          %13884 = vmatpush1.msra.mxu0 %v13721
          %13885 = vmatprep.subr.mxu0 %v13724
          %13886 = vmatpush1.msra.mxu0 %v13723
          %13887 = vmatprep.subr.mxu0 %v13726
          %13888 = vmatpush1.msra.mxu0 %v13725
          %13889 = vmatprep.subr.mxu0 %v13728
          %13890 = vmatpush1.msra.mxu0 %v13727
          %13891 = vmatprep.subr.mxu0 %v13730
          %13892 = vmatpush1.msra.mxu0 %v13729
          %13893 = vmatprep.subr.mxu0 %v13732
          %13894 = vmatpush1.msra.mxu0 %v13731
          %13895 = vmatprep.subr.mxu0 %v13734
          %13896 = vmatpush1.msra.mxu0 %v13733
          %13897 = vmatprep.subr.mxu0 %v13736
          %13898 = vmatpush1.msra.mxu0 %v13735
          %13899 = vmatprep.subr.mxu0 %v13738
          %13900 = vmatpush1.msra.mxu0 %v13737
          %13901 = vmatprep.subr.mxu0 %v13740
          %13902 = vmatpush1.msra.mxu0 %v13739
          %13903 = vmatprep.subr.mxu0 %v13742
          %13904 = vmatpush1.msra.mxu0 %v13741
          %13905 = vmatprep.subr.mxu0 %v13744
          %13906 = vmatpush1.msra.mxu0 %v13743
          %13907 = vmatprep.subr.mxu0 %v13746
          %13908 = vmatpush1.msra.mxu0 %v13745
          %13909 = vmatprep.subr.mxu0 %v13748
          %13910 = vmatpush1.msra.mxu0 %v13747
          %13911 = vmatprep.subr.mxu0 %v13750
          %13912 = vmatpush1.msra.mxu0 %v13749
          %13913 = vmatprep.subr.mxu0 %v13752
          %13914 = vmatpush1.msra.mxu0 %v13751
          %13915 = vmatprep.subr.mxu0 %v13754
          %13916 = vmatpush1.msra.mxu0 %v13753
          %13917 = vmatprep.subr.mxu0 %v13756
          %13918 = vmatpush1.msra.mxu0 %v13755
          %13919 = vmatprep.subr.mxu0 %v13758
          %13920 = vmatpush1.msra.mxu0 %v13757
          %13921 = vmatprep.subr.mxu0 %v13760
          %13922 = vmatpush1.msra.mxu0 %v13759
          %13923 = vmatprep.mubr.f32.mxu0 %v13853
          %13924 = vmatmul.mubr.f32.gmra.mrb[0].mxu0 %v13845
          %v13925 = vpop.f32.mrb[0].mxu0
          %v13926 = vadd.f32 %v13830, %v13925
          %v13927 = vpop.f32.mrb[0].mxu0
          %v13928 = vadd.f32 %v13834, %v13927
          %13929 = vdwg.mxu0
          %13930 = vmatprep.subr.mxu0 %v13762
          %13931 = vmatpush1.msra.mxu0 %v13761
          %13932 = vmatprep.subr.mxu0 %v13764
          %13933 = vmatpush1.msra.mxu0 %v13763
          %13934 = vmatprep.subr.mxu0 %v13766
          %13935 = vmatpush1.msra.mxu0 %v13765
          %13936 = vmatprep.subr.mxu0 %v13768
          %13937 = vmatpush1.msra.mxu0 %v13767
          %13938 = vmatprep.subr.mxu0 %v13770
          %13939 = vmatpush1.msra.mxu0 %v13769
          %13940 = vmatprep.subr.mxu0 %v13772
          %13941 = vmatpush1.msra.mxu0 %v13771
          %13942 = vmatprep.subr.mxu0 %v13774
          %13943 = vmatpush1.msra.mxu0 %v13773
          %13944 = vmatprep.subr.mxu0 %v13776
          %13945 = vmatpush1.msra.mxu0 %v13775
          %13946 = vmatprep.subr.mxu0 %v13778
          %13947 = vmatpush1.msra.mxu0 %v13777
          %13948 = vmatprep.subr.mxu0 %v13780
          %13949 = vmatpush1.msra.mxu0 %v13779
          %13950 = vmatprep.subr.mxu0 %v13782
          %13951 = vmatpush1.msra.mxu0 %v13781
          %13952 = vmatprep.subr.mxu0 %v13784
          %13953 = vmatpush1.msra.mxu0 %v13783
          %13954 = vmatprep.subr.mxu0 %v13786
          %13955 = vmatpush1.msra.mxu0 %v13785
          %13956 = vmatprep.subr.mxu0 %v13788
          %13957 = vmatpush1.msra.mxu0 %v13787
          %13958 = vmatprep.subr.mxu0 %v13790
          %13959 = vmatpush1.msra.mxu0 %v13789
          %13960 = vmatprep.subr.mxu0 %v13792
          %13961 = vmatpush1.msra.mxu0 %v13791
          %13962 = vmatprep.subr.mxu0 %v13794
          %13963 = vmatpush1.msra.mxu0 %v13793
          %13964 = vmatprep.subr.mxu0 %v13796
          %13965 = vmatpush1.msra.mxu0 %v13795
          %13966 = vmatprep.subr.mxu0 %v13798
          %13967 = vmatpush1.msra.mxu0 %v13797
          %13968 = vmatprep.subr.mxu0 %v13800
          %13969 = vmatpush1.msra.mxu0 %v13799
          %13970 = vmatprep.subr.mxu0 %v13802
          %13971 = vmatpush1.msra.mxu0 %v13801
          %13972 = vmatprep.subr.mxu0 %v13804
          %13973 = vmatpush1.msra.mxu0 %v13803
          %13974 = vmatprep.subr.mxu0 %v13806
          %13975 = vmatpush1.msra.mxu0 %v13805
          %13976 = vmatprep.subr.mxu0 %v13808
          %13977 = vmatpush1.msra.mxu0 %v13807
          %13978 = vmatprep.subr.mxu0 %v13810
          %13979 = vmatpush1.msra.mxu0 %v13809
          %13980 = vmatprep.subr.mxu0 %v13812
          %13981 = vmatpush1.msra.mxu0 %v13811
          %13982 = vmatprep.subr.mxu0 %v13814
          %13983 = vmatpush1.msra.mxu0 %v13813
          %13984 = vmatprep.subr.mxu0 %v13816
          %13985 = vmatpush1.msra.mxu0 %v13815
          %13986 = vmatprep.subr.mxu0 %v13818
          %13987 = vmatpush1.msra.mxu0 %v13817
          %13988 = vmatprep.subr.mxu0 %v13820
          %13989 = vmatpush1.msra.mxu0 %v13819
          %13990 = vmatprep.subr.mxu0 %v13822
          %13991 = vmatpush1.msra.mxu0 %v13821
          %13992 = vmatprep.subr.mxu0 %v13824
          %13993 = vmatpush1.msra.mxu0 %v13823
          %13994 = vmatprep.mubr.f32.mxu0 %v13854
          %13995 = vmatmul.mubr.f32.gmra.mrb[0].mxu0 %v13852
          %v13996 = vpop.f32.mrb[0].mxu0
          %v13997 = vadd.f32 %v13926, %v13996
          %v13998 = vpop.f32.mrb[0].mxu0
          %v13999 = vadd.f32 %v13928, %v13998
          %14000 = vdwg.mxu0
          %v14001 = vmax.f32 %v13997, 0.0
          %v14002 = vmax.f32 %v13999, 0.0
          %v14003 = vld [vmem:[%s5] sm:$0xff]
          %v14004 = vld [vmem:[%s5 + $0x8] sm:$0xff]
          %v14005 = vld [vmem:[%s5 + $0x10] sm:$0xff]
          %v14006 = vld [vmem:[%s5 + $0x18] sm:$0xff]
          %v14007 = vld [vmem:[%s5 + $0x20] sm:$0xff]
          %v14008 = vld [vmem:[%s5 + $0x28] sm:$0xff]
          %v14009 = vld [vmem:[%s5 + $0x30] sm:$0xff]
          %v14010 = vld [vmem:[%s5 + $0x38] sm:$0xff]
          %v14011 = vld [vmem:[%s5 + $0x40] sm:$0xff]
          %v14012 = vld [vmem:[%s5 + $0x48] sm:$0xff]
          %v14013 = vld [vmem:[%s5 + $0x50] sm:$0xff]
          %v14014 = vld [vmem:[%s5 + $0x58] sm:$0xff]
          %v14015 = vld [vmem:[%s5 + $0x60] sm:$0xff]
          %v14016 = vld [vmem:[%s5 + $0x68] sm:$0xff]
          %v14017 = vld [vmem:[%s5 + $0x70] sm:$0xff]
          %v14018 = vld [vmem:[%s5 + $0x78] sm:$0xff]
          %v14019 = vld [vmem:[%s5 + $0x80] sm:$0xff]
          %v14020 = vld [vmem:[%s5 + $0x88] sm:$0xff]
          %v14021 = vld [vmem:[%s5 + $0x90] sm:$0xff]
          %v14022 = vld [vmem:[%s5 + $0x98] sm:$0xff]
          %v14023 = vld [vmem:[%s5 + $0xa0] sm:$0xff]
          %v14024 = vld [vmem:[%s5 + $0xa8] sm:$0xff]
          %v14025 = vld [vmem:[%s5 + $0xb0] sm:$0xff]
          %v14026 = vld [vmem:[%s5 + $0xb8] sm:$0xff]
          %v14027 = vld [vmem:[%s5 + $0xc0] sm:$0xff]
          %v14028 = vld [vmem:[%s5 + $0xc8] sm:$0xff]
          %v14029 = vld [vmem:[%s5 + $0xd0] sm:$0xff]
          %v14030 = vld [vmem:[%s5 + $0xd8] sm:$0xff]
          %v14031 = vld [vmem:[%s5 + $0xe0] sm:$0xff]
          %v14032 = vld [vmem:[%s5 + $0xe8] sm:$0xff]
          %v14033 = vld [vmem:[%s5 + $0xf0] sm:$0xff]
          %v14034 = vld [vmem:[%s5 + $0xf8] sm:$0xff]
          %v14035 = vld [vmem:[#allocation12] sm:$0x1]
          %v14037 = vlaneseq
          %v14038 = vshrl.u32 %v14037, 7
          %v14039 = vsub.s32 0, %v14038
          %v14040 = vrot.slane %v14035, %v14039
          %14042 = vmatprep.subr.mxu0 0.0
          %14043 = vmatpush1.msra.mxu0 %v14003
          %14044 = vmatprep.subr.mxu0 0.0
          %14045 = vmatpush1.msra.mxu0 %v14004
          %14046 = vmatprep.subr.mxu0 0.0
          %14047 = vmatpush1.msra.mxu0 %v14005
          %14048 = vmatprep.subr.mxu0 0.0
          %14049 = vmatpush1.msra.mxu0 %v14006
          %14050 = vmatprep.subr.mxu0 0.0
          %14051 = vmatpush1.msra.mxu0 %v14007
          %14052 = vmatprep.subr.mxu0 0.0
          %14053 = vmatpush1.msra.mxu0 %v14008
          %14054 = vmatprep.subr.mxu0 0.0
          %14055 = vmatpush1.msra.mxu0 %v14009
          %14056 = vmatprep.subr.mxu0 0.0
          %14057 = vmatpush1.msra.mxu0 %v14010
          %14058 = vmatprep.subr.mxu0 0.0
          %14059 = vmatpush1.msra.mxu0 %v14011
          %14060 = vmatprep.subr.mxu0 0.0
          %14061 = vmatpush1.msra.mxu0 %v14012
          %14062 = vmatprep.subr.mxu0 0.0
          %14063 = vmatpush1.msra.mxu0 %v14013
          %14064 = vmatprep.subr.mxu0 0.0
          %14065 = vmatpush1.msra.mxu0 %v14014
          %14066 = vmatprep.subr.mxu0 0.0
          %14067 = vmatpush1.msra.mxu0 %v14015
          %14068 = vmatprep.subr.mxu0 0.0
          %14069 = vmatpush1.msra.mxu0 %v14016
          %14070 = vmatprep.subr.mxu0 0.0
          %14071 = vmatpush1.msra.mxu0 %v14017
          %14072 = vmatprep.subr.mxu0 0.0
          %14073 = vmatpush1.msra.mxu0 %v14018
          %14074 = vmatprep.subr.mxu0 0.0
          %14075 = vmatpush1.msra.mxu0 %v14019
          %14076 = vmatprep.subr.mxu0 0.0
          %14077 = vmatpush1.msra.mxu0 %v14020
          %14078 = vmatprep.subr.mxu0 0.0
          %14079 = vmatpush1.msra.mxu0 %v14021
          %14080 = vmatprep.subr.mxu0 0.0
          %14081 = vmatpush1.msra.mxu0 %v14022
          %14082 = vmatprep.subr.mxu0 0.0
          %14083 = vmatpush1.msra.mxu0 %v14023
          %14084 = vmatprep.subr.mxu0 0.0
          %14085 = vmatpush1.msra.mxu0 %v14024
          %14086 = vmatprep.subr.mxu0 0.0
          %14087 = vmatpush1.msra.mxu0 %v14025
          %14088 = vmatprep.subr.mxu0 0.0
          %14089 = vmatpush1.msra.mxu0 %v14026
          %14090 = vmatprep.subr.mxu0 0.0
          %14091 = vmatpush1.msra.mxu0 %v14027
          %14092 = vmatprep.subr.mxu0 0.0
          %14093 = vmatpush1.msra.mxu0 %v14028
          %14094 = vmatprep.subr.mxu0 0.0
          %14095 = vmatpush1.msra.mxu0 %v14029
          %14096 = vmatprep.subr.mxu0 0.0
          %14097 = vmatpush1.msra.mxu0 %v14030
          %14098 = vmatprep.subr.mxu0 0.0
          %14099 = vmatpush1.msra.mxu0 %v14031
          %14100 = vmatprep.subr.mxu0 0.0
          %14101 = vmatpush1.msra.mxu0 %v14032
          %14102 = vmatprep.subr.mxu0 0.0
          %14103 = vmatpush1.msra.mxu0 %v14033
          %14104 = vmatprep.subr.mxu0 0.0
          %14105 = vmatpush1.msra.mxu0 %v14034
          %14106 = vmatprep.mubr.f32.mxu0 %v14002
          %14107 = vmatmul.mubr.f32.gmra.mrb[0].mxu0 %v14001
          %v14108 = vpop.f32.mrb[0].mxu0
          %v14109 = vadd.f32 %v14040, %v14108
          %v14110 = vpop.f32.mrb[0].mxu0
          %14111 = vdwg.mxu0
          %vm14112 = vcmask 9216
          %14113 = vst.msk [vmem:[#allocation14] sm:$0x3] %vm14112, %v14109
        $region80: #{tpu_custom_call.1} parent=47 // pred_fallthru
          _
        // Predicated region
        $region81: #{tpu_custom_call.1} parent=47 // pred_check
          %p14114 = pneg %p190
        $region82: #{tpu_custom_call.1} parent=47 // pred_check_branch
          %14116 = sbr.rel (%p14114) target = $region84
        $region83: #{tpu_custom_call.1} parent=47 // pred_region
          %s14118 = ssub.s32 32, 32
          %14119 = vsyncadd [#allocation5], %s14118
          %s14121 = sshll.u32 [#allocation14], 4
          %s14122 = int_to_ptr.vmem [resolvable:$true] %s14121
          %14124 = dma.vmem_to_hbm [thread:$0]  %s14122, 32, %s7, [#allocation5]
        $region84: #{tpu_custom_call.1} parent=47 // pred_fallthru
          _
        // Predicated region
        $region85: #{tpu_custom_call.1} parent=47 // pred_check
          %p14125 = pneg %p190
        $region86: #{tpu_custom_call.1} parent=47 // pred_check_branch
          %14127 = sbr.rel (%p14125) target = $region88
        $region87: #{tpu_custom_call.1} parent=47 // pred_region
          %14128 = dma.done [#allocation5], 32
        $region88: #{tpu_custom_call.1} parent=47 // pred_fallthru
          _
      $region48: #{tpu_custom_call.1} parent=5 // pred_fallthru
        _
      %p14129 = scmp.le.s32.totalorder 2, %s20
      // Predicated region
      $region89: #{tpu_custom_call.1} parent=5 // pred_check
        %p14130 = pneg %p14129
      $region90: #{tpu_custom_call.1} parent=5 // pred_check_branch
        %14132 = sbr.rel (%p14130) target = $region92
      $region91: #{tpu_custom_call.1} parent=5 // pred_region
        %s14133 = ssub.s32 %s20, 2
      $region92: #{tpu_custom_call.1} parent=5 // pred_fallthru
        _
    $region6: #{tpu_custom_call.1} parent=1 // loop_footer
      %s24 = sadd.s32 1, %s20
    $region7: #{tpu_custom_call.1} parent=1 // loop_footer_branch
      %19 = sbr.rel target = $region3
    $region8: #{tpu_custom_call.1} parent=1 // loop_exit
      _
    %14134 = vsyncpa [#allocation4], 1
    %s14135 = scalar_lea.sflag [#allocation4], 1
    %14136 = vsyncpa %s14135, 1
    %14137 = vsyncpa [#allocation7], 1
    %s14138 = scalar_lea.sflag [#allocation7], 1
    %14139 = vsyncpa %s14138, 1
    %14140 = vsyncpa [#allocation10], 1
    %14141 = vsyncpa [#allocation13], 1
    %14142 = vsyncpa [#allocation5], 1
    %s14143 = scalar_lea.sflag [#allocation5], 1
    %14144 = vsyncpa %s14143, 1

</llo_original>
